<compile_context>
chip_gen: v5e
topology: v5e:2x2
jax: 0.10.0
libtpu: 0.0.40
codegen_flags: <defaults>
</compile_context>

<pallas_src>
import jax
import jax.numpy as jnp
import numpy as np
from jax.experimental import pallas as pl
from jax.experimental.pallas import tpu as pltpu

EPS = 1e-5


def _make_recurrent_cbr_kernel(N, H, W, C, Cp, G, steps):
    """Builds the fused (t+1)-step CBR recurrence kernel for fixed shapes."""
    Wrow = W + 2                      # padded row length (pixels)
    Mpad = N * (H + 2) * Wrow         # rows of the flat, spatially-padded slab
    Minner = N * H * W                # real (non-halo) pixels -> BN denominator
    inv_m = 1.0 / float(Minner)

    def kernel(x_ref, mask_ref, w_ref, gb_ref, o_ref, xin_ref):
        # x_ref    : (Mpad, C)       f32  flat spatially-padded input, real channels
        # mask_ref : (Mpad, 1)       f32  1.0 at interior (non-halo) rows
        # w_ref    : (9, Cp, Cp)     bf16 conv taps, k = dh*3 + dw, (cin, cout)
        # gb_ref   : (2, Cp)         f32  row 0 = BN gamma, row 1 = BN beta
        # o_ref    : (Mpad, Cp)      f32  lane-dense output (halo rows = don't care)
        # xin_ref  : (2G+Mpad, Cp)   bf16 conv-input scratch, flat padded-row layout
        it = pl.program_id(0)

        @pl.when(it == 0)
        def _init():
            # One-time zero fill: guard rows, halo rows and padded lanes stay
            # zero forever (later stores only touch interior rows, lanes < C).
            xin_ref[...] = jnp.zeros_like(xin_ref)
            # Step-0 conv input is x alone (state == 0): no add, single cast.
            xin_ref[G:G + Mpad, 0:C] = x_ref[...].astype(xin_ref.dtype)

        # 3x3 'SAME' conv: each tap is a static, contiguous row-slice of the
        # bf16 scratch (spatial shifts are plain row offsets in the flat
        # layout -> no window gather / reshape copies), one (Mpad,Cp)@(Cp,Cp)
        # MXU matmul per tap with f32 accumulation.
        acc = None
        for k in range(9):
            dh, dw = divmod(k, 3)
            start = G + (dh - 1) * Wrow + (dw - 1)
            tap = jnp.dot(xin_ref[start:start + Mpad, :], w_ref[k],
                          preferred_element_type=jnp.float32)
            acc = tap if acc is None else acc + tap

        # Training-mode BatchNorm2d folded into a per-channel affine.
        # Single-pass masked stats (halo rows excluded), biased variance
        # clamped at 0, eps = 1e-5.  Conv bias omitted: exactly cancelled by
        # the batch-mean subtraction (training-mode BN only).
        mask = mask_ref[...]
        masked = acc * mask
        s1 = jnp.sum(masked, axis=0, keepdims=True)
        s2 = jnp.sum(masked * acc, axis=0, keepdims=True)
        mean = s1 * inv_m
        var = jnp.maximum(s2 * inv_m - mean * mean, 0.0)
        scale = gb_ref[0:1, :] * jax.lax.rsqrt(var + EPS)
        shift = gb_ref[1:2, :] - mean * scale
        # Fused epilogue: one FMA + ReLU pass over the slab.
        y = jnp.maximum(acc * scale + shift, 0.0)

        @pl.when(it == steps - 1)
        def _emit():
            o_ref[...] = y            # single lane-dense write of the state

        @pl.when(it < steps - 1)
        def _next_input():
            # Residual add in f32 once, masked so halo rows stay zero, one
            # cast to bf16; only the C real lanes are stored (padded lanes
            # stay zero from the one-time init).
            nxt = (x_ref[...] + y[:, 0:C]) * mask
            xin_ref[G:G + Mpad, 0:C] = nxt.astype(xin_ref.dtype)

    return kernel


def _recurrent_block_pallas(x_flat, mask, w9, gb, *, N, H, W, C, Cp, t):
    steps = t + 1
    Mpad = N * (H + 2) * (W + 2)
    # Guard rows so every tap's row-slice stays in-bounds; 16-aligned so the
    # per-step interior store is vreg-aligned in the packed bf16 scratch.
    G = ((W + 3 + 15) // 16) * 16
    Mtot = Mpad + 2 * G

    kernel = _make_recurrent_cbr_kernel(N, H, W, C, Cp, G, steps)

    flops = steps * 2 * Mpad * (9 * Cp) * Cp
    bytes_accessed = (x_flat.size * 4 + mask.size * 4 + w9.size * 2
                      + gb.size * 4 + Mpad * Cp * 4)

    # VMEM footprint: double-buffered operands + output + scratch + ~3 f32
    # (Mpad, Cp) temporaries (acc / masked / y).
    vmem_limit = 32 * 1024 * 1024
    vmem_bytes = (2 * (x_flat.size * 4 + mask.size * 4 + w9.size * 2 + gb.size * 4)
                  + 2 * Mpad * Cp * 4
                  + Mtot * Cp * 2
                  + 3 * Mpad * Cp * 4)
    if vmem_bytes > vmem_limit - 4 * 1024 * 1024:
        # TODO(synk): M-tiled two-pass-BN variant for activations this large.
        raise NotImplementedError(
            "Activation does not fit the fused VMEM-resident kernel.")

    grid_spec = pltpu.PrefetchScalarGridSpec(
        num_scalar_prefetch=0,
        grid=(steps,),
        in_specs=[
            pl.BlockSpec((Mpad, C), lambda i: (0, 0)),
            pl.BlockSpec((Mpad, 1), lambda i: (0, 0)),
            pl.BlockSpec((9, Cp, Cp), lambda i: (0, 0, 0)),
            pl.BlockSpec((2, Cp), lambda i: (0, 0)),
        ],
        out_specs=pl.BlockSpec((Mpad, Cp), lambda i: (0, 0)),
        scratch_shapes=[pltpu.VMEM((Mtot, Cp), jnp.bfloat16)],
    )
    return pl.pallas_call(
        kernel,
        out_shape=jax.ShapeDtypeStruct((Mpad, Cp), jnp.float32),
        grid_spec=grid_spec,
        compiler_params=pltpu.CompilerParams(
            dimension_semantics=("arbitrary",),    # true sequential recurrence
            vmem_limit_bytes=vmem_limit,
        ),
        cost_estimate=pl.CostEstimate(
            flops=flops,
            transcendentals=steps * Cp,
            bytes_accessed=bytes_accessed,
        ),
    )(x_flat, mask, w9, gb)


def recurrent_block_forward(x_nchw, params, t=2):
    """Equivalent of Recurrent_block(ch_out=C, t=t).forward(x); x: (N,C,H,W)."""
    w, b, gamma, beta = params          # w: (3,3,Cin,Cout) i.e. HWIO
    _ = b   # conv bias exactly cancelled by training-mode BN (eval mode would need it)
    assert t >= 1
    N, C, H, W = x_nchw.shape
    Cp = ((C + 127) // 128) * 128       # lane-dense output / MXU K & N dimension
    Mpad = N * (H + 2) * (W + 2)

    # One-time glue (cheap XLA): NCHW -> NHWC, spatial zero pad, flatten to the
    # padded-row layout.  Channels stay at real C -> no 32x zero DMA through HBM.
    x = jnp.transpose(x_nchw, (0, 2, 3, 1)).astype(jnp.float32)
    x_flat = jnp.pad(x, ((0, 0), (1, 1), (1, 1), (0, 0))).reshape(Mpad, C)

    # Interior-row mask (static, built host-side).
    m = np.zeros((N, H + 2, W + 2), np.float32)
    m[:, 1:H + 1, 1:W + 1] = 1.0
    mask = jnp.asarray(m.reshape(Mpad, 1))

    # Conv taps with (cin, cout) zero-padded to Cp; BN params packed as (2, Cp)
    # (gamma padded with 1 so padded lanes stay well-defined; they are exactly
    # zero in acc anyway and never reach the real output channels).
    w9 = jnp.pad(w.astype(jnp.float32),
                 ((0, 0), (0, 0), (0, Cp - C), (0, Cp - C)))
    w9 = w9.reshape(9, Cp, Cp).astype(jnp.bfloat16)
    gb = jnp.stack(
        [jnp.pad(gamma.astype(jnp.float32), (0, Cp - C), constant_values=1.0),
         jnp.pad(beta.astype(jnp.float32), (0, Cp - C))], axis=0)

    out_flat = _recurrent_block_pallas(x_flat, mask, w9, gb,
                                       N=N, H=H, W=W, C=C, Cp=Cp, t=t)
    out = out_flat.reshape(N, H + 2, W + 2, Cp)[:, 1:H + 1, 1:W + 1, :C]
    return jnp.transpose(out, (0, 3, 1, 2))     # NHWC -> NCHW


def _reference_forward(x_nchw, params, t=2):
    """Pure-JAX reference mirroring the PyTorch module (training-mode BN).

    Conv operands cast to bf16 with f32 accumulation to match the kernel's MXU
    precision policy; structure (conv+bias, batch stats, biased var, eps, ReLU,
    recurrence) is exactly the PyTorch module."""
    w, b, gamma, beta = params
    x = jnp.transpose(x_nchw, (0, 2, 3, 1)).astype(jnp.float32)
    w_bf = w.astype(jnp.bfloat16)

    def cbr(inp):
        y = jax.lax.conv_general_dilated(
            inp.astype(jnp.bfloat16), w_bf,
            window_strides=(1, 1), padding="SAME",
            dimension_numbers=("NHWC", "HWIO", "NHWC"),
            preferred_element_type=jnp.float32,
        ) + b
        mean = jnp.mean(y, axis=(0, 1, 2), keepdims=True)
        var = jnp.mean((y - mean) ** 2, axis=(0, 1, 2), keepdims=True)
        y = (y - mean) * jax.lax.rsqrt(var + EPS) * gamma + beta
        return jnp.maximum(y, 0.0)

    x1 = None
    for i in range(t):
        if i == 0:
            x1 = cbr(x)
        x1 = cbr(x + x1)
    return jnp.transpose(x1, (0, 3, 1, 2))


if __name__ == "__main__":
    N, C, H, W = 2, 4, 16, 16       # ch_out = 4, t = 2
    T = 2

    key = jax.random.PRNGKey(0)
    kx, kw, kb = jax.random.split(key, 3)

    x = jax.random.normal(kx, (N, C, H, W), dtype=jnp.float32)
    # Synthetic parameters: conv weight (HWIO), conv bias, BN gamma/beta at
    # their PyTorch init values (1 / 0).
    w = 0.1 * jax.random.normal(kw, (3, 3, C, C), dtype=jnp.float32)
    b = 0.1 * jax.random.normal(kb, (C,), dtype=jnp.float32)
    gamma = jnp.ones((C,), dtype=jnp.float32)
    beta = jnp.zeros((C,), dtype=jnp.float32)
    params = (w, b, gamma, beta)

    out = jax.block_until_ready(recurrent_block_forward(x, params, t=T))
    ref = jax.block_until_ready(_reference_forward(x, params, t=T))

    assert out.shape == (N, C, H, W) and out.dtype == jnp.float32
    # Tolerance covers bf16 operand rounding differences between the XLA conv
    # reference and the in-kernel shifted-matmul formulation plus the one-pass
    # sum/sumsq variance (both accumulate in f32; post-BN values are O(1)).
    np.testing.assert_allclose(np.asarray(out), np.asarray(ref),
                               rtol=2e-2, atol=2e-2)

    print("KERNEL_OK")
</pallas_src>

<mosaic_0001>
module attributes {stable_mosaic.version = 11 : i64} {
  func.func @kernel(%arg0: i32, %arg1: memref<648x4xf32, #tpu.memory_space<vmem>>, %arg2: memref<648x1xf32, #tpu.memory_space<vmem>>, %arg3: memref<9x128x128xbf16, #tpu.memory_space<vmem>>, %arg4: memref<2x128xf32, #tpu.memory_space<vmem>>, %arg5: memref<648x128xf32, #tpu.memory_space<vmem>>, %arg6: memref<712x128xbf16, #tpu.memory_space<vmem>>) attributes {dimension_semantics = [#tpu.dimension_semantics<arbitrary>], iteration_bounds = array<i64: 3>, scalar_prefetch = 0 : i64, scratch_operands = 1 : i64, tpu.core_type = #tpu.core_type<tc>, window_params = [{pipeline_mode = #tpu.pipeline_mode<synchronous>, transform_indices = @transform_0, window_bounds = array<i64: 648, 4>}, {pipeline_mode = #tpu.pipeline_mode<synchronous>, transform_indices = @transform_1, window_bounds = array<i64: 648, 1>}, {pipeline_mode = #tpu.pipeline_mode<synchronous>, transform_indices = @transform_2, window_bounds = array<i64: 9, 128, 128>}, {pipeline_mode = #tpu.pipeline_mode<synchronous>, transform_indices = @transform_3, window_bounds = array<i64: 2, 128>}, {pipeline_mode = #tpu.pipeline_mode<synchronous>, transform_indices = @transform_4, window_bounds = array<i64: 648, 128>}]} {
    %c0_i32 = arith.constant 0 : i32
    %0 = arith.cmpi eq, %arg0, %c0_i32 : i32
    %1 = arith.extui %0 : i1 to i32
    %c0_i32_0 = arith.constant 0 : i32
    %2 = arith.cmpi ne, %1, %c0_i32_0 : i32
    scf.if %2 {
      %cst_52 = arith.constant 0.000000e+00 : bf16
      %83 = vector.broadcast %cst_52 : bf16 to vector<712x128xbf16>
      %c0_53 = arith.constant 0 : index
      %c0_54 = arith.constant 0 : index
      %84 = vector.load %arg6[%c0_53, %c0_54] : memref<712x128xbf16, #tpu.memory_space<vmem>>, vector<712x128xbf16>
      tpu.vector_store %arg6[%c0_53, %c0_54], %83 {strides = array<i32>} : memref<712x128xbf16, #tpu.memory_space<vmem>>, vector<712x128xbf16>,
      %c0_55 = arith.constant 0 : index
      %c0_56 = arith.constant 0 : index
      %85 = vector.load %arg1[%c0_55, %c0_56] : memref<648x4xf32, #tpu.memory_space<vmem>>, vector<648x4xf32>
      %86 = arith.truncf %85 : vector<648x4xf32> to vector<648x4xbf16>
      %c32_57 = arith.constant 32 : index
      %c0_58 = arith.constant 0 : index
      %87 = vector.load %arg6[%c32_57, %c0_58] : memref<712x128xbf16, #tpu.memory_space<vmem>>, vector<648x4xbf16>
      tpu.vector_store %arg6[%c32_57, %c0_58], %86 {strides = array<i32>} : memref<712x128xbf16, #tpu.memory_space<vmem>>, vector<648x4xbf16>,
    } else {
    }
    %c13 = arith.constant 13 : index
    %c0 = arith.constant 0 : index
    %3 = vector.load %arg6[%c13, %c0] : memref<712x128xbf16, #tpu.memory_space<vmem>>, vector<648x128xbf16>
    %c0_1 = arith.constant 0 : index
    %c0_2 = arith.constant 0 : index
    %c0_3 = arith.constant 0 : index
    %4 = vector.load %arg3[%c0_1, %c0_2, %c0_3] : memref<9x128x128xbf16, #tpu.memory_space<vmem>>, vector<1x128x128xbf16>
    %5 = vector.shape_cast %4 : vector<1x128x128xbf16> to vector<128x128xbf16>
    %cst = arith.constant dense<0.000000e+00> : vector<648x128xf32>
    %6 = tpu.matmul %3, %5, %cst {dimension_numbers = #tpu.dot_dimension_numbers<[1], [0], [0], [1], [0, 0, 1, 1], [], []>} : vector<648x128xbf16>, vector<128x128xbf16>, vector<648x128xf32> -> vector<648x128xf32>
    %c14 = arith.constant 14 : index
    %c0_4 = arith.constant 0 : index
    %7 = vector.load %arg6[%c14, %c0_4] : memref<712x128xbf16, #tpu.memory_space<vmem>>, vector<648x128xbf16>
    %c1 = arith.constant 1 : index
    %c0_5 = arith.constant 0 : index
    %c0_6 = arith.constant 0 : index
    %8 = vector.load %arg3[%c1, %c0_5, %c0_6] : memref<9x128x128xbf16, #tpu.memory_space<vmem>>, vector<1x128x128xbf16>
    %9 = vector.shape_cast %8 : vector<1x128x128xbf16> to vector<128x128xbf16>
    %cst_7 = arith.constant dense<0.000000e+00> : vector<648x128xf32>
    %10 = tpu.matmul %7, %9, %cst_7 {dimension_numbers = #tpu.dot_dimension_numbers<[1], [0], [0], [1], [0, 0, 1, 1], [], []>} : vector<648x128xbf16>, vector<128x128xbf16>, vector<648x128xf32> -> vector<648x128xf32>
    %11 = arith.addf %6, %10 : vector<648x128xf32>
    %c15 = arith.constant 15 : index
    %c0_8 = arith.constant 0 : index
    %12 = vector.load %arg6[%c15, %c0_8] : memref<712x128xbf16, #tpu.memory_space<vmem>>, vector<648x128xbf16>
    %c2 = arith.constant 2 : index
    %c0_9 = arith.constant 0 : index
    %c0_10 = arith.constant 0 : index
    %13 = vector.load %arg3[%c2, %c0_9, %c0_10] : memref<9x128x128xbf16, #tpu.memory_space<vmem>>, vector<1x128x128xbf16>
    %14 = vector.shape_cast %13 : vector<1x128x128xbf16> to vector<128x128xbf16>
    %cst_11 = arith.constant dense<0.000000e+00> : vector<648x128xf32>
    %15 = tpu.matmul %12, %14, %cst_11 {dimension_numbers = #tpu.dot_dimension_numbers<[1], [0], [0], [1], [0, 0, 1, 1], [], []>} : vector<648x128xbf16>, vector<128x128xbf16>, vector<648x128xf32> -> vector<648x128xf32>
    %16 = arith.addf %11, %15 : vector<648x128xf32>
    %c31 = arith.constant 31 : index
    %c0_12 = arith.constant 0 : index
    %17 = vector.load %arg6[%c31, %c0_12] : memref<712x128xbf16, #tpu.memory_space<vmem>>, vector<648x128xbf16>
    %c3 = arith.constant 3 : index
    %c0_13 = arith.constant 0 : index
    %c0_14 = arith.constant 0 : index
    %18 = vector.load %arg3[%c3, %c0_13, %c0_14] : memref<9x128x128xbf16, #tpu.memory_space<vmem>>, vector<1x128x128xbf16>
    %19 = vector.shape_cast %18 : vector<1x128x128xbf16> to vector<128x128xbf16>
    %cst_15 = arith.constant dense<0.000000e+00> : vector<648x128xf32>
    %20 = tpu.matmul %17, %19, %cst_15 {dimension_numbers = #tpu.dot_dimension_numbers<[1], [0], [0], [1], [0, 0, 1, 1], [], []>} : vector<648x128xbf16>, vector<128x128xbf16>, vector<648x128xf32> -> vector<648x128xf32>
    %21 = arith.addf %16, %20 : vector<648x128xf32>
    %c32 = arith.constant 32 : index
    %c0_16 = arith.constant 0 : index
    %22 = vector.load %arg6[%c32, %c0_16] : memref<712x128xbf16, #tpu.memory_space<vmem>>, vector<648x128xbf16>
    %c4 = arith.constant 4 : index
    %c0_17 = arith.constant 0 : index
    %c0_18 = arith.constant 0 : index
    %23 = vector.load %arg3[%c4, %c0_17, %c0_18] : memref<9x128x128xbf16, #tpu.memory_space<vmem>>, vector<1x128x128xbf16>
    %24 = vector.shape_cast %23 : vector<1x128x128xbf16> to vector<128x128xbf16>
    %cst_19 = arith.constant dense<0.000000e+00> : vector<648x128xf32>
    %25 = tpu.matmul %22, %24, %cst_19 {dimension_numbers = #tpu.dot_dimension_numbers<[1], [0], [0], [1], [0, 0, 1, 1], [], []>} : vector<648x128xbf16>, vector<128x128xbf16>, vector<648x128xf32> -> vector<648x128xf32>
    %26 = arith.addf %21, %25 : vector<648x128xf32>
    %c33 = arith.constant 33 : index
    %c0_20 = arith.constant 0 : index
    %27 = vector.load %arg6[%c33, %c0_20] : memref<712x128xbf16, #tpu.memory_space<vmem>>, vector<648x128xbf16>
    %c5 = arith.constant 5 : index
    %c0_21 = arith.constant 0 : index
    %c0_22 = arith.constant 0 : index
    %28 = vector.load %arg3[%c5, %c0_21, %c0_22] : memref<9x128x128xbf16, #tpu.memory_space<vmem>>, vector<1x128x128xbf16>
    %29 = vector.shape_cast %28 : vector<1x128x128xbf16> to vector<128x128xbf16>
    %cst_23 = arith.constant dense<0.000000e+00> : vector<648x128xf32>
    %30 = tpu.matmul %27, %29, %cst_23 {dimension_numbers = #tpu.dot_dimension_numbers<[1], [0], [0], [1], [0, 0, 1, 1], [], []>} : vector<648x128xbf16>, vector<128x128xbf16>, vector<648x128xf32> -> vector<648x128xf32>
    %31 = arith.addf %26, %30 : vector<648x128xf32>
    %c49 = arith.constant 49 : index
    %c0_24 = arith.constant 0 : index
    %32 = vector.load %arg6[%c49, %c0_24] : memref<712x128xbf16, #tpu.memory_space<vmem>>, vector<648x128xbf16>
    %c6 = arith.constant 6 : index
    %c0_25 = arith.constant 0 : index
    %c0_26 = arith.constant 0 : index
    %33 = vector.load %arg3[%c6, %c0_25, %c0_26] : memref<9x128x128xbf16, #tpu.memory_space<vmem>>, vector<1x128x128xbf16>
    %34 = vector.shape_cast %33 : vector<1x128x128xbf16> to vector<128x128xbf16>
    %cst_27 = arith.constant dense<0.000000e+00> : vector<648x128xf32>
    %35 = tpu.matmul %32, %34, %cst_27 {dimension_numbers = #tpu.dot_dimension_numbers<[1], [0], [0], [1], [0, 0, 1, 1], [], []>} : vector<648x128xbf16>, vector<128x128xbf16>, vector<648x128xf32> -> vector<648x128xf32>
    %36 = arith.addf %31, %35 : vector<648x128xf32>
    %c50 = arith.constant 50 : index
    %c0_28 = arith.constant 0 : index
    %37 = vector.load %arg6[%c50, %c0_28] : memref<712x128xbf16, #tpu.memory_space<vmem>>, vector<648x128xbf16>
    %c7 = arith.constant 7 : index
    %c0_29 = arith.constant 0 : index
    %c0_30 = arith.constant 0 : index
    %38 = vector.load %arg3[%c7, %c0_29, %c0_30] : memref<9x128x128xbf16, #tpu.memory_space<vmem>>, vector<1x128x128xbf16>
    %39 = vector.shape_cast %38 : vector<1x128x128xbf16> to vector<128x128xbf16>
    %cst_31 = arith.constant dense<0.000000e+00> : vector<648x128xf32>
    %40 = tpu.matmul %37, %39, %cst_31 {dimension_numbers = #tpu.dot_dimension_numbers<[1], [0], [0], [1], [0, 0, 1, 1], [], []>} : vector<648x128xbf16>, vector<128x128xbf16>, vector<648x128xf32> -> vector<648x128xf32>
    %41 = arith.addf %36, %40 : vector<648x128xf32>
    %c51 = arith.constant 51 : index
    %c0_32 = arith.constant 0 : index
    %42 = vector.load %arg6[%c51, %c0_32] : memref<712x128xbf16, #tpu.memory_space<vmem>>, vector<648x128xbf16>
    %c8 = arith.constant 8 : index
    %c0_33 = arith.constant 0 : index
    %c0_34 = arith.constant 0 : index
    %43 = vector.load %arg3[%c8, %c0_33, %c0_34] : memref<9x128x128xbf16, #tpu.memory_space<vmem>>, vector<1x128x128xbf16>
    %44 = vector.shape_cast %43 : vector<1x128x128xbf16> to vector<128x128xbf16>
    %cst_35 = arith.constant dense<0.000000e+00> : vector<648x128xf32>
    %45 = tpu.matmul %42, %44, %cst_35 {dimension_numbers = #tpu.dot_dimension_numbers<[1], [0], [0], [1], [0, 0, 1, 1], [], []>} : vector<648x128xbf16>, vector<128x128xbf16>, vector<648x128xf32> -> vector<648x128xf32>
    %46 = arith.addf %41, %45 : vector<648x128xf32>
    %c0_36 = arith.constant 0 : index
    %c0_37 = arith.constant 0 : index
    %47 = vector.load %arg2[%c0_36, %c0_37] : memref<648x1xf32, #tpu.memory_space<vmem>>, vector<648x1xf32>
    %48 = vector.broadcast %47 : vector<648x1xf32> to vector<648x128xf32>
    %49 = arith.mulf %46, %48 : vector<648x128xf32>
    %cst_38 = arith.constant dense<0.000000e+00> : vector<128xf32>
    %50 = vector.multi_reduction <add>, %49, %cst_38 [0] : vector<648x128xf32> to vector<128xf32>
    %51 = vector.shape_cast %50 : vector<128xf32> to vector<1x128xf32>
    %52 = arith.mulf %49, %46 : vector<648x128xf32>
    %cst_39 = arith.constant dense<0.000000e+00> : vector<128xf32>
    %53 = vector.multi_reduction <add>, %52, %cst_39 [0] : vector<648x128xf32> to vector<128xf32>
    %54 = vector.shape_cast %53 : vector<128xf32> to vector<1x128xf32>
    %cst_40 = arith.constant 0.001953125 : f32
    %55 = vector.broadcast %cst_40 : f32 to vector<1x128xf32>
    %56 = arith.mulf %51, %55 : vector<1x128xf32>
    %cst_41 = arith.constant 0.001953125 : f32
    %57 = vector.broadcast %cst_41 : f32 to vector<1x128xf32>
    %58 = arith.mulf %54, %57 : vector<1x128xf32>
    %59 = arith.mulf %56, %56 : vector<1x128xf32>
    %60 = arith.subf %58, %59 : vector<1x128xf32>
    %cst_42 = arith.constant 0.000000e+00 : f32
    %61 = vector.broadcast %cst_42 : f32 to vector<1x128xf32>
    %62 = arith.maximumf %60, %61 : vector<1x128xf32>
    %c0_43 = arith.constant 0 : index
    %c0_44 = arith.constant 0 : index
    %63 = vector.load %arg4[%c0_43, %c0_44] : memref<2x128xf32, #tpu.memory_space<vmem>>, vector<1x128xf32>
    %cst_45 = arith.constant 9.99999974E-6 : f32
    %64 = vector.broadcast %cst_45 : f32 to vector<1x128xf32>
    %65 = arith.addf %62, %64 : vector<1x128xf32>
    %66 = math.rsqrt %65 : vector<1x128xf32>
    %67 = arith.mulf %63, %66 : vector<1x128xf32>
    %c1_46 = arith.constant 1 : index
    %c0_47 = arith.constant 0 : index
    %68 = vector.load %arg4[%c1_46, %c0_47] : memref<2x128xf32, #tpu.memory_space<vmem>>, vector<1x128xf32>
    %69 = arith.mulf %56, %67 : vector<1x128xf32>
    %70 = arith.subf %68, %69 : vector<1x128xf32>
    %71 = vector.broadcast %67 : vector<1x128xf32> to vector<648x128xf32>
    %72 = arith.mulf %46, %71 : vector<648x128xf32>
    %73 = vector.broadcast %70 : vector<1x128xf32> to vector<648x128xf32>
    %74 = arith.addf %72, %73 : vector<648x128xf32>
    %cst_48 = arith.constant 0.000000e+00 : f32
    %75 = vector.broadcast %cst_48 : f32 to vector<648x128xf32>
    %76 = arith.maximumf %74, %75 : vector<648x128xf32>
    %c2_i32 = arith.constant 2 : i32
    %77 = arith.cmpi eq, %arg0, %c2_i32 : i32
    %78 = arith.extui %77 : i1 to i32
    %c0_i32_49 = arith.constant 0 : i32
    %79 = arith.cmpi ne, %78, %c0_i32_49 : i32
    scf.if %79 {
      %c0_52 = arith.constant 0 : index
      %c0_53 = arith.constant 0 : index
      %83 = vector.load %arg5[%c0_52, %c0_53] : memref<648x128xf32, #tpu.memory_space<vmem>>, vector<648x128xf32>
      tpu.vector_store %arg5[%c0_52, %c0_53], %76 {strides = array<i32>} : memref<648x128xf32, #tpu.memory_space<vmem>>, vector<648x128xf32>,
    } else {
    }
    %c2_i32_50 = arith.constant 2 : i32
    %80 = arith.cmpi slt, %arg0, %c2_i32_50 : i32
    %81 = arith.extui %80 : i1 to i32
    %c0_i32_51 = arith.constant 0 : i32
    %82 = arith.cmpi ne, %81, %c0_i32_51 : i32
    scf.if %82 {
      %c0_52 = arith.constant 0 : index
      %c0_53 = arith.constant 0 : index
      %83 = vector.load %arg1[%c0_52, %c0_53] : memref<648x4xf32, #tpu.memory_space<vmem>>, vector<648x4xf32>
      %84 = vector.extract_strided_slice %76 {offsets = [0, 0], sizes = [648, 4], strides = [1, 1]} : vector<648x128xf32> to vector<648x4xf32>
      %85 = arith.addf %83, %84 : vector<648x4xf32>
      %86 = vector.broadcast %47 : vector<648x1xf32> to vector<648x4xf32>
      %87 = arith.mulf %85, %86 : vector<648x4xf32>
      %88 = arith.truncf %87 : vector<648x4xf32> to vector<648x4xbf16>
      %c32_54 = arith.constant 32 : index
      %c0_55 = arith.constant 0 : index
      %89 = vector.load %arg6[%c32_54, %c0_55] : memref<712x128xbf16, #tpu.memory_space<vmem>>, vector<648x4xbf16>
      tpu.vector_store %arg6[%c32_54, %c0_55], %88 {strides = array<i32>} : memref<712x128xbf16, #tpu.memory_space<vmem>>, vector<648x4xbf16>,
    } else {
    }
    return
  }
  func.func @transform_0(%arg0: i32) -> (i32, i32) {
    %c0_i32 = arith.constant 0 : i32
    %c0_i32_0 = arith.constant 0 : i32
    %c0_i32_1 = arith.constant 0 : i32
    return %c0_i32, %c0_i32_0 : i32, i32
  }
  func.func @transform_1(%arg0: i32) -> (i32, i32) {
    %c0_i32 = arith.constant 0 : i32
    %c0_i32_0 = arith.constant 0 : i32
    %c0_i32_1 = arith.constant 0 : i32
    return %c0_i32, %c0_i32_0 : i32, i32
  }
  func.func @transform_2(%arg0: i32) -> (i32, i32, i32) {
    %c0_i32 = arith.constant 0 : i32
    %c0_i32_0 = arith.constant 0 : i32
    %c0_i32_1 = arith.constant 0 : i32
    %c0_i32_2 = arith.constant 0 : i32
    return %c0_i32, %c0_i32_0, %c0_i32_1 : i32, i32, i32
  }
  func.func @transform_3(%arg0: i32) -> (i32, i32) {
    %c0_i32 = arith.constant 0 : i32
    %c0_i32_0 = arith.constant 0 : i32
    %c0_i32_1 = arith.constant 0 : i32
    return %c0_i32, %c0_i32_0 : i32, i32
  }
  func.func @transform_4(%arg0: i32) -> (i32, i32) {
    %c0_i32 = arith.constant 0 : i32
    %c0_i32_0 = arith.constant 0 : i32
    %c0_i32_1 = arith.constant 0 : i32
    return %c0_i32, %c0_i32_0 : i32, i32
  }
}

</mosaic_0001>

<llo_original>
// kernel: tpu_custom_call.1
$region0: #{tpu_custom_call.1}
  #allocation0 [shape = 'u32[]', space=smem, size = 0x4, offset = 0x4, fixed_abs, tag = 'smem constant byte address 0x4 - core index']
  #allocation1 [shape = 'u32[72,128]{1,0:T(1,128)}', space=vmem, size = 0x9000, scoped, tag = 'internal scratch']
  #allocation2 [shape = 'bf16[712,128]{1,0:T(8,128)(2,1)}', space=vmem, size = 0x2c800, scoped, tag = 'scratch operand']
  %s0 = inlined_call_operand.vmem [shape: f32[648,4], index: 0, kind: input, shape index: {}]
  %s1 = inlined_call_operand.vmem [shape: f32[648,1], index: 1, kind: input, shape index: {}]
  %s2 = inlined_call_operand.vmem [shape: bf16[9,128,128], index: 2, kind: input, shape index: {}]
  %s3 = inlined_call_operand.vmem [shape: f32[2,128], index: 3, kind: input, shape index: {}]
  %s4 = inlined_call_operand.hbm [shape: f32[648,128], index: 4, kind: output, shape index: {}]
  %s5 = sld [smem:[#allocation0]]
  $region61: #{tpu_custom_call.1} parent=0
    _
  %s7 = ssub.s32 1, %s5
  %s8 = scalar_select 0, %s7, %s5
  $region1: #{tpu_custom_call.1} parent=0
    #allocation3 [shape = 'u8[331776]{0}', space=vmem, size = 0x51000, scoped, tag = 'output window, operand 0, single buffered']
    #allocation4 [shape = 's32[2]{0}', space=sflag, size = 0x8, scoped, tag = 'scoped memory for tpu_custom_call.1']
    %9 = vsyncpa [#allocation4], 0
    loop: start=0, step=1, limit=5
    $region2: #{tpu_custom_call.1} parent=1 // loop_pre_header
      _
    $region3: #{tpu_custom_call.1} parent=1 // loop_header
      %s11 = sphi 0, %s15
      %p12 = scmp.ge.s32.totalorder %s11, 5
      %s19 = sphi 0, %s19
      %s21 = sphi 0, %s19
      %s22 = sphi 0, %s21
      %s36 = sphi 0, %s22
      %s40 = sphi 0, %s40
      %s42 = sphi 0, %s40
      %s43 = sphi 0, %s42
      %s57 = sphi 0, %s43
      %s61 = sphi 0, %s61
      %s63 = sphi 0, %s61
      %s64 = sphi 0, %s63
      %s78 = sphi 0, %s64
      %s82 = sphi 0, %s82
      %s84 = sphi 0, %s82
      %s85 = sphi 0, %s84
      %s99 = sphi 0, %s85
      %s103 = sphi 0, %s103
      %s105 = sphi 0, %s103
      %s106 = sphi 0, %s105
      %s120 = sphi 0, %s106
    $region4: #{tpu_custom_call.1} parent=1 // loop_header_branch
      %14 = sbr.rel (%p12) target = $region8
    $region5: #{tpu_custom_call.1} parent=1 // loop_body
      %s16 = ssub.s32 %s11, 1
      %s17 = ssub.s32 %s11, 2
      %s18 = sadd.s32 %s11, 1
      %s20 = sadd.s32 %s19, 1
      %p23 = scmp.eq.s32.totalorder %s11, 2
      %p24 = scmp.ne.s32.totalorder %s19, %s21
      %p25 = scmp.eq.s32.totalorder %s11, 0
      %p26 = por %p24, %p25
      %p27 = scmp.ne.s32.totalorder %s19, %s21
      %p28 = scmp.eq.s32.totalorder %s16, 2
      %p29 = por %p27, %p28
      %p30 = scmp.ne.s32.totalorder %s21, %s22
      %p31 = scmp.eq.s32.totalorder %s16, 0
      %p32 = por %p30, %p31
      %p33 = scmp.ne.s32.totalorder %s21, %s22
      %p34 = scmp.eq.s32.totalorder %s17, 2
      %p35 = por %p33, %p34
      %p37 = scmp.ne.s32.totalorder %s22, %s36
      %p38 = scmp.eq.s32.totalorder %s17, 0
      %p39 = por %p37, %p38
      %s41 = sadd.s32 %s40, 1
      %p44 = scmp.eq.s32.totalorder %s11, 2
      %p45 = scmp.ne.s32.totalorder %s40, %s42
      %p46 = scmp.eq.s32.totalorder %s11, 0
      %p47 = por %p45, %p46
      %p48 = scmp.ne.s32.totalorder %s40, %s42
      %p49 = scmp.eq.s32.totalorder %s16, 2
      %p50 = por %p48, %p49
      %p51 = scmp.ne.s32.totalorder %s42, %s43
      %p52 = scmp.eq.s32.totalorder %s16, 0
      %p53 = por %p51, %p52
      %p54 = scmp.ne.s32.totalorder %s42, %s43
      %p55 = scmp.eq.s32.totalorder %s17, 2
      %p56 = por %p54, %p55
      %p58 = scmp.ne.s32.totalorder %s43, %s57
      %p59 = scmp.eq.s32.totalorder %s17, 0
      %p60 = por %p58, %p59
      %s62 = sadd.s32 %s61, 1
      %p65 = scmp.eq.s32.totalorder %s11, 2
      %p66 = scmp.ne.s32.totalorder %s61, %s63
      %p67 = scmp.eq.s32.totalorder %s11, 0
      %p68 = por %p66, %p67
      %p69 = scmp.ne.s32.totalorder %s61, %s63
      %p70 = scmp.eq.s32.totalorder %s16, 2
      %p71 = por %p69, %p70
      %p72 = scmp.ne.s32.totalorder %s63, %s64
      %p73 = scmp.eq.s32.totalorder %s16, 0
      %p74 = por %p72, %p73
      %p75 = scmp.ne.s32.totalorder %s63, %s64
      %p76 = scmp.eq.s32.totalorder %s17, 2
      %p77 = por %p75, %p76
      %p79 = scmp.ne.s32.totalorder %s64, %s78
      %p80 = scmp.eq.s32.totalorder %s17, 0
      %p81 = por %p79, %p80
      %s83 = sadd.s32 %s82, 1
      %p86 = scmp.eq.s32.totalorder %s11, 2
      %p87 = scmp.ne.s32.totalorder %s82, %s84
      %p88 = scmp.eq.s32.totalorder %s11, 0
      %p89 = por %p87, %p88
      %p90 = scmp.ne.s32.totalorder %s82, %s84
      %p91 = scmp.eq.s32.totalorder %s16, 2
      %p92 = por %p90, %p91
      %p93 = scmp.ne.s32.totalorder %s84, %s85
      %p94 = scmp.eq.s32.totalorder %s16, 0
      %p95 = por %p93, %p94
      %p96 = scmp.ne.s32.totalorder %s84, %s85
      %p97 = scmp.eq.s32.totalorder %s17, 2
      %p98 = por %p96, %p97
      %p100 = scmp.ne.s32.totalorder %s85, %s99
      %p101 = scmp.eq.s32.totalorder %s17, 0
      %p102 = por %p100, %p101
      %s104 = sadd.s32 %s103, 1
      %p107 = scmp.eq.s32.totalorder %s11, 2
      %p108 = scmp.ne.s32.totalorder %s103, %s105
      %p109 = scmp.eq.s32.totalorder %s11, 0
      %p110 = por %p108, %p109
      %p111 = scmp.ne.s32.totalorder %s103, %s105
      %p112 = scmp.eq.s32.totalorder %s16, 2
      %p113 = por %p111, %p112
      %p114 = scmp.ne.s32.totalorder %s105, %s106
      %p115 = scmp.eq.s32.totalorder %s16, 0
      %p116 = por %p114, %p115
      %p117 = scmp.ne.s32.totalorder %s105, %s106
      %p118 = scmp.eq.s32.totalorder %s17, 2
      %p119 = por %p117, %p118
      %p121 = scmp.ne.s32.totalorder %s106, %s120
      %p122 = scmp.eq.s32.totalorder %s17, 0
      %p123 = por %p121, %p122
      %p124 = scmp.le.s32.totalorder 1, %s11
      %p125 = scmp.lt.s32.totalorder %s11, 4
      %p126 = pnand %p124, %p125
      %p127 = pneg %p126
      // Predicated region
      $region9: #{tpu_custom_call.1} parent=5 // pred_check
        _
      $region10: #{tpu_custom_call.1} parent=5 // pred_check_branch
        %129 = sbr.rel (%p126) target = $region12
      $region11: #{tpu_custom_call.1} parent=5 // pred_region
        %s130 = ssub.s32 %s11, 1
        // Predicated region
        $region13: #{tpu_custom_call.1} parent=11 // pred_check
          %p131 = pneg %p32
        $region14: #{tpu_custom_call.1} parent=11 // pred_check_branch
          %133 = sbr.rel (%p131) target = $region16
        $region15: #{tpu_custom_call.1} parent=11 // pred_region
          _
        $region16: #{tpu_custom_call.1} parent=11 // pred_fallthru
          _
        // Predicated region
        $region17: #{tpu_custom_call.1} parent=11 // pred_check
          %p134 = pneg %p53
        $region18: #{tpu_custom_call.1} parent=11 // pred_check_branch
          %136 = sbr.rel (%p134) target = $region20
        $region19: #{tpu_custom_call.1} parent=11 // pred_region
          _
        $region20: #{tpu_custom_call.1} parent=11 // pred_fallthru
          _
        // Predicated region
        $region21: #{tpu_custom_call.1} parent=11 // pred_check
          %p137 = pneg %p74
        $region22: #{tpu_custom_call.1} parent=11 // pred_check_branch
          %139 = sbr.rel (%p137) target = $region24
        $region23: #{tpu_custom_call.1} parent=11 // pred_region
          _
        $region24: #{tpu_custom_call.1} parent=11 // pred_fallthru
          _
        // Predicated region
        $region25: #{tpu_custom_call.1} parent=11 // pred_check
          %p140 = pneg %p95
        $region26: #{tpu_custom_call.1} parent=11 // pred_check_branch
          %142 = sbr.rel (%p140) target = $region28
        $region27: #{tpu_custom_call.1} parent=11 // pred_region
          _
        $region28: #{tpu_custom_call.1} parent=11 // pred_fallthru
          _
      $region12: #{tpu_custom_call.1} parent=5 // pred_fallthru
        _
      %p143 = scmp.lt.s32.totalorder %s11, 3
      // Predicated region
      $region29: #{tpu_custom_call.1} parent=5 // pred_check
        %p144 = pneg %p143
      $region30: #{tpu_custom_call.1} parent=5 // pred_check_branch
        %146 = sbr.rel (%p144) target = $region32
      $region31: #{tpu_custom_call.1} parent=5 // pred_region
        _
      $region32: #{tpu_custom_call.1} parent=5 // pred_fallthru
        _
      %p147 = scmp.le.s32.totalorder 1, %s11
      %p148 = scmp.lt.s32.totalorder %s11, 4
      %p149 = pnand %p147, %p148
      %p150 = pneg %p149
      // Predicated region
      $region33: #{tpu_custom_call.1} parent=5 // pred_check
        _
      $region34: #{tpu_custom_call.1} parent=5 // pred_check_branch
        %152 = sbr.rel (%p149) target = $region36
      $region35: #{tpu_custom_call.1} parent=5 // pred_region
        %s153 = ssub.s32 %s11, 1
        %p154 = pneg %p32
        %p155 = pneg %p29
        %p156 = pneg %p53
        %p157 = pneg %p50
        %p158 = pneg %p74
        %p159 = pneg %p71
        %p160 = pneg %p95
        %p161 = pneg %p92
        %p162 = pneg %p116
        %p163 = pneg %p113
        %p165 = scmp.eq.s32.totalorder %s16, 0
        // Predicated region
        $region37: #{tpu_custom_call.1} parent=35 // pred_check
          %p166 = pneg %p165
        $region38: #{tpu_custom_call.1} parent=35 // pred_check_branch
          %168 = sbr.rel (%p166) target = $region40
        $region39: #{tpu_custom_call.1} parent=35 // pred_region
          %169 = vst [vmem:[#allocation2] sm:$0xf] 0
          %170 = vst [vmem:[#allocation2 + $0x4] sm:$0xf] 0
          %171 = vst [vmem:[#allocation2 + $0x8] sm:$0xf] 0
          %172 = vst [vmem:[#allocation2 + $0xc] sm:$0xf] 0
          %173 = vst [vmem:[#allocation2 + $0x10] sm:$0xf] 0
          %174 = vst [vmem:[#allocation2 + $0x14] sm:$0xf] 0
          %175 = vst [vmem:[#allocation2 + $0x18] sm:$0xf] 0
          %176 = vst [vmem:[#allocation2 + $0x1c] sm:$0xf] 0
          %177 = vst [vmem:[#allocation2 + $0x20] sm:$0xf] 0
          %178 = vst [vmem:[#allocation2 + $0x24] sm:$0xf] 0
          %179 = vst [vmem:[#allocation2 + $0x28] sm:$0xf] 0
          %180 = vst [vmem:[#allocation2 + $0x2c] sm:$0xf] 0
          %181 = vst [vmem:[#allocation2 + $0x30] sm:$0xf] 0
          %182 = vst [vmem:[#allocation2 + $0x34] sm:$0xf] 0
          %183 = vst [vmem:[#allocation2 + $0x38] sm:$0xf] 0
          %184 = vst [vmem:[#allocation2 + $0x3c] sm:$0xf] 0
          %185 = vst [vmem:[#allocation2 + $0x40] sm:$0xf] 0
          %186 = vst [vmem:[#allocation2 + $0x44] sm:$0xf] 0
          %187 = vst [vmem:[#allocation2 + $0x48] sm:$0xf] 0
          %188 = vst [vmem:[#allocation2 + $0x4c] sm:$0xf] 0
          %189 = vst [vmem:[#allocation2 + $0x50] sm:$0xf] 0
          %190 = vst [vmem:[#allocation2 + $0x54] sm:$0xf] 0
          %191 = vst [vmem:[#allocation2 + $0x58] sm:$0xf] 0
          %192 = vst [vmem:[#allocation2 + $0x5c] sm:$0xf] 0
          %193 = vst [vmem:[#allocation2 + $0x60] sm:$0xf] 0
          %194 = vst [vmem:[#allocation2 + $0x64] sm:$0xf] 0
          %195 = vst [vmem:[#allocation2 + $0x68] sm:$0xf] 0
          %196 = vst [vmem:[#allocation2 + $0x6c] sm:$0xf] 0
          %197 = vst [vmem:[#allocation2 + $0x70] sm:$0xf] 0
          %198 = vst [vmem:[#allocation2 + $0x74] sm:$0xf] 0
          %199 = vst [vmem:[#allocation2 + $0x78] sm:$0xf] 0
          %200 = vst [vmem:[#allocation2 + $0x7c] sm:$0xf] 0
          %201 = vst [vmem:[#allocation2 + $0x80] sm:$0xf] 0
          %202 = vst [vmem:[#allocation2 + $0x84] sm:$0xf] 0
          %203 = vst [vmem:[#allocation2 + $0x88] sm:$0xf] 0
          %204 = vst [vmem:[#allocation2 + $0x8c] sm:$0xf] 0
          %205 = vst [vmem:[#allocation2 + $0x90] sm:$0xf] 0
          %206 = vst [vmem:[#allocation2 + $0x94] sm:$0xf] 0
          %207 = vst [vmem:[#allocation2 + $0x98] sm:$0xf] 0
          %208 = vst [vmem:[#allocation2 + $0x9c] sm:$0xf] 0
          %209 = vst [vmem:[#allocation2 + $0xa0] sm:$0xf] 0
          %210 = vst [vmem:[#allocation2 + $0xa4] sm:$0xf] 0
          %211 = vst [vmem:[#allocation2 + $0xa8] sm:$0xf] 0
          %212 = vst [vmem:[#allocation2 + $0xac] sm:$0xf] 0
          %213 = vst [vmem:[#allocation2 + $0xb0] sm:$0xf] 0
          %214 = vst [vmem:[#allocation2 + $0xb4] sm:$0xf] 0
          %215 = vst [vmem:[#allocation2 + $0xb8] sm:$0xf] 0
          %216 = vst [vmem:[#allocation2 + $0xbc] sm:$0xf] 0
          %217 = vst [vmem:[#allocation2 + $0xc0] sm:$0xf] 0
          %218 = vst [vmem:[#allocation2 + $0xc4] sm:$0xf] 0
          %219 = vst [vmem:[#allocation2 + $0xc8] sm:$0xf] 0
          %220 = vst [vmem:[#allocation2 + $0xcc] sm:$0xf] 0
          %221 = vst [vmem:[#allocation2 + $0xd0] sm:$0xf] 0
          %222 = vst [vmem:[#allocation2 + $0xd4] sm:$0xf] 0
          %223 = vst [vmem:[#allocation2 + $0xd8] sm:$0xf] 0
          %224 = vst [vmem:[#allocation2 + $0xdc] sm:$0xf] 0
          %225 = vst [vmem:[#allocation2 + $0xe0] sm:$0xf] 0
          %226 = vst [vmem:[#allocation2 + $0xe4] sm:$0xf] 0
          %227 = vst [vmem:[#allocation2 + $0xe8] sm:$0xf] 0
          %228 = vst [vmem:[#allocation2 + $0xec] sm:$0xf] 0
          %229 = vst [vmem:[#allocation2 + $0xf0] sm:$0xf] 0
          %230 = vst [vmem:[#allocation2 + $0xf4] sm:$0xf] 0
          %231 = vst [vmem:[#allocation2 + $0xf8] sm:$0xf] 0
          %232 = vst [vmem:[#allocation2 + $0xfc] sm:$0xf] 0
          %233 = vst [vmem:[#allocation2 + $0x100] sm:$0xf] 0
          %234 = vst [vmem:[#allocation2 + $0x104] sm:$0xf] 0
          %235 = vst [vmem:[#allocation2 + $0x108] sm:$0xf] 0
          %236 = vst [vmem:[#allocation2 + $0x10c] sm:$0xf] 0
          %237 = vst [vmem:[#allocation2 + $0x110] sm:$0xf] 0
          %238 = vst [vmem:[#allocation2 + $0x114] sm:$0xf] 0
          %239 = vst [vmem:[#allocation2 + $0x118] sm:$0xf] 0
          %240 = vst [vmem:[#allocation2 + $0x11c] sm:$0xf] 0
          %241 = vst [vmem:[#allocation2 + $0x120] sm:$0xf] 0
          %242 = vst [vmem:[#allocation2 + $0x124] sm:$0xf] 0
          %243 = vst [vmem:[#allocation2 + $0x128] sm:$0xf] 0
          %244 = vst [vmem:[#allocation2 + $0x12c] sm:$0xf] 0
          %245 = vst [vmem:[#allocation2 + $0x130] sm:$0xf] 0
          %246 = vst [vmem:[#allocation2 + $0x134] sm:$0xf] 0
          %247 = vst [vmem:[#allocation2 + $0x138] sm:$0xf] 0
          %248 = vst [vmem:[#allocation2 + $0x13c] sm:$0xf] 0
          %249 = vst [vmem:[#allocation2 + $0x140] sm:$0xf] 0
          %250 = vst [vmem:[#allocation2 + $0x144] sm:$0xf] 0
          %251 = vst [vmem:[#allocation2 + $0x148] sm:$0xf] 0
          %252 = vst [vmem:[#allocation2 + $0x14c] sm:$0xf] 0
          %253 = vst [vmem:[#allocation2 + $0x150] sm:$0xf] 0
          %254 = vst [vmem:[#allocation2 + $0x154] sm:$0xf] 0
          %255 = vst [vmem:[#allocation2 + $0x158] sm:$0xf] 0
          %256 = vst [vmem:[#allocation2 + $0x15c] sm:$0xf] 0
          %257 = vst [vmem:[#allocation2 + $0x160] sm:$0xf] 0
          %v258 = vld [vmem:[%s0] sm:$0xff]
          %v259 = vld [vmem:[%s0 + $0x8] sm:$0xff]
          %v260 = vld [vmem:[%s0 + $0x10] sm:$0xff]
          %v261 = vld [vmem:[%s0 + $0x18] sm:$0xff]
          %v262 = vld [vmem:[%s0 + $0x20] sm:$0xff]
          %v263 = vld [vmem:[%s0 + $0x28] sm:$0xff]
          %v264 = vld [vmem:[%s0 + $0x30] sm:$0xff]
          %v265 = vld [vmem:[%s0 + $0x38] sm:$0xff]
          %v266 = vld [vmem:[%s0 + $0x40] sm:$0xff]
          %v267 = vld [vmem:[%s0 + $0x48] sm:$0xff]
          %v268 = vld [vmem:[%s0 + $0x50] sm:$0xff]
          %v269 = vld [vmem:[%s0 + $0x58] sm:$0xff]
          %v270 = vld [vmem:[%s0 + $0x60] sm:$0xff]
          %v271 = vld [vmem:[%s0 + $0x68] sm:$0xff]
          %v272 = vld [vmem:[%s0 + $0x70] sm:$0xff]
          %v273 = vld [vmem:[%s0 + $0x78] sm:$0xff]
          %v274 = vld [vmem:[%s0 + $0x80] sm:$0xff]
          %v275 = vld [vmem:[%s0 + $0x88] sm:$0xff]
          %v276 = vld [vmem:[%s0 + $0x90] sm:$0xff]
          %v277 = vld [vmem:[%s0 + $0x98] sm:$0xff]
          %v278 = vld [vmem:[%s0 + $0xa0] sm:$0xff]
          %v279 = vld [vmem:[%s0 + $0xa8] sm:$0xff]
          %v280 = vld [vmem:[%s0 + $0xb0] sm:$0xff]
          %v281 = vld [vmem:[%s0 + $0xb8] sm:$0xff]
          %v282 = vld [vmem:[%s0 + $0xc0] sm:$0xff]
          %v283 = vld [vmem:[%s0 + $0xc8] sm:$0xff]
          %v284 = vld [vmem:[%s0 + $0xd0] sm:$0xff]
          %v285 = vld [vmem:[%s0 + $0xd8] sm:$0xff]
          %v286 = vld [vmem:[%s0 + $0xe0] sm:$0xff]
          %v287 = vld [vmem:[%s0 + $0xe8] sm:$0xff]
          %v288 = vld [vmem:[%s0 + $0xf0] sm:$0xff]
          %v289 = vld [vmem:[%s0 + $0xf8] sm:$0xff]
          %v290 = vld [vmem:[%s0 + $0x100] sm:$0xff]
          %v291 = vld [vmem:[%s0 + $0x108] sm:$0xff]
          %v292 = vld [vmem:[%s0 + $0x110] sm:$0xff]
          %v293 = vld [vmem:[%s0 + $0x118] sm:$0xff]
          %v294 = vld [vmem:[%s0 + $0x120] sm:$0xff]
          %v295 = vld [vmem:[%s0 + $0x128] sm:$0xff]
          %v296 = vld [vmem:[%s0 + $0x130] sm:$0xff]
          %v297 = vld [vmem:[%s0 + $0x138] sm:$0xff]
          %v298 = vld [vmem:[%s0 + $0x140] sm:$0xff]
          %v299 = vld [vmem:[%s0 + $0x148] sm:$0xff]
          %v300 = vld [vmem:[%s0 + $0x150] sm:$0xff]
          %v301 = vld [vmem:[%s0 + $0x158] sm:$0xff]
          %v302 = vld [vmem:[%s0 + $0x160] sm:$0xff]
          %v303 = vld [vmem:[%s0 + $0x168] sm:$0xff]
          %v304 = vld [vmem:[%s0 + $0x170] sm:$0xff]
          %v305 = vld [vmem:[%s0 + $0x178] sm:$0xff]
          %v306 = vld [vmem:[%s0 + $0x180] sm:$0xff]
          %v307 = vld [vmem:[%s0 + $0x188] sm:$0xff]
          %v308 = vld [vmem:[%s0 + $0x190] sm:$0xff]
          %v309 = vld [vmem:[%s0 + $0x198] sm:$0xff]
          %v310 = vld [vmem:[%s0 + $0x1a0] sm:$0xff]
          %v311 = vld [vmem:[%s0 + $0x1a8] sm:$0xff]
          %v312 = vld [vmem:[%s0 + $0x1b0] sm:$0xff]
          %v313 = vld [vmem:[%s0 + $0x1b8] sm:$0xff]
          %v314 = vld [vmem:[%s0 + $0x1c0] sm:$0xff]
          %v315 = vld [vmem:[%s0 + $0x1c8] sm:$0xff]
          %v316 = vld [vmem:[%s0 + $0x1d0] sm:$0xff]
          %v317 = vld [vmem:[%s0 + $0x1d8] sm:$0xff]
          %v318 = vld [vmem:[%s0 + $0x1e0] sm:$0xff]
          %v319 = vld [vmem:[%s0 + $0x1e8] sm:$0xff]
          %v320 = vld [vmem:[%s0 + $0x1f0] sm:$0xff]
          %v321 = vld [vmem:[%s0 + $0x1f8] sm:$0xff]
          %v322 = vld [vmem:[%s0 + $0x200] sm:$0xff]
          %v323 = vld [vmem:[%s0 + $0x208] sm:$0xff]
          %v324 = vld [vmem:[%s0 + $0x210] sm:$0xff]
          %v325 = vld [vmem:[%s0 + $0x218] sm:$0xff]
          %v326 = vld [vmem:[%s0 + $0x220] sm:$0xff]
          %v327 = vld [vmem:[%s0 + $0x228] sm:$0xff]
          %v328 = vld [vmem:[%s0 + $0x230] sm:$0xff]
          %v329 = vld [vmem:[%s0 + $0x238] sm:$0xff]
          %v330 = vld [vmem:[%s0 + $0x240] sm:$0xff]
          %v331 = vld [vmem:[%s0 + $0x248] sm:$0xff]
          %v332 = vld [vmem:[%s0 + $0x250] sm:$0xff]
          %v333 = vld [vmem:[%s0 + $0x258] sm:$0xff]
          %v334 = vld [vmem:[%s0 + $0x260] sm:$0xff]
          %v335 = vld [vmem:[%s0 + $0x268] sm:$0xff]
          %v336 = vld [vmem:[%s0 + $0x270] sm:$0xff]
          %v337 = vld [vmem:[%s0 + $0x278] sm:$0xff]
          %v338 = vld [vmem:[%s0 + $0x280] sm:$0xff]
          %v339 = vpack.c.bf16 %v258, %v258
          %v340 = vpack.c.bf16 %v259, %v259
          %v341 = vpack.c.bf16 %v260, %v260
          %v342 = vpack.c.bf16 %v261, %v261
          %v343 = vpack.c.bf16 %v262, %v262
          %v344 = vpack.c.bf16 %v263, %v263
          %v345 = vpack.c.bf16 %v264, %v264
          %v346 = vpack.c.bf16 %v265, %v265
          %v347 = vpack.c.bf16 %v266, %v266
          %v348 = vpack.c.bf16 %v267, %v267
          %v349 = vpack.c.bf16 %v268, %v268
          %v350 = vpack.c.bf16 %v269, %v269
          %v351 = vpack.c.bf16 %v270, %v270
          %v352 = vpack.c.bf16 %v271, %v271
          %v353 = vpack.c.bf16 %v272, %v272
          %v354 = vpack.c.bf16 %v273, %v273
          %v355 = vpack.c.bf16 %v274, %v274
          %v356 = vpack.c.bf16 %v275, %v275
          %v357 = vpack.c.bf16 %v276, %v276
          %v358 = vpack.c.bf16 %v277, %v277
          %v359 = vpack.c.bf16 %v278, %v278
          %v360 = vpack.c.bf16 %v279, %v279
          %v361 = vpack.c.bf16 %v280, %v280
          %v362 = vpack.c.bf16 %v281, %v281
          %v363 = vpack.c.bf16 %v282, %v282
          %v364 = vpack.c.bf16 %v283, %v283
          %v365 = vpack.c.bf16 %v284, %v284
          %v366 = vpack.c.bf16 %v285, %v285
          %v367 = vpack.c.bf16 %v286, %v286
          %v368 = vpack.c.bf16 %v287, %v287
          %v369 = vpack.c.bf16 %v288, %v288
          %v370 = vpack.c.bf16 %v289, %v289
          %v371 = vpack.c.bf16 %v290, %v290
          %v372 = vpack.c.bf16 %v291, %v291
          %v373 = vpack.c.bf16 %v292, %v292
          %v374 = vpack.c.bf16 %v293, %v293
          %v375 = vpack.c.bf16 %v294, %v294
          %v376 = vpack.c.bf16 %v295, %v295
          %v377 = vpack.c.bf16 %v296, %v296
          %v378 = vpack.c.bf16 %v297, %v297
          %v379 = vpack.c.bf16 %v298, %v298
          %v380 = vpack.c.bf16 %v299, %v299
          %v381 = vpack.c.bf16 %v300, %v300
          %v382 = vpack.c.bf16 %v301, %v301
          %v383 = vpack.c.bf16 %v302, %v302
          %v384 = vpack.c.bf16 %v303, %v303
          %v385 = vpack.c.bf16 %v304, %v304
          %v386 = vpack.c.bf16 %v305, %v305
          %v387 = vpack.c.bf16 %v306, %v306
          %v388 = vpack.c.bf16 %v307, %v307
          %v389 = vpack.c.bf16 %v308, %v308
          %v390 = vpack.c.bf16 %v309, %v309
          %v391 = vpack.c.bf16 %v310, %v310
          %v392 = vpack.c.bf16 %v311, %v311
          %v393 = vpack.c.bf16 %v312, %v312
          %v394 = vpack.c.bf16 %v313, %v313
          %v395 = vpack.c.bf16 %v314, %v314
          %v396 = vpack.c.bf16 %v315, %v315
          %v397 = vpack.c.bf16 %v316, %v316
          %v398 = vpack.c.bf16 %v317, %v317
          %v399 = vpack.c.bf16 %v318, %v318
          %v400 = vpack.c.bf16 %v319, %v319
          %v401 = vpack.c.bf16 %v320, %v320
          %v402 = vpack.c.bf16 %v321, %v321
          %v403 = vpack.c.bf16 %v322, %v322
          %v404 = vpack.c.bf16 %v323, %v323
          %v405 = vpack.c.bf16 %v324, %v324
          %v406 = vpack.c.bf16 %v325, %v325
          %v407 = vpack.c.bf16 %v326, %v326
          %v408 = vpack.c.bf16 %v327, %v327
          %v409 = vpack.c.bf16 %v328, %v328
          %v410 = vpack.c.bf16 %v329, %v329
          %v411 = vpack.c.bf16 %v330, %v330
          %v412 = vpack.c.bf16 %v331, %v331
          %v413 = vpack.c.bf16 %v332, %v332
          %v414 = vpack.c.bf16 %v333, %v333
          %v415 = vpack.c.bf16 %v334, %v334
          %v416 = vpack.c.bf16 %v335, %v335
          %v417 = vpack.c.bf16 %v336, %v336
          %v418 = vpack.c.bf16 %v337, %v337
          %v419 = vpack.c.bf16 %v338, %v338
          %vm420 = vcmask 27648
          %421 = vst.msk [vmem:[#allocation2 + $0x10] sm:$0xf] %vm420, %v339
          %422 = vst.msk [vmem:[#allocation2 + $0x14] sm:$0xf] %vm420, %v340
          %423 = vst.msk [vmem:[#allocation2 + $0x18] sm:$0xf] %vm420, %v341
          %424 = vst.msk [vmem:[#allocation2 + $0x1c] sm:$0xf] %vm420, %v342
          %425 = vst.msk [vmem:[#allocation2 + $0x20] sm:$0xf] %vm420, %v343
          %426 = vst.msk [vmem:[#allocation2 + $0x24] sm:$0xf] %vm420, %v344
          %427 = vst.msk [vmem:[#allocation2 + $0x28] sm:$0xf] %vm420, %v345
          %428 = vst.msk [vmem:[#allocation2 + $0x2c] sm:$0xf] %vm420, %v346
          %429 = vst.msk [vmem:[#allocation2 + $0x30] sm:$0xf] %vm420, %v347
          %430 = vst.msk [vmem:[#allocation2 + $0x34] sm:$0xf] %vm420, %v348
          %431 = vst.msk [vmem:[#allocation2 + $0x38] sm:$0xf] %vm420, %v349
          %432 = vst.msk [vmem:[#allocation2 + $0x3c] sm:$0xf] %vm420, %v350
          %433 = vst.msk [vmem:[#allocation2 + $0x40] sm:$0xf] %vm420, %v351
          %434 = vst.msk [vmem:[#allocation2 + $0x44] sm:$0xf] %vm420, %v352
          %435 = vst.msk [vmem:[#allocation2 + $0x48] sm:$0xf] %vm420, %v353
          %436 = vst.msk [vmem:[#allocation2 + $0x4c] sm:$0xf] %vm420, %v354
          %437 = vst.msk [vmem:[#allocation2 + $0x50] sm:$0xf] %vm420, %v355
          %438 = vst.msk [vmem:[#allocation2 + $0x54] sm:$0xf] %vm420, %v356
          %439 = vst.msk [vmem:[#allocation2 + $0x58] sm:$0xf] %vm420, %v357
          %440 = vst.msk [vmem:[#allocation2 + $0x5c] sm:$0xf] %vm420, %v358
          %441 = vst.msk [vmem:[#allocation2 + $0x60] sm:$0xf] %vm420, %v359
          %442 = vst.msk [vmem:[#allocation2 + $0x64] sm:$0xf] %vm420, %v360
          %443 = vst.msk [vmem:[#allocation2 + $0x68] sm:$0xf] %vm420, %v361
          %444 = vst.msk [vmem:[#allocation2 + $0x6c] sm:$0xf] %vm420, %v362
          %445 = vst.msk [vmem:[#allocation2 + $0x70] sm:$0xf] %vm420, %v363
          %446 = vst.msk [vmem:[#allocation2 + $0x74] sm:$0xf] %vm420, %v364
          %447 = vst.msk [vmem:[#allocation2 + $0x78] sm:$0xf] %vm420, %v365
          %448 = vst.msk [vmem:[#allocation2 + $0x7c] sm:$0xf] %vm420, %v366
          %449 = vst.msk [vmem:[#allocation2 + $0x80] sm:$0xf] %vm420, %v367
          %450 = vst.msk [vmem:[#allocation2 + $0x84] sm:$0xf] %vm420, %v368
          %451 = vst.msk [vmem:[#allocation2 + $0x88] sm:$0xf] %vm420, %v369
          %452 = vst.msk [vmem:[#allocation2 + $0x8c] sm:$0xf] %vm420, %v370
          %453 = vst.msk [vmem:[#allocation2 + $0x90] sm:$0xf] %vm420, %v371
          %454 = vst.msk [vmem:[#allocation2 + $0x94] sm:$0xf] %vm420, %v372
          %455 = vst.msk [vmem:[#allocation2 + $0x98] sm:$0xf] %vm420, %v373
          %456 = vst.msk [vmem:[#allocation2 + $0x9c] sm:$0xf] %vm420, %v374
          %457 = vst.msk [vmem:[#allocation2 + $0xa0] sm:$0xf] %vm420, %v375
          %458 = vst.msk [vmem:[#allocation2 + $0xa4] sm:$0xf] %vm420, %v376
          %459 = vst.msk [vmem:[#allocation2 + $0xa8] sm:$0xf] %vm420, %v377
          %460 = vst.msk [vmem:[#allocation2 + $0xac] sm:$0xf] %vm420, %v378
          %461 = vst.msk [vmem:[#allocation2 + $0xb0] sm:$0xf] %vm420, %v379
          %462 = vst.msk [vmem:[#allocation2 + $0xb4] sm:$0xf] %vm420, %v380
          %463 = vst.msk [vmem:[#allocation2 + $0xb8] sm:$0xf] %vm420, %v381
          %464 = vst.msk [vmem:[#allocation2 + $0xbc] sm:$0xf] %vm420, %v382
          %465 = vst.msk [vmem:[#allocation2 + $0xc0] sm:$0xf] %vm420, %v383
          %466 = vst.msk [vmem:[#allocation2 + $0xc4] sm:$0xf] %vm420, %v384
          %467 = vst.msk [vmem:[#allocation2 + $0xc8] sm:$0xf] %vm420, %v385
          %468 = vst.msk [vmem:[#allocation2 + $0xcc] sm:$0xf] %vm420, %v386
          %469 = vst.msk [vmem:[#allocation2 + $0xd0] sm:$0xf] %vm420, %v387
          %470 = vst.msk [vmem:[#allocation2 + $0xd4] sm:$0xf] %vm420, %v388
          %471 = vst.msk [vmem:[#allocation2 + $0xd8] sm:$0xf] %vm420, %v389
          %472 = vst.msk [vmem:[#allocation2 + $0xdc] sm:$0xf] %vm420, %v390
          %473 = vst.msk [vmem:[#allocation2 + $0xe0] sm:$0xf] %vm420, %v391
          %474 = vst.msk [vmem:[#allocation2 + $0xe4] sm:$0xf] %vm420, %v392
          %475 = vst.msk [vmem:[#allocation2 + $0xe8] sm:$0xf] %vm420, %v393
          %476 = vst.msk [vmem:[#allocation2 + $0xec] sm:$0xf] %vm420, %v394
          %477 = vst.msk [vmem:[#allocation2 + $0xf0] sm:$0xf] %vm420, %v395
          %478 = vst.msk [vmem:[#allocation2 + $0xf4] sm:$0xf] %vm420, %v396
          %479 = vst.msk [vmem:[#allocation2 + $0xf8] sm:$0xf] %vm420, %v397
          %480 = vst.msk [vmem:[#allocation2 + $0xfc] sm:$0xf] %vm420, %v398
          %481 = vst.msk [vmem:[#allocation2 + $0x100] sm:$0xf] %vm420, %v399
          %482 = vst.msk [vmem:[#allocation2 + $0x104] sm:$0xf] %vm420, %v400
          %483 = vst.msk [vmem:[#allocation2 + $0x108] sm:$0xf] %vm420, %v401
          %484 = vst.msk [vmem:[#allocation2 + $0x10c] sm:$0xf] %vm420, %v402
          %485 = vst.msk [vmem:[#allocation2 + $0x110] sm:$0xf] %vm420, %v403
          %486 = vst.msk [vmem:[#allocation2 + $0x114] sm:$0xf] %vm420, %v404
          %487 = vst.msk [vmem:[#allocation2 + $0x118] sm:$0xf] %vm420, %v405
          %488 = vst.msk [vmem:[#allocation2 + $0x11c] sm:$0xf] %vm420, %v406
          %489 = vst.msk [vmem:[#allocation2 + $0x120] sm:$0xf] %vm420, %v407
          %490 = vst.msk [vmem:[#allocation2 + $0x124] sm:$0xf] %vm420, %v408
          %491 = vst.msk [vmem:[#allocation2 + $0x128] sm:$0xf] %vm420, %v409
          %492 = vst.msk [vmem:[#allocation2 + $0x12c] sm:$0xf] %vm420, %v410
          %493 = vst.msk [vmem:[#allocation2 + $0x130] sm:$0xf] %vm420, %v411
          %494 = vst.msk [vmem:[#allocation2 + $0x134] sm:$0xf] %vm420, %v412
          %495 = vst.msk [vmem:[#allocation2 + $0x138] sm:$0xf] %vm420, %v413
          %496 = vst.msk [vmem:[#allocation2 + $0x13c] sm:$0xf] %vm420, %v414
          %497 = vst.msk [vmem:[#allocation2 + $0x140] sm:$0xf] %vm420, %v415
          %498 = vst.msk [vmem:[#allocation2 + $0x144] sm:$0xf] %vm420, %v416
          %499 = vst.msk [vmem:[#allocation2 + $0x148] sm:$0xf] %vm420, %v417
          %500 = vst.msk [vmem:[#allocation2 + $0x14c] sm:$0xf] %vm420, %v418
          %501 = vst.msk [vmem:[#allocation2 + $0x150] sm:$0xf] %vm420, %v419
        $region40: #{tpu_custom_call.1} parent=35 // pred_fallthru
          _
        %v502 = vld [vmem:[#allocation2 + $0x4] sm:$0xc]
        %v503 = vld [vmem:[#allocation2 + $0x8] sm:$0xf]
        %v504 = vld [vmem:[#allocation2 + $0xc] sm:$0xf]
        %v505 = vld [vmem:[#allocation2 + $0x10] sm:$0xf]
        %v506 = vld [vmem:[#allocation2 + $0x14] sm:$0xf]
        %v507 = vld [vmem:[#allocation2 + $0x18] sm:$0xf]
        %v508 = vld [vmem:[#allocation2 + $0x1c] sm:$0xf]
        %v509 = vld [vmem:[#allocation2 + $0x20] sm:$0xf]
        %v510 = vld [vmem:[#allocation2 + $0x24] sm:$0xf]
        %v511 = vld [vmem:[#allocation2 + $0x28] sm:$0xf]
        %v512 = vld [vmem:[#allocation2 + $0x2c] sm:$0xf]
        %v513 = vld [vmem:[#allocation2 + $0x30] sm:$0xf]
        %v514 = vld [vmem:[#allocation2 + $0x34] sm:$0xf]
        %v515 = vld [vmem:[#allocation2 + $0x38] sm:$0xf]
        %v516 = vld [vmem:[#allocation2 + $0x3c] sm:$0xf]
        %v517 = vld [vmem:[#allocation2 + $0x40] sm:$0xf]
        %v518 = vld [vmem:[#allocation2 + $0x44] sm:$0xf]
        %v519 = vld [vmem:[#allocation2 + $0x48] sm:$0xf]
        %v520 = vld [vmem:[#allocation2 + $0x4c] sm:$0xf]
        %v521 = vld [vmem:[#allocation2 + $0x50] sm:$0xf]
        %v522 = vld [vmem:[#allocation2 + $0x54] sm:$0xf]
        %v523 = vld [vmem:[#allocation2 + $0x58] sm:$0xf]
        %v524 = vld [vmem:[#allocation2 + $0x5c] sm:$0xf]
        %v525 = vld [vmem:[#allocation2 + $0x60] sm:$0xf]
        %v526 = vld [vmem:[#allocation2 + $0x64] sm:$0xf]
        %v527 = vld [vmem:[#allocation2 + $0x68] sm:$0xf]
        %v528 = vld [vmem:[#allocation2 + $0x6c] sm:$0xf]
        %v529 = vld [vmem:[#allocation2 + $0x70] sm:$0xf]
        %v530 = vld [vmem:[#allocation2 + $0x74] sm:$0xf]
        %v531 = vld [vmem:[#allocation2 + $0x78] sm:$0xf]
        %v532 = vld [vmem:[#allocation2 + $0x7c] sm:$0xf]
        %v533 = vld [vmem:[#allocation2 + $0x80] sm:$0xf]
        %v534 = vld [vmem:[#allocation2 + $0x84] sm:$0xf]
        %v535 = vld [vmem:[#allocation2 + $0x88] sm:$0xf]
        %v536 = vld [vmem:[#allocation2 + $0x8c] sm:$0xf]
        %v537 = vld [vmem:[#allocation2 + $0x90] sm:$0xf]
        %v538 = vld [vmem:[#allocation2 + $0x94] sm:$0xf]
        %v539 = vld [vmem:[#allocation2 + $0x98] sm:$0xf]
        %v540 = vld [vmem:[#allocation2 + $0x9c] sm:$0xf]
        %v541 = vld [vmem:[#allocation2 + $0xa0] sm:$0xf]
        %v542 = vld [vmem:[#allocation2 + $0xa4] sm:$0xf]
        %v543 = vld [vmem:[#allocation2 + $0xa8] sm:$0xf]
        %v544 = vld [vmem:[#allocation2 + $0xac] sm:$0xf]
        %v545 = vld [vmem:[#allocation2 + $0xb0] sm:$0xf]
        %v546 = vld [vmem:[#allocation2 + $0xb4] sm:$0xf]
        %v547 = vld [vmem:[#allocation2 + $0xb8] sm:$0xf]
        %v548 = vld [vmem:[#allocation2 + $0xbc] sm:$0xf]
        %v549 = vld [vmem:[#allocation2 + $0xc0] sm:$0xf]
        %v550 = vld [vmem:[#allocation2 + $0xc4] sm:$0xf]
        %v551 = vld [vmem:[#allocation2 + $0xc8] sm:$0xf]
        %v552 = vld [vmem:[#allocation2 + $0xcc] sm:$0xf]
        %v553 = vld [vmem:[#allocation2 + $0xd0] sm:$0xf]
        %v554 = vld [vmem:[#allocation2 + $0xd4] sm:$0xf]
        %v555 = vld [vmem:[#allocation2 + $0xd8] sm:$0xf]
        %v556 = vld [vmem:[#allocation2 + $0xdc] sm:$0xf]
        %v557 = vld [vmem:[#allocation2 + $0xe0] sm:$0xf]
        %v558 = vld [vmem:[#allocation2 + $0xe4] sm:$0xf]
        %v559 = vld [vmem:[#allocation2 + $0xe8] sm:$0xf]
        %v560 = vld [vmem:[#allocation2 + $0xec] sm:$0xf]
        %v561 = vld [vmem:[#allocation2 + $0xf0] sm:$0xf]
        %v562 = vld [vmem:[#allocation2 + $0xf4] sm:$0xf]
        %v563 = vld [vmem:[#allocation2 + $0xf8] sm:$0xf]
        %v564 = vld [vmem:[#allocation2 + $0xfc] sm:$0xf]
        %v565 = vld [vmem:[#allocation2 + $0x100] sm:$0xf]
        %v566 = vld [vmem:[#allocation2 + $0x104] sm:$0xf]
        %v567 = vld [vmem:[#allocation2 + $0x108] sm:$0xf]
        %v568 = vld [vmem:[#allocation2 + $0x10c] sm:$0xf]
        %v569 = vld [vmem:[#allocation2 + $0x110] sm:$0xf]
        %v570 = vld [vmem:[#allocation2 + $0x114] sm:$0xf]
        %v571 = vld [vmem:[#allocation2 + $0x118] sm:$0xf]
        %v572 = vld [vmem:[#allocation2 + $0x11c] sm:$0xf]
        %v573 = vld [vmem:[#allocation2 + $0x120] sm:$0xf]
        %v574 = vld [vmem:[#allocation2 + $0x124] sm:$0xf]
        %v575 = vld [vmem:[#allocation2 + $0x128] sm:$0xf]
        %v576 = vld [vmem:[#allocation2 + $0x12c] sm:$0xf]
        %v577 = vld [vmem:[#allocation2 + $0x130] sm:$0xf]
        %v578 = vld [vmem:[#allocation2 + $0x134] sm:$0xf]
        %v579 = vld [vmem:[#allocation2 + $0x138] sm:$0xf]
        %v580 = vld [vmem:[#allocation2 + $0x13c] sm:$0xf]
        %v581 = vld [vmem:[#allocation2 + $0x140] sm:$0xf]
        %v582 = vld [vmem:[#allocation2 + $0x144] sm:$0xf]
        %v583 = vld [vmem:[#allocation2 + $0x148] sm:$0x7]
        %v584 = vld [vmem:[%s2] sm:$0xf]
        %v585 = vld [vmem:[%s2 + $0x4] sm:$0xf]
        %v586 = vld [vmem:[%s2 + $0x8] sm:$0xf]
        %v587 = vld [vmem:[%s2 + $0xc] sm:$0xf]
        %v588 = vld [vmem:[%s2 + $0x10] sm:$0xf]
        %v589 = vld [vmem:[%s2 + $0x14] sm:$0xf]
        %v590 = vld [vmem:[%s2 + $0x18] sm:$0xf]
        %v591 = vld [vmem:[%s2 + $0x1c] sm:$0xf]
        %v592 = vld [vmem:[%s2 + $0x20] sm:$0xf]
        %v593 = vld [vmem:[%s2 + $0x24] sm:$0xf]
        %v594 = vld [vmem:[%s2 + $0x28] sm:$0xf]
        %v595 = vld [vmem:[%s2 + $0x2c] sm:$0xf]
        %v596 = vld [vmem:[%s2 + $0x30] sm:$0xf]
        %v597 = vld [vmem:[%s2 + $0x34] sm:$0xf]
        %v598 = vld [vmem:[%s2 + $0x38] sm:$0xf]
        %v599 = vld [vmem:[%s2 + $0x3c] sm:$0xf]
        %v600 = vld [vmem:[#allocation2 + $0x4] sm:$0x8]
        %s601 = scalar_lea.vmem %s2, 64
        %v602 = vld [vmem:[%s601] sm:$0xf]
        %v603 = vld [vmem:[%s601 + $0x4] sm:$0xf]
        %v604 = vld [vmem:[%s601 + $0x8] sm:$0xf]
        %v605 = vld [vmem:[%s601 + $0xc] sm:$0xf]
        %v606 = vld [vmem:[%s601 + $0x10] sm:$0xf]
        %v607 = vld [vmem:[%s601 + $0x14] sm:$0xf]
        %v608 = vld [vmem:[%s601 + $0x18] sm:$0xf]
        %v609 = vld [vmem:[%s601 + $0x1c] sm:$0xf]
        %v610 = vld [vmem:[%s601 + $0x20] sm:$0xf]
        %v611 = vld [vmem:[%s601 + $0x24] sm:$0xf]
        %v612 = vld [vmem:[%s601 + $0x28] sm:$0xf]
        %v613 = vld [vmem:[%s601 + $0x2c] sm:$0xf]
        %v614 = vld [vmem:[%s601 + $0x30] sm:$0xf]
        %v615 = vld [vmem:[%s601 + $0x34] sm:$0xf]
        %v616 = vld [vmem:[%s601 + $0x38] sm:$0xf]
        %v617 = vld [vmem:[%s601 + $0x3c] sm:$0xf]
        %v700 = vunpack.c.l.b16 %v600
        %v701 = vunpack.c.l.b16 %v503
        %v702 = vunpack.c.l.b16 %v504
        %v703 = vunpack.c.l.b16 %v505
        %v704 = vunpack.c.l.b16 %v506
        %v705 = vunpack.c.l.b16 %v507
        %v706 = vunpack.c.l.b16 %v508
        %v707 = vunpack.c.l.b16 %v509
        %v708 = vunpack.c.l.b16 %v510
        %v709 = vunpack.c.l.b16 %v511
        %v710 = vunpack.c.l.b16 %v512
        %v711 = vunpack.c.l.b16 %v513
        %v712 = vunpack.c.l.b16 %v514
        %v713 = vunpack.c.l.b16 %v515
        %v714 = vunpack.c.l.b16 %v516
        %v715 = vunpack.c.l.b16 %v517
        %v716 = vunpack.c.l.b16 %v518
        %v717 = vunpack.c.l.b16 %v519
        %v718 = vunpack.c.l.b16 %v520
        %v719 = vunpack.c.l.b16 %v521
        %v720 = vunpack.c.l.b16 %v522
        %v721 = vunpack.c.l.b16 %v523
        %v722 = vunpack.c.l.b16 %v524
        %v723 = vunpack.c.l.b16 %v525
        %v724 = vunpack.c.l.b16 %v526
        %v725 = vunpack.c.l.b16 %v527
        %v726 = vunpack.c.l.b16 %v528
        %v727 = vunpack.c.l.b16 %v529
        %v728 = vunpack.c.l.b16 %v530
        %v729 = vunpack.c.l.b16 %v531
        %v730 = vunpack.c.l.b16 %v532
        %v731 = vunpack.c.l.b16 %v533
        %v732 = vunpack.c.l.b16 %v534
        %v733 = vunpack.c.l.b16 %v535
        %v734 = vunpack.c.l.b16 %v536
        %v735 = vunpack.c.l.b16 %v537
        %v736 = vunpack.c.l.b16 %v538
        %v737 = vunpack.c.l.b16 %v539
        %v738 = vunpack.c.l.b16 %v540
        %v739 = vunpack.c.l.b16 %v541
        %v740 = vunpack.c.l.b16 %v542
        %v741 = vunpack.c.l.b16 %v543
        %v742 = vunpack.c.l.b16 %v544
        %v743 = vunpack.c.l.b16 %v545
        %v744 = vunpack.c.l.b16 %v546
        %v745 = vunpack.c.l.b16 %v547
        %v746 = vunpack.c.l.b16 %v548
        %v747 = vunpack.c.l.b16 %v549
        %v748 = vunpack.c.l.b16 %v550
        %v749 = vunpack.c.l.b16 %v551
        %v750 = vunpack.c.l.b16 %v552
        %v751 = vunpack.c.l.b16 %v553
        %v752 = vunpack.c.l.b16 %v554
        %v753 = vunpack.c.l.b16 %v555
        %v754 = vunpack.c.l.b16 %v556
        %v755 = vunpack.c.l.b16 %v557
        %v756 = vunpack.c.l.b16 %v558
        %v757 = vunpack.c.l.b16 %v559
        %v758 = vunpack.c.l.b16 %v560
        %v759 = vunpack.c.l.b16 %v561
        %v760 = vunpack.c.l.b16 %v562
        %v761 = vunpack.c.l.b16 %v563
        %v762 = vunpack.c.l.b16 %v564
        %v763 = vunpack.c.l.b16 %v565
        %v764 = vunpack.c.l.b16 %v566
        %v765 = vunpack.c.l.b16 %v567
        %v766 = vunpack.c.l.b16 %v568
        %v767 = vunpack.c.l.b16 %v569
        %v768 = vunpack.c.l.b16 %v570
        %v769 = vunpack.c.l.b16 %v571
        %v770 = vunpack.c.l.b16 %v572
        %v771 = vunpack.c.l.b16 %v573
        %v772 = vunpack.c.l.b16 %v574
        %v773 = vunpack.c.l.b16 %v575
        %v774 = vunpack.c.l.b16 %v576
        %v775 = vunpack.c.l.b16 %v577
        %v776 = vunpack.c.l.b16 %v578
        %v777 = vunpack.c.l.b16 %v579
        %v778 = vunpack.c.l.b16 %v580
        %v779 = vunpack.c.l.b16 %v581
        %v780 = vunpack.c.l.b16 %v582
        %v781 = vunpack.c.l.b16 %v583
        %v782 = vpack.c.b16 %v701, %v700
        %v783 = vpack.c.b16 %v703, %v702
        %v784 = vpack.c.b16 %v705, %v704
        %v785 = vpack.c.b16 %v707, %v706
        %v786 = vpack.c.b16 %v709, %v708
        %v787 = vpack.c.b16 %v711, %v710
        %v788 = vpack.c.b16 %v713, %v712
        %v789 = vpack.c.b16 %v715, %v714
        %v790 = vpack.c.b16 %v717, %v716
        %v791 = vpack.c.b16 %v719, %v718
        %v792 = vpack.c.b16 %v721, %v720
        %v793 = vpack.c.b16 %v723, %v722
        %v794 = vpack.c.b16 %v725, %v724
        %v795 = vpack.c.b16 %v727, %v726
        %v796 = vpack.c.b16 %v729, %v728
        %v797 = vpack.c.b16 %v731, %v730
        %v798 = vpack.c.b16 %v733, %v732
        %v799 = vpack.c.b16 %v735, %v734
        %v800 = vpack.c.b16 %v737, %v736
        %v801 = vpack.c.b16 %v739, %v738
        %v802 = vpack.c.b16 %v741, %v740
        %v803 = vpack.c.b16 %v743, %v742
        %v804 = vpack.c.b16 %v745, %v744
        %v805 = vpack.c.b16 %v747, %v746
        %v806 = vpack.c.b16 %v749, %v748
        %v807 = vpack.c.b16 %v751, %v750
        %v808 = vpack.c.b16 %v753, %v752
        %v809 = vpack.c.b16 %v755, %v754
        %v810 = vpack.c.b16 %v757, %v756
        %v811 = vpack.c.b16 %v759, %v758
        %v812 = vpack.c.b16 %v761, %v760
        %v813 = vpack.c.b16 %v763, %v762
        %v814 = vpack.c.b16 %v765, %v764
        %v815 = vpack.c.b16 %v767, %v766
        %v816 = vpack.c.b16 %v769, %v768
        %v817 = vpack.c.b16 %v771, %v770
        %v818 = vpack.c.b16 %v773, %v772
        %v819 = vpack.c.b16 %v775, %v774
        %v820 = vpack.c.b16 %v777, %v776
        %v821 = vpack.c.b16 %v779, %v778
        %v822 = vpack.c.b16 %v781, %v780
        %vm823 = vcmask 1044480
        %v824 = vrot.slane %v782, 3
        %v825 = vrot.slane %v783, 3
        %v826 = vsel %vm823, %v824, %v825
        %v827 = vrot.slane %v784, 3
        %v828 = vsel %vm823, %v825, %v827
        %v829 = vrot.slane %v785, 3
        %v830 = vsel %vm823, %v827, %v829
        %v831 = vrot.slane %v786, 3
        %v832 = vsel %vm823, %v829, %v831
        %v833 = vrot.slane %v787, 3
        %v834 = vsel %vm823, %v831, %v833
        %v835 = vrot.slane %v788, 3
        %v836 = vsel %vm823, %v833, %v835
        %v837 = vrot.slane %v789, 3
        %v838 = vsel %vm823, %v835, %v837
        %v839 = vrot.slane %v790, 3
        %v840 = vsel %vm823, %v837, %v839
        %v841 = vrot.slane %v791, 3
        %v842 = vsel %vm823, %v839, %v841
        %v843 = vrot.slane %v792, 3
        %v844 = vsel %vm823, %v841, %v843
        %v845 = vrot.slane %v793, 3
        %v846 = vsel %vm823, %v843, %v845
        %v847 = vrot.slane %v794, 3
        %v848 = vsel %vm823, %v845, %v847
        %v849 = vrot.slane %v795, 3
        %v850 = vsel %vm823, %v847, %v849
        %v851 = vrot.slane %v796, 3
        %v852 = vsel %vm823, %v849, %v851
        %v853 = vrot.slane %v797, 3
        %v854 = vsel %vm823, %v851, %v853
        %v855 = vrot.slane %v798, 3
        %v856 = vsel %vm823, %v853, %v855
        %v857 = vrot.slane %v799, 3
        %v858 = vsel %vm823, %v855, %v857
        %v859 = vrot.slane %v800, 3
        %v860 = vsel %vm823, %v857, %v859
        %v861 = vrot.slane %v801, 3
        %v862 = vsel %vm823, %v859, %v861
        %v863 = vrot.slane %v802, 3
        %v864 = vsel %vm823, %v861, %v863
        %v865 = vrot.slane %v803, 3
        %v866 = vsel %vm823, %v863, %v865
        %v867 = vrot.slane %v804, 3
        %v868 = vsel %vm823, %v865, %v867
        %v869 = vrot.slane %v805, 3
        %v870 = vsel %vm823, %v867, %v869
        %v871 = vrot.slane %v806, 3
        %v872 = vsel %vm823, %v869, %v871
        %v873 = vrot.slane %v807, 3
        %v874 = vsel %vm823, %v871, %v873
        %v875 = vrot.slane %v808, 3
        %v876 = vsel %vm823, %v873, %v875
        %v877 = vrot.slane %v809, 3
        %v878 = vsel %vm823, %v875, %v877
        %v879 = vrot.slane %v810, 3
        %v880 = vsel %vm823, %v877, %v879
        %v881 = vrot.slane %v811, 3
        %v882 = vsel %vm823, %v879, %v881
        %v883 = vrot.slane %v812, 3
        %v884 = vsel %vm823, %v881, %v883
        %v885 = vrot.slane %v813, 3
        %v886 = vsel %vm823, %v883, %v885
        %v887 = vrot.slane %v814, 3
        %v888 = vsel %vm823, %v885, %v887
        %v889 = vrot.slane %v815, 3
        %v890 = vsel %vm823, %v887, %v889
        %v891 = vrot.slane %v816, 3
        %v892 = vsel %vm823, %v889, %v891
        %v893 = vrot.slane %v817, 3
        %v894 = vsel %vm823, %v891, %v893
        %v895 = vrot.slane %v818, 3
        %v896 = vsel %vm823, %v893, %v895
        %v897 = vrot.slane %v819, 3
        %v898 = vsel %vm823, %v895, %v897
        %v899 = vrot.slane %v820, 3
        %v900 = vsel %vm823, %v897, %v899
        %v901 = vrot.slane %v821, 3
        %v902 = vsel %vm823, %v899, %v901
        %v903 = vrot.slane %v822, 3
        %v904 = vsel %vm823, %v901, %v903
        %v962 = vunpack.c.l.b16 %v602
        %v963 = vunpack.c.l.b16 %v603
        %v964 = vunpack.c.l.b16 %v604
        %v965 = vunpack.c.l.b16 %v605
        %v966 = vunpack.c.l.b16 %v606
        %v967 = vunpack.c.l.b16 %v607
        %v968 = vunpack.c.l.b16 %v608
        %v969 = vunpack.c.l.b16 %v609
        %v970 = vunpack.c.l.b16 %v610
        %v971 = vunpack.c.l.b16 %v611
        %v972 = vunpack.c.l.b16 %v612
        %v973 = vunpack.c.l.b16 %v613
        %v974 = vunpack.c.l.b16 %v614
        %v975 = vunpack.c.l.b16 %v615
        %v976 = vunpack.c.l.b16 %v616
        %v977 = vunpack.c.l.b16 %v617
        %v978 = vpack.c.b16 %v963, %v962
        %v979 = vpack.c.b16 %v965, %v964
        %v980 = vpack.c.b16 %v967, %v966
        %v981 = vpack.c.b16 %v969, %v968
        %v982 = vpack.c.b16 %v971, %v970
        %v983 = vpack.c.b16 %v973, %v972
        %v984 = vpack.c.b16 %v975, %v974
        %v985 = vpack.c.b16 %v977, %v976
        %994 = vmatpush.bf16.msra.mxu0 %v985
        %995 = vmatpush.bf16.msra.mxu0 %v984
        %996 = vmatpush.bf16.msra.mxu0 %v983
        %997 = vmatpush.bf16.msra.mxu0 %v982
        %998 = vmatpush.bf16.msra.mxu0 %v981
        %999 = vmatpush.bf16.msra.mxu0 %v980
        %1000 = vmatpush.bf16.msra.mxu0 %v979
        %1001 = vmatpush.bf16.msra.mxu0 %v978
        %1002 = vmatmul.bf16.gmra.mxu0 %v826
        %v1003 = vpop.f32.mrf.mxu0
        %v1004 = vadd.f32 0.0, %v1003
        %v1005 = vpop.f32.mrf.mxu0
        %v1006 = vadd.f32 0.0, %v1005
        %1007 = vmatmul.bf16.gmra.mxu0 %v828
        %v1008 = vpop.f32.mrf.mxu0
        %v1009 = vadd.f32 0.0, %v1008
        %v1010 = vpop.f32.mrf.mxu0
        %v1011 = vadd.f32 0.0, %v1010
        %1012 = vmatmul.bf16.gmra.mxu0 %v830
        %v1013 = vpop.f32.mrf.mxu0
        %v1014 = vadd.f32 0.0, %v1013
        %v1015 = vpop.f32.mrf.mxu0
        %v1016 = vadd.f32 0.0, %v1015
        %1017 = vmatmul.bf16.gmra.mxu0 %v832
        %v1018 = vpop.f32.mrf.mxu0
        %v1019 = vadd.f32 0.0, %v1018
        %v1020 = vpop.f32.mrf.mxu0
        %v1021 = vadd.f32 0.0, %v1020
        %1022 = vmatmul.bf16.gmra.mxu0 %v834
        %v1023 = vpop.f32.mrf.mxu0
        %v1024 = vadd.f32 0.0, %v1023
        %v1025 = vpop.f32.mrf.mxu0
        %v1026 = vadd.f32 0.0, %v1025
        %1027 = vmatmul.bf16.gmra.mxu0 %v836
        %v1028 = vpop.f32.mrf.mxu0
        %v1029 = vadd.f32 0.0, %v1028
        %v1030 = vpop.f32.mrf.mxu0
        %v1031 = vadd.f32 0.0, %v1030
        %1032 = vmatmul.bf16.gmra.mxu0 %v838
        %v1033 = vpop.f32.mrf.mxu0
        %v1034 = vadd.f32 0.0, %v1033
        %v1035 = vpop.f32.mrf.mxu0
        %v1036 = vadd.f32 0.0, %v1035
        %1037 = vmatmul.bf16.gmra.mxu0 %v840
        %v1038 = vpop.f32.mrf.mxu0
        %v1039 = vadd.f32 0.0, %v1038
        %v1040 = vpop.f32.mrf.mxu0
        %v1041 = vadd.f32 0.0, %v1040
        %1042 = vmatmul.bf16.gmra.mxu0 %v842
        %v1043 = vpop.f32.mrf.mxu0
        %v1044 = vadd.f32 0.0, %v1043
        %v1045 = vpop.f32.mrf.mxu0
        %v1046 = vadd.f32 0.0, %v1045
        %1047 = vmatmul.bf16.gmra.mxu0 %v844
        %v1048 = vpop.f32.mrf.mxu0
        %v1049 = vadd.f32 0.0, %v1048
        %v1050 = vpop.f32.mrf.mxu0
        %v1051 = vadd.f32 0.0, %v1050
        %1052 = vmatmul.bf16.gmra.mxu0 %v846
        %v1053 = vpop.f32.mrf.mxu0
        %v1054 = vadd.f32 0.0, %v1053
        %v1055 = vpop.f32.mrf.mxu0
        %v1056 = vadd.f32 0.0, %v1055
        %1057 = vmatmul.bf16.gmra.mxu0 %v848
        %v1058 = vpop.f32.mrf.mxu0
        %v1059 = vadd.f32 0.0, %v1058
        %v1060 = vpop.f32.mrf.mxu0
        %v1061 = vadd.f32 0.0, %v1060
        %1062 = vmatmul.bf16.gmra.mxu0 %v850
        %v1063 = vpop.f32.mrf.mxu0
        %v1064 = vadd.f32 0.0, %v1063
        %v1065 = vpop.f32.mrf.mxu0
        %v1066 = vadd.f32 0.0, %v1065
        %1067 = vmatmul.bf16.gmra.mxu0 %v852
        %v1068 = vpop.f32.mrf.mxu0
        %v1069 = vadd.f32 0.0, %v1068
        %v1070 = vpop.f32.mrf.mxu0
        %v1071 = vadd.f32 0.0, %v1070
        %1072 = vmatmul.bf16.gmra.mxu0 %v854
        %v1073 = vpop.f32.mrf.mxu0
        %v1074 = vadd.f32 0.0, %v1073
        %v1075 = vpop.f32.mrf.mxu0
        %v1076 = vadd.f32 0.0, %v1075
        %1077 = vmatmul.bf16.gmra.mxu0 %v856
        %v1078 = vpop.f32.mrf.mxu0
        %v1079 = vadd.f32 0.0, %v1078
        %v1080 = vpop.f32.mrf.mxu0
        %v1081 = vadd.f32 0.0, %v1080
        %1082 = vmatmul.bf16.gmra.mxu0 %v858
        %v1083 = vpop.f32.mrf.mxu0
        %v1084 = vadd.f32 0.0, %v1083
        %v1085 = vpop.f32.mrf.mxu0
        %v1086 = vadd.f32 0.0, %v1085
        %1087 = vmatmul.bf16.gmra.mxu0 %v860
        %v1088 = vpop.f32.mrf.mxu0
        %v1089 = vadd.f32 0.0, %v1088
        %v1090 = vpop.f32.mrf.mxu0
        %v1091 = vadd.f32 0.0, %v1090
        %1092 = vmatmul.bf16.gmra.mxu0 %v862
        %v1093 = vpop.f32.mrf.mxu0
        %v1094 = vadd.f32 0.0, %v1093
        %v1095 = vpop.f32.mrf.mxu0
        %v1096 = vadd.f32 0.0, %v1095
        %1097 = vmatmul.bf16.gmra.mxu0 %v864
        %v1098 = vpop.f32.mrf.mxu0
        %v1099 = vadd.f32 0.0, %v1098
        %v1100 = vpop.f32.mrf.mxu0
        %v1101 = vadd.f32 0.0, %v1100
        %1102 = vmatmul.bf16.gmra.mxu0 %v866
        %v1103 = vpop.f32.mrf.mxu0
        %v1104 = vadd.f32 0.0, %v1103
        %v1105 = vpop.f32.mrf.mxu0
        %v1106 = vadd.f32 0.0, %v1105
        %1107 = vmatmul.bf16.gmra.mxu0 %v868
        %v1108 = vpop.f32.mrf.mxu0
        %v1109 = vadd.f32 0.0, %v1108
        %v1110 = vpop.f32.mrf.mxu0
        %v1111 = vadd.f32 0.0, %v1110
        %1112 = vmatmul.bf16.gmra.mxu0 %v870
        %v1113 = vpop.f32.mrf.mxu0
        %v1114 = vadd.f32 0.0, %v1113
        %v1115 = vpop.f32.mrf.mxu0
        %v1116 = vadd.f32 0.0, %v1115
        %1117 = vmatmul.bf16.gmra.mxu0 %v872
        %v1118 = vpop.f32.mrf.mxu0
        %v1119 = vadd.f32 0.0, %v1118
        %v1120 = vpop.f32.mrf.mxu0
        %v1121 = vadd.f32 0.0, %v1120
        %1122 = vmatmul.bf16.gmra.mxu0 %v874
        %v1123 = vpop.f32.mrf.mxu0
        %v1124 = vadd.f32 0.0, %v1123
        %v1125 = vpop.f32.mrf.mxu0
        %v1126 = vadd.f32 0.0, %v1125
        %1127 = vmatmul.bf16.gmra.mxu0 %v876
        %v1128 = vpop.f32.mrf.mxu0
        %v1129 = vadd.f32 0.0, %v1128
        %v1130 = vpop.f32.mrf.mxu0
        %v1131 = vadd.f32 0.0, %v1130
        %1132 = vmatmul.bf16.gmra.mxu0 %v878
        %v1133 = vpop.f32.mrf.mxu0
        %v1134 = vadd.f32 0.0, %v1133
        %v1135 = vpop.f32.mrf.mxu0
        %v1136 = vadd.f32 0.0, %v1135
        %1137 = vmatmul.bf16.gmra.mxu0 %v880
        %v1138 = vpop.f32.mrf.mxu0
        %v1139 = vadd.f32 0.0, %v1138
        %v1140 = vpop.f32.mrf.mxu0
        %v1141 = vadd.f32 0.0, %v1140
        %1142 = vmatmul.bf16.gmra.mxu0 %v882
        %v1143 = vpop.f32.mrf.mxu0
        %v1144 = vadd.f32 0.0, %v1143
        %v1145 = vpop.f32.mrf.mxu0
        %v1146 = vadd.f32 0.0, %v1145
        %1147 = vmatmul.bf16.gmra.mxu0 %v884
        %v1148 = vpop.f32.mrf.mxu0
        %v1149 = vadd.f32 0.0, %v1148
        %v1150 = vpop.f32.mrf.mxu0
        %v1151 = vadd.f32 0.0, %v1150
        %1152 = vmatmul.bf16.gmra.mxu0 %v886
        %v1153 = vpop.f32.mrf.mxu0
        %v1154 = vadd.f32 0.0, %v1153
        %v1155 = vpop.f32.mrf.mxu0
        %v1156 = vadd.f32 0.0, %v1155
        %1157 = vmatmul.bf16.gmra.mxu0 %v888
        %v1158 = vpop.f32.mrf.mxu0
        %v1159 = vadd.f32 0.0, %v1158
        %v1160 = vpop.f32.mrf.mxu0
        %v1161 = vadd.f32 0.0, %v1160
        %1162 = vmatmul.bf16.gmra.mxu0 %v890
        %v1163 = vpop.f32.mrf.mxu0
        %v1164 = vadd.f32 0.0, %v1163
        %v1165 = vpop.f32.mrf.mxu0
        %v1166 = vadd.f32 0.0, %v1165
        %1167 = vmatmul.bf16.gmra.mxu0 %v892
        %v1168 = vpop.f32.mrf.mxu0
        %v1169 = vadd.f32 0.0, %v1168
        %v1170 = vpop.f32.mrf.mxu0
        %v1171 = vadd.f32 0.0, %v1170
        %1172 = vmatmul.bf16.gmra.mxu0 %v894
        %v1173 = vpop.f32.mrf.mxu0
        %v1174 = vadd.f32 0.0, %v1173
        %v1175 = vpop.f32.mrf.mxu0
        %v1176 = vadd.f32 0.0, %v1175
        %1177 = vmatmul.bf16.gmra.mxu0 %v896
        %v1178 = vpop.f32.mrf.mxu0
        %v1179 = vadd.f32 0.0, %v1178
        %v1180 = vpop.f32.mrf.mxu0
        %v1181 = vadd.f32 0.0, %v1180
        %1182 = vmatmul.bf16.gmra.mxu0 %v898
        %v1183 = vpop.f32.mrf.mxu0
        %v1184 = vadd.f32 0.0, %v1183
        %v1185 = vpop.f32.mrf.mxu0
        %v1186 = vadd.f32 0.0, %v1185
        %1187 = vmatmul.bf16.gmra.mxu0 %v900
        %v1188 = vpop.f32.mrf.mxu0
        %v1189 = vadd.f32 0.0, %v1188
        %v1190 = vpop.f32.mrf.mxu0
        %v1191 = vadd.f32 0.0, %v1190
        %1192 = vmatmul.bf16.gmra.mxu0 %v902
        %v1193 = vpop.f32.mrf.mxu0
        %v1194 = vadd.f32 0.0, %v1193
        %v1195 = vpop.f32.mrf.mxu0
        %v1196 = vadd.f32 0.0, %v1195
        %1197 = vmatmul.bf16.gmra.mxu0 %v904
        %v1198 = vpop.f32.mrf.mxu0
        %v1199 = vadd.f32 0.0, %v1198
        %v1200 = vpop.f32.mrf.mxu0
        %v1201 = vadd.f32 0.0, %v1200
        %1202 = vmatmul.bf16.gmra.mxu0 %v903
        %v1203 = vpop.f32.mrf.mxu0
        %v1204 = vadd.f32 0.0, %v1203
        %v1205 = vpop.f32.mrf.mxu0
        %1206 = vdwg.mxu0
        %v1208 = vunpack.c.l.b16 %v502
        %v1209 = vpack.c.b16 %v701, %v1208
        %vm1210 = vsmask.f32 5376
        %v1212 = vshrl.u32 %v1209, 16
        %v1214 = vrot.slane %v1212, 2
        %v1215 = vshll.u32 %v1209, 16
        %v1217 = vrot.slane %v1215, 3
        %v1218 = vor.u32 %v1214, %v1217
        %v1220 = vshrl.u32 %v783, 16
        %v1222 = vrot.slane %v1220, 2
        %v1223 = vshll.u32 %v783, 16
        %v1225 = vrot.slane %v1223, 3
        %v1226 = vor.u32 %v1222, %v1225
        %v1227 = vsel %vm1210, %v1218, %v1226
        %v1229 = vshrl.u32 %v784, 16
        %v1231 = vrot.slane %v1229, 2
        %v1232 = vshll.u32 %v784, 16
        %v1234 = vrot.slane %v1232, 3
        %v1235 = vor.u32 %v1231, %v1234
        %v1236 = vsel %vm1210, %v1226, %v1235
        %v1238 = vshrl.u32 %v785, 16
        %v1240 = vrot.slane %v1238, 2
        %v1241 = vshll.u32 %v785, 16
        %v1243 = vrot.slane %v1241, 3
        %v1244 = vor.u32 %v1240, %v1243
        %v1245 = vsel %vm1210, %v1235, %v1244
        %v1247 = vshrl.u32 %v786, 16
        %v1249 = vrot.slane %v1247, 2
        %v1250 = vshll.u32 %v786, 16
        %v1252 = vrot.slane %v1250, 3
        %v1253 = vor.u32 %v1249, %v1252
        %v1254 = vsel %vm1210, %v1244, %v1253
        %v1256 = vshrl.u32 %v787, 16
        %v1258 = vrot.slane %v1256, 2
        %v1259 = vshll.u32 %v787, 16
        %v1261 = vrot.slane %v1259, 3
        %v1262 = vor.u32 %v1258, %v1261
        %v1263 = vsel %vm1210, %v1253, %v1262
        %v1265 = vshrl.u32 %v788, 16
        %v1267 = vrot.slane %v1265, 2
        %v1268 = vshll.u32 %v788, 16
        %v1270 = vrot.slane %v1268, 3
        %v1271 = vor.u32 %v1267, %v1270
        %v1272 = vsel %vm1210, %v1262, %v1271
        %v1274 = vshrl.u32 %v789, 16
        %v1276 = vrot.slane %v1274, 2
        %v1277 = vshll.u32 %v789, 16
        %v1279 = vrot.slane %v1277, 3
        %v1280 = vor.u32 %v1276, %v1279
        %v1281 = vsel %vm1210, %v1271, %v1280
        %v1283 = vshrl.u32 %v790, 16
        %v1285 = vrot.slane %v1283, 2
        %v1286 = vshll.u32 %v790, 16
        %v1288 = vrot.slane %v1286, 3
        %v1289 = vor.u32 %v1285, %v1288
        %v1290 = vsel %vm1210, %v1280, %v1289
        %v1292 = vshrl.u32 %v791, 16
        %v1294 = vrot.slane %v1292, 2
        %v1295 = vshll.u32 %v791, 16
        %v1297 = vrot.slane %v1295, 3
        %v1298 = vor.u32 %v1294, %v1297
        %v1299 = vsel %vm1210, %v1289, %v1298
        %v1301 = vshrl.u32 %v792, 16
        %v1303 = vrot.slane %v1301, 2
        %v1304 = vshll.u32 %v792, 16
        %v1306 = vrot.slane %v1304, 3
        %v1307 = vor.u32 %v1303, %v1306
        %v1308 = vsel %vm1210, %v1298, %v1307
        %v1310 = vshrl.u32 %v793, 16
        %v1312 = vrot.slane %v1310, 2
        %v1313 = vshll.u32 %v793, 16
        %v1315 = vrot.slane %v1313, 3
        %v1316 = vor.u32 %v1312, %v1315
        %v1317 = vsel %vm1210, %v1307, %v1316
        %v1319 = vshrl.u32 %v794, 16
        %v1321 = vrot.slane %v1319, 2
        %v1322 = vshll.u32 %v794, 16
        %v1324 = vrot.slane %v1322, 3
        %v1325 = vor.u32 %v1321, %v1324
        %v1326 = vsel %vm1210, %v1316, %v1325
        %v1328 = vshrl.u32 %v795, 16
        %v1330 = vrot.slane %v1328, 2
        %v1331 = vshll.u32 %v795, 16
        %v1333 = vrot.slane %v1331, 3
        %v1334 = vor.u32 %v1330, %v1333
        %v1335 = vsel %vm1210, %v1325, %v1334
        %v1337 = vshrl.u32 %v796, 16
        %v1339 = vrot.slane %v1337, 2
        %v1340 = vshll.u32 %v796, 16
        %v1342 = vrot.slane %v1340, 3
        %v1343 = vor.u32 %v1339, %v1342
        %v1344 = vsel %vm1210, %v1334, %v1343
        %v1346 = vshrl.u32 %v797, 16
        %v1348 = vrot.slane %v1346, 2
        %v1349 = vshll.u32 %v797, 16
        %v1351 = vrot.slane %v1349, 3
        %v1352 = vor.u32 %v1348, %v1351
        %v1353 = vsel %vm1210, %v1343, %v1352
        %v1355 = vshrl.u32 %v798, 16
        %v1357 = vrot.slane %v1355, 2
        %v1358 = vshll.u32 %v798, 16
        %v1360 = vrot.slane %v1358, 3
        %v1361 = vor.u32 %v1357, %v1360
        %v1362 = vsel %vm1210, %v1352, %v1361
        %v1364 = vshrl.u32 %v799, 16
        %v1366 = vrot.slane %v1364, 2
        %v1367 = vshll.u32 %v799, 16
        %v1369 = vrot.slane %v1367, 3
        %v1370 = vor.u32 %v1366, %v1369
        %v1371 = vsel %vm1210, %v1361, %v1370
        %v1373 = vshrl.u32 %v800, 16
        %v1375 = vrot.slane %v1373, 2
        %v1376 = vshll.u32 %v800, 16
        %v1378 = vrot.slane %v1376, 3
        %v1379 = vor.u32 %v1375, %v1378
        %v1380 = vsel %vm1210, %v1370, %v1379
        %v1382 = vshrl.u32 %v801, 16
        %v1384 = vrot.slane %v1382, 2
        %v1385 = vshll.u32 %v801, 16
        %v1387 = vrot.slane %v1385, 3
        %v1388 = vor.u32 %v1384, %v1387
        %v1389 = vsel %vm1210, %v1379, %v1388
        %v1391 = vshrl.u32 %v802, 16
        %v1393 = vrot.slane %v1391, 2
        %v1394 = vshll.u32 %v802, 16
        %v1396 = vrot.slane %v1394, 3
        %v1397 = vor.u32 %v1393, %v1396
        %v1398 = vsel %vm1210, %v1388, %v1397
        %v1400 = vshrl.u32 %v803, 16
        %v1402 = vrot.slane %v1400, 2
        %v1403 = vshll.u32 %v803, 16
        %v1405 = vrot.slane %v1403, 3
        %v1406 = vor.u32 %v1402, %v1405
        %v1407 = vsel %vm1210, %v1397, %v1406
        %v1409 = vshrl.u32 %v804, 16
        %v1411 = vrot.slane %v1409, 2
        %v1412 = vshll.u32 %v804, 16
        %v1414 = vrot.slane %v1412, 3
        %v1415 = vor.u32 %v1411, %v1414
        %v1416 = vsel %vm1210, %v1406, %v1415
        %v1418 = vshrl.u32 %v805, 16
        %v1420 = vrot.slane %v1418, 2
        %v1421 = vshll.u32 %v805, 16
        %v1423 = vrot.slane %v1421, 3
        %v1424 = vor.u32 %v1420, %v1423
        %v1425 = vsel %vm1210, %v1415, %v1424
        %v1427 = vshrl.u32 %v806, 16
        %v1429 = vrot.slane %v1427, 2
        %v1430 = vshll.u32 %v806, 16
        %v1432 = vrot.slane %v1430, 3
        %v1433 = vor.u32 %v1429, %v1432
        %v1434 = vsel %vm1210, %v1424, %v1433
        %v1436 = vshrl.u32 %v807, 16
        %v1438 = vrot.slane %v1436, 2
        %v1439 = vshll.u32 %v807, 16
        %v1441 = vrot.slane %v1439, 3
        %v1442 = vor.u32 %v1438, %v1441
        %v1443 = vsel %vm1210, %v1433, %v1442
        %v1445 = vshrl.u32 %v808, 16
        %v1447 = vrot.slane %v1445, 2
        %v1448 = vshll.u32 %v808, 16
        %v1450 = vrot.slane %v1448, 3
        %v1451 = vor.u32 %v1447, %v1450
        %v1452 = vsel %vm1210, %v1442, %v1451
        %v1454 = vshrl.u32 %v809, 16
        %v1456 = vrot.slane %v1454, 2
        %v1457 = vshll.u32 %v809, 16
        %v1459 = vrot.slane %v1457, 3
        %v1460 = vor.u32 %v1456, %v1459
        %v1461 = vsel %vm1210, %v1451, %v1460
        %v1463 = vshrl.u32 %v810, 16
        %v1465 = vrot.slane %v1463, 2
        %v1466 = vshll.u32 %v810, 16
        %v1468 = vrot.slane %v1466, 3
        %v1469 = vor.u32 %v1465, %v1468
        %v1470 = vsel %vm1210, %v1460, %v1469
        %v1472 = vshrl.u32 %v811, 16
        %v1474 = vrot.slane %v1472, 2
        %v1475 = vshll.u32 %v811, 16
        %v1477 = vrot.slane %v1475, 3
        %v1478 = vor.u32 %v1474, %v1477
        %v1479 = vsel %vm1210, %v1469, %v1478
        %v1481 = vshrl.u32 %v812, 16
        %v1483 = vrot.slane %v1481, 2
        %v1484 = vshll.u32 %v812, 16
        %v1486 = vrot.slane %v1484, 3
        %v1487 = vor.u32 %v1483, %v1486
        %v1488 = vsel %vm1210, %v1478, %v1487
        %v1490 = vshrl.u32 %v813, 16
        %v1492 = vrot.slane %v1490, 2
        %v1493 = vshll.u32 %v813, 16
        %v1495 = vrot.slane %v1493, 3
        %v1496 = vor.u32 %v1492, %v1495
        %v1497 = vsel %vm1210, %v1487, %v1496
        %v1499 = vshrl.u32 %v814, 16
        %v1501 = vrot.slane %v1499, 2
        %v1502 = vshll.u32 %v814, 16
        %v1504 = vrot.slane %v1502, 3
        %v1505 = vor.u32 %v1501, %v1504
        %v1506 = vsel %vm1210, %v1496, %v1505
        %v1508 = vshrl.u32 %v815, 16
        %v1510 = vrot.slane %v1508, 2
        %v1511 = vshll.u32 %v815, 16
        %v1513 = vrot.slane %v1511, 3
        %v1514 = vor.u32 %v1510, %v1513
        %v1515 = vsel %vm1210, %v1505, %v1514
        %v1517 = vshrl.u32 %v816, 16
        %v1519 = vrot.slane %v1517, 2
        %v1520 = vshll.u32 %v816, 16
        %v1522 = vrot.slane %v1520, 3
        %v1523 = vor.u32 %v1519, %v1522
        %v1524 = vsel %vm1210, %v1514, %v1523
        %v1526 = vshrl.u32 %v817, 16
        %v1528 = vrot.slane %v1526, 2
        %v1529 = vshll.u32 %v817, 16
        %v1531 = vrot.slane %v1529, 3
        %v1532 = vor.u32 %v1528, %v1531
        %v1533 = vsel %vm1210, %v1523, %v1532
        %v1535 = vshrl.u32 %v818, 16
        %v1537 = vrot.slane %v1535, 2
        %v1538 = vshll.u32 %v818, 16
        %v1540 = vrot.slane %v1538, 3
        %v1541 = vor.u32 %v1537, %v1540
        %v1542 = vsel %vm1210, %v1532, %v1541
        %v1544 = vshrl.u32 %v819, 16
        %v1546 = vrot.slane %v1544, 2
        %v1547 = vshll.u32 %v819, 16
        %v1549 = vrot.slane %v1547, 3
        %v1550 = vor.u32 %v1546, %v1549
        %v1551 = vsel %vm1210, %v1541, %v1550
        %v1553 = vshrl.u32 %v820, 16
        %v1555 = vrot.slane %v1553, 2
        %v1556 = vshll.u32 %v820, 16
        %v1558 = vrot.slane %v1556, 3
        %v1559 = vor.u32 %v1555, %v1558
        %v1560 = vsel %vm1210, %v1550, %v1559
        %v1562 = vshrl.u32 %v821, 16
        %v1564 = vrot.slane %v1562, 2
        %v1565 = vshll.u32 %v821, 16
        %v1567 = vrot.slane %v1565, 3
        %v1568 = vor.u32 %v1564, %v1567
        %v1569 = vsel %vm1210, %v1559, %v1568
        %v1571 = vshrl.u32 %v822, 16
        %v1573 = vrot.slane %v1571, 2
        %v1574 = vshll.u32 %v822, 16
        %v1576 = vrot.slane %v1574, 3
        %v1577 = vor.u32 %v1573, %v1576
        %v1578 = vsel %vm1210, %v1568, %v1577
        %v1636 = vunpack.c.l.b16 %v584
        %v1637 = vunpack.c.l.b16 %v585
        %v1638 = vunpack.c.l.b16 %v586
        %v1639 = vunpack.c.l.b16 %v587
        %v1640 = vunpack.c.l.b16 %v588
        %v1641 = vunpack.c.l.b16 %v589
        %v1642 = vunpack.c.l.b16 %v590
        %v1643 = vunpack.c.l.b16 %v591
        %v1644 = vunpack.c.l.b16 %v592
        %v1645 = vunpack.c.l.b16 %v593
        %v1646 = vunpack.c.l.b16 %v594
        %v1647 = vunpack.c.l.b16 %v595
        %v1648 = vunpack.c.l.b16 %v596
        %v1649 = vunpack.c.l.b16 %v597
        %v1650 = vunpack.c.l.b16 %v598
        %v1651 = vunpack.c.l.b16 %v599
        %v1652 = vpack.c.b16 %v1637, %v1636
        %v1653 = vpack.c.b16 %v1639, %v1638
        %v1654 = vpack.c.b16 %v1641, %v1640
        %v1655 = vpack.c.b16 %v1643, %v1642
        %v1656 = vpack.c.b16 %v1645, %v1644
        %v1657 = vpack.c.b16 %v1647, %v1646
        %v1658 = vpack.c.b16 %v1649, %v1648
        %v1659 = vpack.c.b16 %v1651, %v1650
        %1668 = vmatpush.bf16.msra.mxu0 %v1659
        %1669 = vmatpush.bf16.msra.mxu0 %v1658
        %1670 = vmatpush.bf16.msra.mxu0 %v1657
        %1671 = vmatpush.bf16.msra.mxu0 %v1656
        %1672 = vmatpush.bf16.msra.mxu0 %v1655
        %1673 = vmatpush.bf16.msra.mxu0 %v1654
        %1674 = vmatpush.bf16.msra.mxu0 %v1653
        %1675 = vmatpush.bf16.msra.mxu0 %v1652
        %1676 = vmatmul.bf16.gmra.mxu0 %v1227
        %v1677 = vpop.f32.mrf.mxu0
        %v1678 = vadd.f32 %v1004, %v1677
        %v1679 = vpop.f32.mrf.mxu0
        %v1680 = vadd.f32 %v1006, %v1679
        %1681 = vmatmul.bf16.gmra.mxu0 %v1236
        %v1682 = vpop.f32.mrf.mxu0
        %v1683 = vadd.f32 %v1009, %v1682
        %v1684 = vpop.f32.mrf.mxu0
        %v1685 = vadd.f32 %v1011, %v1684
        %1686 = vmatmul.bf16.gmra.mxu0 %v1245
        %v1687 = vpop.f32.mrf.mxu0
        %v1688 = vadd.f32 %v1014, %v1687
        %v1689 = vpop.f32.mrf.mxu0
        %v1690 = vadd.f32 %v1016, %v1689
        %1691 = vmatmul.bf16.gmra.mxu0 %v1254
        %v1692 = vpop.f32.mrf.mxu0
        %v1693 = vadd.f32 %v1019, %v1692
        %v1694 = vpop.f32.mrf.mxu0
        %v1695 = vadd.f32 %v1021, %v1694
        %1696 = vmatmul.bf16.gmra.mxu0 %v1263
        %v1697 = vpop.f32.mrf.mxu0
        %v1698 = vadd.f32 %v1024, %v1697
        %v1699 = vpop.f32.mrf.mxu0
        %v1700 = vadd.f32 %v1026, %v1699
        %1701 = vmatmul.bf16.gmra.mxu0 %v1272
        %v1702 = vpop.f32.mrf.mxu0
        %v1703 = vadd.f32 %v1029, %v1702
        %v1704 = vpop.f32.mrf.mxu0
        %v1705 = vadd.f32 %v1031, %v1704
        %1706 = vmatmul.bf16.gmra.mxu0 %v1281
        %v1707 = vpop.f32.mrf.mxu0
        %v1708 = vadd.f32 %v1034, %v1707
        %v1709 = vpop.f32.mrf.mxu0
        %v1710 = vadd.f32 %v1036, %v1709
        %1711 = vmatmul.bf16.gmra.mxu0 %v1290
        %v1712 = vpop.f32.mrf.mxu0
        %v1713 = vadd.f32 %v1039, %v1712
        %v1714 = vpop.f32.mrf.mxu0
        %v1715 = vadd.f32 %v1041, %v1714
        %1716 = vmatmul.bf16.gmra.mxu0 %v1299
        %v1717 = vpop.f32.mrf.mxu0
        %v1718 = vadd.f32 %v1044, %v1717
        %v1719 = vpop.f32.mrf.mxu0
        %v1720 = vadd.f32 %v1046, %v1719
        %1721 = vmatmul.bf16.gmra.mxu0 %v1308
        %v1722 = vpop.f32.mrf.mxu0
        %v1723 = vadd.f32 %v1049, %v1722
        %v1724 = vpop.f32.mrf.mxu0
        %v1725 = vadd.f32 %v1051, %v1724
        %1726 = vmatmul.bf16.gmra.mxu0 %v1317
        %v1727 = vpop.f32.mrf.mxu0
        %v1728 = vadd.f32 %v1054, %v1727
        %v1729 = vpop.f32.mrf.mxu0
        %v1730 = vadd.f32 %v1056, %v1729
        %1731 = vmatmul.bf16.gmra.mxu0 %v1326
        %v1732 = vpop.f32.mrf.mxu0
        %v1733 = vadd.f32 %v1059, %v1732
        %v1734 = vpop.f32.mrf.mxu0
        %v1735 = vadd.f32 %v1061, %v1734
        %1736 = vmatmul.bf16.gmra.mxu0 %v1335
        %v1737 = vpop.f32.mrf.mxu0
        %v1738 = vadd.f32 %v1064, %v1737
        %v1739 = vpop.f32.mrf.mxu0
        %v1740 = vadd.f32 %v1066, %v1739
        %1741 = vmatmul.bf16.gmra.mxu0 %v1344
        %v1742 = vpop.f32.mrf.mxu0
        %v1743 = vadd.f32 %v1069, %v1742
        %v1744 = vpop.f32.mrf.mxu0
        %v1745 = vadd.f32 %v1071, %v1744
        %1746 = vmatmul.bf16.gmra.mxu0 %v1353
        %v1747 = vpop.f32.mrf.mxu0
        %v1748 = vadd.f32 %v1074, %v1747
        %v1749 = vpop.f32.mrf.mxu0
        %v1750 = vadd.f32 %v1076, %v1749
        %1751 = vmatmul.bf16.gmra.mxu0 %v1362
        %v1752 = vpop.f32.mrf.mxu0
        %v1753 = vadd.f32 %v1079, %v1752
        %v1754 = vpop.f32.mrf.mxu0
        %v1755 = vadd.f32 %v1081, %v1754
        %1756 = vmatmul.bf16.gmra.mxu0 %v1371
        %v1757 = vpop.f32.mrf.mxu0
        %v1758 = vadd.f32 %v1084, %v1757
        %v1759 = vpop.f32.mrf.mxu0
        %v1760 = vadd.f32 %v1086, %v1759
        %1761 = vmatmul.bf16.gmra.mxu0 %v1380
        %v1762 = vpop.f32.mrf.mxu0
        %v1763 = vadd.f32 %v1089, %v1762
        %v1764 = vpop.f32.mrf.mxu0
        %v1765 = vadd.f32 %v1091, %v1764
        %1766 = vmatmul.bf16.gmra.mxu0 %v1389
        %v1767 = vpop.f32.mrf.mxu0
        %v1768 = vadd.f32 %v1094, %v1767
        %v1769 = vpop.f32.mrf.mxu0
        %v1770 = vadd.f32 %v1096, %v1769
        %1771 = vmatmul.bf16.gmra.mxu0 %v1398
        %v1772 = vpop.f32.mrf.mxu0
        %v1773 = vadd.f32 %v1099, %v1772
        %v1774 = vpop.f32.mrf.mxu0
        %v1775 = vadd.f32 %v1101, %v1774
        %1776 = vmatmul.bf16.gmra.mxu0 %v1407
        %v1777 = vpop.f32.mrf.mxu0
        %v1778 = vadd.f32 %v1104, %v1777
        %v1779 = vpop.f32.mrf.mxu0
        %v1780 = vadd.f32 %v1106, %v1779
        %1781 = vmatmul.bf16.gmra.mxu0 %v1416
        %v1782 = vpop.f32.mrf.mxu0
        %v1783 = vadd.f32 %v1109, %v1782
        %v1784 = vpop.f32.mrf.mxu0
        %v1785 = vadd.f32 %v1111, %v1784
        %1786 = vmatmul.bf16.gmra.mxu0 %v1425
        %v1787 = vpop.f32.mrf.mxu0
        %v1788 = vadd.f32 %v1114, %v1787
        %v1789 = vpop.f32.mrf.mxu0
        %v1790 = vadd.f32 %v1116, %v1789
        %1791 = vmatmul.bf16.gmra.mxu0 %v1434
        %v1792 = vpop.f32.mrf.mxu0
        %v1793 = vadd.f32 %v1119, %v1792
        %v1794 = vpop.f32.mrf.mxu0
        %v1795 = vadd.f32 %v1121, %v1794
        %1796 = vmatmul.bf16.gmra.mxu0 %v1443
        %v1797 = vpop.f32.mrf.mxu0
        %v1798 = vadd.f32 %v1124, %v1797
        %v1799 = vpop.f32.mrf.mxu0
        %v1800 = vadd.f32 %v1126, %v1799
        %1801 = vmatmul.bf16.gmra.mxu0 %v1452
        %v1802 = vpop.f32.mrf.mxu0
        %v1803 = vadd.f32 %v1129, %v1802
        %v1804 = vpop.f32.mrf.mxu0
        %v1805 = vadd.f32 %v1131, %v1804
        %1806 = vmatmul.bf16.gmra.mxu0 %v1461
        %v1807 = vpop.f32.mrf.mxu0
        %v1808 = vadd.f32 %v1134, %v1807
        %v1809 = vpop.f32.mrf.mxu0
        %v1810 = vadd.f32 %v1136, %v1809
        %1811 = vmatmul.bf16.gmra.mxu0 %v1470
        %v1812 = vpop.f32.mrf.mxu0
        %v1813 = vadd.f32 %v1139, %v1812
        %v1814 = vpop.f32.mrf.mxu0
        %v1815 = vadd.f32 %v1141, %v1814
        %1816 = vmatmul.bf16.gmra.mxu0 %v1479
        %v1817 = vpop.f32.mrf.mxu0
        %v1818 = vadd.f32 %v1144, %v1817
        %v1819 = vpop.f32.mrf.mxu0
        %v1820 = vadd.f32 %v1146, %v1819
        %1821 = vmatmul.bf16.gmra.mxu0 %v1488
        %v1822 = vpop.f32.mrf.mxu0
        %v1823 = vadd.f32 %v1149, %v1822
        %v1824 = vpop.f32.mrf.mxu0
        %v1825 = vadd.f32 %v1151, %v1824
        %1826 = vmatmul.bf16.gmra.mxu0 %v1497
        %v1827 = vpop.f32.mrf.mxu0
        %v1828 = vadd.f32 %v1154, %v1827
        %v1829 = vpop.f32.mrf.mxu0
        %v1830 = vadd.f32 %v1156, %v1829
        %1831 = vmatmul.bf16.gmra.mxu0 %v1506
        %v1832 = vpop.f32.mrf.mxu0
        %v1833 = vadd.f32 %v1159, %v1832
        %v1834 = vpop.f32.mrf.mxu0
        %v1835 = vadd.f32 %v1161, %v1834
        %1836 = vmatmul.bf16.gmra.mxu0 %v1515
        %v1837 = vpop.f32.mrf.mxu0
        %v1838 = vadd.f32 %v1164, %v1837
        %v1839 = vpop.f32.mrf.mxu0
        %v1840 = vadd.f32 %v1166, %v1839
        %1841 = vmatmul.bf16.gmra.mxu0 %v1524
        %v1842 = vpop.f32.mrf.mxu0
        %v1843 = vadd.f32 %v1169, %v1842
        %v1844 = vpop.f32.mrf.mxu0
        %v1845 = vadd.f32 %v1171, %v1844
        %1846 = vmatmul.bf16.gmra.mxu0 %v1533
        %v1847 = vpop.f32.mrf.mxu0
        %v1848 = vadd.f32 %v1174, %v1847
        %v1849 = vpop.f32.mrf.mxu0
        %v1850 = vadd.f32 %v1176, %v1849
        %1851 = vmatmul.bf16.gmra.mxu0 %v1542
        %v1852 = vpop.f32.mrf.mxu0
        %v1853 = vadd.f32 %v1179, %v1852
        %v1854 = vpop.f32.mrf.mxu0
        %v1855 = vadd.f32 %v1181, %v1854
        %1856 = vmatmul.bf16.gmra.mxu0 %v1551
        %v1857 = vpop.f32.mrf.mxu0
        %v1858 = vadd.f32 %v1184, %v1857
        %v1859 = vpop.f32.mrf.mxu0
        %v1860 = vadd.f32 %v1186, %v1859
        %1861 = vmatmul.bf16.gmra.mxu0 %v1560
        %v1862 = vpop.f32.mrf.mxu0
        %v1863 = vadd.f32 %v1189, %v1862
        %v1864 = vpop.f32.mrf.mxu0
        %v1865 = vadd.f32 %v1191, %v1864
        %1866 = vmatmul.bf16.gmra.mxu0 %v1569
        %v1867 = vpop.f32.mrf.mxu0
        %v1868 = vadd.f32 %v1194, %v1867
        %v1869 = vpop.f32.mrf.mxu0
        %v1870 = vadd.f32 %v1196, %v1869
        %1871 = vmatmul.bf16.gmra.mxu0 %v1578
        %v1872 = vpop.f32.mrf.mxu0
        %v1873 = vadd.f32 %v1199, %v1872
        %v1874 = vpop.f32.mrf.mxu0
        %v1875 = vadd.f32 %v1201, %v1874
        %1876 = vmatmul.bf16.gmra.mxu0 %v1577
        %v1877 = vpop.f32.mrf.mxu0
        %v1878 = vadd.f32 %v1204, %v1877
        %v1879 = vpop.f32.mrf.mxu0
        %1880 = vdwg.mxu0
        %v1881 = vld [vmem:[#allocation2 + $0x148] sm:$0xf]
        %s1882 = scalar_lea.vmem %s2, 128
        %v1883 = vld [vmem:[%s1882] sm:$0xf]
        %v1884 = vld [vmem:[%s1882 + $0x4] sm:$0xf]
        %v1885 = vld [vmem:[%s1882 + $0x8] sm:$0xf]
        %v1886 = vld [vmem:[%s1882 + $0xc] sm:$0xf]
        %v1887 = vld [vmem:[%s1882 + $0x10] sm:$0xf]
        %v1888 = vld [vmem:[%s1882 + $0x14] sm:$0xf]
        %v1889 = vld [vmem:[%s1882 + $0x18] sm:$0xf]
        %v1890 = vld [vmem:[%s1882 + $0x1c] sm:$0xf]
        %v1891 = vld [vmem:[%s1882 + $0x20] sm:$0xf]
        %v1892 = vld [vmem:[%s1882 + $0x24] sm:$0xf]
        %v1893 = vld [vmem:[%s1882 + $0x28] sm:$0xf]
        %v1894 = vld [vmem:[%s1882 + $0x2c] sm:$0xf]
        %v1895 = vld [vmem:[%s1882 + $0x30] sm:$0xf]
        %v1896 = vld [vmem:[%s1882 + $0x34] sm:$0xf]
        %v1897 = vld [vmem:[%s1882 + $0x38] sm:$0xf]
        %v1898 = vld [vmem:[%s1882 + $0x3c] sm:$0xf]
        %v1900 = vunpack.c.l.b16 %v1881
        %v1901 = vpack.c.b16 %v1900, %v780
        %vm1902 = vsmask.f32 4352
        %v1904 = vshrl.u32 %v782, 16
        %v1906 = vrot.slane %v1904, 3
        %v1907 = vshll.u32 %v782, 16
        %v1909 = vrot.slane %v1907, 4
        %v1910 = vor.u32 %v1906, %v1909
        %v1911 = vrot.slane %v1220, 3
        %v1912 = vrot.slane %v1223, 4
        %v1913 = vor.u32 %v1911, %v1912
        %v1914 = vsel %vm1902, %v1910, %v1913
        %v1915 = vrot.slane %v1229, 3
        %v1916 = vrot.slane %v1232, 4
        %v1917 = vor.u32 %v1915, %v1916
        %v1918 = vsel %vm1902, %v1913, %v1917
        %v1919 = vrot.slane %v1238, 3
        %v1920 = vrot.slane %v1241, 4
        %v1921 = vor.u32 %v1919, %v1920
        %v1922 = vsel %vm1902, %v1917, %v1921
        %v1923 = vrot.slane %v1247, 3
        %v1924 = vrot.slane %v1250, 4
        %v1925 = vor.u32 %v1923, %v1924
        %v1926 = vsel %vm1902, %v1921, %v1925
        %v1927 = vrot.slane %v1256, 3
        %v1928 = vrot.slane %v1259, 4
        %v1929 = vor.u32 %v1927, %v1928
        %v1930 = vsel %vm1902, %v1925, %v1929
        %v1931 = vrot.slane %v1265, 3
        %v1932 = vrot.slane %v1268, 4
        %v1933 = vor.u32 %v1931, %v1932
        %v1934 = vsel %vm1902, %v1929, %v1933
        %v1935 = vrot.slane %v1274, 3
        %v1936 = vrot.slane %v1277, 4
        %v1937 = vor.u32 %v1935, %v1936
        %v1938 = vsel %vm1902, %v1933, %v1937
        %v1939 = vrot.slane %v1283, 3
        %v1940 = vrot.slane %v1286, 4
        %v1941 = vor.u32 %v1939, %v1940
        %v1942 = vsel %vm1902, %v1937, %v1941
        %v1943 = vrot.slane %v1292, 3
        %v1944 = vrot.slane %v1295, 4
        %v1945 = vor.u32 %v1943, %v1944
        %v1946 = vsel %vm1902, %v1941, %v1945
        %v1947 = vrot.slane %v1301, 3
        %v1948 = vrot.slane %v1304, 4
        %v1949 = vor.u32 %v1947, %v1948
        %v1950 = vsel %vm1902, %v1945, %v1949
        %v1951 = vrot.slane %v1310, 3
        %v1952 = vrot.slane %v1313, 4
        %v1953 = vor.u32 %v1951, %v1952
        %v1954 = vsel %vm1902, %v1949, %v1953
        %v1955 = vrot.slane %v1319, 3
        %v1956 = vrot.slane %v1322, 4
        %v1957 = vor.u32 %v1955, %v1956
        %v1958 = vsel %vm1902, %v1953, %v1957
        %v1959 = vrot.slane %v1328, 3
        %v1960 = vrot.slane %v1331, 4
        %v1961 = vor.u32 %v1959, %v1960
        %v1962 = vsel %vm1902, %v1957, %v1961
        %v1963 = vrot.slane %v1337, 3
        %v1964 = vrot.slane %v1340, 4
        %v1965 = vor.u32 %v1963, %v1964
        %v1966 = vsel %vm1902, %v1961, %v1965
        %v1967 = vrot.slane %v1346, 3
        %v1968 = vrot.slane %v1349, 4
        %v1969 = vor.u32 %v1967, %v1968
        %v1970 = vsel %vm1902, %v1965, %v1969
        %v1971 = vrot.slane %v1355, 3
        %v1972 = vrot.slane %v1358, 4
        %v1973 = vor.u32 %v1971, %v1972
        %v1974 = vsel %vm1902, %v1969, %v1973
        %v1975 = vrot.slane %v1364, 3
        %v1976 = vrot.slane %v1367, 4
        %v1977 = vor.u32 %v1975, %v1976
        %v1978 = vsel %vm1902, %v1973, %v1977
        %v1979 = vrot.slane %v1373, 3
        %v1980 = vrot.slane %v1376, 4
        %v1981 = vor.u32 %v1979, %v1980
        %v1982 = vsel %vm1902, %v1977, %v1981
        %v1983 = vrot.slane %v1382, 3
        %v1984 = vrot.slane %v1385, 4
        %v1985 = vor.u32 %v1983, %v1984
        %v1986 = vsel %vm1902, %v1981, %v1985
        %v1987 = vrot.slane %v1391, 3
        %v1988 = vrot.slane %v1394, 4
        %v1989 = vor.u32 %v1987, %v1988
        %v1990 = vsel %vm1902, %v1985, %v1989
        %v1991 = vrot.slane %v1400, 3
        %v1992 = vrot.slane %v1403, 4
        %v1993 = vor.u32 %v1991, %v1992
        %v1994 = vsel %vm1902, %v1989, %v1993
        %v1995 = vrot.slane %v1409, 3
        %v1996 = vrot.slane %v1412, 4
        %v1997 = vor.u32 %v1995, %v1996
        %v1998 = vsel %vm1902, %v1993, %v1997
        %v1999 = vrot.slane %v1418, 3
        %v2000 = vrot.slane %v1421, 4
        %v2001 = vor.u32 %v1999, %v2000
        %v2002 = vsel %vm1902, %v1997, %v2001
        %v2003 = vrot.slane %v1427, 3
        %v2004 = vrot.slane %v1430, 4
        %v2005 = vor.u32 %v2003, %v2004
        %v2006 = vsel %vm1902, %v2001, %v2005
        %v2007 = vrot.slane %v1436, 3
        %v2008 = vrot.slane %v1439, 4
        %v2009 = vor.u32 %v2007, %v2008
        %v2010 = vsel %vm1902, %v2005, %v2009
        %v2011 = vrot.slane %v1445, 3
        %v2012 = vrot.slane %v1448, 4
        %v2013 = vor.u32 %v2011, %v2012
        %v2014 = vsel %vm1902, %v2009, %v2013
        %v2015 = vrot.slane %v1454, 3
        %v2016 = vrot.slane %v1457, 4
        %v2017 = vor.u32 %v2015, %v2016
        %v2018 = vsel %vm1902, %v2013, %v2017
        %v2019 = vrot.slane %v1463, 3
        %v2020 = vrot.slane %v1466, 4
        %v2021 = vor.u32 %v2019, %v2020
        %v2022 = vsel %vm1902, %v2017, %v2021
        %v2023 = vrot.slane %v1472, 3
        %v2024 = vrot.slane %v1475, 4
        %v2025 = vor.u32 %v2023, %v2024
        %v2026 = vsel %vm1902, %v2021, %v2025
        %v2027 = vrot.slane %v1481, 3
        %v2028 = vrot.slane %v1484, 4
        %v2029 = vor.u32 %v2027, %v2028
        %v2030 = vsel %vm1902, %v2025, %v2029
        %v2031 = vrot.slane %v1490, 3
        %v2032 = vrot.slane %v1493, 4
        %v2033 = vor.u32 %v2031, %v2032
        %v2034 = vsel %vm1902, %v2029, %v2033
        %v2035 = vrot.slane %v1499, 3
        %v2036 = vrot.slane %v1502, 4
        %v2037 = vor.u32 %v2035, %v2036
        %v2038 = vsel %vm1902, %v2033, %v2037
        %v2039 = vrot.slane %v1508, 3
        %v2040 = vrot.slane %v1511, 4
        %v2041 = vor.u32 %v2039, %v2040
        %v2042 = vsel %vm1902, %v2037, %v2041
        %v2043 = vrot.slane %v1517, 3
        %v2044 = vrot.slane %v1520, 4
        %v2045 = vor.u32 %v2043, %v2044
        %v2046 = vsel %vm1902, %v2041, %v2045
        %v2047 = vrot.slane %v1526, 3
        %v2048 = vrot.slane %v1529, 4
        %v2049 = vor.u32 %v2047, %v2048
        %v2050 = vsel %vm1902, %v2045, %v2049
        %v2051 = vrot.slane %v1535, 3
        %v2052 = vrot.slane %v1538, 4
        %v2053 = vor.u32 %v2051, %v2052
        %v2054 = vsel %vm1902, %v2049, %v2053
        %v2055 = vrot.slane %v1544, 3
        %v2056 = vrot.slane %v1547, 4
        %v2057 = vor.u32 %v2055, %v2056
        %v2058 = vsel %vm1902, %v2053, %v2057
        %v2059 = vrot.slane %v1553, 3
        %v2060 = vrot.slane %v1556, 4
        %v2061 = vor.u32 %v2059, %v2060
        %v2062 = vsel %vm1902, %v2057, %v2061
        %v2063 = vrot.slane %v1562, 3
        %v2064 = vrot.slane %v1565, 4
        %v2065 = vor.u32 %v2063, %v2064
        %v2066 = vsel %vm1902, %v2061, %v2065
        %v2068 = vshrl.u32 %v1901, 16
        %v2070 = vrot.slane %v2068, 3
        %v2071 = vshll.u32 %v1901, 16
        %v2073 = vrot.slane %v2071, 4
        %v2074 = vor.u32 %v2070, %v2073
        %v2075 = vsel %vm1902, %v2065, %v2074
        %v2133 = vunpack.c.l.b16 %v1883
        %v2134 = vunpack.c.l.b16 %v1884
        %v2135 = vunpack.c.l.b16 %v1885
        %v2136 = vunpack.c.l.b16 %v1886
        %v2137 = vunpack.c.l.b16 %v1887
        %v2138 = vunpack.c.l.b16 %v1888
        %v2139 = vunpack.c.l.b16 %v1889
        %v2140 = vunpack.c.l.b16 %v1890
        %v2141 = vunpack.c.l.b16 %v1891
        %v2142 = vunpack.c.l.b16 %v1892
        %v2143 = vunpack.c.l.b16 %v1893
        %v2144 = vunpack.c.l.b16 %v1894
        %v2145 = vunpack.c.l.b16 %v1895
        %v2146 = vunpack.c.l.b16 %v1896
        %v2147 = vunpack.c.l.b16 %v1897
        %v2148 = vunpack.c.l.b16 %v1898
        %v2149 = vpack.c.b16 %v2134, %v2133
        %v2150 = vpack.c.b16 %v2136, %v2135
        %v2151 = vpack.c.b16 %v2138, %v2137
        %v2152 = vpack.c.b16 %v2140, %v2139
        %v2153 = vpack.c.b16 %v2142, %v2141
        %v2154 = vpack.c.b16 %v2144, %v2143
        %v2155 = vpack.c.b16 %v2146, %v2145
        %v2156 = vpack.c.b16 %v2148, %v2147
        %2165 = vmatpush.bf16.msra.mxu0 %v2156
        %2166 = vmatpush.bf16.msra.mxu0 %v2155
        %2167 = vmatpush.bf16.msra.mxu0 %v2154
        %2168 = vmatpush.bf16.msra.mxu0 %v2153
        %2169 = vmatpush.bf16.msra.mxu0 %v2152
        %2170 = vmatpush.bf16.msra.mxu0 %v2151
        %2171 = vmatpush.bf16.msra.mxu0 %v2150
        %2172 = vmatpush.bf16.msra.mxu0 %v2149
        %2173 = vmatmul.bf16.gmra.mxu0 %v1914
        %v2174 = vpop.f32.mrf.mxu0
        %v2175 = vadd.f32 0.0, %v2174
        %v2176 = vpop.f32.mrf.mxu0
        %v2177 = vadd.f32 0.0, %v2176
        %2178 = vmatmul.bf16.gmra.mxu0 %v1918
        %v2179 = vpop.f32.mrf.mxu0
        %v2180 = vadd.f32 0.0, %v2179
        %v2181 = vpop.f32.mrf.mxu0
        %v2182 = vadd.f32 0.0, %v2181
        %2183 = vmatmul.bf16.gmra.mxu0 %v1922
        %v2184 = vpop.f32.mrf.mxu0
        %v2185 = vadd.f32 0.0, %v2184
        %v2186 = vpop.f32.mrf.mxu0
        %v2187 = vadd.f32 0.0, %v2186
        %2188 = vmatmul.bf16.gmra.mxu0 %v1926
        %v2189 = vpop.f32.mrf.mxu0
        %v2190 = vadd.f32 0.0, %v2189
        %v2191 = vpop.f32.mrf.mxu0
        %v2192 = vadd.f32 0.0, %v2191
        %2193 = vmatmul.bf16.gmra.mxu0 %v1930
        %v2194 = vpop.f32.mrf.mxu0
        %v2195 = vadd.f32 0.0, %v2194
        %v2196 = vpop.f32.mrf.mxu0
        %v2197 = vadd.f32 0.0, %v2196
        %2198 = vmatmul.bf16.gmra.mxu0 %v1934
        %v2199 = vpop.f32.mrf.mxu0
        %v2200 = vadd.f32 0.0, %v2199
        %v2201 = vpop.f32.mrf.mxu0
        %v2202 = vadd.f32 0.0, %v2201
        %2203 = vmatmul.bf16.gmra.mxu0 %v1938
        %v2204 = vpop.f32.mrf.mxu0
        %v2205 = vadd.f32 0.0, %v2204
        %v2206 = vpop.f32.mrf.mxu0
        %v2207 = vadd.f32 0.0, %v2206
        %2208 = vmatmul.bf16.gmra.mxu0 %v1942
        %v2209 = vpop.f32.mrf.mxu0
        %v2210 = vadd.f32 0.0, %v2209
        %v2211 = vpop.f32.mrf.mxu0
        %v2212 = vadd.f32 0.0, %v2211
        %2213 = vmatmul.bf16.gmra.mxu0 %v1946
        %v2214 = vpop.f32.mrf.mxu0
        %v2215 = vadd.f32 0.0, %v2214
        %v2216 = vpop.f32.mrf.mxu0
        %v2217 = vadd.f32 0.0, %v2216
        %2218 = vmatmul.bf16.gmra.mxu0 %v1950
        %v2219 = vpop.f32.mrf.mxu0
        %v2220 = vadd.f32 0.0, %v2219
        %v2221 = vpop.f32.mrf.mxu0
        %v2222 = vadd.f32 0.0, %v2221
        %2223 = vmatmul.bf16.gmra.mxu0 %v1954
        %v2224 = vpop.f32.mrf.mxu0
        %v2225 = vadd.f32 0.0, %v2224
        %v2226 = vpop.f32.mrf.mxu0
        %v2227 = vadd.f32 0.0, %v2226
        %2228 = vmatmul.bf16.gmra.mxu0 %v1958
        %v2229 = vpop.f32.mrf.mxu0
        %v2230 = vadd.f32 0.0, %v2229
        %v2231 = vpop.f32.mrf.mxu0
        %v2232 = vadd.f32 0.0, %v2231
        %2233 = vmatmul.bf16.gmra.mxu0 %v1962
        %v2234 = vpop.f32.mrf.mxu0
        %v2235 = vadd.f32 0.0, %v2234
        %v2236 = vpop.f32.mrf.mxu0
        %v2237 = vadd.f32 0.0, %v2236
        %2238 = vmatmul.bf16.gmra.mxu0 %v1966
        %v2239 = vpop.f32.mrf.mxu0
        %v2240 = vadd.f32 0.0, %v2239
        %v2241 = vpop.f32.mrf.mxu0
        %v2242 = vadd.f32 0.0, %v2241
        %2243 = vmatmul.bf16.gmra.mxu0 %v1970
        %v2244 = vpop.f32.mrf.mxu0
        %v2245 = vadd.f32 0.0, %v2244
        %v2246 = vpop.f32.mrf.mxu0
        %v2247 = vadd.f32 0.0, %v2246
        %2248 = vmatmul.bf16.gmra.mxu0 %v1974
        %v2249 = vpop.f32.mrf.mxu0
        %v2250 = vadd.f32 0.0, %v2249
        %v2251 = vpop.f32.mrf.mxu0
        %v2252 = vadd.f32 0.0, %v2251
        %2253 = vmatmul.bf16.gmra.mxu0 %v1978
        %v2254 = vpop.f32.mrf.mxu0
        %v2255 = vadd.f32 0.0, %v2254
        %v2256 = vpop.f32.mrf.mxu0
        %v2257 = vadd.f32 0.0, %v2256
        %2258 = vmatmul.bf16.gmra.mxu0 %v1982
        %v2259 = vpop.f32.mrf.mxu0
        %v2260 = vadd.f32 0.0, %v2259
        %v2261 = vpop.f32.mrf.mxu0
        %v2262 = vadd.f32 0.0, %v2261
        %2263 = vmatmul.bf16.gmra.mxu0 %v1986
        %v2264 = vpop.f32.mrf.mxu0
        %v2265 = vadd.f32 0.0, %v2264
        %v2266 = vpop.f32.mrf.mxu0
        %v2267 = vadd.f32 0.0, %v2266
        %2268 = vmatmul.bf16.gmra.mxu0 %v1990
        %v2269 = vpop.f32.mrf.mxu0
        %v2270 = vadd.f32 0.0, %v2269
        %v2271 = vpop.f32.mrf.mxu0
        %v2272 = vadd.f32 0.0, %v2271
        %2273 = vmatmul.bf16.gmra.mxu0 %v1994
        %v2274 = vpop.f32.mrf.mxu0
        %v2275 = vadd.f32 0.0, %v2274
        %v2276 = vpop.f32.mrf.mxu0
        %v2277 = vadd.f32 0.0, %v2276
        %2278 = vmatmul.bf16.gmra.mxu0 %v1998
        %v2279 = vpop.f32.mrf.mxu0
        %v2280 = vadd.f32 0.0, %v2279
        %v2281 = vpop.f32.mrf.mxu0
        %v2282 = vadd.f32 0.0, %v2281
        %2283 = vmatmul.bf16.gmra.mxu0 %v2002
        %v2284 = vpop.f32.mrf.mxu0
        %v2285 = vadd.f32 0.0, %v2284
        %v2286 = vpop.f32.mrf.mxu0
        %v2287 = vadd.f32 0.0, %v2286
        %2288 = vmatmul.bf16.gmra.mxu0 %v2006
        %v2289 = vpop.f32.mrf.mxu0
        %v2290 = vadd.f32 0.0, %v2289
        %v2291 = vpop.f32.mrf.mxu0
        %v2292 = vadd.f32 0.0, %v2291
        %2293 = vmatmul.bf16.gmra.mxu0 %v2010
        %v2294 = vpop.f32.mrf.mxu0
        %v2295 = vadd.f32 0.0, %v2294
        %v2296 = vpop.f32.mrf.mxu0
        %v2297 = vadd.f32 0.0, %v2296
        %2298 = vmatmul.bf16.gmra.mxu0 %v2014
        %v2299 = vpop.f32.mrf.mxu0
        %v2300 = vadd.f32 0.0, %v2299
        %v2301 = vpop.f32.mrf.mxu0
        %v2302 = vadd.f32 0.0, %v2301
        %2303 = vmatmul.bf16.gmra.mxu0 %v2018
        %v2304 = vpop.f32.mrf.mxu0
        %v2305 = vadd.f32 0.0, %v2304
        %v2306 = vpop.f32.mrf.mxu0
        %v2307 = vadd.f32 0.0, %v2306
        %2308 = vmatmul.bf16.gmra.mxu0 %v2022
        %v2309 = vpop.f32.mrf.mxu0
        %v2310 = vadd.f32 0.0, %v2309
        %v2311 = vpop.f32.mrf.mxu0
        %v2312 = vadd.f32 0.0, %v2311
        %2313 = vmatmul.bf16.gmra.mxu0 %v2026
        %v2314 = vpop.f32.mrf.mxu0
        %v2315 = vadd.f32 0.0, %v2314
        %v2316 = vpop.f32.mrf.mxu0
        %v2317 = vadd.f32 0.0, %v2316
        %2318 = vmatmul.bf16.gmra.mxu0 %v2030
        %v2319 = vpop.f32.mrf.mxu0
        %v2320 = vadd.f32 0.0, %v2319
        %v2321 = vpop.f32.mrf.mxu0
        %v2322 = vadd.f32 0.0, %v2321
        %2323 = vmatmul.bf16.gmra.mxu0 %v2034
        %v2324 = vpop.f32.mrf.mxu0
        %v2325 = vadd.f32 0.0, %v2324
        %v2326 = vpop.f32.mrf.mxu0
        %v2327 = vadd.f32 0.0, %v2326
        %2328 = vmatmul.bf16.gmra.mxu0 %v2038
        %v2329 = vpop.f32.mrf.mxu0
        %v2330 = vadd.f32 0.0, %v2329
        %v2331 = vpop.f32.mrf.mxu0
        %v2332 = vadd.f32 0.0, %v2331
        %2333 = vmatmul.bf16.gmra.mxu0 %v2042
        %v2334 = vpop.f32.mrf.mxu0
        %v2335 = vadd.f32 0.0, %v2334
        %v2336 = vpop.f32.mrf.mxu0
        %v2337 = vadd.f32 0.0, %v2336
        %2338 = vmatmul.bf16.gmra.mxu0 %v2046
        %v2339 = vpop.f32.mrf.mxu0
        %v2340 = vadd.f32 0.0, %v2339
        %v2341 = vpop.f32.mrf.mxu0
        %v2342 = vadd.f32 0.0, %v2341
        %2343 = vmatmul.bf16.gmra.mxu0 %v2050
        %v2344 = vpop.f32.mrf.mxu0
        %v2345 = vadd.f32 0.0, %v2344
        %v2346 = vpop.f32.mrf.mxu0
        %v2347 = vadd.f32 0.0, %v2346
        %2348 = vmatmul.bf16.gmra.mxu0 %v2054
        %v2349 = vpop.f32.mrf.mxu0
        %v2350 = vadd.f32 0.0, %v2349
        %v2351 = vpop.f32.mrf.mxu0
        %v2352 = vadd.f32 0.0, %v2351
        %2353 = vmatmul.bf16.gmra.mxu0 %v2058
        %v2354 = vpop.f32.mrf.mxu0
        %v2355 = vadd.f32 0.0, %v2354
        %v2356 = vpop.f32.mrf.mxu0
        %v2357 = vadd.f32 0.0, %v2356
        %2358 = vmatmul.bf16.gmra.mxu0 %v2062
        %v2359 = vpop.f32.mrf.mxu0
        %v2360 = vadd.f32 0.0, %v2359
        %v2361 = vpop.f32.mrf.mxu0
        %v2362 = vadd.f32 0.0, %v2361
        %2363 = vmatmul.bf16.gmra.mxu0 %v2066
        %v2364 = vpop.f32.mrf.mxu0
        %v2365 = vadd.f32 0.0, %v2364
        %v2366 = vpop.f32.mrf.mxu0
        %v2367 = vadd.f32 0.0, %v2366
        %2368 = vmatmul.bf16.gmra.mxu0 %v2075
        %v2369 = vpop.f32.mrf.mxu0
        %v2370 = vadd.f32 0.0, %v2369
        %v2371 = vpop.f32.mrf.mxu0
        %v2372 = vadd.f32 0.0, %v2371
        %2373 = vmatmul.bf16.gmra.mxu0 %v2074
        %v2374 = vpop.f32.mrf.mxu0
        %v2375 = vadd.f32 0.0, %v2374
        %v2376 = vpop.f32.mrf.mxu0
        %2377 = vdwg.mxu0
        %v2378 = vadd.f32 %v1678, %v2175
        %v2379 = vadd.f32 %v1680, %v2177
        %v2380 = vadd.f32 %v1683, %v2180
        %v2381 = vadd.f32 %v1685, %v2182
        %v2382 = vadd.f32 %v1688, %v2185
        %v2383 = vadd.f32 %v1690, %v2187
        %v2384 = vadd.f32 %v1693, %v2190
        %v2385 = vadd.f32 %v1695, %v2192
        %v2386 = vadd.f32 %v1698, %v2195
        %v2387 = vadd.f32 %v1700, %v2197
        %v2388 = vadd.f32 %v1703, %v2200
        %v2389 = vadd.f32 %v1705, %v2202
        %v2390 = vadd.f32 %v1708, %v2205
        %v2391 = vadd.f32 %v1710, %v2207
        %v2392 = vadd.f32 %v1713, %v2210
        %v2393 = vadd.f32 %v1715, %v2212
        %v2394 = vadd.f32 %v1718, %v2215
        %v2395 = vadd.f32 %v1720, %v2217
        %v2396 = vadd.f32 %v1723, %v2220
        %v2397 = vadd.f32 %v1725, %v2222
        %v2398 = vadd.f32 %v1728, %v2225
        %v2399 = vadd.f32 %v1730, %v2227
        %v2400 = vadd.f32 %v1733, %v2230
        %v2401 = vadd.f32 %v1735, %v2232
        %v2402 = vadd.f32 %v1738, %v2235
        %v2403 = vadd.f32 %v1740, %v2237
        %v2404 = vadd.f32 %v1743, %v2240
        %v2405 = vadd.f32 %v1745, %v2242
        %v2406 = vadd.f32 %v1748, %v2245
        %v2407 = vadd.f32 %v1750, %v2247
        %v2408 = vadd.f32 %v1753, %v2250
        %v2409 = vadd.f32 %v1755, %v2252
        %v2410 = vadd.f32 %v1758, %v2255
        %v2411 = vadd.f32 %v1760, %v2257
        %v2412 = vadd.f32 %v1763, %v2260
        %v2413 = vadd.f32 %v1765, %v2262
        %v2414 = vadd.f32 %v1768, %v2265
        %v2415 = vadd.f32 %v1770, %v2267
        %v2416 = vadd.f32 %v1773, %v2270
        %v2417 = vadd.f32 %v1775, %v2272
        %v2418 = vadd.f32 %v1778, %v2275
        %v2419 = vadd.f32 %v1780, %v2277
        %v2420 = vadd.f32 %v1783, %v2280
        %v2421 = vadd.f32 %v1785, %v2282
        %v2422 = vadd.f32 %v1788, %v2285
        %v2423 = vadd.f32 %v1790, %v2287
        %v2424 = vadd.f32 %v1793, %v2290
        %v2425 = vadd.f32 %v1795, %v2292
        %v2426 = vadd.f32 %v1798, %v2295
        %v2427 = vadd.f32 %v1800, %v2297
        %v2428 = vadd.f32 %v1803, %v2300
        %v2429 = vadd.f32 %v1805, %v2302
        %v2430 = vadd.f32 %v1808, %v2305
        %v2431 = vadd.f32 %v1810, %v2307
        %v2432 = vadd.f32 %v1813, %v2310
        %v2433 = vadd.f32 %v1815, %v2312
        %v2434 = vadd.f32 %v1818, %v2315
        %v2435 = vadd.f32 %v1820, %v2317
        %v2436 = vadd.f32 %v1823, %v2320
        %v2437 = vadd.f32 %v1825, %v2322
        %v2438 = vadd.f32 %v1828, %v2325
        %v2439 = vadd.f32 %v1830, %v2327
        %v2440 = vadd.f32 %v1833, %v2330
        %v2441 = vadd.f32 %v1835, %v2332
        %v2442 = vadd.f32 %v1838, %v2335
        %v2443 = vadd.f32 %v1840, %v2337
        %v2444 = vadd.f32 %v1843, %v2340
        %v2445 = vadd.f32 %v1845, %v2342
        %v2446 = vadd.f32 %v1848, %v2345
        %v2447 = vadd.f32 %v1850, %v2347
        %v2448 = vadd.f32 %v1853, %v2350
        %v2449 = vadd.f32 %v1855, %v2352
        %v2450 = vadd.f32 %v1858, %v2355
        %v2451 = vadd.f32 %v1860, %v2357
        %v2452 = vadd.f32 %v1863, %v2360
        %v2453 = vadd.f32 %v1865, %v2362
        %v2454 = vadd.f32 %v1868, %v2365
        %v2455 = vadd.f32 %v1870, %v2367
        %v2456 = vadd.f32 %v1873, %v2370
        %v2457 = vadd.f32 %v1875, %v2372
        %v2458 = vadd.f32 %v1878, %v2375
        %v2459 = vld [vmem:[#allocation2 + $0xc] sm:$0x8]
        %v2460 = vld [vmem:[#allocation2 + $0x10] sm:$0xf]
        %v2461 = vld [vmem:[#allocation2 + $0x14] sm:$0xf]
        %v2462 = vld [vmem:[#allocation2 + $0x18] sm:$0xf]
        %v2463 = vld [vmem:[#allocation2 + $0x1c] sm:$0xf]
        %v2464 = vld [vmem:[#allocation2 + $0x20] sm:$0xf]
        %v2465 = vld [vmem:[#allocation2 + $0x24] sm:$0xf]
        %v2466 = vld [vmem:[#allocation2 + $0x28] sm:$0xf]
        %v2467 = vld [vmem:[#allocation2 + $0x2c] sm:$0xf]
        %v2468 = vld [vmem:[#allocation2 + $0x30] sm:$0xf]
        %v2469 = vld [vmem:[#allocation2 + $0x34] sm:$0xf]
        %v2470 = vld [vmem:[#allocation2 + $0x38] sm:$0xf]
        %v2471 = vld [vmem:[#allocation2 + $0x3c] sm:$0xf]
        %v2472 = vld [vmem:[#allocation2 + $0x40] sm:$0xf]
        %v2473 = vld [vmem:[#allocation2 + $0x44] sm:$0xf]
        %v2474 = vld [vmem:[#allocation2 + $0x48] sm:$0xf]
        %v2475 = vld [vmem:[#allocation2 + $0x4c] sm:$0xf]
        %v2476 = vld [vmem:[#allocation2 + $0x50] sm:$0xf]
        %v2477 = vld [vmem:[#allocation2 + $0x54] sm:$0xf]
        %v2478 = vld [vmem:[#allocation2 + $0x58] sm:$0xf]
        %v2479 = vld [vmem:[#allocation2 + $0x5c] sm:$0xf]
        %v2480 = vld [vmem:[#allocation2 + $0x60] sm:$0xf]
        %v2481 = vld [vmem:[#allocation2 + $0x64] sm:$0xf]
        %v2482 = vld [vmem:[#allocation2 + $0x68] sm:$0xf]
        %v2483 = vld [vmem:[#allocation2 + $0x6c] sm:$0xf]
        %v2484 = vld [vmem:[#allocation2 + $0x70] sm:$0xf]
        %v2485 = vld [vmem:[#allocation2 + $0x74] sm:$0xf]
        %v2486 = vld [vmem:[#allocation2 + $0x78] sm:$0xf]
        %v2487 = vld [vmem:[#allocation2 + $0x7c] sm:$0xf]
        %v2488 = vld [vmem:[#allocation2 + $0x80] sm:$0xf]
        %v2489 = vld [vmem:[#allocation2 + $0x84] sm:$0xf]
        %v2490 = vld [vmem:[#allocation2 + $0x88] sm:$0xf]
        %v2491 = vld [vmem:[#allocation2 + $0x8c] sm:$0xf]
        %v2492 = vld [vmem:[#allocation2 + $0x90] sm:$0xf]
        %v2493 = vld [vmem:[#allocation2 + $0x94] sm:$0xf]
        %v2494 = vld [vmem:[#allocation2 + $0x98] sm:$0xf]
        %v2495 = vld [vmem:[#allocation2 + $0x9c] sm:$0xf]
        %v2496 = vld [vmem:[#allocation2 + $0xa0] sm:$0xf]
        %v2497 = vld [vmem:[#allocation2 + $0xa4] sm:$0xf]
        %v2498 = vld [vmem:[#allocation2 + $0xa8] sm:$0xf]
        %v2499 = vld [vmem:[#allocation2 + $0xac] sm:$0xf]
        %v2500 = vld [vmem:[#allocation2 + $0xb0] sm:$0xf]
        %v2501 = vld [vmem:[#allocation2 + $0xb4] sm:$0xf]
        %v2502 = vld [vmem:[#allocation2 + $0xb8] sm:$0xf]
        %v2503 = vld [vmem:[#allocation2 + $0xbc] sm:$0xf]
        %v2504 = vld [vmem:[#allocation2 + $0xc0] sm:$0xf]
        %v2505 = vld [vmem:[#allocation2 + $0xc4] sm:$0xf]
        %v2506 = vld [vmem:[#allocation2 + $0xc8] sm:$0xf]
        %v2507 = vld [vmem:[#allocation2 + $0xcc] sm:$0xf]
        %v2508 = vld [vmem:[#allocation2 + $0xd0] sm:$0xf]
        %v2509 = vld [vmem:[#allocation2 + $0xd4] sm:$0xf]
        %v2510 = vld [vmem:[#allocation2 + $0xd8] sm:$0xf]
        %v2511 = vld [vmem:[#allocation2 + $0xdc] sm:$0xf]
        %v2512 = vld [vmem:[#allocation2 + $0xe0] sm:$0xf]
        %v2513 = vld [vmem:[#allocation2 + $0xe4] sm:$0xf]
        %v2514 = vld [vmem:[#allocation2 + $0xe8] sm:$0xf]
        %v2515 = vld [vmem:[#allocation2 + $0xec] sm:$0xf]
        %v2516 = vld [vmem:[#allocation2 + $0xf0] sm:$0xf]
        %v2517 = vld [vmem:[#allocation2 + $0xf4] sm:$0xf]
        %v2518 = vld [vmem:[#allocation2 + $0xf8] sm:$0xf]
        %v2519 = vld [vmem:[#allocation2 + $0xfc] sm:$0xf]
        %v2520 = vld [vmem:[#allocation2 + $0x100] sm:$0xf]
        %v2521 = vld [vmem:[#allocation2 + $0x104] sm:$0xf]
        %v2522 = vld [vmem:[#allocation2 + $0x108] sm:$0xf]
        %v2523 = vld [vmem:[#allocation2 + $0x10c] sm:$0xf]
        %v2524 = vld [vmem:[#allocation2 + $0x110] sm:$0xf]
        %v2525 = vld [vmem:[#allocation2 + $0x114] sm:$0xf]
        %v2526 = vld [vmem:[#allocation2 + $0x118] sm:$0xf]
        %v2527 = vld [vmem:[#allocation2 + $0x11c] sm:$0xf]
        %v2528 = vld [vmem:[#allocation2 + $0x120] sm:$0xf]
        %v2529 = vld [vmem:[#allocation2 + $0x124] sm:$0xf]
        %v2530 = vld [vmem:[#allocation2 + $0x128] sm:$0xf]
        %v2531 = vld [vmem:[#allocation2 + $0x12c] sm:$0xf]
        %v2532 = vld [vmem:[#allocation2 + $0x130] sm:$0xf]
        %v2533 = vld [vmem:[#allocation2 + $0x134] sm:$0xf]
        %v2534 = vld [vmem:[#allocation2 + $0x138] sm:$0xf]
        %v2535 = vld [vmem:[#allocation2 + $0x13c] sm:$0xf]
        %v2536 = vld [vmem:[#allocation2 + $0x140] sm:$0xf]
        %v2537 = vld [vmem:[#allocation2 + $0x144] sm:$0xf]
        %v2538 = vld [vmem:[#allocation2 + $0x148] sm:$0xf]
        %v2539 = vld [vmem:[#allocation2 + $0x14c] sm:$0xf]
        %v2540 = vld [vmem:[#allocation2 + $0x150] sm:$0xf]
        %s2541 = scalar_lea.vmem %s2, 192
        %v2542 = vld [vmem:[%s2541] sm:$0xf]
        %v2543 = vld [vmem:[%s2541 + $0x4] sm:$0xf]
        %v2544 = vld [vmem:[%s2541 + $0x8] sm:$0xf]
        %v2545 = vld [vmem:[%s2541 + $0xc] sm:$0xf]
        %v2546 = vld [vmem:[%s2541 + $0x10] sm:$0xf]
        %v2547 = vld [vmem:[%s2541 + $0x14] sm:$0xf]
        %v2548 = vld [vmem:[%s2541 + $0x18] sm:$0xf]
        %v2549 = vld [vmem:[%s2541 + $0x1c] sm:$0xf]
        %v2550 = vld [vmem:[%s2541 + $0x20] sm:$0xf]
        %v2551 = vld [vmem:[%s2541 + $0x24] sm:$0xf]
        %v2552 = vld [vmem:[%s2541 + $0x28] sm:$0xf]
        %v2553 = vld [vmem:[%s2541 + $0x2c] sm:$0xf]
        %v2554 = vld [vmem:[%s2541 + $0x30] sm:$0xf]
        %v2555 = vld [vmem:[%s2541 + $0x34] sm:$0xf]
        %v2556 = vld [vmem:[%s2541 + $0x38] sm:$0xf]
        %v2557 = vld [vmem:[%s2541 + $0x3c] sm:$0xf]
        %v2640 = vunpack.c.l.b16 %v2459
        %v2641 = vunpack.c.l.b16 %v2460
        %v2642 = vunpack.c.l.b16 %v2461
        %v2643 = vunpack.c.l.b16 %v2462
        %v2644 = vunpack.c.l.b16 %v2463
        %v2645 = vunpack.c.l.b16 %v2464
        %v2646 = vunpack.c.l.b16 %v2465
        %v2647 = vunpack.c.l.b16 %v2466
        %v2648 = vunpack.c.l.b16 %v2467
        %v2649 = vunpack.c.l.b16 %v2468
        %v2650 = vunpack.c.l.b16 %v2469
        %v2651 = vunpack.c.l.b16 %v2470
        %v2652 = vunpack.c.l.b16 %v2471
        %v2653 = vunpack.c.l.b16 %v2472
        %v2654 = vunpack.c.l.b16 %v2473
        %v2655 = vunpack.c.l.b16 %v2474
        %v2656 = vunpack.c.l.b16 %v2475
        %v2657 = vunpack.c.l.b16 %v2476
        %v2658 = vunpack.c.l.b16 %v2477
        %v2659 = vunpack.c.l.b16 %v2478
        %v2660 = vunpack.c.l.b16 %v2479
        %v2661 = vunpack.c.l.b16 %v2480
        %v2662 = vunpack.c.l.b16 %v2481
        %v2663 = vunpack.c.l.b16 %v2482
        %v2664 = vunpack.c.l.b16 %v2483
        %v2665 = vunpack.c.l.b16 %v2484
        %v2666 = vunpack.c.l.b16 %v2485
        %v2667 = vunpack.c.l.b16 %v2486
        %v2668 = vunpack.c.l.b16 %v2487
        %v2669 = vunpack.c.l.b16 %v2488
        %v2670 = vunpack.c.l.b16 %v2489
        %v2671 = vunpack.c.l.b16 %v2490
        %v2672 = vunpack.c.l.b16 %v2491
        %v2673 = vunpack.c.l.b16 %v2492
        %v2674 = vunpack.c.l.b16 %v2493
        %v2675 = vunpack.c.l.b16 %v2494
        %v2676 = vunpack.c.l.b16 %v2495
        %v2677 = vunpack.c.l.b16 %v2496
        %v2678 = vunpack.c.l.b16 %v2497
        %v2679 = vunpack.c.l.b16 %v2498
        %v2680 = vunpack.c.l.b16 %v2499
        %v2681 = vunpack.c.l.b16 %v2500
        %v2682 = vunpack.c.l.b16 %v2501
        %v2683 = vunpack.c.l.b16 %v2502
        %v2684 = vunpack.c.l.b16 %v2503
        %v2685 = vunpack.c.l.b16 %v2504
        %v2686 = vunpack.c.l.b16 %v2505
        %v2687 = vunpack.c.l.b16 %v2506
        %v2688 = vunpack.c.l.b16 %v2507
        %v2689 = vunpack.c.l.b16 %v2508
        %v2690 = vunpack.c.l.b16 %v2509
        %v2691 = vunpack.c.l.b16 %v2510
        %v2692 = vunpack.c.l.b16 %v2511
        %v2693 = vunpack.c.l.b16 %v2512
        %v2694 = vunpack.c.l.b16 %v2513
        %v2695 = vunpack.c.l.b16 %v2514
        %v2696 = vunpack.c.l.b16 %v2515
        %v2697 = vunpack.c.l.b16 %v2516
        %v2698 = vunpack.c.l.b16 %v2517
        %v2699 = vunpack.c.l.b16 %v2518
        %v2700 = vunpack.c.l.b16 %v2519
        %v2701 = vunpack.c.l.b16 %v2520
        %v2702 = vunpack.c.l.b16 %v2521
        %v2703 = vunpack.c.l.b16 %v2522
        %v2704 = vunpack.c.l.b16 %v2523
        %v2705 = vunpack.c.l.b16 %v2524
        %v2706 = vunpack.c.l.b16 %v2525
        %v2707 = vunpack.c.l.b16 %v2526
        %v2708 = vunpack.c.l.b16 %v2527
        %v2709 = vunpack.c.l.b16 %v2528
        %v2710 = vunpack.c.l.b16 %v2529
        %v2711 = vunpack.c.l.b16 %v2530
        %v2712 = vunpack.c.l.b16 %v2531
        %v2713 = vunpack.c.l.b16 %v2532
        %v2714 = vunpack.c.l.b16 %v2533
        %v2715 = vunpack.c.l.b16 %v2534
        %v2716 = vunpack.c.l.b16 %v2535
        %v2717 = vunpack.c.l.b16 %v2536
        %v2718 = vunpack.c.l.b16 %v2537
        %v2719 = vunpack.c.l.b16 %v2538
        %v2720 = vunpack.c.l.b16 %v2539
        %v2721 = vunpack.c.l.b16 %v2540
        %v2722 = vpack.c.b16 %v2641, %v2640
        %v2723 = vpack.c.b16 %v2643, %v2642
        %v2724 = vpack.c.b16 %v2645, %v2644
        %v2725 = vpack.c.b16 %v2647, %v2646
        %v2726 = vpack.c.b16 %v2649, %v2648
        %v2727 = vpack.c.b16 %v2651, %v2650
        %v2728 = vpack.c.b16 %v2653, %v2652
        %v2729 = vpack.c.b16 %v2655, %v2654
        %v2730 = vpack.c.b16 %v2657, %v2656
        %v2731 = vpack.c.b16 %v2659, %v2658
        %v2732 = vpack.c.b16 %v2661, %v2660
        %v2733 = vpack.c.b16 %v2663, %v2662
        %v2734 = vpack.c.b16 %v2665, %v2664
        %v2735 = vpack.c.b16 %v2667, %v2666
        %v2736 = vpack.c.b16 %v2669, %v2668
        %v2737 = vpack.c.b16 %v2671, %v2670
        %v2738 = vpack.c.b16 %v2673, %v2672
        %v2739 = vpack.c.b16 %v2675, %v2674
        %v2740 = vpack.c.b16 %v2677, %v2676
        %v2741 = vpack.c.b16 %v2679, %v2678
        %v2742 = vpack.c.b16 %v2681, %v2680
        %v2743 = vpack.c.b16 %v2683, %v2682
        %v2744 = vpack.c.b16 %v2685, %v2684
        %v2745 = vpack.c.b16 %v2687, %v2686
        %v2746 = vpack.c.b16 %v2689, %v2688
        %v2747 = vpack.c.b16 %v2691, %v2690
        %v2748 = vpack.c.b16 %v2693, %v2692
        %v2749 = vpack.c.b16 %v2695, %v2694
        %v2750 = vpack.c.b16 %v2697, %v2696
        %v2751 = vpack.c.b16 %v2699, %v2698
        %v2752 = vpack.c.b16 %v2701, %v2700
        %v2753 = vpack.c.b16 %v2703, %v2702
        %v2754 = vpack.c.b16 %v2705, %v2704
        %v2755 = vpack.c.b16 %v2707, %v2706
        %v2756 = vpack.c.b16 %v2709, %v2708
        %v2757 = vpack.c.b16 %v2711, %v2710
        %v2758 = vpack.c.b16 %v2713, %v2712
        %v2759 = vpack.c.b16 %v2715, %v2714
        %v2760 = vpack.c.b16 %v2717, %v2716
        %v2761 = vpack.c.b16 %v2719, %v2718
        %v2762 = vpack.c.b16 %v2721, %v2720
        %v2764 = vshrl.u32 %v2722, 16
        %v2766 = vrot.slane %v2764, 3
        %v2767 = vshll.u32 %v2722, 16
        %v2769 = vrot.slane %v2767, 4
        %v2770 = vor.u32 %v2766, %v2769
        %v2772 = vshrl.u32 %v2723, 16
        %v2774 = vrot.slane %v2772, 3
        %v2775 = vshll.u32 %v2723, 16
        %v2777 = vrot.slane %v2775, 4
        %v2778 = vor.u32 %v2774, %v2777
        %v2779 = vsel %vm1902, %v2770, %v2778
        %v2781 = vshrl.u32 %v2724, 16
        %v2783 = vrot.slane %v2781, 3
        %v2784 = vshll.u32 %v2724, 16
        %v2786 = vrot.slane %v2784, 4
        %v2787 = vor.u32 %v2783, %v2786
        %v2788 = vsel %vm1902, %v2778, %v2787
        %v2790 = vshrl.u32 %v2725, 16
        %v2792 = vrot.slane %v2790, 3
        %v2793 = vshll.u32 %v2725, 16
        %v2795 = vrot.slane %v2793, 4
        %v2796 = vor.u32 %v2792, %v2795
        %v2797 = vsel %vm1902, %v2787, %v2796
        %v2799 = vshrl.u32 %v2726, 16
        %v2801 = vrot.slane %v2799, 3
        %v2802 = vshll.u32 %v2726, 16
        %v2804 = vrot.slane %v2802, 4
        %v2805 = vor.u32 %v2801, %v2804
        %v2806 = vsel %vm1902, %v2796, %v2805
        %v2808 = vshrl.u32 %v2727, 16
        %v2810 = vrot.slane %v2808, 3
        %v2811 = vshll.u32 %v2727, 16
        %v2813 = vrot.slane %v2811, 4
        %v2814 = vor.u32 %v2810, %v2813
        %v2815 = vsel %vm1902, %v2805, %v2814
        %v2817 = vshrl.u32 %v2728, 16
        %v2819 = vrot.slane %v2817, 3
        %v2820 = vshll.u32 %v2728, 16
        %v2822 = vrot.slane %v2820, 4
        %v2823 = vor.u32 %v2819, %v2822
        %v2824 = vsel %vm1902, %v2814, %v2823
        %v2826 = vshrl.u32 %v2729, 16
        %v2828 = vrot.slane %v2826, 3
        %v2829 = vshll.u32 %v2729, 16
        %v2831 = vrot.slane %v2829, 4
        %v2832 = vor.u32 %v2828, %v2831
        %v2833 = vsel %vm1902, %v2823, %v2832
        %v2835 = vshrl.u32 %v2730, 16
        %v2837 = vrot.slane %v2835, 3
        %v2838 = vshll.u32 %v2730, 16
        %v2840 = vrot.slane %v2838, 4
        %v2841 = vor.u32 %v2837, %v2840
        %v2842 = vsel %vm1902, %v2832, %v2841
        %v2844 = vshrl.u32 %v2731, 16
        %v2846 = vrot.slane %v2844, 3
        %v2847 = vshll.u32 %v2731, 16
        %v2849 = vrot.slane %v2847, 4
        %v2850 = vor.u32 %v2846, %v2849
        %v2851 = vsel %vm1902, %v2841, %v2850
        %v2853 = vshrl.u32 %v2732, 16
        %v2855 = vrot.slane %v2853, 3
        %v2856 = vshll.u32 %v2732, 16
        %v2858 = vrot.slane %v2856, 4
        %v2859 = vor.u32 %v2855, %v2858
        %v2860 = vsel %vm1902, %v2850, %v2859
        %v2862 = vshrl.u32 %v2733, 16
        %v2864 = vrot.slane %v2862, 3
        %v2865 = vshll.u32 %v2733, 16
        %v2867 = vrot.slane %v2865, 4
        %v2868 = vor.u32 %v2864, %v2867
        %v2869 = vsel %vm1902, %v2859, %v2868
        %v2871 = vshrl.u32 %v2734, 16
        %v2873 = vrot.slane %v2871, 3
        %v2874 = vshll.u32 %v2734, 16
        %v2876 = vrot.slane %v2874, 4
        %v2877 = vor.u32 %v2873, %v2876
        %v2878 = vsel %vm1902, %v2868, %v2877
        %v2880 = vshrl.u32 %v2735, 16
        %v2882 = vrot.slane %v2880, 3
        %v2883 = vshll.u32 %v2735, 16
        %v2885 = vrot.slane %v2883, 4
        %v2886 = vor.u32 %v2882, %v2885
        %v2887 = vsel %vm1902, %v2877, %v2886
        %v2889 = vshrl.u32 %v2736, 16
        %v2891 = vrot.slane %v2889, 3
        %v2892 = vshll.u32 %v2736, 16
        %v2894 = vrot.slane %v2892, 4
        %v2895 = vor.u32 %v2891, %v2894
        %v2896 = vsel %vm1902, %v2886, %v2895
        %v2898 = vshrl.u32 %v2737, 16
        %v2900 = vrot.slane %v2898, 3
        %v2901 = vshll.u32 %v2737, 16
        %v2903 = vrot.slane %v2901, 4
        %v2904 = vor.u32 %v2900, %v2903
        %v2905 = vsel %vm1902, %v2895, %v2904
        %v2907 = vshrl.u32 %v2738, 16
        %v2909 = vrot.slane %v2907, 3
        %v2910 = vshll.u32 %v2738, 16
        %v2912 = vrot.slane %v2910, 4
        %v2913 = vor.u32 %v2909, %v2912
        %v2914 = vsel %vm1902, %v2904, %v2913
        %v2916 = vshrl.u32 %v2739, 16
        %v2918 = vrot.slane %v2916, 3
        %v2919 = vshll.u32 %v2739, 16
        %v2921 = vrot.slane %v2919, 4
        %v2922 = vor.u32 %v2918, %v2921
        %v2923 = vsel %vm1902, %v2913, %v2922
        %v2925 = vshrl.u32 %v2740, 16
        %v2927 = vrot.slane %v2925, 3
        %v2928 = vshll.u32 %v2740, 16
        %v2930 = vrot.slane %v2928, 4
        %v2931 = vor.u32 %v2927, %v2930
        %v2932 = vsel %vm1902, %v2922, %v2931
        %v2934 = vshrl.u32 %v2741, 16
        %v2936 = vrot.slane %v2934, 3
        %v2937 = vshll.u32 %v2741, 16
        %v2939 = vrot.slane %v2937, 4
        %v2940 = vor.u32 %v2936, %v2939
        %v2941 = vsel %vm1902, %v2931, %v2940
        %v2943 = vshrl.u32 %v2742, 16
        %v2945 = vrot.slane %v2943, 3
        %v2946 = vshll.u32 %v2742, 16
        %v2948 = vrot.slane %v2946, 4
        %v2949 = vor.u32 %v2945, %v2948
        %v2950 = vsel %vm1902, %v2940, %v2949
        %v2952 = vshrl.u32 %v2743, 16
        %v2954 = vrot.slane %v2952, 3
        %v2955 = vshll.u32 %v2743, 16
        %v2957 = vrot.slane %v2955, 4
        %v2958 = vor.u32 %v2954, %v2957
        %v2959 = vsel %vm1902, %v2949, %v2958
        %v2961 = vshrl.u32 %v2744, 16
        %v2963 = vrot.slane %v2961, 3
        %v2964 = vshll.u32 %v2744, 16
        %v2966 = vrot.slane %v2964, 4
        %v2967 = vor.u32 %v2963, %v2966
        %v2968 = vsel %vm1902, %v2958, %v2967
        %v2970 = vshrl.u32 %v2745, 16
        %v2972 = vrot.slane %v2970, 3
        %v2973 = vshll.u32 %v2745, 16
        %v2975 = vrot.slane %v2973, 4
        %v2976 = vor.u32 %v2972, %v2975
        %v2977 = vsel %vm1902, %v2967, %v2976
        %v2979 = vshrl.u32 %v2746, 16
        %v2981 = vrot.slane %v2979, 3
        %v2982 = vshll.u32 %v2746, 16
        %v2984 = vrot.slane %v2982, 4
        %v2985 = vor.u32 %v2981, %v2984
        %v2986 = vsel %vm1902, %v2976, %v2985
        %v2988 = vshrl.u32 %v2747, 16
        %v2990 = vrot.slane %v2988, 3
        %v2991 = vshll.u32 %v2747, 16
        %v2993 = vrot.slane %v2991, 4
        %v2994 = vor.u32 %v2990, %v2993
        %v2995 = vsel %vm1902, %v2985, %v2994
        %v2997 = vshrl.u32 %v2748, 16
        %v2999 = vrot.slane %v2997, 3
        %v3000 = vshll.u32 %v2748, 16
        %v3002 = vrot.slane %v3000, 4
        %v3003 = vor.u32 %v2999, %v3002
        %v3004 = vsel %vm1902, %v2994, %v3003
        %v3006 = vshrl.u32 %v2749, 16
        %v3008 = vrot.slane %v3006, 3
        %v3009 = vshll.u32 %v2749, 16
        %v3011 = vrot.slane %v3009, 4
        %v3012 = vor.u32 %v3008, %v3011
        %v3013 = vsel %vm1902, %v3003, %v3012
        %v3015 = vshrl.u32 %v2750, 16
        %v3017 = vrot.slane %v3015, 3
        %v3018 = vshll.u32 %v2750, 16
        %v3020 = vrot.slane %v3018, 4
        %v3021 = vor.u32 %v3017, %v3020
        %v3022 = vsel %vm1902, %v3012, %v3021
        %v3024 = vshrl.u32 %v2751, 16
        %v3026 = vrot.slane %v3024, 3
        %v3027 = vshll.u32 %v2751, 16
        %v3029 = vrot.slane %v3027, 4
        %v3030 = vor.u32 %v3026, %v3029
        %v3031 = vsel %vm1902, %v3021, %v3030
        %v3033 = vshrl.u32 %v2752, 16
        %v3035 = vrot.slane %v3033, 3
        %v3036 = vshll.u32 %v2752, 16
        %v3038 = vrot.slane %v3036, 4
        %v3039 = vor.u32 %v3035, %v3038
        %v3040 = vsel %vm1902, %v3030, %v3039
        %v3042 = vshrl.u32 %v2753, 16
        %v3044 = vrot.slane %v3042, 3
        %v3045 = vshll.u32 %v2753, 16
        %v3047 = vrot.slane %v3045, 4
        %v3048 = vor.u32 %v3044, %v3047
        %v3049 = vsel %vm1902, %v3039, %v3048
        %v3051 = vshrl.u32 %v2754, 16
        %v3053 = vrot.slane %v3051, 3
        %v3054 = vshll.u32 %v2754, 16
        %v3056 = vrot.slane %v3054, 4
        %v3057 = vor.u32 %v3053, %v3056
        %v3058 = vsel %vm1902, %v3048, %v3057
        %v3060 = vshrl.u32 %v2755, 16
        %v3062 = vrot.slane %v3060, 3
        %v3063 = vshll.u32 %v2755, 16
        %v3065 = vrot.slane %v3063, 4
        %v3066 = vor.u32 %v3062, %v3065
        %v3067 = vsel %vm1902, %v3057, %v3066
        %v3069 = vshrl.u32 %v2756, 16
        %v3071 = vrot.slane %v3069, 3
        %v3072 = vshll.u32 %v2756, 16
        %v3074 = vrot.slane %v3072, 4
        %v3075 = vor.u32 %v3071, %v3074
        %v3076 = vsel %vm1902, %v3066, %v3075
        %v3078 = vshrl.u32 %v2757, 16
        %v3080 = vrot.slane %v3078, 3
        %v3081 = vshll.u32 %v2757, 16
        %v3083 = vrot.slane %v3081, 4
        %v3084 = vor.u32 %v3080, %v3083
        %v3085 = vsel %vm1902, %v3075, %v3084
        %v3087 = vshrl.u32 %v2758, 16
        %v3089 = vrot.slane %v3087, 3
        %v3090 = vshll.u32 %v2758, 16
        %v3092 = vrot.slane %v3090, 4
        %v3093 = vor.u32 %v3089, %v3092
        %v3094 = vsel %vm1902, %v3084, %v3093
        %v3096 = vshrl.u32 %v2759, 16
        %v3098 = vrot.slane %v3096, 3
        %v3099 = vshll.u32 %v2759, 16
        %v3101 = vrot.slane %v3099, 4
        %v3102 = vor.u32 %v3098, %v3101
        %v3103 = vsel %vm1902, %v3093, %v3102
        %v3105 = vshrl.u32 %v2760, 16
        %v3107 = vrot.slane %v3105, 3
        %v3108 = vshll.u32 %v2760, 16
        %v3110 = vrot.slane %v3108, 4
        %v3111 = vor.u32 %v3107, %v3110
        %v3112 = vsel %vm1902, %v3102, %v3111
        %v3114 = vshrl.u32 %v2761, 16
        %v3116 = vrot.slane %v3114, 3
        %v3117 = vshll.u32 %v2761, 16
        %v3119 = vrot.slane %v3117, 4
        %v3120 = vor.u32 %v3116, %v3119
        %v3121 = vsel %vm1902, %v3111, %v3120
        %v3123 = vshrl.u32 %v2762, 16
        %v3125 = vrot.slane %v3123, 3
        %v3126 = vshll.u32 %v2762, 16
        %v3128 = vrot.slane %v3126, 4
        %v3129 = vor.u32 %v3125, %v3128
        %v3130 = vsel %vm1902, %v3120, %v3129
        %v3188 = vunpack.c.l.b16 %v2542
        %v3189 = vunpack.c.l.b16 %v2543
        %v3190 = vunpack.c.l.b16 %v2544
        %v3191 = vunpack.c.l.b16 %v2545
        %v3192 = vunpack.c.l.b16 %v2546
        %v3193 = vunpack.c.l.b16 %v2547
        %v3194 = vunpack.c.l.b16 %v2548
        %v3195 = vunpack.c.l.b16 %v2549
        %v3196 = vunpack.c.l.b16 %v2550
        %v3197 = vunpack.c.l.b16 %v2551
        %v3198 = vunpack.c.l.b16 %v2552
        %v3199 = vunpack.c.l.b16 %v2553
        %v3200 = vunpack.c.l.b16 %v2554
        %v3201 = vunpack.c.l.b16 %v2555
        %v3202 = vunpack.c.l.b16 %v2556
        %v3203 = vunpack.c.l.b16 %v2557
        %v3204 = vpack.c.b16 %v3189, %v3188
        %v3205 = vpack.c.b16 %v3191, %v3190
        %v3206 = vpack.c.b16 %v3193, %v3192
        %v3207 = vpack.c.b16 %v3195, %v3194
        %v3208 = vpack.c.b16 %v3197, %v3196
        %v3209 = vpack.c.b16 %v3199, %v3198
        %v3210 = vpack.c.b16 %v3201, %v3200
        %v3211 = vpack.c.b16 %v3203, %v3202
        %3220 = vmatpush.bf16.msra.mxu0 %v3211
        %3221 = vmatpush.bf16.msra.mxu0 %v3210
        %3222 = vmatpush.bf16.msra.mxu0 %v3209
        %3223 = vmatpush.bf16.msra.mxu0 %v3208
        %3224 = vmatpush.bf16.msra.mxu0 %v3207
        %3225 = vmatpush.bf16.msra.mxu0 %v3206
        %3226 = vmatpush.bf16.msra.mxu0 %v3205
        %3227 = vmatpush.bf16.msra.mxu0 %v3204
        %3228 = vmatmul.bf16.gmra.mxu0 %v2779
        %v3229 = vpop.f32.mrf.mxu0
        %v3230 = vadd.f32 0.0, %v3229
        %v3231 = vpop.f32.mrf.mxu0
        %v3232 = vadd.f32 0.0, %v3231
        %3233 = vmatmul.bf16.gmra.mxu0 %v2788
        %v3234 = vpop.f32.mrf.mxu0
        %v3235 = vadd.f32 0.0, %v3234
        %v3236 = vpop.f32.mrf.mxu0
        %v3237 = vadd.f32 0.0, %v3236
        %3238 = vmatmul.bf16.gmra.mxu0 %v2797
        %v3239 = vpop.f32.mrf.mxu0
        %v3240 = vadd.f32 0.0, %v3239
        %v3241 = vpop.f32.mrf.mxu0
        %v3242 = vadd.f32 0.0, %v3241
        %3243 = vmatmul.bf16.gmra.mxu0 %v2806
        %v3244 = vpop.f32.mrf.mxu0
        %v3245 = vadd.f32 0.0, %v3244
        %v3246 = vpop.f32.mrf.mxu0
        %v3247 = vadd.f32 0.0, %v3246
        %3248 = vmatmul.bf16.gmra.mxu0 %v2815
        %v3249 = vpop.f32.mrf.mxu0
        %v3250 = vadd.f32 0.0, %v3249
        %v3251 = vpop.f32.mrf.mxu0
        %v3252 = vadd.f32 0.0, %v3251
        %3253 = vmatmul.bf16.gmra.mxu0 %v2824
        %v3254 = vpop.f32.mrf.mxu0
        %v3255 = vadd.f32 0.0, %v3254
        %v3256 = vpop.f32.mrf.mxu0
        %v3257 = vadd.f32 0.0, %v3256
        %3258 = vmatmul.bf16.gmra.mxu0 %v2833
        %v3259 = vpop.f32.mrf.mxu0
        %v3260 = vadd.f32 0.0, %v3259
        %v3261 = vpop.f32.mrf.mxu0
        %v3262 = vadd.f32 0.0, %v3261
        %3263 = vmatmul.bf16.gmra.mxu0 %v2842
        %v3264 = vpop.f32.mrf.mxu0
        %v3265 = vadd.f32 0.0, %v3264
        %v3266 = vpop.f32.mrf.mxu0
        %v3267 = vadd.f32 0.0, %v3266
        %3268 = vmatmul.bf16.gmra.mxu0 %v2851
        %v3269 = vpop.f32.mrf.mxu0
        %v3270 = vadd.f32 0.0, %v3269
        %v3271 = vpop.f32.mrf.mxu0
        %v3272 = vadd.f32 0.0, %v3271
        %3273 = vmatmul.bf16.gmra.mxu0 %v2860
        %v3274 = vpop.f32.mrf.mxu0
        %v3275 = vadd.f32 0.0, %v3274
        %v3276 = vpop.f32.mrf.mxu0
        %v3277 = vadd.f32 0.0, %v3276
        %3278 = vmatmul.bf16.gmra.mxu0 %v2869
        %v3279 = vpop.f32.mrf.mxu0
        %v3280 = vadd.f32 0.0, %v3279
        %v3281 = vpop.f32.mrf.mxu0
        %v3282 = vadd.f32 0.0, %v3281
        %3283 = vmatmul.bf16.gmra.mxu0 %v2878
        %v3284 = vpop.f32.mrf.mxu0
        %v3285 = vadd.f32 0.0, %v3284
        %v3286 = vpop.f32.mrf.mxu0
        %v3287 = vadd.f32 0.0, %v3286
        %3288 = vmatmul.bf16.gmra.mxu0 %v2887
        %v3289 = vpop.f32.mrf.mxu0
        %v3290 = vadd.f32 0.0, %v3289
        %v3291 = vpop.f32.mrf.mxu0
        %v3292 = vadd.f32 0.0, %v3291
        %3293 = vmatmul.bf16.gmra.mxu0 %v2896
        %v3294 = vpop.f32.mrf.mxu0
        %v3295 = vadd.f32 0.0, %v3294
        %v3296 = vpop.f32.mrf.mxu0
        %v3297 = vadd.f32 0.0, %v3296
        %3298 = vmatmul.bf16.gmra.mxu0 %v2905
        %v3299 = vpop.f32.mrf.mxu0
        %v3300 = vadd.f32 0.0, %v3299
        %v3301 = vpop.f32.mrf.mxu0
        %v3302 = vadd.f32 0.0, %v3301
        %3303 = vmatmul.bf16.gmra.mxu0 %v2914
        %v3304 = vpop.f32.mrf.mxu0
        %v3305 = vadd.f32 0.0, %v3304
        %v3306 = vpop.f32.mrf.mxu0
        %v3307 = vadd.f32 0.0, %v3306
        %3308 = vmatmul.bf16.gmra.mxu0 %v2923
        %v3309 = vpop.f32.mrf.mxu0
        %v3310 = vadd.f32 0.0, %v3309
        %v3311 = vpop.f32.mrf.mxu0
        %v3312 = vadd.f32 0.0, %v3311
        %3313 = vmatmul.bf16.gmra.mxu0 %v2932
        %v3314 = vpop.f32.mrf.mxu0
        %v3315 = vadd.f32 0.0, %v3314
        %v3316 = vpop.f32.mrf.mxu0
        %v3317 = vadd.f32 0.0, %v3316
        %3318 = vmatmul.bf16.gmra.mxu0 %v2941
        %v3319 = vpop.f32.mrf.mxu0
        %v3320 = vadd.f32 0.0, %v3319
        %v3321 = vpop.f32.mrf.mxu0
        %v3322 = vadd.f32 0.0, %v3321
        %3323 = vmatmul.bf16.gmra.mxu0 %v2950
        %v3324 = vpop.f32.mrf.mxu0
        %v3325 = vadd.f32 0.0, %v3324
        %v3326 = vpop.f32.mrf.mxu0
        %v3327 = vadd.f32 0.0, %v3326
        %3328 = vmatmul.bf16.gmra.mxu0 %v2959
        %v3329 = vpop.f32.mrf.mxu0
        %v3330 = vadd.f32 0.0, %v3329
        %v3331 = vpop.f32.mrf.mxu0
        %v3332 = vadd.f32 0.0, %v3331
        %3333 = vmatmul.bf16.gmra.mxu0 %v2968
        %v3334 = vpop.f32.mrf.mxu0
        %v3335 = vadd.f32 0.0, %v3334
        %v3336 = vpop.f32.mrf.mxu0
        %v3337 = vadd.f32 0.0, %v3336
        %3338 = vmatmul.bf16.gmra.mxu0 %v2977
        %v3339 = vpop.f32.mrf.mxu0
        %v3340 = vadd.f32 0.0, %v3339
        %v3341 = vpop.f32.mrf.mxu0
        %v3342 = vadd.f32 0.0, %v3341
        %3343 = vmatmul.bf16.gmra.mxu0 %v2986
        %v3344 = vpop.f32.mrf.mxu0
        %v3345 = vadd.f32 0.0, %v3344
        %v3346 = vpop.f32.mrf.mxu0
        %v3347 = vadd.f32 0.0, %v3346
        %3348 = vmatmul.bf16.gmra.mxu0 %v2995
        %v3349 = vpop.f32.mrf.mxu0
        %v3350 = vadd.f32 0.0, %v3349
        %v3351 = vpop.f32.mrf.mxu0
        %v3352 = vadd.f32 0.0, %v3351
        %3353 = vmatmul.bf16.gmra.mxu0 %v3004
        %v3354 = vpop.f32.mrf.mxu0
        %v3355 = vadd.f32 0.0, %v3354
        %v3356 = vpop.f32.mrf.mxu0
        %v3357 = vadd.f32 0.0, %v3356
        %3358 = vmatmul.bf16.gmra.mxu0 %v3013
        %v3359 = vpop.f32.mrf.mxu0
        %v3360 = vadd.f32 0.0, %v3359
        %v3361 = vpop.f32.mrf.mxu0
        %v3362 = vadd.f32 0.0, %v3361
        %3363 = vmatmul.bf16.gmra.mxu0 %v3022
        %v3364 = vpop.f32.mrf.mxu0
        %v3365 = vadd.f32 0.0, %v3364
        %v3366 = vpop.f32.mrf.mxu0
        %v3367 = vadd.f32 0.0, %v3366
        %3368 = vmatmul.bf16.gmra.mxu0 %v3031
        %v3369 = vpop.f32.mrf.mxu0
        %v3370 = vadd.f32 0.0, %v3369
        %v3371 = vpop.f32.mrf.mxu0
        %v3372 = vadd.f32 0.0, %v3371
        %3373 = vmatmul.bf16.gmra.mxu0 %v3040
        %v3374 = vpop.f32.mrf.mxu0
        %v3375 = vadd.f32 0.0, %v3374
        %v3376 = vpop.f32.mrf.mxu0
        %v3377 = vadd.f32 0.0, %v3376
        %3378 = vmatmul.bf16.gmra.mxu0 %v3049
        %v3379 = vpop.f32.mrf.mxu0
        %v3380 = vadd.f32 0.0, %v3379
        %v3381 = vpop.f32.mrf.mxu0
        %v3382 = vadd.f32 0.0, %v3381
        %3383 = vmatmul.bf16.gmra.mxu0 %v3058
        %v3384 = vpop.f32.mrf.mxu0
        %v3385 = vadd.f32 0.0, %v3384
        %v3386 = vpop.f32.mrf.mxu0
        %v3387 = vadd.f32 0.0, %v3386
        %3388 = vmatmul.bf16.gmra.mxu0 %v3067
        %v3389 = vpop.f32.mrf.mxu0
        %v3390 = vadd.f32 0.0, %v3389
        %v3391 = vpop.f32.mrf.mxu0
        %v3392 = vadd.f32 0.0, %v3391
        %3393 = vmatmul.bf16.gmra.mxu0 %v3076
        %v3394 = vpop.f32.mrf.mxu0
        %v3395 = vadd.f32 0.0, %v3394
        %v3396 = vpop.f32.mrf.mxu0
        %v3397 = vadd.f32 0.0, %v3396
        %3398 = vmatmul.bf16.gmra.mxu0 %v3085
        %v3399 = vpop.f32.mrf.mxu0
        %v3400 = vadd.f32 0.0, %v3399
        %v3401 = vpop.f32.mrf.mxu0
        %v3402 = vadd.f32 0.0, %v3401
        %3403 = vmatmul.bf16.gmra.mxu0 %v3094
        %v3404 = vpop.f32.mrf.mxu0
        %v3405 = vadd.f32 0.0, %v3404
        %v3406 = vpop.f32.mrf.mxu0
        %v3407 = vadd.f32 0.0, %v3406
        %3408 = vmatmul.bf16.gmra.mxu0 %v3103
        %v3409 = vpop.f32.mrf.mxu0
        %v3410 = vadd.f32 0.0, %v3409
        %v3411 = vpop.f32.mrf.mxu0
        %v3412 = vadd.f32 0.0, %v3411
        %3413 = vmatmul.bf16.gmra.mxu0 %v3112
        %v3414 = vpop.f32.mrf.mxu0
        %v3415 = vadd.f32 0.0, %v3414
        %v3416 = vpop.f32.mrf.mxu0
        %v3417 = vadd.f32 0.0, %v3416
        %3418 = vmatmul.bf16.gmra.mxu0 %v3121
        %v3419 = vpop.f32.mrf.mxu0
        %v3420 = vadd.f32 0.0, %v3419
        %v3421 = vpop.f32.mrf.mxu0
        %v3422 = vadd.f32 0.0, %v3421
        %3423 = vmatmul.bf16.gmra.mxu0 %v3130
        %v3424 = vpop.f32.mrf.mxu0
        %v3425 = vadd.f32 0.0, %v3424
        %v3426 = vpop.f32.mrf.mxu0
        %v3427 = vadd.f32 0.0, %v3426
        %3428 = vmatmul.bf16.gmra.mxu0 %v3129
        %v3429 = vpop.f32.mrf.mxu0
        %v3430 = vadd.f32 0.0, %v3429
        %v3431 = vpop.f32.mrf.mxu0
        %3432 = vdwg.mxu0
        %v3433 = vadd.f32 %v2378, %v3230
        %v3434 = vadd.f32 %v2379, %v3232
        %v3435 = vadd.f32 %v2380, %v3235
        %v3436 = vadd.f32 %v2381, %v3237
        %v3437 = vadd.f32 %v2382, %v3240
        %v3438 = vadd.f32 %v2383, %v3242
        %v3439 = vadd.f32 %v2384, %v3245
        %v3440 = vadd.f32 %v2385, %v3247
        %v3441 = vadd.f32 %v2386, %v3250
        %v3442 = vadd.f32 %v2387, %v3252
        %v3443 = vadd.f32 %v2388, %v3255
        %v3444 = vadd.f32 %v2389, %v3257
        %v3445 = vadd.f32 %v2390, %v3260
        %v3446 = vadd.f32 %v2391, %v3262
        %v3447 = vadd.f32 %v2392, %v3265
        %v3448 = vadd.f32 %v2393, %v3267
        %v3449 = vadd.f32 %v2394, %v3270
        %v3450 = vadd.f32 %v2395, %v3272
        %v3451 = vadd.f32 %v2396, %v3275
        %v3452 = vadd.f32 %v2397, %v3277
        %v3453 = vadd.f32 %v2398, %v3280
        %v3454 = vadd.f32 %v2399, %v3282
        %v3455 = vadd.f32 %v2400, %v3285
        %v3456 = vadd.f32 %v2401, %v3287
        %v3457 = vadd.f32 %v2402, %v3290
        %v3458 = vadd.f32 %v2403, %v3292
        %v3459 = vadd.f32 %v2404, %v3295
        %v3460 = vadd.f32 %v2405, %v3297
        %v3461 = vadd.f32 %v2406, %v3300
        %v3462 = vadd.f32 %v2407, %v3302
        %v3463 = vadd.f32 %v2408, %v3305
        %v3464 = vadd.f32 %v2409, %v3307
        %v3465 = vadd.f32 %v2410, %v3310
        %v3466 = vadd.f32 %v2411, %v3312
        %v3467 = vadd.f32 %v2412, %v3315
        %v3468 = vadd.f32 %v2413, %v3317
        %v3469 = vadd.f32 %v2414, %v3320
        %v3470 = vadd.f32 %v2415, %v3322
        %v3471 = vadd.f32 %v2416, %v3325
        %v3472 = vadd.f32 %v2417, %v3327
        %v3473 = vadd.f32 %v2418, %v3330
        %v3474 = vadd.f32 %v2419, %v3332
        %v3475 = vadd.f32 %v2420, %v3335
        %v3476 = vadd.f32 %v2421, %v3337
        %v3477 = vadd.f32 %v2422, %v3340
        %v3478 = vadd.f32 %v2423, %v3342
        %v3479 = vadd.f32 %v2424, %v3345
        %v3480 = vadd.f32 %v2425, %v3347
        %v3481 = vadd.f32 %v2426, %v3350
        %v3482 = vadd.f32 %v2427, %v3352
        %v3483 = vadd.f32 %v2428, %v3355
        %v3484 = vadd.f32 %v2429, %v3357
        %v3485 = vadd.f32 %v2430, %v3360
        %v3486 = vadd.f32 %v2431, %v3362
        %v3487 = vadd.f32 %v2432, %v3365
        %v3488 = vadd.f32 %v2433, %v3367
        %v3489 = vadd.f32 %v2434, %v3370
        %v3490 = vadd.f32 %v2435, %v3372
        %v3491 = vadd.f32 %v2436, %v3375
        %v3492 = vadd.f32 %v2437, %v3377
        %v3493 = vadd.f32 %v2438, %v3380
        %v3494 = vadd.f32 %v2439, %v3382
        %v3495 = vadd.f32 %v2440, %v3385
        %v3496 = vadd.f32 %v2441, %v3387
        %v3497 = vadd.f32 %v2442, %v3390
        %v3498 = vadd.f32 %v2443, %v3392
        %v3499 = vadd.f32 %v2444, %v3395
        %v3500 = vadd.f32 %v2445, %v3397
        %v3501 = vadd.f32 %v2446, %v3400
        %v3502 = vadd.f32 %v2447, %v3402
        %v3503 = vadd.f32 %v2448, %v3405
        %v3504 = vadd.f32 %v2449, %v3407
        %v3505 = vadd.f32 %v2450, %v3410
        %v3506 = vadd.f32 %v2451, %v3412
        %v3507 = vadd.f32 %v2452, %v3415
        %v3508 = vadd.f32 %v2453, %v3417
        %v3509 = vadd.f32 %v2454, %v3420
        %v3510 = vadd.f32 %v2455, %v3422
        %v3511 = vadd.f32 %v2456, %v3425
        %v3512 = vadd.f32 %v2457, %v3427
        %v3513 = vadd.f32 %v2458, %v3430
        %s3514 = scalar_lea.vmem %s2, 256
        %v3515 = vld [vmem:[%s3514] sm:$0xf]
        %v3516 = vld [vmem:[%s3514 + $0x4] sm:$0xf]
        %v3517 = vld [vmem:[%s3514 + $0x8] sm:$0xf]
        %v3518 = vld [vmem:[%s3514 + $0xc] sm:$0xf]
        %v3519 = vld [vmem:[%s3514 + $0x10] sm:$0xf]
        %v3520 = vld [vmem:[%s3514 + $0x14] sm:$0xf]
        %v3521 = vld [vmem:[%s3514 + $0x18] sm:$0xf]
        %v3522 = vld [vmem:[%s3514 + $0x1c] sm:$0xf]
        %v3523 = vld [vmem:[%s3514 + $0x20] sm:$0xf]
        %v3524 = vld [vmem:[%s3514 + $0x24] sm:$0xf]
        %v3525 = vld [vmem:[%s3514 + $0x28] sm:$0xf]
        %v3526 = vld [vmem:[%s3514 + $0x2c] sm:$0xf]
        %v3527 = vld [vmem:[%s3514 + $0x30] sm:$0xf]
        %v3528 = vld [vmem:[%s3514 + $0x34] sm:$0xf]
        %v3529 = vld [vmem:[%s3514 + $0x38] sm:$0xf]
        %v3530 = vld [vmem:[%s3514 + $0x3c] sm:$0xf]
        %v3531 = vpack.c.b16 %v2642, %v2641
        %v3532 = vpack.c.b16 %v2644, %v2643
        %v3533 = vpack.c.b16 %v2646, %v2645
        %v3534 = vpack.c.b16 %v2648, %v2647
        %v3535 = vpack.c.b16 %v2650, %v2649
        %v3536 = vpack.c.b16 %v2652, %v2651
        %v3537 = vpack.c.b16 %v2654, %v2653
        %v3538 = vpack.c.b16 %v2656, %v2655
        %v3539 = vpack.c.b16 %v2658, %v2657
        %v3540 = vpack.c.b16 %v2660, %v2659
        %v3541 = vpack.c.b16 %v2662, %v2661
        %v3542 = vpack.c.b16 %v2664, %v2663
        %v3543 = vpack.c.b16 %v2666, %v2665
        %v3544 = vpack.c.b16 %v2668, %v2667
        %v3545 = vpack.c.b16 %v2670, %v2669
        %v3546 = vpack.c.b16 %v2672, %v2671
        %v3547 = vpack.c.b16 %v2674, %v2673
        %v3548 = vpack.c.b16 %v2676, %v2675
        %v3549 = vpack.c.b16 %v2678, %v2677
        %v3550 = vpack.c.b16 %v2680, %v2679
        %v3551 = vpack.c.b16 %v2682, %v2681
        %v3552 = vpack.c.b16 %v2684, %v2683
        %v3553 = vpack.c.b16 %v2686, %v2685
        %v3554 = vpack.c.b16 %v2688, %v2687
        %v3555 = vpack.c.b16 %v2690, %v2689
        %v3556 = vpack.c.b16 %v2692, %v2691
        %v3557 = vpack.c.b16 %v2694, %v2693
        %v3558 = vpack.c.b16 %v2696, %v2695
        %v3559 = vpack.c.b16 %v2698, %v2697
        %v3560 = vpack.c.b16 %v2700, %v2699
        %v3561 = vpack.c.b16 %v2702, %v2701
        %v3562 = vpack.c.b16 %v2704, %v2703
        %v3563 = vpack.c.b16 %v2706, %v2705
        %v3564 = vpack.c.b16 %v2708, %v2707
        %v3565 = vpack.c.b16 %v2710, %v2709
        %v3566 = vpack.c.b16 %v2712, %v2711
        %v3567 = vpack.c.b16 %v2714, %v2713
        %v3568 = vpack.c.b16 %v2716, %v2715
        %v3569 = vpack.c.b16 %v2718, %v2717
        %v3570 = vpack.c.b16 %v2720, %v2719
        %v3571 = vpack.c.b16 %v2721, %v2721
        %v3629 = vunpack.c.l.b16 %v3515
        %v3630 = vunpack.c.l.b16 %v3516
        %v3631 = vunpack.c.l.b16 %v3517
        %v3632 = vunpack.c.l.b16 %v3518
        %v3633 = vunpack.c.l.b16 %v3519
        %v3634 = vunpack.c.l.b16 %v3520
        %v3635 = vunpack.c.l.b16 %v3521
        %v3636 = vunpack.c.l.b16 %v3522
        %v3637 = vunpack.c.l.b16 %v3523
        %v3638 = vunpack.c.l.b16 %v3524
        %v3639 = vunpack.c.l.b16 %v3525
        %v3640 = vunpack.c.l.b16 %v3526
        %v3641 = vunpack.c.l.b16 %v3527
        %v3642 = vunpack.c.l.b16 %v3528
        %v3643 = vunpack.c.l.b16 %v3529
        %v3644 = vunpack.c.l.b16 %v3530
        %v3645 = vpack.c.b16 %v3630, %v3629
        %v3646 = vpack.c.b16 %v3632, %v3631
        %v3647 = vpack.c.b16 %v3634, %v3633
        %v3648 = vpack.c.b16 %v3636, %v3635
        %v3649 = vpack.c.b16 %v3638, %v3637
        %v3650 = vpack.c.b16 %v3640, %v3639
        %v3651 = vpack.c.b16 %v3642, %v3641
        %v3652 = vpack.c.b16 %v3644, %v3643
        %3661 = vmatpush.bf16.msra.mxu0 %v3652
        %3662 = vmatpush.bf16.msra.mxu0 %v3651
        %3663 = vmatpush.bf16.msra.mxu0 %v3650
        %3664 = vmatpush.bf16.msra.mxu0 %v3649
        %3665 = vmatpush.bf16.msra.mxu0 %v3648
        %3666 = vmatpush.bf16.msra.mxu0 %v3647
        %3667 = vmatpush.bf16.msra.mxu0 %v3646
        %3668 = vmatpush.bf16.msra.mxu0 %v3645
        %3669 = vmatmul.bf16.gmra.mxu0 %v3531
        %v3670 = vpop.f32.mrf.mxu0
        %v3671 = vadd.f32 0.0, %v3670
        %v3672 = vpop.f32.mrf.mxu0
        %v3673 = vadd.f32 0.0, %v3672
        %3674 = vmatmul.bf16.gmra.mxu0 %v3532
        %v3675 = vpop.f32.mrf.mxu0
        %v3676 = vadd.f32 0.0, %v3675
        %v3677 = vpop.f32.mrf.mxu0
        %v3678 = vadd.f32 0.0, %v3677
        %3679 = vmatmul.bf16.gmra.mxu0 %v3533
        %v3680 = vpop.f32.mrf.mxu0
        %v3681 = vadd.f32 0.0, %v3680
        %v3682 = vpop.f32.mrf.mxu0
        %v3683 = vadd.f32 0.0, %v3682
        %3684 = vmatmul.bf16.gmra.mxu0 %v3534
        %v3685 = vpop.f32.mrf.mxu0
        %v3686 = vadd.f32 0.0, %v3685
        %v3687 = vpop.f32.mrf.mxu0
        %v3688 = vadd.f32 0.0, %v3687
        %3689 = vmatmul.bf16.gmra.mxu0 %v3535
        %v3690 = vpop.f32.mrf.mxu0
        %v3691 = vadd.f32 0.0, %v3690
        %v3692 = vpop.f32.mrf.mxu0
        %v3693 = vadd.f32 0.0, %v3692
        %3694 = vmatmul.bf16.gmra.mxu0 %v3536
        %v3695 = vpop.f32.mrf.mxu0
        %v3696 = vadd.f32 0.0, %v3695
        %v3697 = vpop.f32.mrf.mxu0
        %v3698 = vadd.f32 0.0, %v3697
        %3699 = vmatmul.bf16.gmra.mxu0 %v3537
        %v3700 = vpop.f32.mrf.mxu0
        %v3701 = vadd.f32 0.0, %v3700
        %v3702 = vpop.f32.mrf.mxu0
        %v3703 = vadd.f32 0.0, %v3702
        %3704 = vmatmul.bf16.gmra.mxu0 %v3538
        %v3705 = vpop.f32.mrf.mxu0
        %v3706 = vadd.f32 0.0, %v3705
        %v3707 = vpop.f32.mrf.mxu0
        %v3708 = vadd.f32 0.0, %v3707
        %3709 = vmatmul.bf16.gmra.mxu0 %v3539
        %v3710 = vpop.f32.mrf.mxu0
        %v3711 = vadd.f32 0.0, %v3710
        %v3712 = vpop.f32.mrf.mxu0
        %v3713 = vadd.f32 0.0, %v3712
        %3714 = vmatmul.bf16.gmra.mxu0 %v3540
        %v3715 = vpop.f32.mrf.mxu0
        %v3716 = vadd.f32 0.0, %v3715
        %v3717 = vpop.f32.mrf.mxu0
        %v3718 = vadd.f32 0.0, %v3717
        %3719 = vmatmul.bf16.gmra.mxu0 %v3541
        %v3720 = vpop.f32.mrf.mxu0
        %v3721 = vadd.f32 0.0, %v3720
        %v3722 = vpop.f32.mrf.mxu0
        %v3723 = vadd.f32 0.0, %v3722
        %3724 = vmatmul.bf16.gmra.mxu0 %v3542
        %v3725 = vpop.f32.mrf.mxu0
        %v3726 = vadd.f32 0.0, %v3725
        %v3727 = vpop.f32.mrf.mxu0
        %v3728 = vadd.f32 0.0, %v3727
        %3729 = vmatmul.bf16.gmra.mxu0 %v3543
        %v3730 = vpop.f32.mrf.mxu0
        %v3731 = vadd.f32 0.0, %v3730
        %v3732 = vpop.f32.mrf.mxu0
        %v3733 = vadd.f32 0.0, %v3732
        %3734 = vmatmul.bf16.gmra.mxu0 %v3544
        %v3735 = vpop.f32.mrf.mxu0
        %v3736 = vadd.f32 0.0, %v3735
        %v3737 = vpop.f32.mrf.mxu0
        %v3738 = vadd.f32 0.0, %v3737
        %3739 = vmatmul.bf16.gmra.mxu0 %v3545
        %v3740 = vpop.f32.mrf.mxu0
        %v3741 = vadd.f32 0.0, %v3740
        %v3742 = vpop.f32.mrf.mxu0
        %v3743 = vadd.f32 0.0, %v3742
        %3744 = vmatmul.bf16.gmra.mxu0 %v3546
        %v3745 = vpop.f32.mrf.mxu0
        %v3746 = vadd.f32 0.0, %v3745
        %v3747 = vpop.f32.mrf.mxu0
        %v3748 = vadd.f32 0.0, %v3747
        %3749 = vmatmul.bf16.gmra.mxu0 %v3547
        %v3750 = vpop.f32.mrf.mxu0
        %v3751 = vadd.f32 0.0, %v3750
        %v3752 = vpop.f32.mrf.mxu0
        %v3753 = vadd.f32 0.0, %v3752
        %3754 = vmatmul.bf16.gmra.mxu0 %v3548
        %v3755 = vpop.f32.mrf.mxu0
        %v3756 = vadd.f32 0.0, %v3755
        %v3757 = vpop.f32.mrf.mxu0
        %v3758 = vadd.f32 0.0, %v3757
        %3759 = vmatmul.bf16.gmra.mxu0 %v3549
        %v3760 = vpop.f32.mrf.mxu0
        %v3761 = vadd.f32 0.0, %v3760
        %v3762 = vpop.f32.mrf.mxu0
        %v3763 = vadd.f32 0.0, %v3762
        %3764 = vmatmul.bf16.gmra.mxu0 %v3550
        %v3765 = vpop.f32.mrf.mxu0
        %v3766 = vadd.f32 0.0, %v3765
        %v3767 = vpop.f32.mrf.mxu0
        %v3768 = vadd.f32 0.0, %v3767
        %3769 = vmatmul.bf16.gmra.mxu0 %v3551
        %v3770 = vpop.f32.mrf.mxu0
        %v3771 = vadd.f32 0.0, %v3770
        %v3772 = vpop.f32.mrf.mxu0
        %v3773 = vadd.f32 0.0, %v3772
        %3774 = vmatmul.bf16.gmra.mxu0 %v3552
        %v3775 = vpop.f32.mrf.mxu0
        %v3776 = vadd.f32 0.0, %v3775
        %v3777 = vpop.f32.mrf.mxu0
        %v3778 = vadd.f32 0.0, %v3777
        %3779 = vmatmul.bf16.gmra.mxu0 %v3553
        %v3780 = vpop.f32.mrf.mxu0
        %v3781 = vadd.f32 0.0, %v3780
        %v3782 = vpop.f32.mrf.mxu0
        %v3783 = vadd.f32 0.0, %v3782
        %3784 = vmatmul.bf16.gmra.mxu0 %v3554
        %v3785 = vpop.f32.mrf.mxu0
        %v3786 = vadd.f32 0.0, %v3785
        %v3787 = vpop.f32.mrf.mxu0
        %v3788 = vadd.f32 0.0, %v3787
        %3789 = vmatmul.bf16.gmra.mxu0 %v3555
        %v3790 = vpop.f32.mrf.mxu0
        %v3791 = vadd.f32 0.0, %v3790
        %v3792 = vpop.f32.mrf.mxu0
        %v3793 = vadd.f32 0.0, %v3792
        %3794 = vmatmul.bf16.gmra.mxu0 %v3556
        %v3795 = vpop.f32.mrf.mxu0
        %v3796 = vadd.f32 0.0, %v3795
        %v3797 = vpop.f32.mrf.mxu0
        %v3798 = vadd.f32 0.0, %v3797
        %3799 = vmatmul.bf16.gmra.mxu0 %v3557
        %v3800 = vpop.f32.mrf.mxu0
        %v3801 = vadd.f32 0.0, %v3800
        %v3802 = vpop.f32.mrf.mxu0
        %v3803 = vadd.f32 0.0, %v3802
        %3804 = vmatmul.bf16.gmra.mxu0 %v3558
        %v3805 = vpop.f32.mrf.mxu0
        %v3806 = vadd.f32 0.0, %v3805
        %v3807 = vpop.f32.mrf.mxu0
        %v3808 = vadd.f32 0.0, %v3807
        %3809 = vmatmul.bf16.gmra.mxu0 %v3559
        %v3810 = vpop.f32.mrf.mxu0
        %v3811 = vadd.f32 0.0, %v3810
        %v3812 = vpop.f32.mrf.mxu0
        %v3813 = vadd.f32 0.0, %v3812
        %3814 = vmatmul.bf16.gmra.mxu0 %v3560
        %v3815 = vpop.f32.mrf.mxu0
        %v3816 = vadd.f32 0.0, %v3815
        %v3817 = vpop.f32.mrf.mxu0
        %v3818 = vadd.f32 0.0, %v3817
        %3819 = vmatmul.bf16.gmra.mxu0 %v3561
        %v3820 = vpop.f32.mrf.mxu0
        %v3821 = vadd.f32 0.0, %v3820
        %v3822 = vpop.f32.mrf.mxu0
        %v3823 = vadd.f32 0.0, %v3822
        %3824 = vmatmul.bf16.gmra.mxu0 %v3562
        %v3825 = vpop.f32.mrf.mxu0
        %v3826 = vadd.f32 0.0, %v3825
        %v3827 = vpop.f32.mrf.mxu0
        %v3828 = vadd.f32 0.0, %v3827
        %3829 = vmatmul.bf16.gmra.mxu0 %v3563
        %v3830 = vpop.f32.mrf.mxu0
        %v3831 = vadd.f32 0.0, %v3830
        %v3832 = vpop.f32.mrf.mxu0
        %v3833 = vadd.f32 0.0, %v3832
        %3834 = vmatmul.bf16.gmra.mxu0 %v3564
        %v3835 = vpop.f32.mrf.mxu0
        %v3836 = vadd.f32 0.0, %v3835
        %v3837 = vpop.f32.mrf.mxu0
        %v3838 = vadd.f32 0.0, %v3837
        %3839 = vmatmul.bf16.gmra.mxu0 %v3565
        %v3840 = vpop.f32.mrf.mxu0
        %v3841 = vadd.f32 0.0, %v3840
        %v3842 = vpop.f32.mrf.mxu0
        %v3843 = vadd.f32 0.0, %v3842
        %3844 = vmatmul.bf16.gmra.mxu0 %v3566
        %v3845 = vpop.f32.mrf.mxu0
        %v3846 = vadd.f32 0.0, %v3845
        %v3847 = vpop.f32.mrf.mxu0
        %v3848 = vadd.f32 0.0, %v3847
        %3849 = vmatmul.bf16.gmra.mxu0 %v3567
        %v3850 = vpop.f32.mrf.mxu0
        %v3851 = vadd.f32 0.0, %v3850
        %v3852 = vpop.f32.mrf.mxu0
        %v3853 = vadd.f32 0.0, %v3852
        %3854 = vmatmul.bf16.gmra.mxu0 %v3568
        %v3855 = vpop.f32.mrf.mxu0
        %v3856 = vadd.f32 0.0, %v3855
        %v3857 = vpop.f32.mrf.mxu0
        %v3858 = vadd.f32 0.0, %v3857
        %3859 = vmatmul.bf16.gmra.mxu0 %v3569
        %v3860 = vpop.f32.mrf.mxu0
        %v3861 = vadd.f32 0.0, %v3860
        %v3862 = vpop.f32.mrf.mxu0
        %v3863 = vadd.f32 0.0, %v3862
        %3864 = vmatmul.bf16.gmra.mxu0 %v3570
        %v3865 = vpop.f32.mrf.mxu0
        %v3866 = vadd.f32 0.0, %v3865
        %v3867 = vpop.f32.mrf.mxu0
        %v3868 = vadd.f32 0.0, %v3867
        %3869 = vmatmul.bf16.gmra.mxu0 %v3571
        %v3870 = vpop.f32.mrf.mxu0
        %v3871 = vadd.f32 0.0, %v3870
        %v3872 = vpop.f32.mrf.mxu0
        %3873 = vdwg.mxu0
        %v3874 = vadd.f32 %v3433, %v3671
        %v3875 = vadd.f32 %v3434, %v3673
        %v3876 = vadd.f32 %v3435, %v3676
        %v3877 = vadd.f32 %v3436, %v3678
        %v3878 = vadd.f32 %v3437, %v3681
        %v3879 = vadd.f32 %v3438, %v3683
        %v3880 = vadd.f32 %v3439, %v3686
        %v3881 = vadd.f32 %v3440, %v3688
        %v3882 = vadd.f32 %v3441, %v3691
        %v3883 = vadd.f32 %v3442, %v3693
        %v3884 = vadd.f32 %v3443, %v3696
        %v3885 = vadd.f32 %v3444, %v3698
        %v3886 = vadd.f32 %v3445, %v3701
        %v3887 = vadd.f32 %v3446, %v3703
        %v3888 = vadd.f32 %v3447, %v3706
        %v3889 = vadd.f32 %v3448, %v3708
        %v3890 = vadd.f32 %v3449, %v3711
        %v3891 = vadd.f32 %v3450, %v3713
        %v3892 = vadd.f32 %v3451, %v3716
        %v3893 = vadd.f32 %v3452, %v3718
        %v3894 = vadd.f32 %v3453, %v3721
        %v3895 = vadd.f32 %v3454, %v3723
        %v3896 = vadd.f32 %v3455, %v3726
        %v3897 = vadd.f32 %v3456, %v3728
        %v3898 = vadd.f32 %v3457, %v3731
        %v3899 = vadd.f32 %v3458, %v3733
        %v3900 = vadd.f32 %v3459, %v3736
        %v3901 = vadd.f32 %v3460, %v3738
        %v3902 = vadd.f32 %v3461, %v3741
        %v3903 = vadd.f32 %v3462, %v3743
        %v3904 = vadd.f32 %v3463, %v3746
        %v3905 = vadd.f32 %v3464, %v3748
        %v3906 = vadd.f32 %v3465, %v3751
        %v3907 = vadd.f32 %v3466, %v3753
        %v3908 = vadd.f32 %v3467, %v3756
        %v3909 = vadd.f32 %v3468, %v3758
        %v3910 = vadd.f32 %v3469, %v3761
        %v3911 = vadd.f32 %v3470, %v3763
        %v3912 = vadd.f32 %v3471, %v3766
        %v3913 = vadd.f32 %v3472, %v3768
        %v3914 = vadd.f32 %v3473, %v3771
        %v3915 = vadd.f32 %v3474, %v3773
        %v3916 = vadd.f32 %v3475, %v3776
        %v3917 = vadd.f32 %v3476, %v3778
        %v3918 = vadd.f32 %v3477, %v3781
        %v3919 = vadd.f32 %v3478, %v3783
        %v3920 = vadd.f32 %v3479, %v3786
        %v3921 = vadd.f32 %v3480, %v3788
        %v3922 = vadd.f32 %v3481, %v3791
        %v3923 = vadd.f32 %v3482, %v3793
        %v3924 = vadd.f32 %v3483, %v3796
        %v3925 = vadd.f32 %v3484, %v3798
        %v3926 = vadd.f32 %v3485, %v3801
        %v3927 = vadd.f32 %v3486, %v3803
        %v3928 = vadd.f32 %v3487, %v3806
        %v3929 = vadd.f32 %v3488, %v3808
        %v3930 = vadd.f32 %v3489, %v3811
        %v3931 = vadd.f32 %v3490, %v3813
        %v3932 = vadd.f32 %v3491, %v3816
        %v3933 = vadd.f32 %v3492, %v3818
        %v3934 = vadd.f32 %v3493, %v3821
        %v3935 = vadd.f32 %v3494, %v3823
        %v3936 = vadd.f32 %v3495, %v3826
        %v3937 = vadd.f32 %v3496, %v3828
        %v3938 = vadd.f32 %v3497, %v3831
        %v3939 = vadd.f32 %v3498, %v3833
        %v3940 = vadd.f32 %v3499, %v3836
        %v3941 = vadd.f32 %v3500, %v3838
        %v3942 = vadd.f32 %v3501, %v3841
        %v3943 = vadd.f32 %v3502, %v3843
        %v3944 = vadd.f32 %v3503, %v3846
        %v3945 = vadd.f32 %v3504, %v3848
        %v3946 = vadd.f32 %v3505, %v3851
        %v3947 = vadd.f32 %v3506, %v3853
        %v3948 = vadd.f32 %v3507, %v3856
        %v3949 = vadd.f32 %v3508, %v3858
        %v3950 = vadd.f32 %v3509, %v3861
        %v3951 = vadd.f32 %v3510, %v3863
        %v3952 = vadd.f32 %v3511, %v3866
        %v3953 = vadd.f32 %v3512, %v3868
        %v3954 = vadd.f32 %v3513, %v3871
        %v3955 = vld [vmem:[#allocation2 + $0x10] sm:$0xf]
        %v3956 = vld [vmem:[#allocation2 + $0x14] sm:$0xf]
        %v3957 = vld [vmem:[#allocation2 + $0x18] sm:$0xf]
        %v3958 = vld [vmem:[#allocation2 + $0x1c] sm:$0xf]
        %v3959 = vld [vmem:[#allocation2 + $0x20] sm:$0xf]
        %v3960 = vld [vmem:[#allocation2 + $0x24] sm:$0xf]
        %v3961 = vld [vmem:[#allocation2 + $0x28] sm:$0xf]
        %v3962 = vld [vmem:[#allocation2 + $0x2c] sm:$0xf]
        %v3963 = vld [vmem:[#allocation2 + $0x30] sm:$0xf]
        %v3964 = vld [vmem:[#allocation2 + $0x34] sm:$0xf]
        %v3965 = vld [vmem:[#allocation2 + $0x38] sm:$0xf]
        %v3966 = vld [vmem:[#allocation2 + $0x3c] sm:$0xf]
        %v3967 = vld [vmem:[#allocation2 + $0x40] sm:$0xf]
        %v3968 = vld [vmem:[#allocation2 + $0x44] sm:$0xf]
        %v3969 = vld [vmem:[#allocation2 + $0x48] sm:$0xf]
        %v3970 = vld [vmem:[#allocation2 + $0x4c] sm:$0xf]
        %v3971 = vld [vmem:[#allocation2 + $0x50] sm:$0xf]
        %v3972 = vld [vmem:[#allocation2 + $0x54] sm:$0xf]
        %v3973 = vld [vmem:[#allocation2 + $0x58] sm:$0xf]
        %v3974 = vld [vmem:[#allocation2 + $0x5c] sm:$0xf]
        %v3975 = vld [vmem:[#allocation2 + $0x60] sm:$0xf]
        %v3976 = vld [vmem:[#allocation2 + $0x64] sm:$0xf]
        %v3977 = vld [vmem:[#allocation2 + $0x68] sm:$0xf]
        %v3978 = vld [vmem:[#allocation2 + $0x6c] sm:$0xf]
        %v3979 = vld [vmem:[#allocation2 + $0x70] sm:$0xf]
        %v3980 = vld [vmem:[#allocation2 + $0x74] sm:$0xf]
        %v3981 = vld [vmem:[#allocation2 + $0x78] sm:$0xf]
        %v3982 = vld [vmem:[#allocation2 + $0x7c] sm:$0xf]
        %v3983 = vld [vmem:[#allocation2 + $0x80] sm:$0xf]
        %v3984 = vld [vmem:[#allocation2 + $0x84] sm:$0xf]
        %v3985 = vld [vmem:[#allocation2 + $0x88] sm:$0xf]
        %v3986 = vld [vmem:[#allocation2 + $0x8c] sm:$0xf]
        %v3987 = vld [vmem:[#allocation2 + $0x90] sm:$0xf]
        %v3988 = vld [vmem:[#allocation2 + $0x94] sm:$0xf]
        %v3989 = vld [vmem:[#allocation2 + $0x98] sm:$0xf]
        %v3990 = vld [vmem:[#allocation2 + $0x9c] sm:$0xf]
        %v3991 = vld [vmem:[#allocation2 + $0xa0] sm:$0xf]
        %v3992 = vld [vmem:[#allocation2 + $0xa4] sm:$0xf]
        %v3993 = vld [vmem:[#allocation2 + $0xa8] sm:$0xf]
        %v3994 = vld [vmem:[#allocation2 + $0xac] sm:$0xf]
        %v3995 = vld [vmem:[#allocation2 + $0xb0] sm:$0xf]
        %v3996 = vld [vmem:[#allocation2 + $0xb4] sm:$0xf]
        %v3997 = vld [vmem:[#allocation2 + $0xb8] sm:$0xf]
        %v3998 = vld [vmem:[#allocation2 + $0xbc] sm:$0xf]
        %v3999 = vld [vmem:[#allocation2 + $0xc0] sm:$0xf]
        %v4000 = vld [vmem:[#allocation2 + $0xc4] sm:$0xf]
        %v4001 = vld [vmem:[#allocation2 + $0xc8] sm:$0xf]
        %v4002 = vld [vmem:[#allocation2 + $0xcc] sm:$0xf]
        %v4003 = vld [vmem:[#allocation2 + $0xd0] sm:$0xf]
        %v4004 = vld [vmem:[#allocation2 + $0xd4] sm:$0xf]
        %v4005 = vld [vmem:[#allocation2 + $0xd8] sm:$0xf]
        %v4006 = vld [vmem:[#allocation2 + $0xdc] sm:$0xf]
        %v4007 = vld [vmem:[#allocation2 + $0xe0] sm:$0xf]
        %v4008 = vld [vmem:[#allocation2 + $0xe4] sm:$0xf]
        %v4009 = vld [vmem:[#allocation2 + $0xe8] sm:$0xf]
        %v4010 = vld [vmem:[#allocation2 + $0xec] sm:$0xf]
        %v4011 = vld [vmem:[#allocation2 + $0xf0] sm:$0xf]
        %v4012 = vld [vmem:[#allocation2 + $0xf4] sm:$0xf]
        %v4013 = vld [vmem:[#allocation2 + $0xf8] sm:$0xf]
        %v4014 = vld [vmem:[#allocation2 + $0xfc] sm:$0xf]
        %v4015 = vld [vmem:[#allocation2 + $0x100] sm:$0xf]
        %v4016 = vld [vmem:[#allocation2 + $0x104] sm:$0xf]
        %v4017 = vld [vmem:[#allocation2 + $0x108] sm:$0xf]
        %v4018 = vld [vmem:[#allocation2 + $0x10c] sm:$0xf]
        %v4019 = vld [vmem:[#allocation2 + $0x110] sm:$0xf]
        %v4020 = vld [vmem:[#allocation2 + $0x114] sm:$0xf]
        %v4021 = vld [vmem:[#allocation2 + $0x118] sm:$0xf]
        %v4022 = vld [vmem:[#allocation2 + $0x11c] sm:$0xf]
        %v4023 = vld [vmem:[#allocation2 + $0x120] sm:$0xf]
        %v4024 = vld [vmem:[#allocation2 + $0x124] sm:$0xf]
        %v4025 = vld [vmem:[#allocation2 + $0x128] sm:$0xf]
        %v4026 = vld [vmem:[#allocation2 + $0x12c] sm:$0xf]
        %v4027 = vld [vmem:[#allocation2 + $0x130] sm:$0xf]
        %v4028 = vld [vmem:[#allocation2 + $0x134] sm:$0xf]
        %v4029 = vld [vmem:[#allocation2 + $0x138] sm:$0xf]
        %v4030 = vld [vmem:[#allocation2 + $0x13c] sm:$0xf]
        %v4031 = vld [vmem:[#allocation2 + $0x140] sm:$0xf]
        %v4032 = vld [vmem:[#allocation2 + $0x144] sm:$0xf]
        %v4033 = vld [vmem:[#allocation2 + $0x148] sm:$0xf]
        %v4034 = vld [vmem:[#allocation2 + $0x14c] sm:$0xf]
        %v4035 = vld [vmem:[#allocation2 + $0x150] sm:$0xf]
        %v4036 = vld [vmem:[#allocation2 + $0x154] sm:$0x1]
        %s4037 = scalar_lea.vmem %s2, 320
        %v4038 = vld [vmem:[%s4037] sm:$0xf]
        %v4039 = vld [vmem:[%s4037 + $0x4] sm:$0xf]
        %v4040 = vld [vmem:[%s4037 + $0x8] sm:$0xf]
        %v4041 = vld [vmem:[%s4037 + $0xc] sm:$0xf]
        %v4042 = vld [vmem:[%s4037 + $0x10] sm:$0xf]
        %v4043 = vld [vmem:[%s4037 + $0x14] sm:$0xf]
        %v4044 = vld [vmem:[%s4037 + $0x18] sm:$0xf]
        %v4045 = vld [vmem:[%s4037 + $0x1c] sm:$0xf]
        %v4046 = vld [vmem:[%s4037 + $0x20] sm:$0xf]
        %v4047 = vld [vmem:[%s4037 + $0x24] sm:$0xf]
        %v4048 = vld [vmem:[%s4037 + $0x28] sm:$0xf]
        %v4049 = vld [vmem:[%s4037 + $0x2c] sm:$0xf]
        %v4050 = vld [vmem:[%s4037 + $0x30] sm:$0xf]
        %v4051 = vld [vmem:[%s4037 + $0x34] sm:$0xf]
        %v4052 = vld [vmem:[%s4037 + $0x38] sm:$0xf]
        %v4053 = vld [vmem:[%s4037 + $0x3c] sm:$0xf]
        %v4136 = vunpack.c.l.b16 %v3955
        %v4137 = vunpack.c.l.b16 %v3956
        %v4138 = vunpack.c.l.b16 %v3957
        %v4139 = vunpack.c.l.b16 %v3958
        %v4140 = vunpack.c.l.b16 %v3959
        %v4141 = vunpack.c.l.b16 %v3960
        %v4142 = vunpack.c.l.b16 %v3961
        %v4143 = vunpack.c.l.b16 %v3962
        %v4144 = vunpack.c.l.b16 %v3963
        %v4145 = vunpack.c.l.b16 %v3964
        %v4146 = vunpack.c.l.b16 %v3965
        %v4147 = vunpack.c.l.b16 %v3966
        %v4148 = vunpack.c.l.b16 %v3967
        %v4149 = vunpack.c.l.b16 %v3968
        %v4150 = vunpack.c.l.b16 %v3969
        %v4151 = vunpack.c.l.b16 %v3970
        %v4152 = vunpack.c.l.b16 %v3971
        %v4153 = vunpack.c.l.b16 %v3972
        %v4154 = vunpack.c.l.b16 %v3973
        %v4155 = vunpack.c.l.b16 %v3974
        %v4156 = vunpack.c.l.b16 %v3975
        %v4157 = vunpack.c.l.b16 %v3976
        %v4158 = vunpack.c.l.b16 %v3977
        %v4159 = vunpack.c.l.b16 %v3978
        %v4160 = vunpack.c.l.b16 %v3979
        %v4161 = vunpack.c.l.b16 %v3980
        %v4162 = vunpack.c.l.b16 %v3981
        %v4163 = vunpack.c.l.b16 %v3982
        %v4164 = vunpack.c.l.b16 %v3983
        %v4165 = vunpack.c.l.b16 %v3984
        %v4166 = vunpack.c.l.b16 %v3985
        %v4167 = vunpack.c.l.b16 %v3986
        %v4168 = vunpack.c.l.b16 %v3987
        %v4169 = vunpack.c.l.b16 %v3988
        %v4170 = vunpack.c.l.b16 %v3989
        %v4171 = vunpack.c.l.b16 %v3990
        %v4172 = vunpack.c.l.b16 %v3991
        %v4173 = vunpack.c.l.b16 %v3992
        %v4174 = vunpack.c.l.b16 %v3993
        %v4175 = vunpack.c.l.b16 %v3994
        %v4176 = vunpack.c.l.b16 %v3995
        %v4177 = vunpack.c.l.b16 %v3996
        %v4178 = vunpack.c.l.b16 %v3997
        %v4179 = vunpack.c.l.b16 %v3998
        %v4180 = vunpack.c.l.b16 %v3999
        %v4181 = vunpack.c.l.b16 %v4000
        %v4182 = vunpack.c.l.b16 %v4001
        %v4183 = vunpack.c.l.b16 %v4002
        %v4184 = vunpack.c.l.b16 %v4003
        %v4185 = vunpack.c.l.b16 %v4004
        %v4186 = vunpack.c.l.b16 %v4005
        %v4187 = vunpack.c.l.b16 %v4006
        %v4188 = vunpack.c.l.b16 %v4007
        %v4189 = vunpack.c.l.b16 %v4008
        %v4190 = vunpack.c.l.b16 %v4009
        %v4191 = vunpack.c.l.b16 %v4010
        %v4192 = vunpack.c.l.b16 %v4011
        %v4193 = vunpack.c.l.b16 %v4012
        %v4194 = vunpack.c.l.b16 %v4013
        %v4195 = vunpack.c.l.b16 %v4014
        %v4196 = vunpack.c.l.b16 %v4015
        %v4197 = vunpack.c.l.b16 %v4016
        %v4198 = vunpack.c.l.b16 %v4017
        %v4199 = vunpack.c.l.b16 %v4018
        %v4200 = vunpack.c.l.b16 %v4019
        %v4201 = vunpack.c.l.b16 %v4020
        %v4202 = vunpack.c.l.b16 %v4021
        %v4203 = vunpack.c.l.b16 %v4022
        %v4204 = vunpack.c.l.b16 %v4023
        %v4205 = vunpack.c.l.b16 %v4024
        %v4206 = vunpack.c.l.b16 %v4025
        %v4207 = vunpack.c.l.b16 %v4026
        %v4208 = vunpack.c.l.b16 %v4027
        %v4209 = vunpack.c.l.b16 %v4028
        %v4210 = vunpack.c.l.b16 %v4029
        %v4211 = vunpack.c.l.b16 %v4030
        %v4212 = vunpack.c.l.b16 %v4031
        %v4213 = vunpack.c.l.b16 %v4032
        %v4214 = vunpack.c.l.b16 %v4033
        %v4215 = vunpack.c.l.b16 %v4034
        %v4216 = vunpack.c.l.b16 %v4035
        %v4217 = vunpack.c.l.b16 %v4036
        %v4218 = vpack.c.b16 %v4137, %v4136
        %v4219 = vpack.c.b16 %v4139, %v4138
        %v4220 = vpack.c.b16 %v4141, %v4140
        %v4221 = vpack.c.b16 %v4143, %v4142
        %v4222 = vpack.c.b16 %v4145, %v4144
        %v4223 = vpack.c.b16 %v4147, %v4146
        %v4224 = vpack.c.b16 %v4149, %v4148
        %v4225 = vpack.c.b16 %v4151, %v4150
        %v4226 = vpack.c.b16 %v4153, %v4152
        %v4227 = vpack.c.b16 %v4155, %v4154
        %v4228 = vpack.c.b16 %v4157, %v4156
        %v4229 = vpack.c.b16 %v4159, %v4158
        %v4230 = vpack.c.b16 %v4161, %v4160
        %v4231 = vpack.c.b16 %v4163, %v4162
        %v4232 = vpack.c.b16 %v4165, %v4164
        %v4233 = vpack.c.b16 %v4167, %v4166
        %v4234 = vpack.c.b16 %v4169, %v4168
        %v4235 = vpack.c.b16 %v4171, %v4170
        %v4236 = vpack.c.b16 %v4173, %v4172
        %v4237 = vpack.c.b16 %v4175, %v4174
        %v4238 = vpack.c.b16 %v4177, %v4176
        %v4239 = vpack.c.b16 %v4179, %v4178
        %v4240 = vpack.c.b16 %v4181, %v4180
        %v4241 = vpack.c.b16 %v4183, %v4182
        %v4242 = vpack.c.b16 %v4185, %v4184
        %v4243 = vpack.c.b16 %v4187, %v4186
        %v4244 = vpack.c.b16 %v4189, %v4188
        %v4245 = vpack.c.b16 %v4191, %v4190
        %v4246 = vpack.c.b16 %v4193, %v4192
        %v4247 = vpack.c.b16 %v4195, %v4194
        %v4248 = vpack.c.b16 %v4197, %v4196
        %v4249 = vpack.c.b16 %v4199, %v4198
        %v4250 = vpack.c.b16 %v4201, %v4200
        %v4251 = vpack.c.b16 %v4203, %v4202
        %v4252 = vpack.c.b16 %v4205, %v4204
        %v4253 = vpack.c.b16 %v4207, %v4206
        %v4254 = vpack.c.b16 %v4209, %v4208
        %v4255 = vpack.c.b16 %v4211, %v4210
        %v4256 = vpack.c.b16 %v4213, %v4212
        %v4257 = vpack.c.b16 %v4215, %v4214
        %v4258 = vpack.c.b16 %v4217, %v4216
        %vm4259 = vsmask.f32 7424
        %v4261 = vshrl.u32 %v4218, 16
        %v4263 = vshll.u32 %v4218, 16
        %v4265 = vrot.slane %v4263, 1
        %v4266 = vor.u32 %v4261, %v4265
        %v4268 = vshll.u32 %v4219, 16
        %v4270 = vrot.slane %v4268, 1
        %v4271 = vsel %vm4259, %v4266, %v4270
        %v4272 = vshrl.u32 %v4219, 16
        %v4274 = vor.u32 %v4272, %v4270
        %v4276 = vshll.u32 %v4220, 16
        %v4278 = vrot.slane %v4276, 1
        %v4279 = vsel %vm4259, %v4274, %v4278
        %v4280 = vshrl.u32 %v4220, 16
        %v4282 = vor.u32 %v4280, %v4278
        %v4284 = vshll.u32 %v4221, 16
        %v4286 = vrot.slane %v4284, 1
        %v4287 = vsel %vm4259, %v4282, %v4286
        %v4288 = vshrl.u32 %v4221, 16
        %v4290 = vor.u32 %v4288, %v4286
        %v4292 = vshll.u32 %v4222, 16
        %v4294 = vrot.slane %v4292, 1
        %v4295 = vsel %vm4259, %v4290, %v4294
        %v4296 = vshrl.u32 %v4222, 16
        %v4298 = vor.u32 %v4296, %v4294
        %v4300 = vshll.u32 %v4223, 16
        %v4302 = vrot.slane %v4300, 1
        %v4303 = vsel %vm4259, %v4298, %v4302
        %v4304 = vshrl.u32 %v4223, 16
        %v4306 = vor.u32 %v4304, %v4302
        %v4308 = vshll.u32 %v4224, 16
        %v4310 = vrot.slane %v4308, 1
        %v4311 = vsel %vm4259, %v4306, %v4310
        %v4312 = vshrl.u32 %v4224, 16
        %v4314 = vor.u32 %v4312, %v4310
        %v4316 = vshll.u32 %v4225, 16
        %v4318 = vrot.slane %v4316, 1
        %v4319 = vsel %vm4259, %v4314, %v4318
        %v4320 = vshrl.u32 %v4225, 16
        %v4322 = vor.u32 %v4320, %v4318
        %v4324 = vshll.u32 %v4226, 16
        %v4326 = vrot.slane %v4324, 1
        %v4327 = vsel %vm4259, %v4322, %v4326
        %v4328 = vshrl.u32 %v4226, 16
        %v4330 = vor.u32 %v4328, %v4326
        %v4332 = vshll.u32 %v4227, 16
        %v4334 = vrot.slane %v4332, 1
        %v4335 = vsel %vm4259, %v4330, %v4334
        %v4336 = vshrl.u32 %v4227, 16
        %v4338 = vor.u32 %v4336, %v4334
        %v4340 = vshll.u32 %v4228, 16
        %v4342 = vrot.slane %v4340, 1
        %v4343 = vsel %vm4259, %v4338, %v4342
        %v4344 = vshrl.u32 %v4228, 16
        %v4346 = vor.u32 %v4344, %v4342
        %v4348 = vshll.u32 %v4229, 16
        %v4350 = vrot.slane %v4348, 1
        %v4351 = vsel %vm4259, %v4346, %v4350
        %v4352 = vshrl.u32 %v4229, 16
        %v4354 = vor.u32 %v4352, %v4350
        %v4356 = vshll.u32 %v4230, 16
        %v4358 = vrot.slane %v4356, 1
        %v4359 = vsel %vm4259, %v4354, %v4358
        %v4360 = vshrl.u32 %v4230, 16
        %v4362 = vor.u32 %v4360, %v4358
        %v4364 = vshll.u32 %v4231, 16
        %v4366 = vrot.slane %v4364, 1
        %v4367 = vsel %vm4259, %v4362, %v4366
        %v4368 = vshrl.u32 %v4231, 16
        %v4370 = vor.u32 %v4368, %v4366
        %v4372 = vshll.u32 %v4232, 16
        %v4374 = vrot.slane %v4372, 1
        %v4375 = vsel %vm4259, %v4370, %v4374
        %v4376 = vshrl.u32 %v4232, 16
        %v4378 = vor.u32 %v4376, %v4374
        %v4380 = vshll.u32 %v4233, 16
        %v4382 = vrot.slane %v4380, 1
        %v4383 = vsel %vm4259, %v4378, %v4382
        %v4384 = vshrl.u32 %v4233, 16
        %v4386 = vor.u32 %v4384, %v4382
        %v4388 = vshll.u32 %v4234, 16
        %v4390 = vrot.slane %v4388, 1
        %v4391 = vsel %vm4259, %v4386, %v4390
        %v4392 = vshrl.u32 %v4234, 16
        %v4394 = vor.u32 %v4392, %v4390
        %v4396 = vshll.u32 %v4235, 16
        %v4398 = vrot.slane %v4396, 1
        %v4399 = vsel %vm4259, %v4394, %v4398
        %v4400 = vshrl.u32 %v4235, 16
        %v4402 = vor.u32 %v4400, %v4398
        %v4404 = vshll.u32 %v4236, 16
        %v4406 = vrot.slane %v4404, 1
        %v4407 = vsel %vm4259, %v4402, %v4406
        %v4408 = vshrl.u32 %v4236, 16
        %v4410 = vor.u32 %v4408, %v4406
        %v4412 = vshll.u32 %v4237, 16
        %v4414 = vrot.slane %v4412, 1
        %v4415 = vsel %vm4259, %v4410, %v4414
        %v4416 = vshrl.u32 %v4237, 16
        %v4418 = vor.u32 %v4416, %v4414
        %v4420 = vshll.u32 %v4238, 16
        %v4422 = vrot.slane %v4420, 1
        %v4423 = vsel %vm4259, %v4418, %v4422
        %v4424 = vshrl.u32 %v4238, 16
        %v4426 = vor.u32 %v4424, %v4422
        %v4428 = vshll.u32 %v4239, 16
        %v4430 = vrot.slane %v4428, 1
        %v4431 = vsel %vm4259, %v4426, %v4430
        %v4432 = vshrl.u32 %v4239, 16
        %v4434 = vor.u32 %v4432, %v4430
        %v4436 = vshll.u32 %v4240, 16
        %v4438 = vrot.slane %v4436, 1
        %v4439 = vsel %vm4259, %v4434, %v4438
        %v4440 = vshrl.u32 %v4240, 16
        %v4442 = vor.u32 %v4440, %v4438
        %v4444 = vshll.u32 %v4241, 16
        %v4446 = vrot.slane %v4444, 1
        %v4447 = vsel %vm4259, %v4442, %v4446
        %v4448 = vshrl.u32 %v4241, 16
        %v4450 = vor.u32 %v4448, %v4446
        %v4452 = vshll.u32 %v4242, 16
        %v4454 = vrot.slane %v4452, 1
        %v4455 = vsel %vm4259, %v4450, %v4454
        %v4456 = vshrl.u32 %v4242, 16
        %v4458 = vor.u32 %v4456, %v4454
        %v4460 = vshll.u32 %v4243, 16
        %v4462 = vrot.slane %v4460, 1
        %v4463 = vsel %vm4259, %v4458, %v4462
        %v4464 = vshrl.u32 %v4243, 16
        %v4466 = vor.u32 %v4464, %v4462
        %v4468 = vshll.u32 %v4244, 16
        %v4470 = vrot.slane %v4468, 1
        %v4471 = vsel %vm4259, %v4466, %v4470
        %v4472 = vshrl.u32 %v4244, 16
        %v4474 = vor.u32 %v4472, %v4470
        %v4476 = vshll.u32 %v4245, 16
        %v4478 = vrot.slane %v4476, 1
        %v4479 = vsel %vm4259, %v4474, %v4478
        %v4480 = vshrl.u32 %v4245, 16
        %v4482 = vor.u32 %v4480, %v4478
        %v4484 = vshll.u32 %v4246, 16
        %v4486 = vrot.slane %v4484, 1
        %v4487 = vsel %vm4259, %v4482, %v4486
        %v4488 = vshrl.u32 %v4246, 16
        %v4490 = vor.u32 %v4488, %v4486
        %v4492 = vshll.u32 %v4247, 16
        %v4494 = vrot.slane %v4492, 1
        %v4495 = vsel %vm4259, %v4490, %v4494
        %v4496 = vshrl.u32 %v4247, 16
        %v4498 = vor.u32 %v4496, %v4494
        %v4500 = vshll.u32 %v4248, 16
        %v4502 = vrot.slane %v4500, 1
        %v4503 = vsel %vm4259, %v4498, %v4502
        %v4504 = vshrl.u32 %v4248, 16
        %v4506 = vor.u32 %v4504, %v4502
        %v4508 = vshll.u32 %v4249, 16
        %v4510 = vrot.slane %v4508, 1
        %v4511 = vsel %vm4259, %v4506, %v4510
        %v4512 = vshrl.u32 %v4249, 16
        %v4514 = vor.u32 %v4512, %v4510
        %v4516 = vshll.u32 %v4250, 16
        %v4518 = vrot.slane %v4516, 1
        %v4519 = vsel %vm4259, %v4514, %v4518
        %v4520 = vshrl.u32 %v4250, 16
        %v4522 = vor.u32 %v4520, %v4518
        %v4524 = vshll.u32 %v4251, 16
        %v4526 = vrot.slane %v4524, 1
        %v4527 = vsel %vm4259, %v4522, %v4526
        %v4528 = vshrl.u32 %v4251, 16
        %v4530 = vor.u32 %v4528, %v4526
        %v4532 = vshll.u32 %v4252, 16
        %v4534 = vrot.slane %v4532, 1
        %v4535 = vsel %vm4259, %v4530, %v4534
        %v4536 = vshrl.u32 %v4252, 16
        %v4538 = vor.u32 %v4536, %v4534
        %v4540 = vshll.u32 %v4253, 16
        %v4542 = vrot.slane %v4540, 1
        %v4543 = vsel %vm4259, %v4538, %v4542
        %v4544 = vshrl.u32 %v4253, 16
        %v4546 = vor.u32 %v4544, %v4542
        %v4548 = vshll.u32 %v4254, 16
        %v4550 = vrot.slane %v4548, 1
        %v4551 = vsel %vm4259, %v4546, %v4550
        %v4552 = vshrl.u32 %v4254, 16
        %v4554 = vor.u32 %v4552, %v4550
        %v4556 = vshll.u32 %v4255, 16
        %v4558 = vrot.slane %v4556, 1
        %v4559 = vsel %vm4259, %v4554, %v4558
        %v4560 = vshrl.u32 %v4255, 16
        %v4562 = vor.u32 %v4560, %v4558
        %v4564 = vshll.u32 %v4256, 16
        %v4566 = vrot.slane %v4564, 1
        %v4567 = vsel %vm4259, %v4562, %v4566
        %v4568 = vshrl.u32 %v4256, 16
        %v4570 = vor.u32 %v4568, %v4566
        %v4572 = vshll.u32 %v4257, 16
        %v4574 = vrot.slane %v4572, 1
        %v4575 = vsel %vm4259, %v4570, %v4574
        %v4576 = vshrl.u32 %v4257, 16
        %v4578 = vor.u32 %v4576, %v4574
        %v4580 = vshll.u32 %v4258, 16
        %v4582 = vrot.slane %v4580, 1
        %v4583 = vsel %vm4259, %v4578, %v4582
        %v4584 = vshrl.u32 %v4258, 16
        %v4586 = vor.u32 %v4584, %v4582
        %v4644 = vunpack.c.l.b16 %v4038
        %v4645 = vunpack.c.l.b16 %v4039
        %v4646 = vunpack.c.l.b16 %v4040
        %v4647 = vunpack.c.l.b16 %v4041
        %v4648 = vunpack.c.l.b16 %v4042
        %v4649 = vunpack.c.l.b16 %v4043
        %v4650 = vunpack.c.l.b16 %v4044
        %v4651 = vunpack.c.l.b16 %v4045
        %v4652 = vunpack.c.l.b16 %v4046
        %v4653 = vunpack.c.l.b16 %v4047
        %v4654 = vunpack.c.l.b16 %v4048
        %v4655 = vunpack.c.l.b16 %v4049
        %v4656 = vunpack.c.l.b16 %v4050
        %v4657 = vunpack.c.l.b16 %v4051
        %v4658 = vunpack.c.l.b16 %v4052
        %v4659 = vunpack.c.l.b16 %v4053
        %v4660 = vpack.c.b16 %v4645, %v4644
        %v4661 = vpack.c.b16 %v4647, %v4646
        %v4662 = vpack.c.b16 %v4649, %v4648
        %v4663 = vpack.c.b16 %v4651, %v4650
        %v4664 = vpack.c.b16 %v4653, %v4652
        %v4665 = vpack.c.b16 %v4655, %v4654
        %v4666 = vpack.c.b16 %v4657, %v4656
        %v4667 = vpack.c.b16 %v4659, %v4658
        %4676 = vmatpush.bf16.msra.mxu0 %v4667
        %4677 = vmatpush.bf16.msra.mxu0 %v4666
        %4678 = vmatpush.bf16.msra.mxu0 %v4665
        %4679 = vmatpush.bf16.msra.mxu0 %v4664
        %4680 = vmatpush.bf16.msra.mxu0 %v4663
        %4681 = vmatpush.bf16.msra.mxu0 %v4662
        %4682 = vmatpush.bf16.msra.mxu0 %v4661
        %4683 = vmatpush.bf16.msra.mxu0 %v4660
        %4684 = vmatmul.bf16.gmra.mxu0 %v4271
        %v4685 = vpop.f32.mrf.mxu0
        %v4686 = vadd.f32 0.0, %v4685
        %v4687 = vpop.f32.mrf.mxu0
        %v4688 = vadd.f32 0.0, %v4687
        %4689 = vmatmul.bf16.gmra.mxu0 %v4279
        %v4690 = vpop.f32.mrf.mxu0
        %v4691 = vadd.f32 0.0, %v4690
        %v4692 = vpop.f32.mrf.mxu0
        %v4693 = vadd.f32 0.0, %v4692
        %4694 = vmatmul.bf16.gmra.mxu0 %v4287
        %v4695 = vpop.f32.mrf.mxu0
        %v4696 = vadd.f32 0.0, %v4695
        %v4697 = vpop.f32.mrf.mxu0
        %v4698 = vadd.f32 0.0, %v4697
        %4699 = vmatmul.bf16.gmra.mxu0 %v4295
        %v4700 = vpop.f32.mrf.mxu0
        %v4701 = vadd.f32 0.0, %v4700
        %v4702 = vpop.f32.mrf.mxu0
        %v4703 = vadd.f32 0.0, %v4702
        %4704 = vmatmul.bf16.gmra.mxu0 %v4303
        %v4705 = vpop.f32.mrf.mxu0
        %v4706 = vadd.f32 0.0, %v4705
        %v4707 = vpop.f32.mrf.mxu0
        %v4708 = vadd.f32 0.0, %v4707
        %4709 = vmatmul.bf16.gmra.mxu0 %v4311
        %v4710 = vpop.f32.mrf.mxu0
        %v4711 = vadd.f32 0.0, %v4710
        %v4712 = vpop.f32.mrf.mxu0
        %v4713 = vadd.f32 0.0, %v4712
        %4714 = vmatmul.bf16.gmra.mxu0 %v4319
        %v4715 = vpop.f32.mrf.mxu0
        %v4716 = vadd.f32 0.0, %v4715
        %v4717 = vpop.f32.mrf.mxu0
        %v4718 = vadd.f32 0.0, %v4717
        %4719 = vmatmul.bf16.gmra.mxu0 %v4327
        %v4720 = vpop.f32.mrf.mxu0
        %v4721 = vadd.f32 0.0, %v4720
        %v4722 = vpop.f32.mrf.mxu0
        %v4723 = vadd.f32 0.0, %v4722
        %4724 = vmatmul.bf16.gmra.mxu0 %v4335
        %v4725 = vpop.f32.mrf.mxu0
        %v4726 = vadd.f32 0.0, %v4725
        %v4727 = vpop.f32.mrf.mxu0
        %v4728 = vadd.f32 0.0, %v4727
        %4729 = vmatmul.bf16.gmra.mxu0 %v4343
        %v4730 = vpop.f32.mrf.mxu0
        %v4731 = vadd.f32 0.0, %v4730
        %v4732 = vpop.f32.mrf.mxu0
        %v4733 = vadd.f32 0.0, %v4732
        %4734 = vmatmul.bf16.gmra.mxu0 %v4351
        %v4735 = vpop.f32.mrf.mxu0
        %v4736 = vadd.f32 0.0, %v4735
        %v4737 = vpop.f32.mrf.mxu0
        %v4738 = vadd.f32 0.0, %v4737
        %4739 = vmatmul.bf16.gmra.mxu0 %v4359
        %v4740 = vpop.f32.mrf.mxu0
        %v4741 = vadd.f32 0.0, %v4740
        %v4742 = vpop.f32.mrf.mxu0
        %v4743 = vadd.f32 0.0, %v4742
        %4744 = vmatmul.bf16.gmra.mxu0 %v4367
        %v4745 = vpop.f32.mrf.mxu0
        %v4746 = vadd.f32 0.0, %v4745
        %v4747 = vpop.f32.mrf.mxu0
        %v4748 = vadd.f32 0.0, %v4747
        %4749 = vmatmul.bf16.gmra.mxu0 %v4375
        %v4750 = vpop.f32.mrf.mxu0
        %v4751 = vadd.f32 0.0, %v4750
        %v4752 = vpop.f32.mrf.mxu0
        %v4753 = vadd.f32 0.0, %v4752
        %4754 = vmatmul.bf16.gmra.mxu0 %v4383
        %v4755 = vpop.f32.mrf.mxu0
        %v4756 = vadd.f32 0.0, %v4755
        %v4757 = vpop.f32.mrf.mxu0
        %v4758 = vadd.f32 0.0, %v4757
        %4759 = vmatmul.bf16.gmra.mxu0 %v4391
        %v4760 = vpop.f32.mrf.mxu0
        %v4761 = vadd.f32 0.0, %v4760
        %v4762 = vpop.f32.mrf.mxu0
        %v4763 = vadd.f32 0.0, %v4762
        %4764 = vmatmul.bf16.gmra.mxu0 %v4399
        %v4765 = vpop.f32.mrf.mxu0
        %v4766 = vadd.f32 0.0, %v4765
        %v4767 = vpop.f32.mrf.mxu0
        %v4768 = vadd.f32 0.0, %v4767
        %4769 = vmatmul.bf16.gmra.mxu0 %v4407
        %v4770 = vpop.f32.mrf.mxu0
        %v4771 = vadd.f32 0.0, %v4770
        %v4772 = vpop.f32.mrf.mxu0
        %v4773 = vadd.f32 0.0, %v4772
        %4774 = vmatmul.bf16.gmra.mxu0 %v4415
        %v4775 = vpop.f32.mrf.mxu0
        %v4776 = vadd.f32 0.0, %v4775
        %v4777 = vpop.f32.mrf.mxu0
        %v4778 = vadd.f32 0.0, %v4777
        %4779 = vmatmul.bf16.gmra.mxu0 %v4423
        %v4780 = vpop.f32.mrf.mxu0
        %v4781 = vadd.f32 0.0, %v4780
        %v4782 = vpop.f32.mrf.mxu0
        %v4783 = vadd.f32 0.0, %v4782
        %4784 = vmatmul.bf16.gmra.mxu0 %v4431
        %v4785 = vpop.f32.mrf.mxu0
        %v4786 = vadd.f32 0.0, %v4785
        %v4787 = vpop.f32.mrf.mxu0
        %v4788 = vadd.f32 0.0, %v4787
        %4789 = vmatmul.bf16.gmra.mxu0 %v4439
        %v4790 = vpop.f32.mrf.mxu0
        %v4791 = vadd.f32 0.0, %v4790
        %v4792 = vpop.f32.mrf.mxu0
        %v4793 = vadd.f32 0.0, %v4792
        %4794 = vmatmul.bf16.gmra.mxu0 %v4447
        %v4795 = vpop.f32.mrf.mxu0
        %v4796 = vadd.f32 0.0, %v4795
        %v4797 = vpop.f32.mrf.mxu0
        %v4798 = vadd.f32 0.0, %v4797
        %4799 = vmatmul.bf16.gmra.mxu0 %v4455
        %v4800 = vpop.f32.mrf.mxu0
        %v4801 = vadd.f32 0.0, %v4800
        %v4802 = vpop.f32.mrf.mxu0
        %v4803 = vadd.f32 0.0, %v4802
        %4804 = vmatmul.bf16.gmra.mxu0 %v4463
        %v4805 = vpop.f32.mrf.mxu0
        %v4806 = vadd.f32 0.0, %v4805
        %v4807 = vpop.f32.mrf.mxu0
        %v4808 = vadd.f32 0.0, %v4807
        %4809 = vmatmul.bf16.gmra.mxu0 %v4471
        %v4810 = vpop.f32.mrf.mxu0
        %v4811 = vadd.f32 0.0, %v4810
        %v4812 = vpop.f32.mrf.mxu0
        %v4813 = vadd.f32 0.0, %v4812
        %4814 = vmatmul.bf16.gmra.mxu0 %v4479
        %v4815 = vpop.f32.mrf.mxu0
        %v4816 = vadd.f32 0.0, %v4815
        %v4817 = vpop.f32.mrf.mxu0
        %v4818 = vadd.f32 0.0, %v4817
        %4819 = vmatmul.bf16.gmra.mxu0 %v4487
        %v4820 = vpop.f32.mrf.mxu0
        %v4821 = vadd.f32 0.0, %v4820
        %v4822 = vpop.f32.mrf.mxu0
        %v4823 = vadd.f32 0.0, %v4822
        %4824 = vmatmul.bf16.gmra.mxu0 %v4495
        %v4825 = vpop.f32.mrf.mxu0
        %v4826 = vadd.f32 0.0, %v4825
        %v4827 = vpop.f32.mrf.mxu0
        %v4828 = vadd.f32 0.0, %v4827
        %4829 = vmatmul.bf16.gmra.mxu0 %v4503
        %v4830 = vpop.f32.mrf.mxu0
        %v4831 = vadd.f32 0.0, %v4830
        %v4832 = vpop.f32.mrf.mxu0
        %v4833 = vadd.f32 0.0, %v4832
        %4834 = vmatmul.bf16.gmra.mxu0 %v4511
        %v4835 = vpop.f32.mrf.mxu0
        %v4836 = vadd.f32 0.0, %v4835
        %v4837 = vpop.f32.mrf.mxu0
        %v4838 = vadd.f32 0.0, %v4837
        %4839 = vmatmul.bf16.gmra.mxu0 %v4519
        %v4840 = vpop.f32.mrf.mxu0
        %v4841 = vadd.f32 0.0, %v4840
        %v4842 = vpop.f32.mrf.mxu0
        %v4843 = vadd.f32 0.0, %v4842
        %4844 = vmatmul.bf16.gmra.mxu0 %v4527
        %v4845 = vpop.f32.mrf.mxu0
        %v4846 = vadd.f32 0.0, %v4845
        %v4847 = vpop.f32.mrf.mxu0
        %v4848 = vadd.f32 0.0, %v4847
        %4849 = vmatmul.bf16.gmra.mxu0 %v4535
        %v4850 = vpop.f32.mrf.mxu0
        %v4851 = vadd.f32 0.0, %v4850
        %v4852 = vpop.f32.mrf.mxu0
        %v4853 = vadd.f32 0.0, %v4852
        %4854 = vmatmul.bf16.gmra.mxu0 %v4543
        %v4855 = vpop.f32.mrf.mxu0
        %v4856 = vadd.f32 0.0, %v4855
        %v4857 = vpop.f32.mrf.mxu0
        %v4858 = vadd.f32 0.0, %v4857
        %4859 = vmatmul.bf16.gmra.mxu0 %v4551
        %v4860 = vpop.f32.mrf.mxu0
        %v4861 = vadd.f32 0.0, %v4860
        %v4862 = vpop.f32.mrf.mxu0
        %v4863 = vadd.f32 0.0, %v4862
        %4864 = vmatmul.bf16.gmra.mxu0 %v4559
        %v4865 = vpop.f32.mrf.mxu0
        %v4866 = vadd.f32 0.0, %v4865
        %v4867 = vpop.f32.mrf.mxu0
        %v4868 = vadd.f32 0.0, %v4867
        %4869 = vmatmul.bf16.gmra.mxu0 %v4567
        %v4870 = vpop.f32.mrf.mxu0
        %v4871 = vadd.f32 0.0, %v4870
        %v4872 = vpop.f32.mrf.mxu0
        %v4873 = vadd.f32 0.0, %v4872
        %4874 = vmatmul.bf16.gmra.mxu0 %v4575
        %v4875 = vpop.f32.mrf.mxu0
        %v4876 = vadd.f32 0.0, %v4875
        %v4877 = vpop.f32.mrf.mxu0
        %v4878 = vadd.f32 0.0, %v4877
        %4879 = vmatmul.bf16.gmra.mxu0 %v4583
        %v4880 = vpop.f32.mrf.mxu0
        %v4881 = vadd.f32 0.0, %v4880
        %v4882 = vpop.f32.mrf.mxu0
        %v4883 = vadd.f32 0.0, %v4882
        %4884 = vmatmul.bf16.gmra.mxu0 %v4586
        %v4885 = vpop.f32.mrf.mxu0
        %v4886 = vadd.f32 0.0, %v4885
        %v4887 = vpop.f32.mrf.mxu0
        %4888 = vdwg.mxu0
        %v4889 = vadd.f32 %v3874, %v4686
        %v4890 = vadd.f32 %v3875, %v4688
        %v4891 = vadd.f32 %v3876, %v4691
        %v4892 = vadd.f32 %v3877, %v4693
        %v4893 = vadd.f32 %v3878, %v4696
        %v4894 = vadd.f32 %v3879, %v4698
        %v4895 = vadd.f32 %v3880, %v4701
        %v4896 = vadd.f32 %v3881, %v4703
        %v4897 = vadd.f32 %v3882, %v4706
        %v4898 = vadd.f32 %v3883, %v4708
        %v4899 = vadd.f32 %v3884, %v4711
        %v4900 = vadd.f32 %v3885, %v4713
        %v4901 = vadd.f32 %v3886, %v4716
        %v4902 = vadd.f32 %v3887, %v4718
        %v4903 = vadd.f32 %v3888, %v4721
        %v4904 = vadd.f32 %v3889, %v4723
        %v4905 = vadd.f32 %v3890, %v4726
        %v4906 = vadd.f32 %v3891, %v4728
        %v4907 = vadd.f32 %v3892, %v4731
        %v4908 = vadd.f32 %v3893, %v4733
        %v4909 = vadd.f32 %v3894, %v4736
        %v4910 = vadd.f32 %v3895, %v4738
        %v4911 = vadd.f32 %v3896, %v4741
        %v4912 = vadd.f32 %v3897, %v4743
        %v4913 = vadd.f32 %v3898, %v4746
        %v4914 = vadd.f32 %v3899, %v4748
        %v4915 = vadd.f32 %v3900, %v4751
        %v4916 = vadd.f32 %v3901, %v4753
        %v4917 = vadd.f32 %v3902, %v4756
        %v4918 = vadd.f32 %v3903, %v4758
        %v4919 = vadd.f32 %v3904, %v4761
        %v4920 = vadd.f32 %v3905, %v4763
        %v4921 = vadd.f32 %v3906, %v4766
        %v4922 = vadd.f32 %v3907, %v4768
        %v4923 = vadd.f32 %v3908, %v4771
        %v4924 = vadd.f32 %v3909, %v4773
        %v4925 = vadd.f32 %v3910, %v4776
        %v4926 = vadd.f32 %v3911, %v4778
        %v4927 = vadd.f32 %v3912, %v4781
        %v4928 = vadd.f32 %v3913, %v4783
        %v4929 = vadd.f32 %v3914, %v4786
        %v4930 = vadd.f32 %v3915, %v4788
        %v4931 = vadd.f32 %v3916, %v4791
        %v4932 = vadd.f32 %v3917, %v4793
        %v4933 = vadd.f32 %v3918, %v4796
        %v4934 = vadd.f32 %v3919, %v4798
        %v4935 = vadd.f32 %v3920, %v4801
        %v4936 = vadd.f32 %v3921, %v4803
        %v4937 = vadd.f32 %v3922, %v4806
        %v4938 = vadd.f32 %v3923, %v4808
        %v4939 = vadd.f32 %v3924, %v4811
        %v4940 = vadd.f32 %v3925, %v4813
        %v4941 = vadd.f32 %v3926, %v4816
        %v4942 = vadd.f32 %v3927, %v4818
        %v4943 = vadd.f32 %v3928, %v4821
        %v4944 = vadd.f32 %v3929, %v4823
        %v4945 = vadd.f32 %v3930, %v4826
        %v4946 = vadd.f32 %v3931, %v4828
        %v4947 = vadd.f32 %v3932, %v4831
        %v4948 = vadd.f32 %v3933, %v4833
        %v4949 = vadd.f32 %v3934, %v4836
        %v4950 = vadd.f32 %v3935, %v4838
        %v4951 = vadd.f32 %v3936, %v4841
        %v4952 = vadd.f32 %v3937, %v4843
        %v4953 = vadd.f32 %v3938, %v4846
        %v4954 = vadd.f32 %v3939, %v4848
        %v4955 = vadd.f32 %v3940, %v4851
        %v4956 = vadd.f32 %v3941, %v4853
        %v4957 = vadd.f32 %v3942, %v4856
        %v4958 = vadd.f32 %v3943, %v4858
        %v4959 = vadd.f32 %v3944, %v4861
        %v4960 = vadd.f32 %v3945, %v4863
        %v4961 = vadd.f32 %v3946, %v4866
        %v4962 = vadd.f32 %v3947, %v4868
        %v4963 = vadd.f32 %v3948, %v4871
        %v4964 = vadd.f32 %v3949, %v4873
        %v4965 = vadd.f32 %v3950, %v4876
        %v4966 = vadd.f32 %v3951, %v4878
        %v4967 = vadd.f32 %v3952, %v4881
        %v4968 = vadd.f32 %v3953, %v4883
        %v4969 = vadd.f32 %v3954, %v4886
        %v4970 = vld [vmem:[#allocation2 + $0x18] sm:$0xf]
        %v4971 = vld [vmem:[#allocation2 + $0x1c] sm:$0xf]
        %v4972 = vld [vmem:[#allocation2 + $0x20] sm:$0xf]
        %v4973 = vld [vmem:[#allocation2 + $0x24] sm:$0xf]
        %v4974 = vld [vmem:[#allocation2 + $0x28] sm:$0xf]
        %v4975 = vld [vmem:[#allocation2 + $0x2c] sm:$0xf]
        %v4976 = vld [vmem:[#allocation2 + $0x30] sm:$0xf]
        %v4977 = vld [vmem:[#allocation2 + $0x34] sm:$0xf]
        %v4978 = vld [vmem:[#allocation2 + $0x38] sm:$0xf]
        %v4979 = vld [vmem:[#allocation2 + $0x3c] sm:$0xf]
        %v4980 = vld [vmem:[#allocation2 + $0x40] sm:$0xf]
        %v4981 = vld [vmem:[#allocation2 + $0x44] sm:$0xf]
        %v4982 = vld [vmem:[#allocation2 + $0x48] sm:$0xf]
        %v4983 = vld [vmem:[#allocation2 + $0x4c] sm:$0xf]
        %v4984 = vld [vmem:[#allocation2 + $0x50] sm:$0xf]
        %v4985 = vld [vmem:[#allocation2 + $0x54] sm:$0xf]
        %v4986 = vld [vmem:[#allocation2 + $0x58] sm:$0xf]
        %v4987 = vld [vmem:[#allocation2 + $0x5c] sm:$0xf]
        %v4988 = vld [vmem:[#allocation2 + $0x60] sm:$0xf]
        %v4989 = vld [vmem:[#allocation2 + $0x64] sm:$0xf]
        %v4990 = vld [vmem:[#allocation2 + $0x68] sm:$0xf]
        %v4991 = vld [vmem:[#allocation2 + $0x6c] sm:$0xf]
        %v4992 = vld [vmem:[#allocation2 + $0x70] sm:$0xf]
        %v4993 = vld [vmem:[#allocation2 + $0x74] sm:$0xf]
        %v4994 = vld [vmem:[#allocation2 + $0x78] sm:$0xf]
        %v4995 = vld [vmem:[#allocation2 + $0x7c] sm:$0xf]
        %v4996 = vld [vmem:[#allocation2 + $0x80] sm:$0xf]
        %v4997 = vld [vmem:[#allocation2 + $0x84] sm:$0xf]
        %v4998 = vld [vmem:[#allocation2 + $0x88] sm:$0xf]
        %v4999 = vld [vmem:[#allocation2 + $0x8c] sm:$0xf]
        %v5000 = vld [vmem:[#allocation2 + $0x90] sm:$0xf]
        %v5001 = vld [vmem:[#allocation2 + $0x94] sm:$0xf]
        %v5002 = vld [vmem:[#allocation2 + $0x98] sm:$0xf]
        %v5003 = vld [vmem:[#allocation2 + $0x9c] sm:$0xf]
        %v5004 = vld [vmem:[#allocation2 + $0xa0] sm:$0xf]
        %v5005 = vld [vmem:[#allocation2 + $0xa4] sm:$0xf]
        %v5006 = vld [vmem:[#allocation2 + $0xa8] sm:$0xf]
        %v5007 = vld [vmem:[#allocation2 + $0xac] sm:$0xf]
        %v5008 = vld [vmem:[#allocation2 + $0xb0] sm:$0xf]
        %v5009 = vld [vmem:[#allocation2 + $0xb4] sm:$0xf]
        %v5010 = vld [vmem:[#allocation2 + $0xb8] sm:$0xf]
        %v5011 = vld [vmem:[#allocation2 + $0xbc] sm:$0xf]
        %v5012 = vld [vmem:[#allocation2 + $0xc0] sm:$0xf]
        %v5013 = vld [vmem:[#allocation2 + $0xc4] sm:$0xf]
        %v5014 = vld [vmem:[#allocation2 + $0xc8] sm:$0xf]
        %v5015 = vld [vmem:[#allocation2 + $0xcc] sm:$0xf]
        %v5016 = vld [vmem:[#allocation2 + $0xd0] sm:$0xf]
        %v5017 = vld [vmem:[#allocation2 + $0xd4] sm:$0xf]
        %v5018 = vld [vmem:[#allocation2 + $0xd8] sm:$0xf]
        %v5019 = vld [vmem:[#allocation2 + $0xdc] sm:$0xf]
        %v5020 = vld [vmem:[#allocation2 + $0xe0] sm:$0xf]
        %v5021 = vld [vmem:[#allocation2 + $0xe4] sm:$0xf]
        %v5022 = vld [vmem:[#allocation2 + $0xe8] sm:$0xf]
        %v5023 = vld [vmem:[#allocation2 + $0xec] sm:$0xf]
        %v5024 = vld [vmem:[#allocation2 + $0xf0] sm:$0xf]
        %v5025 = vld [vmem:[#allocation2 + $0xf4] sm:$0xf]
        %v5026 = vld [vmem:[#allocation2 + $0xf8] sm:$0xf]
        %v5027 = vld [vmem:[#allocation2 + $0xfc] sm:$0xf]
        %v5028 = vld [vmem:[#allocation2 + $0x100] sm:$0xf]
        %v5029 = vld [vmem:[#allocation2 + $0x104] sm:$0xf]
        %v5030 = vld [vmem:[#allocation2 + $0x108] sm:$0xf]
        %v5031 = vld [vmem:[#allocation2 + $0x10c] sm:$0xf]
        %v5032 = vld [vmem:[#allocation2 + $0x110] sm:$0xf]
        %v5033 = vld [vmem:[#allocation2 + $0x114] sm:$0xf]
        %v5034 = vld [vmem:[#allocation2 + $0x118] sm:$0xf]
        %v5035 = vld [vmem:[#allocation2 + $0x11c] sm:$0xf]
        %v5036 = vld [vmem:[#allocation2 + $0x120] sm:$0xf]
        %v5037 = vld [vmem:[#allocation2 + $0x124] sm:$0xf]
        %v5038 = vld [vmem:[#allocation2 + $0x128] sm:$0xf]
        %v5039 = vld [vmem:[#allocation2 + $0x12c] sm:$0xf]
        %v5040 = vld [vmem:[#allocation2 + $0x130] sm:$0xf]
        %v5041 = vld [vmem:[#allocation2 + $0x134] sm:$0xf]
        %v5042 = vld [vmem:[#allocation2 + $0x138] sm:$0xf]
        %v5043 = vld [vmem:[#allocation2 + $0x13c] sm:$0xf]
        %v5044 = vld [vmem:[#allocation2 + $0x140] sm:$0xf]
        %v5045 = vld [vmem:[#allocation2 + $0x144] sm:$0xf]
        %v5046 = vld [vmem:[#allocation2 + $0x148] sm:$0xf]
        %v5047 = vld [vmem:[#allocation2 + $0x14c] sm:$0xf]
        %v5048 = vld [vmem:[#allocation2 + $0x150] sm:$0xf]
        %v5049 = vld [vmem:[#allocation2 + $0x154] sm:$0xf]
        %v5050 = vld [vmem:[#allocation2 + $0x158] sm:$0xf]
        %v5051 = vld [vmem:[#allocation2 + $0x15c] sm:$0x1]
        %s5052 = scalar_lea.vmem %s2, 384
        %v5053 = vld [vmem:[%s5052] sm:$0xf]
        %v5054 = vld [vmem:[%s5052 + $0x4] sm:$0xf]
        %v5055 = vld [vmem:[%s5052 + $0x8] sm:$0xf]
        %v5056 = vld [vmem:[%s5052 + $0xc] sm:$0xf]
        %v5057 = vld [vmem:[%s5052 + $0x10] sm:$0xf]
        %v5058 = vld [vmem:[%s5052 + $0x14] sm:$0xf]
        %v5059 = vld [vmem:[%s5052 + $0x18] sm:$0xf]
        %v5060 = vld [vmem:[%s5052 + $0x1c] sm:$0xf]
        %v5061 = vld [vmem:[%s5052 + $0x20] sm:$0xf]
        %v5062 = vld [vmem:[%s5052 + $0x24] sm:$0xf]
        %v5063 = vld [vmem:[%s5052 + $0x28] sm:$0xf]
        %v5064 = vld [vmem:[%s5052 + $0x2c] sm:$0xf]
        %v5065 = vld [vmem:[%s5052 + $0x30] sm:$0xf]
        %v5066 = vld [vmem:[%s5052 + $0x34] sm:$0xf]
        %v5067 = vld [vmem:[%s5052 + $0x38] sm:$0xf]
        %v5068 = vld [vmem:[%s5052 + $0x3c] sm:$0xf]
        %v5151 = vunpack.c.l.b16 %v4970
        %v5152 = vunpack.c.l.b16 %v4971
        %v5153 = vunpack.c.l.b16 %v4972
        %v5154 = vunpack.c.l.b16 %v4973
        %v5155 = vunpack.c.l.b16 %v4974
        %v5156 = vunpack.c.l.b16 %v4975
        %v5157 = vunpack.c.l.b16 %v4976
        %v5158 = vunpack.c.l.b16 %v4977
        %v5159 = vunpack.c.l.b16 %v4978
        %v5160 = vunpack.c.l.b16 %v4979
        %v5161 = vunpack.c.l.b16 %v4980
        %v5162 = vunpack.c.l.b16 %v4981
        %v5163 = vunpack.c.l.b16 %v4982
        %v5164 = vunpack.c.l.b16 %v4983
        %v5165 = vunpack.c.l.b16 %v4984
        %v5166 = vunpack.c.l.b16 %v4985
        %v5167 = vunpack.c.l.b16 %v4986
        %v5168 = vunpack.c.l.b16 %v4987
        %v5169 = vunpack.c.l.b16 %v4988
        %v5170 = vunpack.c.l.b16 %v4989
        %v5171 = vunpack.c.l.b16 %v4990
        %v5172 = vunpack.c.l.b16 %v4991
        %v5173 = vunpack.c.l.b16 %v4992
        %v5174 = vunpack.c.l.b16 %v4993
        %v5175 = vunpack.c.l.b16 %v4994
        %v5176 = vunpack.c.l.b16 %v4995
        %v5177 = vunpack.c.l.b16 %v4996
        %v5178 = vunpack.c.l.b16 %v4997
        %v5179 = vunpack.c.l.b16 %v4998
        %v5180 = vunpack.c.l.b16 %v4999
        %v5181 = vunpack.c.l.b16 %v5000
        %v5182 = vunpack.c.l.b16 %v5001
        %v5183 = vunpack.c.l.b16 %v5002
        %v5184 = vunpack.c.l.b16 %v5003
        %v5185 = vunpack.c.l.b16 %v5004
        %v5186 = vunpack.c.l.b16 %v5005
        %v5187 = vunpack.c.l.b16 %v5006
        %v5188 = vunpack.c.l.b16 %v5007
        %v5189 = vunpack.c.l.b16 %v5008
        %v5190 = vunpack.c.l.b16 %v5009
        %v5191 = vunpack.c.l.b16 %v5010
        %v5192 = vunpack.c.l.b16 %v5011
        %v5193 = vunpack.c.l.b16 %v5012
        %v5194 = vunpack.c.l.b16 %v5013
        %v5195 = vunpack.c.l.b16 %v5014
        %v5196 = vunpack.c.l.b16 %v5015
        %v5197 = vunpack.c.l.b16 %v5016
        %v5198 = vunpack.c.l.b16 %v5017
        %v5199 = vunpack.c.l.b16 %v5018
        %v5200 = vunpack.c.l.b16 %v5019
        %v5201 = vunpack.c.l.b16 %v5020
        %v5202 = vunpack.c.l.b16 %v5021
        %v5203 = vunpack.c.l.b16 %v5022
        %v5204 = vunpack.c.l.b16 %v5023
        %v5205 = vunpack.c.l.b16 %v5024
        %v5206 = vunpack.c.l.b16 %v5025
        %v5207 = vunpack.c.l.b16 %v5026
        %v5208 = vunpack.c.l.b16 %v5027
        %v5209 = vunpack.c.l.b16 %v5028
        %v5210 = vunpack.c.l.b16 %v5029
        %v5211 = vunpack.c.l.b16 %v5030
        %v5212 = vunpack.c.l.b16 %v5031
        %v5213 = vunpack.c.l.b16 %v5032
        %v5214 = vunpack.c.l.b16 %v5033
        %v5215 = vunpack.c.l.b16 %v5034
        %v5216 = vunpack.c.l.b16 %v5035
        %v5217 = vunpack.c.l.b16 %v5036
        %v5218 = vunpack.c.l.b16 %v5037
        %v5219 = vunpack.c.l.b16 %v5038
        %v5220 = vunpack.c.l.b16 %v5039
        %v5221 = vunpack.c.l.b16 %v5040
        %v5222 = vunpack.c.l.b16 %v5041
        %v5223 = vunpack.c.l.b16 %v5042
        %v5224 = vunpack.c.l.b16 %v5043
        %v5225 = vunpack.c.l.b16 %v5044
        %v5226 = vunpack.c.l.b16 %v5045
        %v5227 = vunpack.c.l.b16 %v5046
        %v5228 = vunpack.c.l.b16 %v5047
        %v5229 = vunpack.c.l.b16 %v5048
        %v5230 = vunpack.c.l.b16 %v5049
        %v5231 = vunpack.c.l.b16 %v5050
        %v5232 = vunpack.c.l.b16 %v5051
        %v5233 = vpack.c.b16 %v5152, %v5151
        %v5234 = vpack.c.b16 %v5154, %v5153
        %v5235 = vpack.c.b16 %v5156, %v5155
        %v5236 = vpack.c.b16 %v5158, %v5157
        %v5237 = vpack.c.b16 %v5160, %v5159
        %v5238 = vpack.c.b16 %v5162, %v5161
        %v5239 = vpack.c.b16 %v5164, %v5163
        %v5240 = vpack.c.b16 %v5166, %v5165
        %v5241 = vpack.c.b16 %v5168, %v5167
        %v5242 = vpack.c.b16 %v5170, %v5169
        %v5243 = vpack.c.b16 %v5172, %v5171
        %v5244 = vpack.c.b16 %v5174, %v5173
        %v5245 = vpack.c.b16 %v5176, %v5175
        %v5246 = vpack.c.b16 %v5178, %v5177
        %v5247 = vpack.c.b16 %v5180, %v5179
        %v5248 = vpack.c.b16 %v5182, %v5181
        %v5249 = vpack.c.b16 %v5184, %v5183
        %v5250 = vpack.c.b16 %v5186, %v5185
        %v5251 = vpack.c.b16 %v5188, %v5187
        %v5252 = vpack.c.b16 %v5190, %v5189
        %v5253 = vpack.c.b16 %v5192, %v5191
        %v5254 = vpack.c.b16 %v5194, %v5193
        %v5255 = vpack.c.b16 %v5196, %v5195
        %v5256 = vpack.c.b16 %v5198, %v5197
        %v5257 = vpack.c.b16 %v5200, %v5199
        %v5258 = vpack.c.b16 %v5202, %v5201
        %v5259 = vpack.c.b16 %v5204, %v5203
        %v5260 = vpack.c.b16 %v5206, %v5205
        %v5261 = vpack.c.b16 %v5208, %v5207
        %v5262 = vpack.c.b16 %v5210, %v5209
        %v5263 = vpack.c.b16 %v5212, %v5211
        %v5264 = vpack.c.b16 %v5214, %v5213
        %v5265 = vpack.c.b16 %v5216, %v5215
        %v5266 = vpack.c.b16 %v5218, %v5217
        %v5267 = vpack.c.b16 %v5220, %v5219
        %v5268 = vpack.c.b16 %v5222, %v5221
        %v5269 = vpack.c.b16 %v5224, %v5223
        %v5270 = vpack.c.b16 %v5226, %v5225
        %v5271 = vpack.c.b16 %v5228, %v5227
        %v5272 = vpack.c.b16 %v5230, %v5229
        %v5273 = vpack.c.b16 %v5232, %v5231
        %v5275 = vshrl.u32 %v5233, 16
        %v5277 = vshll.u32 %v5233, 16
        %v5279 = vrot.slane %v5277, 1
        %v5280 = vor.u32 %v5275, %v5279
        %v5282 = vshll.u32 %v5234, 16
        %v5284 = vrot.slane %v5282, 1
        %v5285 = vsel %vm4259, %v5280, %v5284
        %v5286 = vshrl.u32 %v5234, 16
        %v5288 = vor.u32 %v5286, %v5284
        %v5290 = vshll.u32 %v5235, 16
        %v5292 = vrot.slane %v5290, 1
        %v5293 = vsel %vm4259, %v5288, %v5292
        %v5294 = vshrl.u32 %v5235, 16
        %v5296 = vor.u32 %v5294, %v5292
        %v5298 = vshll.u32 %v5236, 16
        %v5300 = vrot.slane %v5298, 1
        %v5301 = vsel %vm4259, %v5296, %v5300
        %v5302 = vshrl.u32 %v5236, 16
        %v5304 = vor.u32 %v5302, %v5300
        %v5306 = vshll.u32 %v5237, 16
        %v5308 = vrot.slane %v5306, 1
        %v5309 = vsel %vm4259, %v5304, %v5308
        %v5310 = vshrl.u32 %v5237, 16
        %v5312 = vor.u32 %v5310, %v5308
        %v5314 = vshll.u32 %v5238, 16
        %v5316 = vrot.slane %v5314, 1
        %v5317 = vsel %vm4259, %v5312, %v5316
        %v5318 = vshrl.u32 %v5238, 16
        %v5320 = vor.u32 %v5318, %v5316
        %v5322 = vshll.u32 %v5239, 16
        %v5324 = vrot.slane %v5322, 1
        %v5325 = vsel %vm4259, %v5320, %v5324
        %v5326 = vshrl.u32 %v5239, 16
        %v5328 = vor.u32 %v5326, %v5324
        %v5330 = vshll.u32 %v5240, 16
        %v5332 = vrot.slane %v5330, 1
        %v5333 = vsel %vm4259, %v5328, %v5332
        %v5334 = vshrl.u32 %v5240, 16
        %v5336 = vor.u32 %v5334, %v5332
        %v5338 = vshll.u32 %v5241, 16
        %v5340 = vrot.slane %v5338, 1
        %v5341 = vsel %vm4259, %v5336, %v5340
        %v5342 = vshrl.u32 %v5241, 16
        %v5344 = vor.u32 %v5342, %v5340
        %v5346 = vshll.u32 %v5242, 16
        %v5348 = vrot.slane %v5346, 1
        %v5349 = vsel %vm4259, %v5344, %v5348
        %v5350 = vshrl.u32 %v5242, 16
        %v5352 = vor.u32 %v5350, %v5348
        %v5354 = vshll.u32 %v5243, 16
        %v5356 = vrot.slane %v5354, 1
        %v5357 = vsel %vm4259, %v5352, %v5356
        %v5358 = vshrl.u32 %v5243, 16
        %v5360 = vor.u32 %v5358, %v5356
        %v5362 = vshll.u32 %v5244, 16
        %v5364 = vrot.slane %v5362, 1
        %v5365 = vsel %vm4259, %v5360, %v5364
        %v5366 = vshrl.u32 %v5244, 16
        %v5368 = vor.u32 %v5366, %v5364
        %v5370 = vshll.u32 %v5245, 16
        %v5372 = vrot.slane %v5370, 1
        %v5373 = vsel %vm4259, %v5368, %v5372
        %v5374 = vshrl.u32 %v5245, 16
        %v5376 = vor.u32 %v5374, %v5372
        %v5378 = vshll.u32 %v5246, 16
        %v5380 = vrot.slane %v5378, 1
        %v5381 = vsel %vm4259, %v5376, %v5380
        %v5382 = vshrl.u32 %v5246, 16
        %v5384 = vor.u32 %v5382, %v5380
        %v5386 = vshll.u32 %v5247, 16
        %v5388 = vrot.slane %v5386, 1
        %v5389 = vsel %vm4259, %v5384, %v5388
        %v5390 = vshrl.u32 %v5247, 16
        %v5392 = vor.u32 %v5390, %v5388
        %v5394 = vshll.u32 %v5248, 16
        %v5396 = vrot.slane %v5394, 1
        %v5397 = vsel %vm4259, %v5392, %v5396
        %v5398 = vshrl.u32 %v5248, 16
        %v5400 = vor.u32 %v5398, %v5396
        %v5402 = vshll.u32 %v5249, 16
        %v5404 = vrot.slane %v5402, 1
        %v5405 = vsel %vm4259, %v5400, %v5404
        %v5406 = vshrl.u32 %v5249, 16
        %v5408 = vor.u32 %v5406, %v5404
        %v5410 = vshll.u32 %v5250, 16
        %v5412 = vrot.slane %v5410, 1
        %v5413 = vsel %vm4259, %v5408, %v5412
        %v5414 = vshrl.u32 %v5250, 16
        %v5416 = vor.u32 %v5414, %v5412
        %v5418 = vshll.u32 %v5251, 16
        %v5420 = vrot.slane %v5418, 1
        %v5421 = vsel %vm4259, %v5416, %v5420
        %v5422 = vshrl.u32 %v5251, 16
        %v5424 = vor.u32 %v5422, %v5420
        %v5426 = vshll.u32 %v5252, 16
        %v5428 = vrot.slane %v5426, 1
        %v5429 = vsel %vm4259, %v5424, %v5428
        %v5430 = vshrl.u32 %v5252, 16
        %v5432 = vor.u32 %v5430, %v5428
        %v5434 = vshll.u32 %v5253, 16
        %v5436 = vrot.slane %v5434, 1
        %v5437 = vsel %vm4259, %v5432, %v5436
        %v5438 = vshrl.u32 %v5253, 16
        %v5440 = vor.u32 %v5438, %v5436
        %v5442 = vshll.u32 %v5254, 16
        %v5444 = vrot.slane %v5442, 1
        %v5445 = vsel %vm4259, %v5440, %v5444
        %v5446 = vshrl.u32 %v5254, 16
        %v5448 = vor.u32 %v5446, %v5444
        %v5450 = vshll.u32 %v5255, 16
        %v5452 = vrot.slane %v5450, 1
        %v5453 = vsel %vm4259, %v5448, %v5452
        %v5454 = vshrl.u32 %v5255, 16
        %v5456 = vor.u32 %v5454, %v5452
        %v5458 = vshll.u32 %v5256, 16
        %v5460 = vrot.slane %v5458, 1
        %v5461 = vsel %vm4259, %v5456, %v5460
        %v5462 = vshrl.u32 %v5256, 16
        %v5464 = vor.u32 %v5462, %v5460
        %v5466 = vshll.u32 %v5257, 16
        %v5468 = vrot.slane %v5466, 1
        %v5469 = vsel %vm4259, %v5464, %v5468
        %v5470 = vshrl.u32 %v5257, 16
        %v5472 = vor.u32 %v5470, %v5468
        %v5474 = vshll.u32 %v5258, 16
        %v5476 = vrot.slane %v5474, 1
        %v5477 = vsel %vm4259, %v5472, %v5476
        %v5478 = vshrl.u32 %v5258, 16
        %v5480 = vor.u32 %v5478, %v5476
        %v5482 = vshll.u32 %v5259, 16
        %v5484 = vrot.slane %v5482, 1
        %v5485 = vsel %vm4259, %v5480, %v5484
        %v5486 = vshrl.u32 %v5259, 16
        %v5488 = vor.u32 %v5486, %v5484
        %v5490 = vshll.u32 %v5260, 16
        %v5492 = vrot.slane %v5490, 1
        %v5493 = vsel %vm4259, %v5488, %v5492
        %v5494 = vshrl.u32 %v5260, 16
        %v5496 = vor.u32 %v5494, %v5492
        %v5498 = vshll.u32 %v5261, 16
        %v5500 = vrot.slane %v5498, 1
        %v5501 = vsel %vm4259, %v5496, %v5500
        %v5502 = vshrl.u32 %v5261, 16
        %v5504 = vor.u32 %v5502, %v5500
        %v5506 = vshll.u32 %v5262, 16
        %v5508 = vrot.slane %v5506, 1
        %v5509 = vsel %vm4259, %v5504, %v5508
        %v5510 = vshrl.u32 %v5262, 16
        %v5512 = vor.u32 %v5510, %v5508
        %v5514 = vshll.u32 %v5263, 16
        %v5516 = vrot.slane %v5514, 1
        %v5517 = vsel %vm4259, %v5512, %v5516
        %v5518 = vshrl.u32 %v5263, 16
        %v5520 = vor.u32 %v5518, %v5516
        %v5522 = vshll.u32 %v5264, 16
        %v5524 = vrot.slane %v5522, 1
        %v5525 = vsel %vm4259, %v5520, %v5524
        %v5526 = vshrl.u32 %v5264, 16
        %v5528 = vor.u32 %v5526, %v5524
        %v5530 = vshll.u32 %v5265, 16
        %v5532 = vrot.slane %v5530, 1
        %v5533 = vsel %vm4259, %v5528, %v5532
        %v5534 = vshrl.u32 %v5265, 16
        %v5536 = vor.u32 %v5534, %v5532
        %v5538 = vshll.u32 %v5266, 16
        %v5540 = vrot.slane %v5538, 1
        %v5541 = vsel %vm4259, %v5536, %v5540
        %v5542 = vshrl.u32 %v5266, 16
        %v5544 = vor.u32 %v5542, %v5540
        %v5546 = vshll.u32 %v5267, 16
        %v5548 = vrot.slane %v5546, 1
        %v5549 = vsel %vm4259, %v5544, %v5548
        %v5550 = vshrl.u32 %v5267, 16
        %v5552 = vor.u32 %v5550, %v5548
        %v5554 = vshll.u32 %v5268, 16
        %v5556 = vrot.slane %v5554, 1
        %v5557 = vsel %vm4259, %v5552, %v5556
        %v5558 = vshrl.u32 %v5268, 16
        %v5560 = vor.u32 %v5558, %v5556
        %v5562 = vshll.u32 %v5269, 16
        %v5564 = vrot.slane %v5562, 1
        %v5565 = vsel %vm4259, %v5560, %v5564
        %v5566 = vshrl.u32 %v5269, 16
        %v5568 = vor.u32 %v5566, %v5564
        %v5570 = vshll.u32 %v5270, 16
        %v5572 = vrot.slane %v5570, 1
        %v5573 = vsel %vm4259, %v5568, %v5572
        %v5574 = vshrl.u32 %v5270, 16
        %v5576 = vor.u32 %v5574, %v5572
        %v5578 = vshll.u32 %v5271, 16
        %v5580 = vrot.slane %v5578, 1
        %v5581 = vsel %vm4259, %v5576, %v5580
        %v5582 = vshrl.u32 %v5271, 16
        %v5584 = vor.u32 %v5582, %v5580
        %v5586 = vshll.u32 %v5272, 16
        %v5588 = vrot.slane %v5586, 1
        %v5589 = vsel %vm4259, %v5584, %v5588
        %v5590 = vshrl.u32 %v5272, 16
        %v5592 = vor.u32 %v5590, %v5588
        %v5594 = vshll.u32 %v5273, 16
        %v5596 = vrot.slane %v5594, 1
        %v5597 = vsel %vm4259, %v5592, %v5596
        %v5598 = vshrl.u32 %v5273, 16
        %v5600 = vor.u32 %v5598, %v5596
        %v5658 = vunpack.c.l.b16 %v5053
        %v5659 = vunpack.c.l.b16 %v5054
        %v5660 = vunpack.c.l.b16 %v5055
        %v5661 = vunpack.c.l.b16 %v5056
        %v5662 = vunpack.c.l.b16 %v5057
        %v5663 = vunpack.c.l.b16 %v5058
        %v5664 = vunpack.c.l.b16 %v5059
        %v5665 = vunpack.c.l.b16 %v5060
        %v5666 = vunpack.c.l.b16 %v5061
        %v5667 = vunpack.c.l.b16 %v5062
        %v5668 = vunpack.c.l.b16 %v5063
        %v5669 = vunpack.c.l.b16 %v5064
        %v5670 = vunpack.c.l.b16 %v5065
        %v5671 = vunpack.c.l.b16 %v5066
        %v5672 = vunpack.c.l.b16 %v5067
        %v5673 = vunpack.c.l.b16 %v5068
        %v5674 = vpack.c.b16 %v5659, %v5658
        %v5675 = vpack.c.b16 %v5661, %v5660
        %v5676 = vpack.c.b16 %v5663, %v5662
        %v5677 = vpack.c.b16 %v5665, %v5664
        %v5678 = vpack.c.b16 %v5667, %v5666
        %v5679 = vpack.c.b16 %v5669, %v5668
        %v5680 = vpack.c.b16 %v5671, %v5670
        %v5681 = vpack.c.b16 %v5673, %v5672
        %5690 = vmatpush.bf16.msra.mxu0 %v5681
        %5691 = vmatpush.bf16.msra.mxu0 %v5680
        %5692 = vmatpush.bf16.msra.mxu0 %v5679
        %5693 = vmatpush.bf16.msra.mxu0 %v5678
        %5694 = vmatpush.bf16.msra.mxu0 %v5677
        %5695 = vmatpush.bf16.msra.mxu0 %v5676
        %5696 = vmatpush.bf16.msra.mxu0 %v5675
        %5697 = vmatpush.bf16.msra.mxu0 %v5674
        %5698 = vmatmul.bf16.gmra.mxu0 %v5285
        %v5699 = vpop.f32.mrf.mxu0
        %v5700 = vadd.f32 0.0, %v5699
        %v5701 = vpop.f32.mrf.mxu0
        %v5702 = vadd.f32 0.0, %v5701
        %5703 = vmatmul.bf16.gmra.mxu0 %v5293
        %v5704 = vpop.f32.mrf.mxu0
        %v5705 = vadd.f32 0.0, %v5704
        %v5706 = vpop.f32.mrf.mxu0
        %v5707 = vadd.f32 0.0, %v5706
        %5708 = vmatmul.bf16.gmra.mxu0 %v5301
        %v5709 = vpop.f32.mrf.mxu0
        %v5710 = vadd.f32 0.0, %v5709
        %v5711 = vpop.f32.mrf.mxu0
        %v5712 = vadd.f32 0.0, %v5711
        %5713 = vmatmul.bf16.gmra.mxu0 %v5309
        %v5714 = vpop.f32.mrf.mxu0
        %v5715 = vadd.f32 0.0, %v5714
        %v5716 = vpop.f32.mrf.mxu0
        %v5717 = vadd.f32 0.0, %v5716
        %5718 = vmatmul.bf16.gmra.mxu0 %v5317
        %v5719 = vpop.f32.mrf.mxu0
        %v5720 = vadd.f32 0.0, %v5719
        %v5721 = vpop.f32.mrf.mxu0
        %v5722 = vadd.f32 0.0, %v5721
        %5723 = vmatmul.bf16.gmra.mxu0 %v5325
        %v5724 = vpop.f32.mrf.mxu0
        %v5725 = vadd.f32 0.0, %v5724
        %v5726 = vpop.f32.mrf.mxu0
        %v5727 = vadd.f32 0.0, %v5726
        %5728 = vmatmul.bf16.gmra.mxu0 %v5333
        %v5729 = vpop.f32.mrf.mxu0
        %v5730 = vadd.f32 0.0, %v5729
        %v5731 = vpop.f32.mrf.mxu0
        %v5732 = vadd.f32 0.0, %v5731
        %5733 = vmatmul.bf16.gmra.mxu0 %v5341
        %v5734 = vpop.f32.mrf.mxu0
        %v5735 = vadd.f32 0.0, %v5734
        %v5736 = vpop.f32.mrf.mxu0
        %v5737 = vadd.f32 0.0, %v5736
        %5738 = vmatmul.bf16.gmra.mxu0 %v5349
        %v5739 = vpop.f32.mrf.mxu0
        %v5740 = vadd.f32 0.0, %v5739
        %v5741 = vpop.f32.mrf.mxu0
        %v5742 = vadd.f32 0.0, %v5741
        %5743 = vmatmul.bf16.gmra.mxu0 %v5357
        %v5744 = vpop.f32.mrf.mxu0
        %v5745 = vadd.f32 0.0, %v5744
        %v5746 = vpop.f32.mrf.mxu0
        %v5747 = vadd.f32 0.0, %v5746
        %5748 = vmatmul.bf16.gmra.mxu0 %v5365
        %v5749 = vpop.f32.mrf.mxu0
        %v5750 = vadd.f32 0.0, %v5749
        %v5751 = vpop.f32.mrf.mxu0
        %v5752 = vadd.f32 0.0, %v5751
        %5753 = vmatmul.bf16.gmra.mxu0 %v5373
        %v5754 = vpop.f32.mrf.mxu0
        %v5755 = vadd.f32 0.0, %v5754
        %v5756 = vpop.f32.mrf.mxu0
        %v5757 = vadd.f32 0.0, %v5756
        %5758 = vmatmul.bf16.gmra.mxu0 %v5381
        %v5759 = vpop.f32.mrf.mxu0
        %v5760 = vadd.f32 0.0, %v5759
        %v5761 = vpop.f32.mrf.mxu0
        %v5762 = vadd.f32 0.0, %v5761
        %5763 = vmatmul.bf16.gmra.mxu0 %v5389
        %v5764 = vpop.f32.mrf.mxu0
        %v5765 = vadd.f32 0.0, %v5764
        %v5766 = vpop.f32.mrf.mxu0
        %v5767 = vadd.f32 0.0, %v5766
        %5768 = vmatmul.bf16.gmra.mxu0 %v5397
        %v5769 = vpop.f32.mrf.mxu0
        %v5770 = vadd.f32 0.0, %v5769
        %v5771 = vpop.f32.mrf.mxu0
        %v5772 = vadd.f32 0.0, %v5771
        %5773 = vmatmul.bf16.gmra.mxu0 %v5405
        %v5774 = vpop.f32.mrf.mxu0
        %v5775 = vadd.f32 0.0, %v5774
        %v5776 = vpop.f32.mrf.mxu0
        %v5777 = vadd.f32 0.0, %v5776
        %5778 = vmatmul.bf16.gmra.mxu0 %v5413
        %v5779 = vpop.f32.mrf.mxu0
        %v5780 = vadd.f32 0.0, %v5779
        %v5781 = vpop.f32.mrf.mxu0
        %v5782 = vadd.f32 0.0, %v5781
        %5783 = vmatmul.bf16.gmra.mxu0 %v5421
        %v5784 = vpop.f32.mrf.mxu0
        %v5785 = vadd.f32 0.0, %v5784
        %v5786 = vpop.f32.mrf.mxu0
        %v5787 = vadd.f32 0.0, %v5786
        %5788 = vmatmul.bf16.gmra.mxu0 %v5429
        %v5789 = vpop.f32.mrf.mxu0
        %v5790 = vadd.f32 0.0, %v5789
        %v5791 = vpop.f32.mrf.mxu0
        %v5792 = vadd.f32 0.0, %v5791
        %5793 = vmatmul.bf16.gmra.mxu0 %v5437
        %v5794 = vpop.f32.mrf.mxu0
        %v5795 = vadd.f32 0.0, %v5794
        %v5796 = vpop.f32.mrf.mxu0
        %v5797 = vadd.f32 0.0, %v5796
        %5798 = vmatmul.bf16.gmra.mxu0 %v5445
        %v5799 = vpop.f32.mrf.mxu0
        %v5800 = vadd.f32 0.0, %v5799
        %v5801 = vpop.f32.mrf.mxu0
        %v5802 = vadd.f32 0.0, %v5801
        %5803 = vmatmul.bf16.gmra.mxu0 %v5453
        %v5804 = vpop.f32.mrf.mxu0
        %v5805 = vadd.f32 0.0, %v5804
        %v5806 = vpop.f32.mrf.mxu0
        %v5807 = vadd.f32 0.0, %v5806
        %5808 = vmatmul.bf16.gmra.mxu0 %v5461
        %v5809 = vpop.f32.mrf.mxu0
        %v5810 = vadd.f32 0.0, %v5809
        %v5811 = vpop.f32.mrf.mxu0
        %v5812 = vadd.f32 0.0, %v5811
        %5813 = vmatmul.bf16.gmra.mxu0 %v5469
        %v5814 = vpop.f32.mrf.mxu0
        %v5815 = vadd.f32 0.0, %v5814
        %v5816 = vpop.f32.mrf.mxu0
        %v5817 = vadd.f32 0.0, %v5816
        %5818 = vmatmul.bf16.gmra.mxu0 %v5477
        %v5819 = vpop.f32.mrf.mxu0
        %v5820 = vadd.f32 0.0, %v5819
        %v5821 = vpop.f32.mrf.mxu0
        %v5822 = vadd.f32 0.0, %v5821
        %5823 = vmatmul.bf16.gmra.mxu0 %v5485
        %v5824 = vpop.f32.mrf.mxu0
        %v5825 = vadd.f32 0.0, %v5824
        %v5826 = vpop.f32.mrf.mxu0
        %v5827 = vadd.f32 0.0, %v5826
        %5828 = vmatmul.bf16.gmra.mxu0 %v5493
        %v5829 = vpop.f32.mrf.mxu0
        %v5830 = vadd.f32 0.0, %v5829
        %v5831 = vpop.f32.mrf.mxu0
        %v5832 = vadd.f32 0.0, %v5831
        %5833 = vmatmul.bf16.gmra.mxu0 %v5501
        %v5834 = vpop.f32.mrf.mxu0
        %v5835 = vadd.f32 0.0, %v5834
        %v5836 = vpop.f32.mrf.mxu0
        %v5837 = vadd.f32 0.0, %v5836
        %5838 = vmatmul.bf16.gmra.mxu0 %v5509
        %v5839 = vpop.f32.mrf.mxu0
        %v5840 = vadd.f32 0.0, %v5839
        %v5841 = vpop.f32.mrf.mxu0
        %v5842 = vadd.f32 0.0, %v5841
        %5843 = vmatmul.bf16.gmra.mxu0 %v5517
        %v5844 = vpop.f32.mrf.mxu0
        %v5845 = vadd.f32 0.0, %v5844
        %v5846 = vpop.f32.mrf.mxu0
        %v5847 = vadd.f32 0.0, %v5846
        %5848 = vmatmul.bf16.gmra.mxu0 %v5525
        %v5849 = vpop.f32.mrf.mxu0
        %v5850 = vadd.f32 0.0, %v5849
        %v5851 = vpop.f32.mrf.mxu0
        %v5852 = vadd.f32 0.0, %v5851
        %5853 = vmatmul.bf16.gmra.mxu0 %v5533
        %v5854 = vpop.f32.mrf.mxu0
        %v5855 = vadd.f32 0.0, %v5854
        %v5856 = vpop.f32.mrf.mxu0
        %v5857 = vadd.f32 0.0, %v5856
        %5858 = vmatmul.bf16.gmra.mxu0 %v5541
        %v5859 = vpop.f32.mrf.mxu0
        %v5860 = vadd.f32 0.0, %v5859
        %v5861 = vpop.f32.mrf.mxu0
        %v5862 = vadd.f32 0.0, %v5861
        %5863 = vmatmul.bf16.gmra.mxu0 %v5549
        %v5864 = vpop.f32.mrf.mxu0
        %v5865 = vadd.f32 0.0, %v5864
        %v5866 = vpop.f32.mrf.mxu0
        %v5867 = vadd.f32 0.0, %v5866
        %5868 = vmatmul.bf16.gmra.mxu0 %v5557
        %v5869 = vpop.f32.mrf.mxu0
        %v5870 = vadd.f32 0.0, %v5869
        %v5871 = vpop.f32.mrf.mxu0
        %v5872 = vadd.f32 0.0, %v5871
        %5873 = vmatmul.bf16.gmra.mxu0 %v5565
        %v5874 = vpop.f32.mrf.mxu0
        %v5875 = vadd.f32 0.0, %v5874
        %v5876 = vpop.f32.mrf.mxu0
        %v5877 = vadd.f32 0.0, %v5876
        %5878 = vmatmul.bf16.gmra.mxu0 %v5573
        %v5879 = vpop.f32.mrf.mxu0
        %v5880 = vadd.f32 0.0, %v5879
        %v5881 = vpop.f32.mrf.mxu0
        %v5882 = vadd.f32 0.0, %v5881
        %5883 = vmatmul.bf16.gmra.mxu0 %v5581
        %v5884 = vpop.f32.mrf.mxu0
        %v5885 = vadd.f32 0.0, %v5884
        %v5886 = vpop.f32.mrf.mxu0
        %v5887 = vadd.f32 0.0, %v5886
        %5888 = vmatmul.bf16.gmra.mxu0 %v5589
        %v5889 = vpop.f32.mrf.mxu0
        %v5890 = vadd.f32 0.0, %v5889
        %v5891 = vpop.f32.mrf.mxu0
        %v5892 = vadd.f32 0.0, %v5891
        %5893 = vmatmul.bf16.gmra.mxu0 %v5597
        %v5894 = vpop.f32.mrf.mxu0
        %v5895 = vadd.f32 0.0, %v5894
        %v5896 = vpop.f32.mrf.mxu0
        %v5897 = vadd.f32 0.0, %v5896
        %5898 = vmatmul.bf16.gmra.mxu0 %v5600
        %v5899 = vpop.f32.mrf.mxu0
        %v5900 = vadd.f32 0.0, %v5899
        %v5901 = vpop.f32.mrf.mxu0
        %5902 = vdwg.mxu0
        %v5903 = vadd.f32 %v4889, %v5700
        %v5904 = vadd.f32 %v4890, %v5702
        %v5905 = vadd.f32 %v4891, %v5705
        %v5906 = vadd.f32 %v4892, %v5707
        %v5907 = vadd.f32 %v4893, %v5710
        %v5908 = vadd.f32 %v4894, %v5712
        %v5909 = vadd.f32 %v4895, %v5715
        %v5910 = vadd.f32 %v4896, %v5717
        %v5911 = vadd.f32 %v4897, %v5720
        %v5912 = vadd.f32 %v4898, %v5722
        %v5913 = vadd.f32 %v4899, %v5725
        %v5914 = vadd.f32 %v4900, %v5727
        %v5915 = vadd.f32 %v4901, %v5730
        %v5916 = vadd.f32 %v4902, %v5732
        %v5917 = vadd.f32 %v4903, %v5735
        %v5918 = vadd.f32 %v4904, %v5737
        %v5919 = vadd.f32 %v4905, %v5740
        %v5920 = vadd.f32 %v4906, %v5742
        %v5921 = vadd.f32 %v4907, %v5745
        %v5922 = vadd.f32 %v4908, %v5747
        %v5923 = vadd.f32 %v4909, %v5750
        %v5924 = vadd.f32 %v4910, %v5752
        %v5925 = vadd.f32 %v4911, %v5755
        %v5926 = vadd.f32 %v4912, %v5757
        %v5927 = vadd.f32 %v4913, %v5760
        %v5928 = vadd.f32 %v4914, %v5762
        %v5929 = vadd.f32 %v4915, %v5765
        %v5930 = vadd.f32 %v4916, %v5767
        %v5931 = vadd.f32 %v4917, %v5770
        %v5932 = vadd.f32 %v4918, %v5772
        %v5933 = vadd.f32 %v4919, %v5775
        %v5934 = vadd.f32 %v4920, %v5777
        %v5935 = vadd.f32 %v4921, %v5780
        %v5936 = vadd.f32 %v4922, %v5782
        %v5937 = vadd.f32 %v4923, %v5785
        %v5938 = vadd.f32 %v4924, %v5787
        %v5939 = vadd.f32 %v4925, %v5790
        %v5940 = vadd.f32 %v4926, %v5792
        %v5941 = vadd.f32 %v4927, %v5795
        %v5942 = vadd.f32 %v4928, %v5797
        %v5943 = vadd.f32 %v4929, %v5800
        %v5944 = vadd.f32 %v4930, %v5802
        %v5945 = vadd.f32 %v4931, %v5805
        %v5946 = vadd.f32 %v4932, %v5807
        %v5947 = vadd.f32 %v4933, %v5810
        %v5948 = vadd.f32 %v4934, %v5812
        %v5949 = vadd.f32 %v4935, %v5815
        %v5950 = vadd.f32 %v4936, %v5817
        %v5951 = vadd.f32 %v4937, %v5820
        %v5952 = vadd.f32 %v4938, %v5822
        %v5953 = vadd.f32 %v4939, %v5825
        %v5954 = vadd.f32 %v4940, %v5827
        %v5955 = vadd.f32 %v4941, %v5830
        %v5956 = vadd.f32 %v4942, %v5832
        %v5957 = vadd.f32 %v4943, %v5835
        %v5958 = vadd.f32 %v4944, %v5837
        %v5959 = vadd.f32 %v4945, %v5840
        %v5960 = vadd.f32 %v4946, %v5842
        %v5961 = vadd.f32 %v4947, %v5845
        %v5962 = vadd.f32 %v4948, %v5847
        %v5963 = vadd.f32 %v4949, %v5850
        %v5964 = vadd.f32 %v4950, %v5852
        %v5965 = vadd.f32 %v4951, %v5855
        %v5966 = vadd.f32 %v4952, %v5857
        %v5967 = vadd.f32 %v4953, %v5860
        %v5968 = vadd.f32 %v4954, %v5862
        %v5969 = vadd.f32 %v4955, %v5865
        %v5970 = vadd.f32 %v4956, %v5867
        %v5971 = vadd.f32 %v4957, %v5870
        %v5972 = vadd.f32 %v4958, %v5872
        %v5973 = vadd.f32 %v4959, %v5875
        %v5974 = vadd.f32 %v4960, %v5877
        %v5975 = vadd.f32 %v4961, %v5880
        %v5976 = vadd.f32 %v4962, %v5882
        %v5977 = vadd.f32 %v4963, %v5885
        %v5978 = vadd.f32 %v4964, %v5887
        %v5979 = vadd.f32 %v4965, %v5890
        %v5980 = vadd.f32 %v4966, %v5892
        %v5981 = vadd.f32 %v4967, %v5895
        %v5982 = vadd.f32 %v4968, %v5897
        %v5983 = vadd.f32 %v4969, %v5900
        %v5984 = vld [vmem:[#allocation2 + $0x18] sm:$0xe]
        %s5985 = scalar_lea.vmem %s2, 448
        %v5986 = vld [vmem:[%s5985] sm:$0xf]
        %v5987 = vld [vmem:[%s5985 + $0x4] sm:$0xf]
        %v5988 = vld [vmem:[%s5985 + $0x8] sm:$0xf]
        %v5989 = vld [vmem:[%s5985 + $0xc] sm:$0xf]
        %v5990 = vld [vmem:[%s5985 + $0x10] sm:$0xf]
        %v5991 = vld [vmem:[%s5985 + $0x14] sm:$0xf]
        %v5992 = vld [vmem:[%s5985 + $0x18] sm:$0xf]
        %v5993 = vld [vmem:[%s5985 + $0x1c] sm:$0xf]
        %v5994 = vld [vmem:[%s5985 + $0x20] sm:$0xf]
        %v5995 = vld [vmem:[%s5985 + $0x24] sm:$0xf]
        %v5996 = vld [vmem:[%s5985 + $0x28] sm:$0xf]
        %v5997 = vld [vmem:[%s5985 + $0x2c] sm:$0xf]
        %v5998 = vld [vmem:[%s5985 + $0x30] sm:$0xf]
        %v5999 = vld [vmem:[%s5985 + $0x34] sm:$0xf]
        %v6000 = vld [vmem:[%s5985 + $0x38] sm:$0xf]
        %v6001 = vld [vmem:[%s5985 + $0x3c] sm:$0xf]
        %v6003 = vunpack.c.l.b16 %v5984
        %v6004 = vpack.c.b16 %v5152, %v6003
        %vm6005 = vcmask 1046528
        %v6006 = vrot.slane %v6004, 1
        %v6007 = vrot.slane %v5234, 1
        %v6008 = vsel %vm6005, %v6006, %v6007
        %v6009 = vrot.slane %v5235, 1
        %v6010 = vsel %vm6005, %v6007, %v6009
        %v6011 = vrot.slane %v5236, 1
        %v6012 = vsel %vm6005, %v6009, %v6011
        %v6013 = vrot.slane %v5237, 1
        %v6014 = vsel %vm6005, %v6011, %v6013
        %v6015 = vrot.slane %v5238, 1
        %v6016 = vsel %vm6005, %v6013, %v6015
        %v6017 = vrot.slane %v5239, 1
        %v6018 = vsel %vm6005, %v6015, %v6017
        %v6019 = vrot.slane %v5240, 1
        %v6020 = vsel %vm6005, %v6017, %v6019
        %v6021 = vrot.slane %v5241, 1
        %v6022 = vsel %vm6005, %v6019, %v6021
        %v6023 = vrot.slane %v5242, 1
        %v6024 = vsel %vm6005, %v6021, %v6023
        %v6025 = vrot.slane %v5243, 1
        %v6026 = vsel %vm6005, %v6023, %v6025
        %v6027 = vrot.slane %v5244, 1
        %v6028 = vsel %vm6005, %v6025, %v6027
        %v6029 = vrot.slane %v5245, 1
        %v6030 = vsel %vm6005, %v6027, %v6029
        %v6031 = vrot.slane %v5246, 1
        %v6032 = vsel %vm6005, %v6029, %v6031
        %v6033 = vrot.slane %v5247, 1
        %v6034 = vsel %vm6005, %v6031, %v6033
        %v6035 = vrot.slane %v5248, 1
        %v6036 = vsel %vm6005, %v6033, %v6035
        %v6037 = vrot.slane %v5249, 1
        %v6038 = vsel %vm6005, %v6035, %v6037
        %v6039 = vrot.slane %v5250, 1
        %v6040 = vsel %vm6005, %v6037, %v6039
        %v6041 = vrot.slane %v5251, 1
        %v6042 = vsel %vm6005, %v6039, %v6041
        %v6043 = vrot.slane %v5252, 1
        %v6044 = vsel %vm6005, %v6041, %v6043
        %v6045 = vrot.slane %v5253, 1
        %v6046 = vsel %vm6005, %v6043, %v6045
        %v6047 = vrot.slane %v5254, 1
        %v6048 = vsel %vm6005, %v6045, %v6047
        %v6049 = vrot.slane %v5255, 1
        %v6050 = vsel %vm6005, %v6047, %v6049
        %v6051 = vrot.slane %v5256, 1
        %v6052 = vsel %vm6005, %v6049, %v6051
        %v6053 = vrot.slane %v5257, 1
        %v6054 = vsel %vm6005, %v6051, %v6053
        %v6055 = vrot.slane %v5258, 1
        %v6056 = vsel %vm6005, %v6053, %v6055
        %v6057 = vrot.slane %v5259, 1
        %v6058 = vsel %vm6005, %v6055, %v6057
        %v6059 = vrot.slane %v5260, 1
        %v6060 = vsel %vm6005, %v6057, %v6059
        %v6061 = vrot.slane %v5261, 1
        %v6062 = vsel %vm6005, %v6059, %v6061
        %v6063 = vrot.slane %v5262, 1
        %v6064 = vsel %vm6005, %v6061, %v6063
        %v6065 = vrot.slane %v5263, 1
        %v6066 = vsel %vm6005, %v6063, %v6065
        %v6067 = vrot.slane %v5264, 1
        %v6068 = vsel %vm6005, %v6065, %v6067
        %v6069 = vrot.slane %v5265, 1
        %v6070 = vsel %vm6005, %v6067, %v6069
        %v6071 = vrot.slane %v5266, 1
        %v6072 = vsel %vm6005, %v6069, %v6071
        %v6073 = vrot.slane %v5267, 1
        %v6074 = vsel %vm6005, %v6071, %v6073
        %v6075 = vrot.slane %v5268, 1
        %v6076 = vsel %vm6005, %v6073, %v6075
        %v6077 = vrot.slane %v5269, 1
        %v6078 = vsel %vm6005, %v6075, %v6077
        %v6079 = vrot.slane %v5270, 1
        %v6080 = vsel %vm6005, %v6077, %v6079
        %v6081 = vrot.slane %v5271, 1
        %v6082 = vsel %vm6005, %v6079, %v6081
        %v6083 = vrot.slane %v5272, 1
        %v6084 = vsel %vm6005, %v6081, %v6083
        %v6085 = vrot.slane %v5273, 1
        %v6086 = vsel %vm6005, %v6083, %v6085
        %v6144 = vunpack.c.l.b16 %v5986
        %v6145 = vunpack.c.l.b16 %v5987
        %v6146 = vunpack.c.l.b16 %v5988
        %v6147 = vunpack.c.l.b16 %v5989
        %v6148 = vunpack.c.l.b16 %v5990
        %v6149 = vunpack.c.l.b16 %v5991
        %v6150 = vunpack.c.l.b16 %v5992
        %v6151 = vunpack.c.l.b16 %v5993
        %v6152 = vunpack.c.l.b16 %v5994
        %v6153 = vunpack.c.l.b16 %v5995
        %v6154 = vunpack.c.l.b16 %v5996
        %v6155 = vunpack.c.l.b16 %v5997
        %v6156 = vunpack.c.l.b16 %v5998
        %v6157 = vunpack.c.l.b16 %v5999
        %v6158 = vunpack.c.l.b16 %v6000
        %v6159 = vunpack.c.l.b16 %v6001
        %v6160 = vpack.c.b16 %v6145, %v6144
        %v6161 = vpack.c.b16 %v6147, %v6146
        %v6162 = vpack.c.b16 %v6149, %v6148
        %v6163 = vpack.c.b16 %v6151, %v6150
        %v6164 = vpack.c.b16 %v6153, %v6152
        %v6165 = vpack.c.b16 %v6155, %v6154
        %v6166 = vpack.c.b16 %v6157, %v6156
        %v6167 = vpack.c.b16 %v6159, %v6158
        %6176 = vmatpush.bf16.msra.mxu0 %v6167
        %6177 = vmatpush.bf16.msra.mxu0 %v6166
        %6178 = vmatpush.bf16.msra.mxu0 %v6165
        %6179 = vmatpush.bf16.msra.mxu0 %v6164
        %6180 = vmatpush.bf16.msra.mxu0 %v6163
        %6181 = vmatpush.bf16.msra.mxu0 %v6162
        %6182 = vmatpush.bf16.msra.mxu0 %v6161
        %6183 = vmatpush.bf16.msra.mxu0 %v6160
        %6184 = vmatmul.bf16.gmra.mxu0 %v6008
        %v6185 = vpop.f32.mrf.mxu0
        %v6186 = vadd.f32 0.0, %v6185
        %v6187 = vpop.f32.mrf.mxu0
        %v6188 = vadd.f32 0.0, %v6187
        %6189 = vmatmul.bf16.gmra.mxu0 %v6010
        %v6190 = vpop.f32.mrf.mxu0
        %v6191 = vadd.f32 0.0, %v6190
        %v6192 = vpop.f32.mrf.mxu0
        %v6193 = vadd.f32 0.0, %v6192
        %6194 = vmatmul.bf16.gmra.mxu0 %v6012
        %v6195 = vpop.f32.mrf.mxu0
        %v6196 = vadd.f32 0.0, %v6195
        %v6197 = vpop.f32.mrf.mxu0
        %v6198 = vadd.f32 0.0, %v6197
        %6199 = vmatmul.bf16.gmra.mxu0 %v6014
        %v6200 = vpop.f32.mrf.mxu0
        %v6201 = vadd.f32 0.0, %v6200
        %v6202 = vpop.f32.mrf.mxu0
        %v6203 = vadd.f32 0.0, %v6202
        %6204 = vmatmul.bf16.gmra.mxu0 %v6016
        %v6205 = vpop.f32.mrf.mxu0
        %v6206 = vadd.f32 0.0, %v6205
        %v6207 = vpop.f32.mrf.mxu0
        %v6208 = vadd.f32 0.0, %v6207
        %6209 = vmatmul.bf16.gmra.mxu0 %v6018
        %v6210 = vpop.f32.mrf.mxu0
        %v6211 = vadd.f32 0.0, %v6210
        %v6212 = vpop.f32.mrf.mxu0
        %v6213 = vadd.f32 0.0, %v6212
        %6214 = vmatmul.bf16.gmra.mxu0 %v6020
        %v6215 = vpop.f32.mrf.mxu0
        %v6216 = vadd.f32 0.0, %v6215
        %v6217 = vpop.f32.mrf.mxu0
        %v6218 = vadd.f32 0.0, %v6217
        %6219 = vmatmul.bf16.gmra.mxu0 %v6022
        %v6220 = vpop.f32.mrf.mxu0
        %v6221 = vadd.f32 0.0, %v6220
        %v6222 = vpop.f32.mrf.mxu0
        %v6223 = vadd.f32 0.0, %v6222
        %6224 = vmatmul.bf16.gmra.mxu0 %v6024
        %v6225 = vpop.f32.mrf.mxu0
        %v6226 = vadd.f32 0.0, %v6225
        %v6227 = vpop.f32.mrf.mxu0
        %v6228 = vadd.f32 0.0, %v6227
        %6229 = vmatmul.bf16.gmra.mxu0 %v6026
        %v6230 = vpop.f32.mrf.mxu0
        %v6231 = vadd.f32 0.0, %v6230
        %v6232 = vpop.f32.mrf.mxu0
        %v6233 = vadd.f32 0.0, %v6232
        %6234 = vmatmul.bf16.gmra.mxu0 %v6028
        %v6235 = vpop.f32.mrf.mxu0
        %v6236 = vadd.f32 0.0, %v6235
        %v6237 = vpop.f32.mrf.mxu0
        %v6238 = vadd.f32 0.0, %v6237
        %6239 = vmatmul.bf16.gmra.mxu0 %v6030
        %v6240 = vpop.f32.mrf.mxu0
        %v6241 = vadd.f32 0.0, %v6240
        %v6242 = vpop.f32.mrf.mxu0
        %v6243 = vadd.f32 0.0, %v6242
        %6244 = vmatmul.bf16.gmra.mxu0 %v6032
        %v6245 = vpop.f32.mrf.mxu0
        %v6246 = vadd.f32 0.0, %v6245
        %v6247 = vpop.f32.mrf.mxu0
        %v6248 = vadd.f32 0.0, %v6247
        %6249 = vmatmul.bf16.gmra.mxu0 %v6034
        %v6250 = vpop.f32.mrf.mxu0
        %v6251 = vadd.f32 0.0, %v6250
        %v6252 = vpop.f32.mrf.mxu0
        %v6253 = vadd.f32 0.0, %v6252
        %6254 = vmatmul.bf16.gmra.mxu0 %v6036
        %v6255 = vpop.f32.mrf.mxu0
        %v6256 = vadd.f32 0.0, %v6255
        %v6257 = vpop.f32.mrf.mxu0
        %v6258 = vadd.f32 0.0, %v6257
        %6259 = vmatmul.bf16.gmra.mxu0 %v6038
        %v6260 = vpop.f32.mrf.mxu0
        %v6261 = vadd.f32 0.0, %v6260
        %v6262 = vpop.f32.mrf.mxu0
        %v6263 = vadd.f32 0.0, %v6262
        %6264 = vmatmul.bf16.gmra.mxu0 %v6040
        %v6265 = vpop.f32.mrf.mxu0
        %v6266 = vadd.f32 0.0, %v6265
        %v6267 = vpop.f32.mrf.mxu0
        %v6268 = vadd.f32 0.0, %v6267
        %6269 = vmatmul.bf16.gmra.mxu0 %v6042
        %v6270 = vpop.f32.mrf.mxu0
        %v6271 = vadd.f32 0.0, %v6270
        %v6272 = vpop.f32.mrf.mxu0
        %v6273 = vadd.f32 0.0, %v6272
        %6274 = vmatmul.bf16.gmra.mxu0 %v6044
        %v6275 = vpop.f32.mrf.mxu0
        %v6276 = vadd.f32 0.0, %v6275
        %v6277 = vpop.f32.mrf.mxu0
        %v6278 = vadd.f32 0.0, %v6277
        %6279 = vmatmul.bf16.gmra.mxu0 %v6046
        %v6280 = vpop.f32.mrf.mxu0
        %v6281 = vadd.f32 0.0, %v6280
        %v6282 = vpop.f32.mrf.mxu0
        %v6283 = vadd.f32 0.0, %v6282
        %6284 = vmatmul.bf16.gmra.mxu0 %v6048
        %v6285 = vpop.f32.mrf.mxu0
        %v6286 = vadd.f32 0.0, %v6285
        %v6287 = vpop.f32.mrf.mxu0
        %v6288 = vadd.f32 0.0, %v6287
        %6289 = vmatmul.bf16.gmra.mxu0 %v6050
        %v6290 = vpop.f32.mrf.mxu0
        %v6291 = vadd.f32 0.0, %v6290
        %v6292 = vpop.f32.mrf.mxu0
        %v6293 = vadd.f32 0.0, %v6292
        %6294 = vmatmul.bf16.gmra.mxu0 %v6052
        %v6295 = vpop.f32.mrf.mxu0
        %v6296 = vadd.f32 0.0, %v6295
        %v6297 = vpop.f32.mrf.mxu0
        %v6298 = vadd.f32 0.0, %v6297
        %6299 = vmatmul.bf16.gmra.mxu0 %v6054
        %v6300 = vpop.f32.mrf.mxu0
        %v6301 = vadd.f32 0.0, %v6300
        %v6302 = vpop.f32.mrf.mxu0
        %v6303 = vadd.f32 0.0, %v6302
        %6304 = vmatmul.bf16.gmra.mxu0 %v6056
        %v6305 = vpop.f32.mrf.mxu0
        %v6306 = vadd.f32 0.0, %v6305
        %v6307 = vpop.f32.mrf.mxu0
        %v6308 = vadd.f32 0.0, %v6307
        %6309 = vmatmul.bf16.gmra.mxu0 %v6058
        %v6310 = vpop.f32.mrf.mxu0
        %v6311 = vadd.f32 0.0, %v6310
        %v6312 = vpop.f32.mrf.mxu0
        %v6313 = vadd.f32 0.0, %v6312
        %6314 = vmatmul.bf16.gmra.mxu0 %v6060
        %v6315 = vpop.f32.mrf.mxu0
        %v6316 = vadd.f32 0.0, %v6315
        %v6317 = vpop.f32.mrf.mxu0
        %v6318 = vadd.f32 0.0, %v6317
        %6319 = vmatmul.bf16.gmra.mxu0 %v6062
        %v6320 = vpop.f32.mrf.mxu0
        %v6321 = vadd.f32 0.0, %v6320
        %v6322 = vpop.f32.mrf.mxu0
        %v6323 = vadd.f32 0.0, %v6322
        %6324 = vmatmul.bf16.gmra.mxu0 %v6064
        %v6325 = vpop.f32.mrf.mxu0
        %v6326 = vadd.f32 0.0, %v6325
        %v6327 = vpop.f32.mrf.mxu0
        %v6328 = vadd.f32 0.0, %v6327
        %6329 = vmatmul.bf16.gmra.mxu0 %v6066
        %v6330 = vpop.f32.mrf.mxu0
        %v6331 = vadd.f32 0.0, %v6330
        %v6332 = vpop.f32.mrf.mxu0
        %v6333 = vadd.f32 0.0, %v6332
        %6334 = vmatmul.bf16.gmra.mxu0 %v6068
        %v6335 = vpop.f32.mrf.mxu0
        %v6336 = vadd.f32 0.0, %v6335
        %v6337 = vpop.f32.mrf.mxu0
        %v6338 = vadd.f32 0.0, %v6337
        %6339 = vmatmul.bf16.gmra.mxu0 %v6070
        %v6340 = vpop.f32.mrf.mxu0
        %v6341 = vadd.f32 0.0, %v6340
        %v6342 = vpop.f32.mrf.mxu0
        %v6343 = vadd.f32 0.0, %v6342
        %6344 = vmatmul.bf16.gmra.mxu0 %v6072
        %v6345 = vpop.f32.mrf.mxu0
        %v6346 = vadd.f32 0.0, %v6345
        %v6347 = vpop.f32.mrf.mxu0
        %v6348 = vadd.f32 0.0, %v6347
        %6349 = vmatmul.bf16.gmra.mxu0 %v6074
        %v6350 = vpop.f32.mrf.mxu0
        %v6351 = vadd.f32 0.0, %v6350
        %v6352 = vpop.f32.mrf.mxu0
        %v6353 = vadd.f32 0.0, %v6352
        %6354 = vmatmul.bf16.gmra.mxu0 %v6076
        %v6355 = vpop.f32.mrf.mxu0
        %v6356 = vadd.f32 0.0, %v6355
        %v6357 = vpop.f32.mrf.mxu0
        %v6358 = vadd.f32 0.0, %v6357
        %6359 = vmatmul.bf16.gmra.mxu0 %v6078
        %v6360 = vpop.f32.mrf.mxu0
        %v6361 = vadd.f32 0.0, %v6360
        %v6362 = vpop.f32.mrf.mxu0
        %v6363 = vadd.f32 0.0, %v6362
        %6364 = vmatmul.bf16.gmra.mxu0 %v6080
        %v6365 = vpop.f32.mrf.mxu0
        %v6366 = vadd.f32 0.0, %v6365
        %v6367 = vpop.f32.mrf.mxu0
        %v6368 = vadd.f32 0.0, %v6367
        %6369 = vmatmul.bf16.gmra.mxu0 %v6082
        %v6370 = vpop.f32.mrf.mxu0
        %v6371 = vadd.f32 0.0, %v6370
        %v6372 = vpop.f32.mrf.mxu0
        %v6373 = vadd.f32 0.0, %v6372
        %6374 = vmatmul.bf16.gmra.mxu0 %v6084
        %v6375 = vpop.f32.mrf.mxu0
        %v6376 = vadd.f32 0.0, %v6375
        %v6377 = vpop.f32.mrf.mxu0
        %v6378 = vadd.f32 0.0, %v6377
        %6379 = vmatmul.bf16.gmra.mxu0 %v6086
        %v6380 = vpop.f32.mrf.mxu0
        %v6381 = vadd.f32 0.0, %v6380
        %v6382 = vpop.f32.mrf.mxu0
        %v6383 = vadd.f32 0.0, %v6382
        %6384 = vmatmul.bf16.gmra.mxu0 %v6085
        %v6385 = vpop.f32.mrf.mxu0
        %v6386 = vadd.f32 0.0, %v6385
        %v6387 = vpop.f32.mrf.mxu0
        %6388 = vdwg.mxu0
        %v6389 = vadd.f32 %v5903, %v6186
        %v6390 = vadd.f32 %v5904, %v6188
        %v6391 = vadd.f32 %v5905, %v6191
        %v6392 = vadd.f32 %v5906, %v6193
        %v6393 = vadd.f32 %v5907, %v6196
        %v6394 = vadd.f32 %v5908, %v6198
        %v6395 = vadd.f32 %v5909, %v6201
        %v6396 = vadd.f32 %v5910, %v6203
        %v6397 = vadd.f32 %v5911, %v6206
        %v6398 = vadd.f32 %v5912, %v6208
        %v6399 = vadd.f32 %v5913, %v6211
        %v6400 = vadd.f32 %v5914, %v6213
        %v6401 = vadd.f32 %v5915, %v6216
        %v6402 = vadd.f32 %v5916, %v6218
        %v6403 = vadd.f32 %v5917, %v6221
        %v6404 = vadd.f32 %v5918, %v6223
        %v6405 = vadd.f32 %v5919, %v6226
        %v6406 = vadd.f32 %v5920, %v6228
        %v6407 = vadd.f32 %v5921, %v6231
        %v6408 = vadd.f32 %v5922, %v6233
        %v6409 = vadd.f32 %v5923, %v6236
        %v6410 = vadd.f32 %v5924, %v6238
        %v6411 = vadd.f32 %v5925, %v6241
        %v6412 = vadd.f32 %v5926, %v6243
        %v6413 = vadd.f32 %v5927, %v6246
        %v6414 = vadd.f32 %v5928, %v6248
        %v6415 = vadd.f32 %v5929, %v6251
        %v6416 = vadd.f32 %v5930, %v6253
        %v6417 = vadd.f32 %v5931, %v6256
        %v6418 = vadd.f32 %v5932, %v6258
        %v6419 = vadd.f32 %v5933, %v6261
        %v6420 = vadd.f32 %v5934, %v6263
        %v6421 = vadd.f32 %v5935, %v6266
        %v6422 = vadd.f32 %v5936, %v6268
        %v6423 = vadd.f32 %v5937, %v6271
        %v6424 = vadd.f32 %v5938, %v6273
        %v6425 = vadd.f32 %v5939, %v6276
        %v6426 = vadd.f32 %v5940, %v6278
        %v6427 = vadd.f32 %v5941, %v6281
        %v6428 = vadd.f32 %v5942, %v6283
        %v6429 = vadd.f32 %v5943, %v6286
        %v6430 = vadd.f32 %v5944, %v6288
        %v6431 = vadd.f32 %v5945, %v6291
        %v6432 = vadd.f32 %v5946, %v6293
        %v6433 = vadd.f32 %v5947, %v6296
        %v6434 = vadd.f32 %v5948, %v6298
        %v6435 = vadd.f32 %v5949, %v6301
        %v6436 = vadd.f32 %v5950, %v6303
        %v6437 = vadd.f32 %v5951, %v6306
        %v6438 = vadd.f32 %v5952, %v6308
        %v6439 = vadd.f32 %v5953, %v6311
        %v6440 = vadd.f32 %v5954, %v6313
        %v6441 = vadd.f32 %v5955, %v6316
        %v6442 = vadd.f32 %v5956, %v6318
        %v6443 = vadd.f32 %v5957, %v6321
        %v6444 = vadd.f32 %v5958, %v6323
        %v6445 = vadd.f32 %v5959, %v6326
        %v6446 = vadd.f32 %v5960, %v6328
        %v6447 = vadd.f32 %v5961, %v6331
        %v6448 = vadd.f32 %v5962, %v6333
        %v6449 = vadd.f32 %v5963, %v6336
        %v6450 = vadd.f32 %v5964, %v6338
        %v6451 = vadd.f32 %v5965, %v6341
        %v6452 = vadd.f32 %v5966, %v6343
        %v6453 = vadd.f32 %v5967, %v6346
        %v6454 = vadd.f32 %v5968, %v6348
        %v6455 = vadd.f32 %v5969, %v6351
        %v6456 = vadd.f32 %v5970, %v6353
        %v6457 = vadd.f32 %v5971, %v6356
        %v6458 = vadd.f32 %v5972, %v6358
        %v6459 = vadd.f32 %v5973, %v6361
        %v6460 = vadd.f32 %v5974, %v6363
        %v6461 = vadd.f32 %v5975, %v6366
        %v6462 = vadd.f32 %v5976, %v6368
        %v6463 = vadd.f32 %v5977, %v6371
        %v6464 = vadd.f32 %v5978, %v6373
        %v6465 = vadd.f32 %v5979, %v6376
        %v6466 = vadd.f32 %v5980, %v6378
        %v6467 = vadd.f32 %v5981, %v6381
        %v6468 = vadd.f32 %v5982, %v6383
        %v6469 = vadd.f32 %v5983, %v6386
        %v6470 = vld [vmem:[#allocation2 + $0x15c] sm:$0x3]
        %s6471 = scalar_lea.vmem %s2, 512
        %v6472 = vld [vmem:[%s6471] sm:$0xf]
        %v6473 = vld [vmem:[%s6471 + $0x4] sm:$0xf]
        %v6474 = vld [vmem:[%s6471 + $0x8] sm:$0xf]
        %v6475 = vld [vmem:[%s6471 + $0xc] sm:$0xf]
        %v6476 = vld [vmem:[%s6471 + $0x10] sm:$0xf]
        %v6477 = vld [vmem:[%s6471 + $0x14] sm:$0xf]
        %v6478 = vld [vmem:[%s6471 + $0x18] sm:$0xf]
        %v6479 = vld [vmem:[%s6471 + $0x1c] sm:$0xf]
        %v6480 = vld [vmem:[%s6471 + $0x20] sm:$0xf]
        %v6481 = vld [vmem:[%s6471 + $0x24] sm:$0xf]
        %v6482 = vld [vmem:[%s6471 + $0x28] sm:$0xf]
        %v6483 = vld [vmem:[%s6471 + $0x2c] sm:$0xf]
        %v6484 = vld [vmem:[%s6471 + $0x30] sm:$0xf]
        %v6485 = vld [vmem:[%s6471 + $0x34] sm:$0xf]
        %v6486 = vld [vmem:[%s6471 + $0x38] sm:$0xf]
        %v6487 = vld [vmem:[%s6471 + $0x3c] sm:$0xf]
        %v6489 = vunpack.c.l.b16 %v6470
        %v6490 = vpack.c.b16 %v6489, %v5231
        %vm6491 = vsmask.f32 6400
        %v6493 = vshrl.u32 %v6004, 16
        %v6495 = vrot.slane %v6493, 1
        %v6496 = vshll.u32 %v6004, 16
        %v6498 = vrot.slane %v6496, 2
        %v6499 = vor.u32 %v6495, %v6498
        %v6500 = vrot.slane %v5286, 1
        %v6501 = vrot.slane %v5282, 2
        %v6502 = vor.u32 %v6500, %v6501
        %v6503 = vsel %vm6491, %v6499, %v6502
        %v6504 = vrot.slane %v5294, 1
        %v6505 = vrot.slane %v5290, 2
        %v6506 = vor.u32 %v6504, %v6505
        %v6507 = vsel %vm6491, %v6502, %v6506
        %v6508 = vrot.slane %v5302, 1
        %v6509 = vrot.slane %v5298, 2
        %v6510 = vor.u32 %v6508, %v6509
        %v6511 = vsel %vm6491, %v6506, %v6510
        %v6512 = vrot.slane %v5310, 1
        %v6513 = vrot.slane %v5306, 2
        %v6514 = vor.u32 %v6512, %v6513
        %v6515 = vsel %vm6491, %v6510, %v6514
        %v6516 = vrot.slane %v5318, 1
        %v6517 = vrot.slane %v5314, 2
        %v6518 = vor.u32 %v6516, %v6517
        %v6519 = vsel %vm6491, %v6514, %v6518
        %v6520 = vrot.slane %v5326, 1
        %v6521 = vrot.slane %v5322, 2
        %v6522 = vor.u32 %v6520, %v6521
        %v6523 = vsel %vm6491, %v6518, %v6522
        %v6524 = vrot.slane %v5334, 1
        %v6525 = vrot.slane %v5330, 2
        %v6526 = vor.u32 %v6524, %v6525
        %v6527 = vsel %vm6491, %v6522, %v6526
        %v6528 = vrot.slane %v5342, 1
        %v6529 = vrot.slane %v5338, 2
        %v6530 = vor.u32 %v6528, %v6529
        %v6531 = vsel %vm6491, %v6526, %v6530
        %v6532 = vrot.slane %v5350, 1
        %v6533 = vrot.slane %v5346, 2
        %v6534 = vor.u32 %v6532, %v6533
        %v6535 = vsel %vm6491, %v6530, %v6534
        %v6536 = vrot.slane %v5358, 1
        %v6537 = vrot.slane %v5354, 2
        %v6538 = vor.u32 %v6536, %v6537
        %v6539 = vsel %vm6491, %v6534, %v6538
        %v6540 = vrot.slane %v5366, 1
        %v6541 = vrot.slane %v5362, 2
        %v6542 = vor.u32 %v6540, %v6541
        %v6543 = vsel %vm6491, %v6538, %v6542
        %v6544 = vrot.slane %v5374, 1
        %v6545 = vrot.slane %v5370, 2
        %v6546 = vor.u32 %v6544, %v6545
        %v6547 = vsel %vm6491, %v6542, %v6546
        %v6548 = vrot.slane %v5382, 1
        %v6549 = vrot.slane %v5378, 2
        %v6550 = vor.u32 %v6548, %v6549
        %v6551 = vsel %vm6491, %v6546, %v6550
        %v6552 = vrot.slane %v5390, 1
        %v6553 = vrot.slane %v5386, 2
        %v6554 = vor.u32 %v6552, %v6553
        %v6555 = vsel %vm6491, %v6550, %v6554
        %v6556 = vrot.slane %v5398, 1
        %v6557 = vrot.slane %v5394, 2
        %v6558 = vor.u32 %v6556, %v6557
        %v6559 = vsel %vm6491, %v6554, %v6558
        %v6560 = vrot.slane %v5406, 1
        %v6561 = vrot.slane %v5402, 2
        %v6562 = vor.u32 %v6560, %v6561
        %v6563 = vsel %vm6491, %v6558, %v6562
        %v6564 = vrot.slane %v5414, 1
        %v6565 = vrot.slane %v5410, 2
        %v6566 = vor.u32 %v6564, %v6565
        %v6567 = vsel %vm6491, %v6562, %v6566
        %v6568 = vrot.slane %v5422, 1
        %v6569 = vrot.slane %v5418, 2
        %v6570 = vor.u32 %v6568, %v6569
        %v6571 = vsel %vm6491, %v6566, %v6570
        %v6572 = vrot.slane %v5430, 1
        %v6573 = vrot.slane %v5426, 2
        %v6574 = vor.u32 %v6572, %v6573
        %v6575 = vsel %vm6491, %v6570, %v6574
        %v6576 = vrot.slane %v5438, 1
        %v6577 = vrot.slane %v5434, 2
        %v6578 = vor.u32 %v6576, %v6577
        %v6579 = vsel %vm6491, %v6574, %v6578
        %v6580 = vrot.slane %v5446, 1
        %v6581 = vrot.slane %v5442, 2
        %v6582 = vor.u32 %v6580, %v6581
        %v6583 = vsel %vm6491, %v6578, %v6582
        %v6584 = vrot.slane %v5454, 1
        %v6585 = vrot.slane %v5450, 2
        %v6586 = vor.u32 %v6584, %v6585
        %v6587 = vsel %vm6491, %v6582, %v6586
        %v6588 = vrot.slane %v5462, 1
        %v6589 = vrot.slane %v5458, 2
        %v6590 = vor.u32 %v6588, %v6589
        %v6591 = vsel %vm6491, %v6586, %v6590
        %v6592 = vrot.slane %v5470, 1
        %v6593 = vrot.slane %v5466, 2
        %v6594 = vor.u32 %v6592, %v6593
        %v6595 = vsel %vm6491, %v6590, %v6594
        %v6596 = vrot.slane %v5478, 1
        %v6597 = vrot.slane %v5474, 2
        %v6598 = vor.u32 %v6596, %v6597
        %v6599 = vsel %vm6491, %v6594, %v6598
        %v6600 = vrot.slane %v5486, 1
        %v6601 = vrot.slane %v5482, 2
        %v6602 = vor.u32 %v6600, %v6601
        %v6603 = vsel %vm6491, %v6598, %v6602
        %v6604 = vrot.slane %v5494, 1
        %v6605 = vrot.slane %v5490, 2
        %v6606 = vor.u32 %v6604, %v6605
        %v6607 = vsel %vm6491, %v6602, %v6606
        %v6608 = vrot.slane %v5502, 1
        %v6609 = vrot.slane %v5498, 2
        %v6610 = vor.u32 %v6608, %v6609
        %v6611 = vsel %vm6491, %v6606, %v6610
        %v6612 = vrot.slane %v5510, 1
        %v6613 = vrot.slane %v5506, 2
        %v6614 = vor.u32 %v6612, %v6613
        %v6615 = vsel %vm6491, %v6610, %v6614
        %v6616 = vrot.slane %v5518, 1
        %v6617 = vrot.slane %v5514, 2
        %v6618 = vor.u32 %v6616, %v6617
        %v6619 = vsel %vm6491, %v6614, %v6618
        %v6620 = vrot.slane %v5526, 1
        %v6621 = vrot.slane %v5522, 2
        %v6622 = vor.u32 %v6620, %v6621
        %v6623 = vsel %vm6491, %v6618, %v6622
        %v6624 = vrot.slane %v5534, 1
        %v6625 = vrot.slane %v5530, 2
        %v6626 = vor.u32 %v6624, %v6625
        %v6627 = vsel %vm6491, %v6622, %v6626
        %v6628 = vrot.slane %v5542, 1
        %v6629 = vrot.slane %v5538, 2
        %v6630 = vor.u32 %v6628, %v6629
        %v6631 = vsel %vm6491, %v6626, %v6630
        %v6632 = vrot.slane %v5550, 1
        %v6633 = vrot.slane %v5546, 2
        %v6634 = vor.u32 %v6632, %v6633
        %v6635 = vsel %vm6491, %v6630, %v6634
        %v6636 = vrot.slane %v5558, 1
        %v6637 = vrot.slane %v5554, 2
        %v6638 = vor.u32 %v6636, %v6637
        %v6639 = vsel %vm6491, %v6634, %v6638
        %v6640 = vrot.slane %v5566, 1
        %v6641 = vrot.slane %v5562, 2
        %v6642 = vor.u32 %v6640, %v6641
        %v6643 = vsel %vm6491, %v6638, %v6642
        %v6644 = vrot.slane %v5574, 1
        %v6645 = vrot.slane %v5570, 2
        %v6646 = vor.u32 %v6644, %v6645
        %v6647 = vsel %vm6491, %v6642, %v6646
        %v6648 = vrot.slane %v5582, 1
        %v6649 = vrot.slane %v5578, 2
        %v6650 = vor.u32 %v6648, %v6649
        %v6651 = vsel %vm6491, %v6646, %v6650
        %v6652 = vrot.slane %v5590, 1
        %v6653 = vrot.slane %v5586, 2
        %v6654 = vor.u32 %v6652, %v6653
        %v6655 = vsel %vm6491, %v6650, %v6654
        %v6657 = vshrl.u32 %v6490, 16
        %v6659 = vrot.slane %v6657, 1
        %v6660 = vshll.u32 %v6490, 16
        %v6662 = vrot.slane %v6660, 2
        %v6663 = vor.u32 %v6659, %v6662
        %v6664 = vsel %vm6491, %v6654, %v6663
        %v6722 = vunpack.c.l.b16 %v6472
        %v6723 = vunpack.c.l.b16 %v6473
        %v6724 = vunpack.c.l.b16 %v6474
        %v6725 = vunpack.c.l.b16 %v6475
        %v6726 = vunpack.c.l.b16 %v6476
        %v6727 = vunpack.c.l.b16 %v6477
        %v6728 = vunpack.c.l.b16 %v6478
        %v6729 = vunpack.c.l.b16 %v6479
        %v6730 = vunpack.c.l.b16 %v6480
        %v6731 = vunpack.c.l.b16 %v6481
        %v6732 = vunpack.c.l.b16 %v6482
        %v6733 = vunpack.c.l.b16 %v6483
        %v6734 = vunpack.c.l.b16 %v6484
        %v6735 = vunpack.c.l.b16 %v6485
        %v6736 = vunpack.c.l.b16 %v6486
        %v6737 = vunpack.c.l.b16 %v6487
        %v6738 = vpack.c.b16 %v6723, %v6722
        %v6739 = vpack.c.b16 %v6725, %v6724
        %v6740 = vpack.c.b16 %v6727, %v6726
        %v6741 = vpack.c.b16 %v6729, %v6728
        %v6742 = vpack.c.b16 %v6731, %v6730
        %v6743 = vpack.c.b16 %v6733, %v6732
        %v6744 = vpack.c.b16 %v6735, %v6734
        %v6745 = vpack.c.b16 %v6737, %v6736
        %6754 = vmatpush.bf16.msra.mxu0 %v6745
        %6755 = vmatpush.bf16.msra.mxu0 %v6744
        %6756 = vmatpush.bf16.msra.mxu0 %v6743
        %6757 = vmatpush.bf16.msra.mxu0 %v6742
        %6758 = vmatpush.bf16.msra.mxu0 %v6741
        %6759 = vmatpush.bf16.msra.mxu0 %v6740
        %6760 = vmatpush.bf16.msra.mxu0 %v6739
        %6761 = vmatpush.bf16.msra.mxu0 %v6738
        %6762 = vmatmul.bf16.gmra.mxu0 %v6503
        %v6763 = vpop.f32.mrf.mxu0
        %v6764 = vadd.f32 0.0, %v6763
        %v6765 = vpop.f32.mrf.mxu0
        %v6766 = vadd.f32 0.0, %v6765
        %6767 = vmatmul.bf16.gmra.mxu0 %v6507
        %v6768 = vpop.f32.mrf.mxu0
        %v6769 = vadd.f32 0.0, %v6768
        %v6770 = vpop.f32.mrf.mxu0
        %v6771 = vadd.f32 0.0, %v6770
        %6772 = vmatmul.bf16.gmra.mxu0 %v6511
        %v6773 = vpop.f32.mrf.mxu0
        %v6774 = vadd.f32 0.0, %v6773
        %v6775 = vpop.f32.mrf.mxu0
        %v6776 = vadd.f32 0.0, %v6775
        %6777 = vmatmul.bf16.gmra.mxu0 %v6515
        %v6778 = vpop.f32.mrf.mxu0
        %v6779 = vadd.f32 0.0, %v6778
        %v6780 = vpop.f32.mrf.mxu0
        %v6781 = vadd.f32 0.0, %v6780
        %6782 = vmatmul.bf16.gmra.mxu0 %v6519
        %v6783 = vpop.f32.mrf.mxu0
        %v6784 = vadd.f32 0.0, %v6783
        %v6785 = vpop.f32.mrf.mxu0
        %v6786 = vadd.f32 0.0, %v6785
        %6787 = vmatmul.bf16.gmra.mxu0 %v6523
        %v6788 = vpop.f32.mrf.mxu0
        %v6789 = vadd.f32 0.0, %v6788
        %v6790 = vpop.f32.mrf.mxu0
        %v6791 = vadd.f32 0.0, %v6790
        %6792 = vmatmul.bf16.gmra.mxu0 %v6527
        %v6793 = vpop.f32.mrf.mxu0
        %v6794 = vadd.f32 0.0, %v6793
        %v6795 = vpop.f32.mrf.mxu0
        %v6796 = vadd.f32 0.0, %v6795
        %6797 = vmatmul.bf16.gmra.mxu0 %v6531
        %v6798 = vpop.f32.mrf.mxu0
        %v6799 = vadd.f32 0.0, %v6798
        %v6800 = vpop.f32.mrf.mxu0
        %v6801 = vadd.f32 0.0, %v6800
        %6802 = vmatmul.bf16.gmra.mxu0 %v6535
        %v6803 = vpop.f32.mrf.mxu0
        %v6804 = vadd.f32 0.0, %v6803
        %v6805 = vpop.f32.mrf.mxu0
        %v6806 = vadd.f32 0.0, %v6805
        %6807 = vmatmul.bf16.gmra.mxu0 %v6539
        %v6808 = vpop.f32.mrf.mxu0
        %v6809 = vadd.f32 0.0, %v6808
        %v6810 = vpop.f32.mrf.mxu0
        %v6811 = vadd.f32 0.0, %v6810
        %6812 = vmatmul.bf16.gmra.mxu0 %v6543
        %v6813 = vpop.f32.mrf.mxu0
        %v6814 = vadd.f32 0.0, %v6813
        %v6815 = vpop.f32.mrf.mxu0
        %v6816 = vadd.f32 0.0, %v6815
        %6817 = vmatmul.bf16.gmra.mxu0 %v6547
        %v6818 = vpop.f32.mrf.mxu0
        %v6819 = vadd.f32 0.0, %v6818
        %v6820 = vpop.f32.mrf.mxu0
        %v6821 = vadd.f32 0.0, %v6820
        %6822 = vmatmul.bf16.gmra.mxu0 %v6551
        %v6823 = vpop.f32.mrf.mxu0
        %v6824 = vadd.f32 0.0, %v6823
        %v6825 = vpop.f32.mrf.mxu0
        %v6826 = vadd.f32 0.0, %v6825
        %6827 = vmatmul.bf16.gmra.mxu0 %v6555
        %v6828 = vpop.f32.mrf.mxu0
        %v6829 = vadd.f32 0.0, %v6828
        %v6830 = vpop.f32.mrf.mxu0
        %v6831 = vadd.f32 0.0, %v6830
        %6832 = vmatmul.bf16.gmra.mxu0 %v6559
        %v6833 = vpop.f32.mrf.mxu0
        %v6834 = vadd.f32 0.0, %v6833
        %v6835 = vpop.f32.mrf.mxu0
        %v6836 = vadd.f32 0.0, %v6835
        %6837 = vmatmul.bf16.gmra.mxu0 %v6563
        %v6838 = vpop.f32.mrf.mxu0
        %v6839 = vadd.f32 0.0, %v6838
        %v6840 = vpop.f32.mrf.mxu0
        %v6841 = vadd.f32 0.0, %v6840
        %6842 = vmatmul.bf16.gmra.mxu0 %v6567
        %v6843 = vpop.f32.mrf.mxu0
        %v6844 = vadd.f32 0.0, %v6843
        %v6845 = vpop.f32.mrf.mxu0
        %v6846 = vadd.f32 0.0, %v6845
        %6847 = vmatmul.bf16.gmra.mxu0 %v6571
        %v6848 = vpop.f32.mrf.mxu0
        %v6849 = vadd.f32 0.0, %v6848
        %v6850 = vpop.f32.mrf.mxu0
        %v6851 = vadd.f32 0.0, %v6850
        %6852 = vmatmul.bf16.gmra.mxu0 %v6575
        %v6853 = vpop.f32.mrf.mxu0
        %v6854 = vadd.f32 0.0, %v6853
        %v6855 = vpop.f32.mrf.mxu0
        %v6856 = vadd.f32 0.0, %v6855
        %6857 = vmatmul.bf16.gmra.mxu0 %v6579
        %v6858 = vpop.f32.mrf.mxu0
        %v6859 = vadd.f32 0.0, %v6858
        %v6860 = vpop.f32.mrf.mxu0
        %v6861 = vadd.f32 0.0, %v6860
        %6862 = vmatmul.bf16.gmra.mxu0 %v6583
        %v6863 = vpop.f32.mrf.mxu0
        %v6864 = vadd.f32 0.0, %v6863
        %v6865 = vpop.f32.mrf.mxu0
        %v6866 = vadd.f32 0.0, %v6865
        %6867 = vmatmul.bf16.gmra.mxu0 %v6587
        %v6868 = vpop.f32.mrf.mxu0
        %v6869 = vadd.f32 0.0, %v6868
        %v6870 = vpop.f32.mrf.mxu0
        %v6871 = vadd.f32 0.0, %v6870
        %6872 = vmatmul.bf16.gmra.mxu0 %v6591
        %v6873 = vpop.f32.mrf.mxu0
        %v6874 = vadd.f32 0.0, %v6873
        %v6875 = vpop.f32.mrf.mxu0
        %v6876 = vadd.f32 0.0, %v6875
        %6877 = vmatmul.bf16.gmra.mxu0 %v6595
        %v6878 = vpop.f32.mrf.mxu0
        %v6879 = vadd.f32 0.0, %v6878
        %v6880 = vpop.f32.mrf.mxu0
        %v6881 = vadd.f32 0.0, %v6880
        %6882 = vmatmul.bf16.gmra.mxu0 %v6599
        %v6883 = vpop.f32.mrf.mxu0
        %v6884 = vadd.f32 0.0, %v6883
        %v6885 = vpop.f32.mrf.mxu0
        %v6886 = vadd.f32 0.0, %v6885
        %6887 = vmatmul.bf16.gmra.mxu0 %v6603
        %v6888 = vpop.f32.mrf.mxu0
        %v6889 = vadd.f32 0.0, %v6888
        %v6890 = vpop.f32.mrf.mxu0
        %v6891 = vadd.f32 0.0, %v6890
        %6892 = vmatmul.bf16.gmra.mxu0 %v6607
        %v6893 = vpop.f32.mrf.mxu0
        %v6894 = vadd.f32 0.0, %v6893
        %v6895 = vpop.f32.mrf.mxu0
        %v6896 = vadd.f32 0.0, %v6895
        %6897 = vmatmul.bf16.gmra.mxu0 %v6611
        %v6898 = vpop.f32.mrf.mxu0
        %v6899 = vadd.f32 0.0, %v6898
        %v6900 = vpop.f32.mrf.mxu0
        %v6901 = vadd.f32 0.0, %v6900
        %6902 = vmatmul.bf16.gmra.mxu0 %v6615
        %v6903 = vpop.f32.mrf.mxu0
        %v6904 = vadd.f32 0.0, %v6903
        %v6905 = vpop.f32.mrf.mxu0
        %v6906 = vadd.f32 0.0, %v6905
        %6907 = vmatmul.bf16.gmra.mxu0 %v6619
        %v6908 = vpop.f32.mrf.mxu0
        %v6909 = vadd.f32 0.0, %v6908
        %v6910 = vpop.f32.mrf.mxu0
        %v6911 = vadd.f32 0.0, %v6910
        %6912 = vmatmul.bf16.gmra.mxu0 %v6623
        %v6913 = vpop.f32.mrf.mxu0
        %v6914 = vadd.f32 0.0, %v6913
        %v6915 = vpop.f32.mrf.mxu0
        %v6916 = vadd.f32 0.0, %v6915
        %6917 = vmatmul.bf16.gmra.mxu0 %v6627
        %v6918 = vpop.f32.mrf.mxu0
        %v6919 = vadd.f32 0.0, %v6918
        %v6920 = vpop.f32.mrf.mxu0
        %v6921 = vadd.f32 0.0, %v6920
        %6922 = vmatmul.bf16.gmra.mxu0 %v6631
        %v6923 = vpop.f32.mrf.mxu0
        %v6924 = vadd.f32 0.0, %v6923
        %v6925 = vpop.f32.mrf.mxu0
        %v6926 = vadd.f32 0.0, %v6925
        %6927 = vmatmul.bf16.gmra.mxu0 %v6635
        %v6928 = vpop.f32.mrf.mxu0
        %v6929 = vadd.f32 0.0, %v6928
        %v6930 = vpop.f32.mrf.mxu0
        %v6931 = vadd.f32 0.0, %v6930
        %6932 = vmatmul.bf16.gmra.mxu0 %v6639
        %v6933 = vpop.f32.mrf.mxu0
        %v6934 = vadd.f32 0.0, %v6933
        %v6935 = vpop.f32.mrf.mxu0
        %v6936 = vadd.f32 0.0, %v6935
        %6937 = vmatmul.bf16.gmra.mxu0 %v6643
        %v6938 = vpop.f32.mrf.mxu0
        %v6939 = vadd.f32 0.0, %v6938
        %v6940 = vpop.f32.mrf.mxu0
        %v6941 = vadd.f32 0.0, %v6940
        %6942 = vmatmul.bf16.gmra.mxu0 %v6647
        %v6943 = vpop.f32.mrf.mxu0
        %v6944 = vadd.f32 0.0, %v6943
        %v6945 = vpop.f32.mrf.mxu0
        %v6946 = vadd.f32 0.0, %v6945
        %6947 = vmatmul.bf16.gmra.mxu0 %v6651
        %v6948 = vpop.f32.mrf.mxu0
        %v6949 = vadd.f32 0.0, %v6948
        %v6950 = vpop.f32.mrf.mxu0
        %v6951 = vadd.f32 0.0, %v6950
        %6952 = vmatmul.bf16.gmra.mxu0 %v6655
        %v6953 = vpop.f32.mrf.mxu0
        %v6954 = vadd.f32 0.0, %v6953
        %v6955 = vpop.f32.mrf.mxu0
        %v6956 = vadd.f32 0.0, %v6955
        %6957 = vmatmul.bf16.gmra.mxu0 %v6664
        %v6958 = vpop.f32.mrf.mxu0
        %v6959 = vadd.f32 0.0, %v6958
        %v6960 = vpop.f32.mrf.mxu0
        %v6961 = vadd.f32 0.0, %v6960
        %6962 = vmatmul.bf16.gmra.mxu0 %v6663
        %v6963 = vpop.f32.mrf.mxu0
        %v6964 = vadd.f32 0.0, %v6963
        %v6965 = vpop.f32.mrf.mxu0
        %6966 = vdwg.mxu0
        %v6967 = vadd.f32 %v6389, %v6764
        %v6968 = vadd.f32 %v6390, %v6766
        %v6969 = vadd.f32 %v6391, %v6769
        %v6970 = vadd.f32 %v6392, %v6771
        %v6971 = vadd.f32 %v6393, %v6774
        %v6972 = vadd.f32 %v6394, %v6776
        %v6973 = vadd.f32 %v6395, %v6779
        %v6974 = vadd.f32 %v6396, %v6781
        %v6975 = vadd.f32 %v6397, %v6784
        %v6976 = vadd.f32 %v6398, %v6786
        %v6977 = vadd.f32 %v6399, %v6789
        %v6978 = vadd.f32 %v6400, %v6791
        %v6979 = vadd.f32 %v6401, %v6794
        %v6980 = vadd.f32 %v6402, %v6796
        %v6981 = vadd.f32 %v6403, %v6799
        %v6982 = vadd.f32 %v6404, %v6801
        %v6983 = vadd.f32 %v6405, %v6804
        %v6984 = vadd.f32 %v6406, %v6806
        %v6985 = vadd.f32 %v6407, %v6809
        %v6986 = vadd.f32 %v6408, %v6811
        %v6987 = vadd.f32 %v6409, %v6814
        %v6988 = vadd.f32 %v6410, %v6816
        %v6989 = vadd.f32 %v6411, %v6819
        %v6990 = vadd.f32 %v6412, %v6821
        %v6991 = vadd.f32 %v6413, %v6824
        %v6992 = vadd.f32 %v6414, %v6826
        %v6993 = vadd.f32 %v6415, %v6829
        %v6994 = vadd.f32 %v6416, %v6831
        %v6995 = vadd.f32 %v6417, %v6834
        %v6996 = vadd.f32 %v6418, %v6836
        %v6997 = vadd.f32 %v6419, %v6839
        %v6998 = vadd.f32 %v6420, %v6841
        %v6999 = vadd.f32 %v6421, %v6844
        %v7000 = vadd.f32 %v6422, %v6846
        %v7001 = vadd.f32 %v6423, %v6849
        %v7002 = vadd.f32 %v6424, %v6851
        %v7003 = vadd.f32 %v6425, %v6854
        %v7004 = vadd.f32 %v6426, %v6856
        %v7005 = vadd.f32 %v6427, %v6859
        %v7006 = vadd.f32 %v6428, %v6861
        %v7007 = vadd.f32 %v6429, %v6864
        %v7008 = vadd.f32 %v6430, %v6866
        %v7009 = vadd.f32 %v6431, %v6869
        %v7010 = vadd.f32 %v6432, %v6871
        %v7011 = vadd.f32 %v6433, %v6874
        %v7012 = vadd.f32 %v6434, %v6876
        %v7013 = vadd.f32 %v6435, %v6879
        %v7014 = vadd.f32 %v6436, %v6881
        %v7015 = vadd.f32 %v6437, %v6884
        %v7016 = vadd.f32 %v6438, %v6886
        %v7017 = vadd.f32 %v6439, %v6889
        %v7018 = vadd.f32 %v6440, %v6891
        %v7019 = vadd.f32 %v6441, %v6894
        %v7020 = vadd.f32 %v6442, %v6896
        %v7021 = vadd.f32 %v6443, %v6899
        %v7022 = vadd.f32 %v6444, %v6901
        %v7023 = vadd.f32 %v6445, %v6904
        %v7024 = vadd.f32 %v6446, %v6906
        %v7025 = vadd.f32 %v6447, %v6909
        %v7026 = vadd.f32 %v6448, %v6911
        %v7027 = vadd.f32 %v6449, %v6914
        %v7028 = vadd.f32 %v6450, %v6916
        %v7029 = vadd.f32 %v6451, %v6919
        %v7030 = vadd.f32 %v6452, %v6921
        %v7031 = vadd.f32 %v6453, %v6924
        %v7032 = vadd.f32 %v6454, %v6926
        %v7033 = vadd.f32 %v6455, %v6929
        %v7034 = vadd.f32 %v6456, %v6931
        %v7035 = vadd.f32 %v6457, %v6934
        %v7036 = vadd.f32 %v6458, %v6936
        %v7037 = vadd.f32 %v6459, %v6939
        %v7038 = vadd.f32 %v6460, %v6941
        %v7039 = vadd.f32 %v6461, %v6944
        %v7040 = vadd.f32 %v6462, %v6946
        %v7041 = vadd.f32 %v6463, %v6949
        %v7042 = vadd.f32 %v6464, %v6951
        %v7043 = vadd.f32 %v6465, %v6954
        %v7044 = vadd.f32 %v6466, %v6956
        %v7045 = vadd.f32 %v6467, %v6959
        %v7046 = vadd.f32 %v6468, %v6961
        %v7047 = vadd.f32 %v6469, %v6964
        %v7048 = vld [vmem:[%s1] sm:$0xff]
        %v7049 = vld [vmem:[%s1 + $0x8] sm:$0xff]
        %v7050 = vld [vmem:[%s1 + $0x10] sm:$0xff]
        %v7051 = vld [vmem:[%s1 + $0x18] sm:$0xff]
        %v7052 = vld [vmem:[%s1 + $0x20] sm:$0xff]
        %v7053 = vld [vmem:[%s1 + $0x28] sm:$0xff]
        %v7054 = vld [vmem:[%s1 + $0x30] sm:$0xff]
        %v7055 = vld [vmem:[%s1 + $0x38] sm:$0xff]
        %v7056 = vld [vmem:[%s1 + $0x40] sm:$0xff]
        %v7057 = vld [vmem:[%s1 + $0x48] sm:$0xff]
        %v7058 = vld [vmem:[%s1 + $0x50] sm:$0xff]
        %v7059 = vld [vmem:[%s1 + $0x58] sm:$0xff]
        %v7060 = vld [vmem:[%s1 + $0x60] sm:$0xff]
        %v7061 = vld [vmem:[%s1 + $0x68] sm:$0xff]
        %v7062 = vld [vmem:[%s1 + $0x70] sm:$0xff]
        %v7063 = vld [vmem:[%s1 + $0x78] sm:$0xff]
        %v7064 = vld [vmem:[%s1 + $0x80] sm:$0xff]
        %v7065 = vld [vmem:[%s1 + $0x88] sm:$0xff]
        %v7066 = vld [vmem:[%s1 + $0x90] sm:$0xff]
        %v7067 = vld [vmem:[%s1 + $0x98] sm:$0xff]
        %v7068 = vld [vmem:[%s1 + $0xa0] sm:$0xff]
        %v7069 = vld [vmem:[%s1 + $0xa8] sm:$0xff]
        %v7070 = vld [vmem:[%s1 + $0xb0] sm:$0xff]
        %v7071 = vld [vmem:[%s1 + $0xb8] sm:$0xff]
        %v7072 = vld [vmem:[%s1 + $0xc0] sm:$0xff]
        %v7073 = vld [vmem:[%s1 + $0xc8] sm:$0xff]
        %v7074 = vld [vmem:[%s1 + $0xd0] sm:$0xff]
        %v7075 = vld [vmem:[%s1 + $0xd8] sm:$0xff]
        %v7076 = vld [vmem:[%s1 + $0xe0] sm:$0xff]
        %v7077 = vld [vmem:[%s1 + $0xe8] sm:$0xff]
        %v7078 = vld [vmem:[%s1 + $0xf0] sm:$0xff]
        %v7079 = vld [vmem:[%s1 + $0xf8] sm:$0xff]
        %v7080 = vld [vmem:[%s1 + $0x100] sm:$0xff]
        %v7081 = vld [vmem:[%s1 + $0x108] sm:$0xff]
        %v7082 = vld [vmem:[%s1 + $0x110] sm:$0xff]
        %v7083 = vld [vmem:[%s1 + $0x118] sm:$0xff]
        %v7084 = vld [vmem:[%s1 + $0x120] sm:$0xff]
        %v7085 = vld [vmem:[%s1 + $0x128] sm:$0xff]
        %v7086 = vld [vmem:[%s1 + $0x130] sm:$0xff]
        %v7087 = vld [vmem:[%s1 + $0x138] sm:$0xff]
        %v7088 = vld [vmem:[%s1 + $0x140] sm:$0xff]
        %v7089 = vld [vmem:[%s1 + $0x148] sm:$0xff]
        %v7090 = vld [vmem:[%s1 + $0x150] sm:$0xff]
        %v7091 = vld [vmem:[%s1 + $0x158] sm:$0xff]
        %v7092 = vld [vmem:[%s1 + $0x160] sm:$0xff]
        %v7093 = vld [vmem:[%s1 + $0x168] sm:$0xff]
        %v7094 = vld [vmem:[%s1 + $0x170] sm:$0xff]
        %v7095 = vld [vmem:[%s1 + $0x178] sm:$0xff]
        %v7096 = vld [vmem:[%s1 + $0x180] sm:$0xff]
        %v7097 = vld [vmem:[%s1 + $0x188] sm:$0xff]
        %v7098 = vld [vmem:[%s1 + $0x190] sm:$0xff]
        %v7099 = vld [vmem:[%s1 + $0x198] sm:$0xff]
        %v7100 = vld [vmem:[%s1 + $0x1a0] sm:$0xff]
        %v7101 = vld [vmem:[%s1 + $0x1a8] sm:$0xff]
        %v7102 = vld [vmem:[%s1 + $0x1b0] sm:$0xff]
        %v7103 = vld [vmem:[%s1 + $0x1b8] sm:$0xff]
        %v7104 = vld [vmem:[%s1 + $0x1c0] sm:$0xff]
        %v7105 = vld [vmem:[%s1 + $0x1c8] sm:$0xff]
        %v7106 = vld [vmem:[%s1 + $0x1d0] sm:$0xff]
        %v7107 = vld [vmem:[%s1 + $0x1d8] sm:$0xff]
        %v7108 = vld [vmem:[%s1 + $0x1e0] sm:$0xff]
        %v7109 = vld [vmem:[%s1 + $0x1e8] sm:$0xff]
        %v7110 = vld [vmem:[%s1 + $0x1f0] sm:$0xff]
        %v7111 = vld [vmem:[%s1 + $0x1f8] sm:$0xff]
        %v7112 = vld [vmem:[%s1 + $0x200] sm:$0xff]
        %v7113 = vld [vmem:[%s1 + $0x208] sm:$0xff]
        %v7114 = vld [vmem:[%s1 + $0x210] sm:$0xff]
        %v7115 = vld [vmem:[%s1 + $0x218] sm:$0xff]
        %v7116 = vld [vmem:[%s1 + $0x220] sm:$0xff]
        %v7117 = vld [vmem:[%s1 + $0x228] sm:$0xff]
        %v7118 = vld [vmem:[%s1 + $0x230] sm:$0xff]
        %v7119 = vld [vmem:[%s1 + $0x238] sm:$0xff]
        %v7120 = vld [vmem:[%s1 + $0x240] sm:$0xff]
        %v7121 = vld [vmem:[%s1 + $0x248] sm:$0xff]
        %v7122 = vld [vmem:[%s1 + $0x250] sm:$0xff]
        %v7123 = vld [vmem:[%s1 + $0x258] sm:$0xff]
        %v7124 = vld [vmem:[%s1 + $0x260] sm:$0xff]
        %v7125 = vld [vmem:[%s1 + $0x268] sm:$0xff]
        %v7126 = vld [vmem:[%s1 + $0x270] sm:$0xff]
        %v7127 = vld [vmem:[%s1 + $0x278] sm:$0xff]
        %v7128 = vld [vmem:[%s1 + $0x280] sm:$0xff]
        %7130 = vset.pattern.permute.xlu0 0
        %7131 = vperm.xlu0 %7130, %v7048
        %v7132 = vpop.permute.xlu0 %7131
        %7135 = vset.pattern.permute.xlu0 0
        %7136 = vperm.xlu0 %7135, %v7049
        %v7137 = vpop.permute.xlu0 %7136
        %7140 = vset.pattern.permute.xlu0 0
        %7141 = vperm.xlu0 %7140, %v7050
        %v7142 = vpop.permute.xlu0 %7141
        %7145 = vset.pattern.permute.xlu0 0
        %7146 = vperm.xlu0 %7145, %v7051
        %v7147 = vpop.permute.xlu0 %7146
        %7150 = vset.pattern.permute.xlu0 0
        %7151 = vperm.xlu0 %7150, %v7052
        %v7152 = vpop.permute.xlu0 %7151
        %7155 = vset.pattern.permute.xlu0 0
        %7156 = vperm.xlu0 %7155, %v7053
        %v7157 = vpop.permute.xlu0 %7156
        %7160 = vset.pattern.permute.xlu0 0
        %7161 = vperm.xlu0 %7160, %v7054
        %v7162 = vpop.permute.xlu0 %7161
        %7165 = vset.pattern.permute.xlu0 0
        %7166 = vperm.xlu0 %7165, %v7055
        %v7167 = vpop.permute.xlu0 %7166
        %7170 = vset.pattern.permute.xlu0 0
        %7171 = vperm.xlu0 %7170, %v7056
        %v7172 = vpop.permute.xlu0 %7171
        %7175 = vset.pattern.permute.xlu0 0
        %7176 = vperm.xlu0 %7175, %v7057
        %v7177 = vpop.permute.xlu0 %7176
        %7180 = vset.pattern.permute.xlu0 0
        %7181 = vperm.xlu0 %7180, %v7058
        %v7182 = vpop.permute.xlu0 %7181
        %7185 = vset.pattern.permute.xlu0 0
        %7186 = vperm.xlu0 %7185, %v7059
        %v7187 = vpop.permute.xlu0 %7186
        %7190 = vset.pattern.permute.xlu0 0
        %7191 = vperm.xlu0 %7190, %v7060
        %v7192 = vpop.permute.xlu0 %7191
        %7195 = vset.pattern.permute.xlu0 0
        %7196 = vperm.xlu0 %7195, %v7061
        %v7197 = vpop.permute.xlu0 %7196
        %7200 = vset.pattern.permute.xlu0 0
        %7201 = vperm.xlu0 %7200, %v7062
        %v7202 = vpop.permute.xlu0 %7201
        %7205 = vset.pattern.permute.xlu0 0
        %7206 = vperm.xlu0 %7205, %v7063
        %v7207 = vpop.permute.xlu0 %7206
        %7210 = vset.pattern.permute.xlu0 0
        %7211 = vperm.xlu0 %7210, %v7064
        %v7212 = vpop.permute.xlu0 %7211
        %7215 = vset.pattern.permute.xlu0 0
        %7216 = vperm.xlu0 %7215, %v7065
        %v7217 = vpop.permute.xlu0 %7216
        %7220 = vset.pattern.permute.xlu0 0
        %7221 = vperm.xlu0 %7220, %v7066
        %v7222 = vpop.permute.xlu0 %7221
        %7225 = vset.pattern.permute.xlu0 0
        %7226 = vperm.xlu0 %7225, %v7067
        %v7227 = vpop.permute.xlu0 %7226
        %7230 = vset.pattern.permute.xlu0 0
        %7231 = vperm.xlu0 %7230, %v7068
        %v7232 = vpop.permute.xlu0 %7231
        %7235 = vset.pattern.permute.xlu0 0
        %7236 = vperm.xlu0 %7235, %v7069
        %v7237 = vpop.permute.xlu0 %7236
        %7240 = vset.pattern.permute.xlu0 0
        %7241 = vperm.xlu0 %7240, %v7070
        %v7242 = vpop.permute.xlu0 %7241
        %7245 = vset.pattern.permute.xlu0 0
        %7246 = vperm.xlu0 %7245, %v7071
        %v7247 = vpop.permute.xlu0 %7246
        %7250 = vset.pattern.permute.xlu0 0
        %7251 = vperm.xlu0 %7250, %v7072
        %v7252 = vpop.permute.xlu0 %7251
        %7255 = vset.pattern.permute.xlu0 0
        %7256 = vperm.xlu0 %7255, %v7073
        %v7257 = vpop.permute.xlu0 %7256
        %7260 = vset.pattern.permute.xlu0 0
        %7261 = vperm.xlu0 %7260, %v7074
        %v7262 = vpop.permute.xlu0 %7261
        %7265 = vset.pattern.permute.xlu0 0
        %7266 = vperm.xlu0 %7265, %v7075
        %v7267 = vpop.permute.xlu0 %7266
        %7270 = vset.pattern.permute.xlu0 0
        %7271 = vperm.xlu0 %7270, %v7076
        %v7272 = vpop.permute.xlu0 %7271
        %7275 = vset.pattern.permute.xlu0 0
        %7276 = vperm.xlu0 %7275, %v7077
        %v7277 = vpop.permute.xlu0 %7276
        %7280 = vset.pattern.permute.xlu0 0
        %7281 = vperm.xlu0 %7280, %v7078
        %v7282 = vpop.permute.xlu0 %7281
        %7285 = vset.pattern.permute.xlu0 0
        %7286 = vperm.xlu0 %7285, %v7079
        %v7287 = vpop.permute.xlu0 %7286
        %7290 = vset.pattern.permute.xlu0 0
        %7291 = vperm.xlu0 %7290, %v7080
        %v7292 = vpop.permute.xlu0 %7291
        %7295 = vset.pattern.permute.xlu0 0
        %7296 = vperm.xlu0 %7295, %v7081
        %v7297 = vpop.permute.xlu0 %7296
        %7300 = vset.pattern.permute.xlu0 0
        %7301 = vperm.xlu0 %7300, %v7082
        %v7302 = vpop.permute.xlu0 %7301
        %7305 = vset.pattern.permute.xlu0 0
        %7306 = vperm.xlu0 %7305, %v7083
        %v7307 = vpop.permute.xlu0 %7306
        %7310 = vset.pattern.permute.xlu0 0
        %7311 = vperm.xlu0 %7310, %v7084
        %v7312 = vpop.permute.xlu0 %7311
        %7315 = vset.pattern.permute.xlu0 0
        %7316 = vperm.xlu0 %7315, %v7085
        %v7317 = vpop.permute.xlu0 %7316
        %7320 = vset.pattern.permute.xlu0 0
        %7321 = vperm.xlu0 %7320, %v7086
        %v7322 = vpop.permute.xlu0 %7321
        %7325 = vset.pattern.permute.xlu0 0
        %7326 = vperm.xlu0 %7325, %v7087
        %v7327 = vpop.permute.xlu0 %7326
        %7330 = vset.pattern.permute.xlu0 0
        %7331 = vperm.xlu0 %7330, %v7088
        %v7332 = vpop.permute.xlu0 %7331
        %7335 = vset.pattern.permute.xlu0 0
        %7336 = vperm.xlu0 %7335, %v7089
        %v7337 = vpop.permute.xlu0 %7336
        %7340 = vset.pattern.permute.xlu0 0
        %7341 = vperm.xlu0 %7340, %v7090
        %v7342 = vpop.permute.xlu0 %7341
        %7345 = vset.pattern.permute.xlu0 0
        %7346 = vperm.xlu0 %7345, %v7091
        %v7347 = vpop.permute.xlu0 %7346
        %7350 = vset.pattern.permute.xlu0 0
        %7351 = vperm.xlu0 %7350, %v7092
        %v7352 = vpop.permute.xlu0 %7351
        %7355 = vset.pattern.permute.xlu0 0
        %7356 = vperm.xlu0 %7355, %v7093
        %v7357 = vpop.permute.xlu0 %7356
        %7360 = vset.pattern.permute.xlu0 0
        %7361 = vperm.xlu0 %7360, %v7094
        %v7362 = vpop.permute.xlu0 %7361
        %7365 = vset.pattern.permute.xlu0 0
        %7366 = vperm.xlu0 %7365, %v7095
        %v7367 = vpop.permute.xlu0 %7366
        %7370 = vset.pattern.permute.xlu0 0
        %7371 = vperm.xlu0 %7370, %v7096
        %v7372 = vpop.permute.xlu0 %7371
        %7375 = vset.pattern.permute.xlu0 0
        %7376 = vperm.xlu0 %7375, %v7097
        %v7377 = vpop.permute.xlu0 %7376
        %7380 = vset.pattern.permute.xlu0 0
        %7381 = vperm.xlu0 %7380, %v7098
        %v7382 = vpop.permute.xlu0 %7381
        %7385 = vset.pattern.permute.xlu0 0
        %7386 = vperm.xlu0 %7385, %v7099
        %v7387 = vpop.permute.xlu0 %7386
        %7390 = vset.pattern.permute.xlu0 0
        %7391 = vperm.xlu0 %7390, %v7100
        %v7392 = vpop.permute.xlu0 %7391
        %7395 = vset.pattern.permute.xlu0 0
        %7396 = vperm.xlu0 %7395, %v7101
        %v7397 = vpop.permute.xlu0 %7396
        %7400 = vset.pattern.permute.xlu0 0
        %7401 = vperm.xlu0 %7400, %v7102
        %v7402 = vpop.permute.xlu0 %7401
        %7405 = vset.pattern.permute.xlu0 0
        %7406 = vperm.xlu0 %7405, %v7103
        %v7407 = vpop.permute.xlu0 %7406
        %7410 = vset.pattern.permute.xlu0 0
        %7411 = vperm.xlu0 %7410, %v7104
        %v7412 = vpop.permute.xlu0 %7411
        %7415 = vset.pattern.permute.xlu0 0
        %7416 = vperm.xlu0 %7415, %v7105
        %v7417 = vpop.permute.xlu0 %7416
        %7420 = vset.pattern.permute.xlu0 0
        %7421 = vperm.xlu0 %7420, %v7106
        %v7422 = vpop.permute.xlu0 %7421
        %7425 = vset.pattern.permute.xlu0 0
        %7426 = vperm.xlu0 %7425, %v7107
        %v7427 = vpop.permute.xlu0 %7426
        %7430 = vset.pattern.permute.xlu0 0
        %7431 = vperm.xlu0 %7430, %v7108
        %v7432 = vpop.permute.xlu0 %7431
        %7435 = vset.pattern.permute.xlu0 0
        %7436 = vperm.xlu0 %7435, %v7109
        %v7437 = vpop.permute.xlu0 %7436
        %7440 = vset.pattern.permute.xlu0 0
        %7441 = vperm.xlu0 %7440, %v7110
        %v7442 = vpop.permute.xlu0 %7441
        %7445 = vset.pattern.permute.xlu0 0
        %7446 = vperm.xlu0 %7445, %v7111
        %v7447 = vpop.permute.xlu0 %7446
        %7450 = vset.pattern.permute.xlu0 0
        %7451 = vperm.xlu0 %7450, %v7112
        %v7452 = vpop.permute.xlu0 %7451
        %7455 = vset.pattern.permute.xlu0 0
        %7456 = vperm.xlu0 %7455, %v7113
        %v7457 = vpop.permute.xlu0 %7456
        %7460 = vset.pattern.permute.xlu0 0
        %7461 = vperm.xlu0 %7460, %v7114
        %v7462 = vpop.permute.xlu0 %7461
        %7465 = vset.pattern.permute.xlu0 0
        %7466 = vperm.xlu0 %7465, %v7115
        %v7467 = vpop.permute.xlu0 %7466
        %7470 = vset.pattern.permute.xlu0 0
        %7471 = vperm.xlu0 %7470, %v7116
        %v7472 = vpop.permute.xlu0 %7471
        %7475 = vset.pattern.permute.xlu0 0
        %7476 = vperm.xlu0 %7475, %v7117
        %v7477 = vpop.permute.xlu0 %7476
        %7480 = vset.pattern.permute.xlu0 0
        %7481 = vperm.xlu0 %7480, %v7118
        %v7482 = vpop.permute.xlu0 %7481
        %7485 = vset.pattern.permute.xlu0 0
        %7486 = vperm.xlu0 %7485, %v7119
        %v7487 = vpop.permute.xlu0 %7486
        %7490 = vset.pattern.permute.xlu0 0
        %7491 = vperm.xlu0 %7490, %v7120
        %v7492 = vpop.permute.xlu0 %7491
        %7495 = vset.pattern.permute.xlu0 0
        %7496 = vperm.xlu0 %7495, %v7121
        %v7497 = vpop.permute.xlu0 %7496
        %7500 = vset.pattern.permute.xlu0 0
        %7501 = vperm.xlu0 %7500, %v7122
        %v7502 = vpop.permute.xlu0 %7501
        %7505 = vset.pattern.permute.xlu0 0
        %7506 = vperm.xlu0 %7505, %v7123
        %v7507 = vpop.permute.xlu0 %7506
        %7510 = vset.pattern.permute.xlu0 0
        %7511 = vperm.xlu0 %7510, %v7124
        %v7512 = vpop.permute.xlu0 %7511
        %7515 = vset.pattern.permute.xlu0 0
        %7516 = vperm.xlu0 %7515, %v7125
        %v7517 = vpop.permute.xlu0 %7516
        %7520 = vset.pattern.permute.xlu0 0
        %7521 = vperm.xlu0 %7520, %v7126
        %v7522 = vpop.permute.xlu0 %7521
        %7525 = vset.pattern.permute.xlu0 0
        %7526 = vperm.xlu0 %7525, %v7127
        %v7527 = vpop.permute.xlu0 %7526
        %7530 = vset.pattern.permute.xlu0 0
        %7531 = vperm.xlu0 %7530, %v7128
        %v7532 = vpop.permute.xlu0 %7531
        %v7534 = vmul.f32 %v6967, %v7132
        %v7535 = vmul.f32 %v6968, %v7137
        %v7536 = vmul.f32 %v6969, %v7142
        %v7537 = vmul.f32 %v6970, %v7147
        %v7538 = vmul.f32 %v6971, %v7152
        %v7539 = vmul.f32 %v6972, %v7157
        %v7540 = vmul.f32 %v6973, %v7162
        %v7541 = vmul.f32 %v6974, %v7167
        %v7542 = vmul.f32 %v6975, %v7172
        %v7543 = vmul.f32 %v6976, %v7177
        %v7544 = vmul.f32 %v6977, %v7182
        %v7545 = vmul.f32 %v6978, %v7187
        %v7546 = vmul.f32 %v6979, %v7192
        %v7547 = vmul.f32 %v6980, %v7197
        %v7548 = vmul.f32 %v6981, %v7202
        %v7549 = vmul.f32 %v6982, %v7207
        %v7550 = vmul.f32 %v6983, %v7212
        %v7551 = vmul.f32 %v6984, %v7217
        %v7552 = vmul.f32 %v6985, %v7222
        %v7553 = vmul.f32 %v6986, %v7227
        %v7554 = vmul.f32 %v6987, %v7232
        %v7555 = vmul.f32 %v6988, %v7237
        %v7556 = vmul.f32 %v6989, %v7242
        %v7557 = vmul.f32 %v6990, %v7247
        %v7558 = vmul.f32 %v6991, %v7252
        %v7559 = vmul.f32 %v6992, %v7257
        %v7560 = vmul.f32 %v6993, %v7262
        %v7561 = vmul.f32 %v6994, %v7267
        %v7562 = vmul.f32 %v6995, %v7272
        %v7563 = vmul.f32 %v6996, %v7277
        %v7564 = vmul.f32 %v6997, %v7282
        %v7565 = vmul.f32 %v6998, %v7287
        %v7566 = vmul.f32 %v6999, %v7292
        %v7567 = vmul.f32 %v7000, %v7297
        %v7568 = vmul.f32 %v7001, %v7302
        %v7569 = vmul.f32 %v7002, %v7307
        %v7570 = vmul.f32 %v7003, %v7312
        %v7571 = vmul.f32 %v7004, %v7317
        %v7572 = vmul.f32 %v7005, %v7322
        %v7573 = vmul.f32 %v7006, %v7327
        %v7574 = vmul.f32 %v7007, %v7332
        %v7575 = vmul.f32 %v7008, %v7337
        %v7576 = vmul.f32 %v7009, %v7342
        %v7577 = vmul.f32 %v7010, %v7347
        %v7578 = vmul.f32 %v7011, %v7352
        %v7579 = vmul.f32 %v7012, %v7357
        %v7580 = vmul.f32 %v7013, %v7362
        %v7581 = vmul.f32 %v7014, %v7367
        %v7582 = vmul.f32 %v7015, %v7372
        %v7583 = vmul.f32 %v7016, %v7377
        %v7584 = vmul.f32 %v7017, %v7382
        %v7585 = vmul.f32 %v7018, %v7387
        %v7586 = vmul.f32 %v7019, %v7392
        %v7587 = vmul.f32 %v7020, %v7397
        %v7588 = vmul.f32 %v7021, %v7402
        %v7589 = vmul.f32 %v7022, %v7407
        %v7590 = vmul.f32 %v7023, %v7412
        %v7591 = vmul.f32 %v7024, %v7417
        %v7592 = vmul.f32 %v7025, %v7422
        %v7593 = vmul.f32 %v7026, %v7427
        %v7594 = vmul.f32 %v7027, %v7432
        %v7595 = vmul.f32 %v7028, %v7437
        %v7596 = vmul.f32 %v7029, %v7442
        %v7597 = vmul.f32 %v7030, %v7447
        %v7598 = vmul.f32 %v7031, %v7452
        %v7599 = vmul.f32 %v7032, %v7457
        %v7600 = vmul.f32 %v7033, %v7462
        %v7601 = vmul.f32 %v7034, %v7467
        %v7602 = vmul.f32 %v7035, %v7472
        %v7603 = vmul.f32 %v7036, %v7477
        %v7604 = vmul.f32 %v7037, %v7482
        %v7605 = vmul.f32 %v7038, %v7487
        %v7606 = vmul.f32 %v7039, %v7492
        %v7607 = vmul.f32 %v7040, %v7497
        %v7608 = vmul.f32 %v7041, %v7502
        %v7609 = vmul.f32 %v7042, %v7507
        %v7610 = vmul.f32 %v7043, %v7512
        %v7611 = vmul.f32 %v7044, %v7517
        %v7612 = vmul.f32 %v7045, %v7522
        %v7613 = vmul.f32 %v7046, %v7527
        %v7614 = vmul.f32 %v7047, %v7532
        %v7615 = vadd.f32 %v7534, %v7535
        %v7616 = vadd.f32 %v7615, %v7536
        %v7617 = vadd.f32 %v7616, %v7537
        %v7618 = vadd.f32 %v7617, %v7538
        %v7619 = vadd.f32 %v7618, %v7539
        %v7620 = vadd.f32 %v7619, %v7540
        %v7621 = vadd.f32 %v7620, %v7541
        %v7622 = vadd.f32 %v7621, %v7542
        %v7623 = vadd.f32 %v7622, %v7543
        %v7624 = vadd.f32 %v7623, %v7544
        %v7625 = vadd.f32 %v7624, %v7545
        %v7626 = vadd.f32 %v7625, %v7546
        %v7627 = vadd.f32 %v7626, %v7547
        %v7628 = vadd.f32 %v7627, %v7548
        %v7629 = vadd.f32 %v7628, %v7549
        %v7630 = vadd.f32 %v7629, %v7550
        %v7631 = vadd.f32 %v7630, %v7551
        %v7632 = vadd.f32 %v7631, %v7552
        %v7633 = vadd.f32 %v7632, %v7553
        %v7634 = vadd.f32 %v7633, %v7554
        %v7635 = vadd.f32 %v7634, %v7555
        %v7636 = vadd.f32 %v7635, %v7556
        %v7637 = vadd.f32 %v7636, %v7557
        %v7638 = vadd.f32 %v7637, %v7558
        %v7639 = vadd.f32 %v7638, %v7559
        %v7640 = vadd.f32 %v7639, %v7560
        %v7641 = vadd.f32 %v7640, %v7561
        %v7642 = vadd.f32 %v7641, %v7562
        %v7643 = vadd.f32 %v7642, %v7563
        %v7644 = vadd.f32 %v7643, %v7564
        %v7645 = vadd.f32 %v7644, %v7565
        %v7646 = vadd.f32 %v7645, %v7566
        %v7647 = vadd.f32 %v7646, %v7567
        %v7648 = vadd.f32 %v7647, %v7568
        %v7649 = vadd.f32 %v7648, %v7569
        %v7650 = vadd.f32 %v7649, %v7570
        %v7651 = vadd.f32 %v7650, %v7571
        %v7652 = vadd.f32 %v7651, %v7572
        %v7653 = vadd.f32 %v7652, %v7573
        %v7654 = vadd.f32 %v7653, %v7574
        %v7655 = vadd.f32 %v7654, %v7575
        %v7656 = vadd.f32 %v7655, %v7576
        %v7657 = vadd.f32 %v7656, %v7577
        %v7658 = vadd.f32 %v7657, %v7578
        %v7659 = vadd.f32 %v7658, %v7579
        %v7660 = vadd.f32 %v7659, %v7580
        %v7661 = vadd.f32 %v7660, %v7581
        %v7662 = vadd.f32 %v7661, %v7582
        %v7663 = vadd.f32 %v7662, %v7583
        %v7664 = vadd.f32 %v7663, %v7584
        %v7665 = vadd.f32 %v7664, %v7585
        %v7666 = vadd.f32 %v7665, %v7586
        %v7667 = vadd.f32 %v7666, %v7587
        %v7668 = vadd.f32 %v7667, %v7588
        %v7669 = vadd.f32 %v7668, %v7589
        %v7670 = vadd.f32 %v7669, %v7590
        %v7671 = vadd.f32 %v7670, %v7591
        %v7672 = vadd.f32 %v7671, %v7592
        %v7673 = vadd.f32 %v7672, %v7593
        %v7674 = vadd.f32 %v7673, %v7594
        %v7675 = vadd.f32 %v7674, %v7595
        %v7676 = vadd.f32 %v7675, %v7596
        %v7677 = vadd.f32 %v7676, %v7597
        %v7678 = vadd.f32 %v7677, %v7598
        %v7679 = vadd.f32 %v7678, %v7599
        %v7680 = vadd.f32 %v7679, %v7600
        %v7681 = vadd.f32 %v7680, %v7601
        %v7682 = vadd.f32 %v7681, %v7602
        %v7683 = vadd.f32 %v7682, %v7603
        %v7684 = vadd.f32 %v7683, %v7604
        %v7685 = vadd.f32 %v7684, %v7605
        %v7686 = vadd.f32 %v7685, %v7606
        %v7687 = vadd.f32 %v7686, %v7607
        %v7688 = vadd.f32 %v7687, %v7608
        %v7689 = vadd.f32 %v7688, %v7609
        %v7690 = vadd.f32 %v7689, %v7610
        %v7691 = vadd.f32 %v7690, %v7611
        %v7692 = vadd.f32 %v7691, %v7612
        %v7693 = vadd.f32 %v7692, %v7613
        %v7694 = vadd.f32 %v7693, %v7614
        %v7695 = vrot.slane %v7694, 4
        %v7696 = vadd.f32 %v7694, %v7695
        %v7697 = vrot.slane %v7696, 2
        %v7698 = vadd.f32 %v7696, %v7697
        %v7699 = vrot.slane %v7698, 1
        %v7700 = vadd.f32 %v7698, %v7699
        %v7701 = vmul.f32 %v7534, %v6967
        %v7702 = vmul.f32 %v7535, %v6968
        %v7703 = vmul.f32 %v7536, %v6969
        %v7704 = vmul.f32 %v7537, %v6970
        %v7705 = vmul.f32 %v7538, %v6971
        %v7706 = vmul.f32 %v7539, %v6972
        %v7707 = vmul.f32 %v7540, %v6973
        %v7708 = vmul.f32 %v7541, %v6974
        %v7709 = vmul.f32 %v7542, %v6975
        %v7710 = vmul.f32 %v7543, %v6976
        %v7711 = vmul.f32 %v7544, %v6977
        %v7712 = vmul.f32 %v7545, %v6978
        %v7713 = vmul.f32 %v7546, %v6979
        %v7714 = vmul.f32 %v7547, %v6980
        %v7715 = vmul.f32 %v7548, %v6981
        %v7716 = vmul.f32 %v7549, %v6982
        %v7717 = vmul.f32 %v7550, %v6983
        %v7718 = vmul.f32 %v7551, %v6984
        %v7719 = vmul.f32 %v7552, %v6985
        %v7720 = vmul.f32 %v7553, %v6986
        %v7721 = vmul.f32 %v7554, %v6987
        %v7722 = vmul.f32 %v7555, %v6988
        %v7723 = vmul.f32 %v7556, %v6989
        %v7724 = vmul.f32 %v7557, %v6990
        %v7725 = vmul.f32 %v7558, %v6991
        %v7726 = vmul.f32 %v7559, %v6992
        %v7727 = vmul.f32 %v7560, %v6993
        %v7728 = vmul.f32 %v7561, %v6994
        %v7729 = vmul.f32 %v7562, %v6995
        %v7730 = vmul.f32 %v7563, %v6996
        %v7731 = vmul.f32 %v7564, %v6997
        %v7732 = vmul.f32 %v7565, %v6998
        %v7733 = vmul.f32 %v7566, %v6999
        %v7734 = vmul.f32 %v7567, %v7000
        %v7735 = vmul.f32 %v7568, %v7001
        %v7736 = vmul.f32 %v7569, %v7002
        %v7737 = vmul.f32 %v7570, %v7003
        %v7738 = vmul.f32 %v7571, %v7004
        %v7739 = vmul.f32 %v7572, %v7005
        %v7740 = vmul.f32 %v7573, %v7006
        %v7741 = vmul.f32 %v7574, %v7007
        %v7742 = vmul.f32 %v7575, %v7008
        %v7743 = vmul.f32 %v7576, %v7009
        %v7744 = vmul.f32 %v7577, %v7010
        %v7745 = vmul.f32 %v7578, %v7011
        %v7746 = vmul.f32 %v7579, %v7012
        %v7747 = vmul.f32 %v7580, %v7013
        %v7748 = vmul.f32 %v7581, %v7014
        %v7749 = vmul.f32 %v7582, %v7015
        %v7750 = vmul.f32 %v7583, %v7016
        %v7751 = vmul.f32 %v7584, %v7017
        %v7752 = vmul.f32 %v7585, %v7018
        %v7753 = vmul.f32 %v7586, %v7019
        %v7754 = vmul.f32 %v7587, %v7020
        %v7755 = vmul.f32 %v7588, %v7021
        %v7756 = vmul.f32 %v7589, %v7022
        %v7757 = vmul.f32 %v7590, %v7023
        %v7758 = vmul.f32 %v7591, %v7024
        %v7759 = vmul.f32 %v7592, %v7025
        %v7760 = vmul.f32 %v7593, %v7026
        %v7761 = vmul.f32 %v7594, %v7027
        %v7762 = vmul.f32 %v7595, %v7028
        %v7763 = vmul.f32 %v7596, %v7029
        %v7764 = vmul.f32 %v7597, %v7030
        %v7765 = vmul.f32 %v7598, %v7031
        %v7766 = vmul.f32 %v7599, %v7032
        %v7767 = vmul.f32 %v7600, %v7033
        %v7768 = vmul.f32 %v7601, %v7034
        %v7769 = vmul.f32 %v7602, %v7035
        %v7770 = vmul.f32 %v7603, %v7036
        %v7771 = vmul.f32 %v7604, %v7037
        %v7772 = vmul.f32 %v7605, %v7038
        %v7773 = vmul.f32 %v7606, %v7039
        %v7774 = vmul.f32 %v7607, %v7040
        %v7775 = vmul.f32 %v7608, %v7041
        %v7776 = vmul.f32 %v7609, %v7042
        %v7777 = vmul.f32 %v7610, %v7043
        %v7778 = vmul.f32 %v7611, %v7044
        %v7779 = vmul.f32 %v7612, %v7045
        %v7780 = vmul.f32 %v7613, %v7046
        %v7781 = vmul.f32 %v7614, %v7047
        %v7782 = vadd.f32 %v7701, %v7702
        %v7783 = vadd.f32 %v7782, %v7703
        %v7784 = vadd.f32 %v7783, %v7704
        %v7785 = vadd.f32 %v7784, %v7705
        %v7786 = vadd.f32 %v7785, %v7706
        %v7787 = vadd.f32 %v7786, %v7707
        %v7788 = vadd.f32 %v7787, %v7708
        %v7789 = vadd.f32 %v7788, %v7709
        %v7790 = vadd.f32 %v7789, %v7710
        %v7791 = vadd.f32 %v7790, %v7711
        %v7792 = vadd.f32 %v7791, %v7712
        %v7793 = vadd.f32 %v7792, %v7713
        %v7794 = vadd.f32 %v7793, %v7714
        %v7795 = vadd.f32 %v7794, %v7715
        %v7796 = vadd.f32 %v7795, %v7716
        %v7797 = vadd.f32 %v7796, %v7717
        %v7798 = vadd.f32 %v7797, %v7718
        %v7799 = vadd.f32 %v7798, %v7719
        %v7800 = vadd.f32 %v7799, %v7720
        %v7801 = vadd.f32 %v7800, %v7721
        %v7802 = vadd.f32 %v7801, %v7722
        %v7803 = vadd.f32 %v7802, %v7723
        %v7804 = vadd.f32 %v7803, %v7724
        %v7805 = vadd.f32 %v7804, %v7725
        %v7806 = vadd.f32 %v7805, %v7726
        %v7807 = vadd.f32 %v7806, %v7727
        %v7808 = vadd.f32 %v7807, %v7728
        %v7809 = vadd.f32 %v7808, %v7729
        %v7810 = vadd.f32 %v7809, %v7730
        %v7811 = vadd.f32 %v7810, %v7731
        %v7812 = vadd.f32 %v7811, %v7732
        %v7813 = vadd.f32 %v7812, %v7733
        %v7814 = vadd.f32 %v7813, %v7734
        %v7815 = vadd.f32 %v7814, %v7735
        %v7816 = vadd.f32 %v7815, %v7736
        %v7817 = vadd.f32 %v7816, %v7737
        %v7818 = vadd.f32 %v7817, %v7738
        %v7819 = vadd.f32 %v7818, %v7739
        %v7820 = vadd.f32 %v7819, %v7740
        %v7821 = vadd.f32 %v7820, %v7741
        %v7822 = vadd.f32 %v7821, %v7742
        %v7823 = vadd.f32 %v7822, %v7743
        %v7824 = vadd.f32 %v7823, %v7744
        %v7825 = vadd.f32 %v7824, %v7745
        %v7826 = vadd.f32 %v7825, %v7746
        %v7827 = vadd.f32 %v7826, %v7747
        %v7828 = vadd.f32 %v7827, %v7748
        %v7829 = vadd.f32 %v7828, %v7749
        %v7830 = vadd.f32 %v7829, %v7750
        %v7831 = vadd.f32 %v7830, %v7751
        %v7832 = vadd.f32 %v7831, %v7752
        %v7833 = vadd.f32 %v7832, %v7753
        %v7834 = vadd.f32 %v7833, %v7754
        %v7835 = vadd.f32 %v7834, %v7755
        %v7836 = vadd.f32 %v7835, %v7756
        %v7837 = vadd.f32 %v7836, %v7757
        %v7838 = vadd.f32 %v7837, %v7758
        %v7839 = vadd.f32 %v7838, %v7759
        %v7840 = vadd.f32 %v7839, %v7760
        %v7841 = vadd.f32 %v7840, %v7761
        %v7842 = vadd.f32 %v7841, %v7762
        %v7843 = vadd.f32 %v7842, %v7763
        %v7844 = vadd.f32 %v7843, %v7764
        %v7845 = vadd.f32 %v7844, %v7765
        %v7846 = vadd.f32 %v7845, %v7766
        %v7847 = vadd.f32 %v7846, %v7767
        %v7848 = vadd.f32 %v7847, %v7768
        %v7849 = vadd.f32 %v7848, %v7769
        %v7850 = vadd.f32 %v7849, %v7770
        %v7851 = vadd.f32 %v7850, %v7771
        %v7852 = vadd.f32 %v7851, %v7772
        %v7853 = vadd.f32 %v7852, %v7773
        %v7854 = vadd.f32 %v7853, %v7774
        %v7855 = vadd.f32 %v7854, %v7775
        %v7856 = vadd.f32 %v7855, %v7776
        %v7857 = vadd.f32 %v7856, %v7777
        %v7858 = vadd.f32 %v7857, %v7778
        %v7859 = vadd.f32 %v7858, %v7779
        %v7860 = vadd.f32 %v7859, %v7780
        %v7861 = vadd.f32 %v7860, %v7781
        %v7862 = vrot.slane %v7861, 4
        %v7863 = vadd.f32 %v7861, %v7862
        %v7864 = vrot.slane %v7863, 2
        %v7865 = vadd.f32 %v7863, %v7864
        %v7866 = vrot.slane %v7865, 1
        %v7867 = vadd.f32 %v7865, %v7866
        %v7868 = vmul.f32 %v7700, 0.001953125
        %v7869 = vmul.f32 %v7867, 0.001953125
        %v7870 = vmul.f32 %v7868, %v7868
        %v7871 = vsub.f32 %v7869, %v7870
        %v7872 = vmax.f32 %v7871, 0.0
        %v7873 = vld [vmem:[%s3] sm:$0x1]
        %v7874 = vadd.f32 %v7872, 1e-05
        %v7875 = vrsqrt.pop %v7874
        %v7876 = vmul.f32 %v7875, %v7874
        %v7877 = vmul.f32 %v7876, %v7875
        %v7878 = vmul.f32 0.5, %v7877
        %v7879 = vsub.f32 1.5, %v7878
        %v7880 = vmul.f32 %v7875, %v7879
        %vm7881 = vweird.f32 %v7874
        %vm7882 = vweird.f32 %v7875
        %vm7883 = vmor %vm7881, %vm7882
        %v7884 = vsel %vm7883, %v7875, %v7880
        %v7885 = vmul.f32 %v7873, %v7884
        %v7886 = vld [vmem:[%s3 + $0x1] sm:$0x1]
        %v7887 = vmul.f32 %v7868, %v7885
        %v7888 = vsub.f32 %v7886, %v7887
        %v7889 = vperm.slane %v7885, 0
        %v7890 = vmul.f32 %v6967, %v7889
        %v7891 = vmul.f32 %v6968, %v7889
        %v7892 = vmul.f32 %v6969, %v7889
        %v7893 = vmul.f32 %v6970, %v7889
        %v7894 = vmul.f32 %v6971, %v7889
        %v7895 = vmul.f32 %v6972, %v7889
        %v7896 = vmul.f32 %v6973, %v7889
        %v7897 = vmul.f32 %v6974, %v7889
        %v7898 = vmul.f32 %v6975, %v7889
        %v7899 = vmul.f32 %v6976, %v7889
        %v7900 = vmul.f32 %v6977, %v7889
        %v7901 = vmul.f32 %v6978, %v7889
        %v7902 = vmul.f32 %v6979, %v7889
        %v7903 = vmul.f32 %v6980, %v7889
        %v7904 = vmul.f32 %v6981, %v7889
        %v7905 = vmul.f32 %v6982, %v7889
        %v7906 = vmul.f32 %v6983, %v7889
        %v7907 = vmul.f32 %v6984, %v7889
        %v7908 = vmul.f32 %v6985, %v7889
        %v7909 = vmul.f32 %v6986, %v7889
        %v7910 = vmul.f32 %v6987, %v7889
        %v7911 = vmul.f32 %v6988, %v7889
        %v7912 = vmul.f32 %v6989, %v7889
        %v7913 = vmul.f32 %v6990, %v7889
        %v7914 = vmul.f32 %v6991, %v7889
        %v7915 = vmul.f32 %v6992, %v7889
        %v7916 = vmul.f32 %v6993, %v7889
        %v7917 = vmul.f32 %v6994, %v7889
        %v7918 = vmul.f32 %v6995, %v7889
        %v7919 = vmul.f32 %v6996, %v7889
        %v7920 = vmul.f32 %v6997, %v7889
        %v7921 = vmul.f32 %v6998, %v7889
        %v7922 = vmul.f32 %v6999, %v7889
        %v7923 = vmul.f32 %v7000, %v7889
        %v7924 = vmul.f32 %v7001, %v7889
        %v7925 = vmul.f32 %v7002, %v7889
        %v7926 = vmul.f32 %v7003, %v7889
        %v7927 = vmul.f32 %v7004, %v7889
        %v7928 = vmul.f32 %v7005, %v7889
        %v7929 = vmul.f32 %v7006, %v7889
        %v7930 = vmul.f32 %v7007, %v7889
        %v7931 = vmul.f32 %v7008, %v7889
        %v7932 = vmul.f32 %v7009, %v7889
        %v7933 = vmul.f32 %v7010, %v7889
        %v7934 = vmul.f32 %v7011, %v7889
        %v7935 = vmul.f32 %v7012, %v7889
        %v7936 = vmul.f32 %v7013, %v7889
        %v7937 = vmul.f32 %v7014, %v7889
        %v7938 = vmul.f32 %v7015, %v7889
        %v7939 = vmul.f32 %v7016, %v7889
        %v7940 = vmul.f32 %v7017, %v7889
        %v7941 = vmul.f32 %v7018, %v7889
        %v7942 = vmul.f32 %v7019, %v7889
        %v7943 = vmul.f32 %v7020, %v7889
        %v7944 = vmul.f32 %v7021, %v7889
        %v7945 = vmul.f32 %v7022, %v7889
        %v7946 = vmul.f32 %v7023, %v7889
        %v7947 = vmul.f32 %v7024, %v7889
        %v7948 = vmul.f32 %v7025, %v7889
        %v7949 = vmul.f32 %v7026, %v7889
        %v7950 = vmul.f32 %v7027, %v7889
        %v7951 = vmul.f32 %v7028, %v7889
        %v7952 = vmul.f32 %v7029, %v7889
        %v7953 = vmul.f32 %v7030, %v7889
        %v7954 = vmul.f32 %v7031, %v7889
        %v7955 = vmul.f32 %v7032, %v7889
        %v7956 = vmul.f32 %v7033, %v7889
        %v7957 = vmul.f32 %v7034, %v7889
        %v7958 = vmul.f32 %v7035, %v7889
        %v7959 = vmul.f32 %v7036, %v7889
        %v7960 = vmul.f32 %v7037, %v7889
        %v7961 = vmul.f32 %v7038, %v7889
        %v7962 = vmul.f32 %v7039, %v7889
        %v7963 = vmul.f32 %v7040, %v7889
        %v7964 = vmul.f32 %v7041, %v7889
        %v7965 = vmul.f32 %v7042, %v7889
        %v7966 = vmul.f32 %v7043, %v7889
        %v7967 = vmul.f32 %v7044, %v7889
        %v7968 = vmul.f32 %v7045, %v7889
        %v7969 = vmul.f32 %v7046, %v7889
        %v7970 = vmul.f32 %v7047, %v7889
        %v7971 = vperm.slane %v7888, 0
        %v7972 = vadd.f32 %v7890, %v7971
        %v7973 = vadd.f32 %v7891, %v7971
        %v7974 = vadd.f32 %v7892, %v7971
        %v7975 = vadd.f32 %v7893, %v7971
        %v7976 = vadd.f32 %v7894, %v7971
        %v7977 = vadd.f32 %v7895, %v7971
        %v7978 = vadd.f32 %v7896, %v7971
        %v7979 = vadd.f32 %v7897, %v7971
        %v7980 = vadd.f32 %v7898, %v7971
        %v7981 = vadd.f32 %v7899, %v7971
        %v7982 = vadd.f32 %v7900, %v7971
        %v7983 = vadd.f32 %v7901, %v7971
        %v7984 = vadd.f32 %v7902, %v7971
        %v7985 = vadd.f32 %v7903, %v7971
        %v7986 = vadd.f32 %v7904, %v7971
        %v7987 = vadd.f32 %v7905, %v7971
        %v7988 = vadd.f32 %v7906, %v7971
        %v7989 = vadd.f32 %v7907, %v7971
        %v7990 = vadd.f32 %v7908, %v7971
        %v7991 = vadd.f32 %v7909, %v7971
        %v7992 = vadd.f32 %v7910, %v7971
        %v7993 = vadd.f32 %v7911, %v7971
        %v7994 = vadd.f32 %v7912, %v7971
        %v7995 = vadd.f32 %v7913, %v7971
        %v7996 = vadd.f32 %v7914, %v7971
        %v7997 = vadd.f32 %v7915, %v7971
        %v7998 = vadd.f32 %v7916, %v7971
        %v7999 = vadd.f32 %v7917, %v7971
        %v8000 = vadd.f32 %v7918, %v7971
        %v8001 = vadd.f32 %v7919, %v7971
        %v8002 = vadd.f32 %v7920, %v7971
        %v8003 = vadd.f32 %v7921, %v7971
        %v8004 = vadd.f32 %v7922, %v7971
        %v8005 = vadd.f32 %v7923, %v7971
        %v8006 = vadd.f32 %v7924, %v7971
        %v8007 = vadd.f32 %v7925, %v7971
        %v8008 = vadd.f32 %v7926, %v7971
        %v8009 = vadd.f32 %v7927, %v7971
        %v8010 = vadd.f32 %v7928, %v7971
        %v8011 = vadd.f32 %v7929, %v7971
        %v8012 = vadd.f32 %v7930, %v7971
        %v8013 = vadd.f32 %v7931, %v7971
        %v8014 = vadd.f32 %v7932, %v7971
        %v8015 = vadd.f32 %v7933, %v7971
        %v8016 = vadd.f32 %v7934, %v7971
        %v8017 = vadd.f32 %v7935, %v7971
        %v8018 = vadd.f32 %v7936, %v7971
        %v8019 = vadd.f32 %v7937, %v7971
        %v8020 = vadd.f32 %v7938, %v7971
        %v8021 = vadd.f32 %v7939, %v7971
        %v8022 = vadd.f32 %v7940, %v7971
        %v8023 = vadd.f32 %v7941, %v7971
        %v8024 = vadd.f32 %v7942, %v7971
        %v8025 = vadd.f32 %v7943, %v7971
        %v8026 = vadd.f32 %v7944, %v7971
        %v8027 = vadd.f32 %v7945, %v7971
        %v8028 = vadd.f32 %v7946, %v7971
        %v8029 = vadd.f32 %v7947, %v7971
        %v8030 = vadd.f32 %v7948, %v7971
        %v8031 = vadd.f32 %v7949, %v7971
        %v8032 = vadd.f32 %v7950, %v7971
        %v8033 = vadd.f32 %v7951, %v7971
        %v8034 = vadd.f32 %v7952, %v7971
        %v8035 = vadd.f32 %v7953, %v7971
        %v8036 = vadd.f32 %v7954, %v7971
        %v8037 = vadd.f32 %v7955, %v7971
        %v8038 = vadd.f32 %v7956, %v7971
        %v8039 = vadd.f32 %v7957, %v7971
        %v8040 = vadd.f32 %v7958, %v7971
        %v8041 = vadd.f32 %v7959, %v7971
        %v8042 = vadd.f32 %v7960, %v7971
        %v8043 = vadd.f32 %v7961, %v7971
        %v8044 = vadd.f32 %v7962, %v7971
        %v8045 = vadd.f32 %v7963, %v7971
        %v8046 = vadd.f32 %v7964, %v7971
        %v8047 = vadd.f32 %v7965, %v7971
        %v8048 = vadd.f32 %v7966, %v7971
        %v8049 = vadd.f32 %v7967, %v7971
        %v8050 = vadd.f32 %v7968, %v7971
        %v8051 = vadd.f32 %v7969, %v7971
        %v8052 = vadd.f32 %v7970, %v7971
        %v8053 = vmax.f32 %v7972, 0.0
        %v8054 = vmax.f32 %v7973, 0.0
        %v8055 = vmax.f32 %v7974, 0.0
        %v8056 = vmax.f32 %v7975, 0.0
        %v8057 = vmax.f32 %v7976, 0.0
        %v8058 = vmax.f32 %v7977, 0.0
        %v8059 = vmax.f32 %v7978, 0.0
        %v8060 = vmax.f32 %v7979, 0.0
        %v8061 = vmax.f32 %v7980, 0.0
        %v8062 = vmax.f32 %v7981, 0.0
        %v8063 = vmax.f32 %v7982, 0.0
        %v8064 = vmax.f32 %v7983, 0.0
        %v8065 = vmax.f32 %v7984, 0.0
        %v8066 = vmax.f32 %v7985, 0.0
        %v8067 = vmax.f32 %v7986, 0.0
        %v8068 = vmax.f32 %v7987, 0.0
        %v8069 = vmax.f32 %v7988, 0.0
        %v8070 = vmax.f32 %v7989, 0.0
        %v8071 = vmax.f32 %v7990, 0.0
        %v8072 = vmax.f32 %v7991, 0.0
        %v8073 = vmax.f32 %v7992, 0.0
        %v8074 = vmax.f32 %v7993, 0.0
        %v8075 = vmax.f32 %v7994, 0.0
        %v8076 = vmax.f32 %v7995, 0.0
        %v8077 = vmax.f32 %v7996, 0.0
        %v8078 = vmax.f32 %v7997, 0.0
        %v8079 = vmax.f32 %v7998, 0.0
        %v8080 = vmax.f32 %v7999, 0.0
        %v8081 = vmax.f32 %v8000, 0.0
        %v8082 = vmax.f32 %v8001, 0.0
        %v8083 = vmax.f32 %v8002, 0.0
        %v8084 = vmax.f32 %v8003, 0.0
        %v8085 = vmax.f32 %v8004, 0.0
        %v8086 = vmax.f32 %v8005, 0.0
        %v8087 = vmax.f32 %v8006, 0.0
        %v8088 = vmax.f32 %v8007, 0.0
        %v8089 = vmax.f32 %v8008, 0.0
        %v8090 = vmax.f32 %v8009, 0.0
        %v8091 = vmax.f32 %v8010, 0.0
        %v8092 = vmax.f32 %v8011, 0.0
        %v8093 = vmax.f32 %v8012, 0.0
        %v8094 = vmax.f32 %v8013, 0.0
        %v8095 = vmax.f32 %v8014, 0.0
        %v8096 = vmax.f32 %v8015, 0.0
        %v8097 = vmax.f32 %v8016, 0.0
        %v8098 = vmax.f32 %v8017, 0.0
        %v8099 = vmax.f32 %v8018, 0.0
        %v8100 = vmax.f32 %v8019, 0.0
        %v8101 = vmax.f32 %v8020, 0.0
        %v8102 = vmax.f32 %v8021, 0.0
        %v8103 = vmax.f32 %v8022, 0.0
        %v8104 = vmax.f32 %v8023, 0.0
        %v8105 = vmax.f32 %v8024, 0.0
        %v8106 = vmax.f32 %v8025, 0.0
        %v8107 = vmax.f32 %v8026, 0.0
        %v8108 = vmax.f32 %v8027, 0.0
        %v8109 = vmax.f32 %v8028, 0.0
        %v8110 = vmax.f32 %v8029, 0.0
        %v8111 = vmax.f32 %v8030, 0.0
        %v8112 = vmax.f32 %v8031, 0.0
        %v8113 = vmax.f32 %v8032, 0.0
        %v8114 = vmax.f32 %v8033, 0.0
        %v8115 = vmax.f32 %v8034, 0.0
        %v8116 = vmax.f32 %v8035, 0.0
        %v8117 = vmax.f32 %v8036, 0.0
        %v8118 = vmax.f32 %v8037, 0.0
        %v8119 = vmax.f32 %v8038, 0.0
        %v8120 = vmax.f32 %v8039, 0.0
        %v8121 = vmax.f32 %v8040, 0.0
        %v8122 = vmax.f32 %v8041, 0.0
        %v8123 = vmax.f32 %v8042, 0.0
        %v8124 = vmax.f32 %v8043, 0.0
        %v8125 = vmax.f32 %v8044, 0.0
        %v8126 = vmax.f32 %v8045, 0.0
        %v8127 = vmax.f32 %v8046, 0.0
        %v8128 = vmax.f32 %v8047, 0.0
        %v8129 = vmax.f32 %v8048, 0.0
        %v8130 = vmax.f32 %v8049, 0.0
        %v8131 = vmax.f32 %v8050, 0.0
        %v8132 = vmax.f32 %v8051, 0.0
        %v8133 = vmax.f32 %v8052, 0.0
        %p8134 = scmp.eq.s32.totalorder %s16, 2
        // Predicated region
        $region41: #{tpu_custom_call.1} parent=35 // pred_check
          %p8135 = pneg %p8134
        $region42: #{tpu_custom_call.1} parent=35 // pred_check_branch
          %8137 = sbr.rel (%p8135) target = $region44
        $region43: #{tpu_custom_call.1} parent=35 // pred_region
          %8138 = vst [vmem:[#allocation3] sm:$0xff] %v8053
          %8139 = vst [vmem:[#allocation3 + $0x8] sm:$0xff] %v8054
          %8140 = vst [vmem:[#allocation3 + $0x10] sm:$0xff] %v8055
          %8141 = vst [vmem:[#allocation3 + $0x18] sm:$0xff] %v8056
          %8142 = vst [vmem:[#allocation3 + $0x20] sm:$0xff] %v8057
          %8143 = vst [vmem:[#allocation3 + $0x28] sm:$0xff] %v8058
          %8144 = vst [vmem:[#allocation3 + $0x30] sm:$0xff] %v8059
          %8145 = vst [vmem:[#allocation3 + $0x38] sm:$0xff] %v8060
          %8146 = vst [vmem:[#allocation3 + $0x40] sm:$0xff] %v8061
          %8147 = vst [vmem:[#allocation3 + $0x48] sm:$0xff] %v8062
          %8148 = vst [vmem:[#allocation3 + $0x50] sm:$0xff] %v8063
          %8149 = vst [vmem:[#allocation3 + $0x58] sm:$0xff] %v8064
          %8150 = vst [vmem:[#allocation3 + $0x60] sm:$0xff] %v8065
          %8151 = vst [vmem:[#allocation3 + $0x68] sm:$0xff] %v8066
          %8152 = vst [vmem:[#allocation3 + $0x70] sm:$0xff] %v8067
          %8153 = vst [vmem:[#allocation3 + $0x78] sm:$0xff] %v8068
          %8154 = vst [vmem:[#allocation3 + $0x80] sm:$0xff] %v8069
          %8155 = vst [vmem:[#allocation3 + $0x88] sm:$0xff] %v8070
          %8156 = vst [vmem:[#allocation3 + $0x90] sm:$0xff] %v8071
          %8157 = vst [vmem:[#allocation3 + $0x98] sm:$0xff] %v8072
          %8158 = vst [vmem:[#allocation3 + $0xa0] sm:$0xff] %v8073
          %8159 = vst [vmem:[#allocation3 + $0xa8] sm:$0xff] %v8074
          %8160 = vst [vmem:[#allocation3 + $0xb0] sm:$0xff] %v8075
          %8161 = vst [vmem:[#allocation3 + $0xb8] sm:$0xff] %v8076
          %8162 = vst [vmem:[#allocation3 + $0xc0] sm:$0xff] %v8077
          %8163 = vst [vmem:[#allocation3 + $0xc8] sm:$0xff] %v8078
          %8164 = vst [vmem:[#allocation3 + $0xd0] sm:$0xff] %v8079
          %8165 = vst [vmem:[#allocation3 + $0xd8] sm:$0xff] %v8080
          %8166 = vst [vmem:[#allocation3 + $0xe0] sm:$0xff] %v8081
          %8167 = vst [vmem:[#allocation3 + $0xe8] sm:$0xff] %v8082
          %8168 = vst [vmem:[#allocation3 + $0xf0] sm:$0xff] %v8083
          %8169 = vst [vmem:[#allocation3 + $0xf8] sm:$0xff] %v8084
          %8170 = vst [vmem:[#allocation3 + $0x100] sm:$0xff] %v8085
          %8171 = vst [vmem:[#allocation3 + $0x108] sm:$0xff] %v8086
          %8172 = vst [vmem:[#allocation3 + $0x110] sm:$0xff] %v8087
          %8173 = vst [vmem:[#allocation3 + $0x118] sm:$0xff] %v8088
          %8174 = vst [vmem:[#allocation3 + $0x120] sm:$0xff] %v8089
          %8175 = vst [vmem:[#allocation3 + $0x128] sm:$0xff] %v8090
          %8176 = vst [vmem:[#allocation3 + $0x130] sm:$0xff] %v8091
          %8177 = vst [vmem:[#allocation3 + $0x138] sm:$0xff] %v8092
          %8178 = vst [vmem:[#allocation3 + $0x140] sm:$0xff] %v8093
          %8179 = vst [vmem:[#allocation3 + $0x148] sm:$0xff] %v8094
          %8180 = vst [vmem:[#allocation3 + $0x150] sm:$0xff] %v8095
          %8181 = vst [vmem:[#allocation3 + $0x158] sm:$0xff] %v8096
          %8182 = vst [vmem:[#allocation3 + $0x160] sm:$0xff] %v8097
          %8183 = vst [vmem:[#allocation3 + $0x168] sm:$0xff] %v8098
          %8184 = vst [vmem:[#allocation3 + $0x170] sm:$0xff] %v8099
          %8185 = vst [vmem:[#allocation3 + $0x178] sm:$0xff] %v8100
          %8186 = vst [vmem:[#allocation3 + $0x180] sm:$0xff] %v8101
          %8187 = vst [vmem:[#allocation3 + $0x188] sm:$0xff] %v8102
          %8188 = vst [vmem:[#allocation3 + $0x190] sm:$0xff] %v8103
          %8189 = vst [vmem:[#allocation3 + $0x198] sm:$0xff] %v8104
          %8190 = vst [vmem:[#allocation3 + $0x1a0] sm:$0xff] %v8105
          %8191 = vst [vmem:[#allocation3 + $0x1a8] sm:$0xff] %v8106
          %8192 = vst [vmem:[#allocation3 + $0x1b0] sm:$0xff] %v8107
          %8193 = vst [vmem:[#allocation3 + $0x1b8] sm:$0xff] %v8108
          %8194 = vst [vmem:[#allocation3 + $0x1c0] sm:$0xff] %v8109
          %8195 = vst [vmem:[#allocation3 + $0x1c8] sm:$0xff] %v8110
          %8196 = vst [vmem:[#allocation3 + $0x1d0] sm:$0xff] %v8111
          %8197 = vst [vmem:[#allocation3 + $0x1d8] sm:$0xff] %v8112
          %8198 = vst [vmem:[#allocation3 + $0x1e0] sm:$0xff] %v8113
          %8199 = vst [vmem:[#allocation3 + $0x1e8] sm:$0xff] %v8114
          %8200 = vst [vmem:[#allocation3 + $0x1f0] sm:$0xff] %v8115
          %8201 = vst [vmem:[#allocation3 + $0x1f8] sm:$0xff] %v8116
          %8202 = vst [vmem:[#allocation3 + $0x200] sm:$0xff] %v8117
          %8203 = vst [vmem:[#allocation3 + $0x208] sm:$0xff] %v8118
          %8204 = vst [vmem:[#allocation3 + $0x210] sm:$0xff] %v8119
          %8205 = vst [vmem:[#allocation3 + $0x218] sm:$0xff] %v8120
          %8206 = vst [vmem:[#allocation3 + $0x220] sm:$0xff] %v8121
          %8207 = vst [vmem:[#allocation3 + $0x228] sm:$0xff] %v8122
          %8208 = vst [vmem:[#allocation3 + $0x230] sm:$0xff] %v8123
          %8209 = vst [vmem:[#allocation3 + $0x238] sm:$0xff] %v8124
          %8210 = vst [vmem:[#allocation3 + $0x240] sm:$0xff] %v8125
          %8211 = vst [vmem:[#allocation3 + $0x248] sm:$0xff] %v8126
          %8212 = vst [vmem:[#allocation3 + $0x250] sm:$0xff] %v8127
          %8213 = vst [vmem:[#allocation3 + $0x258] sm:$0xff] %v8128
          %8214 = vst [vmem:[#allocation3 + $0x260] sm:$0xff] %v8129
          %8215 = vst [vmem:[#allocation3 + $0x268] sm:$0xff] %v8130
          %8216 = vst [vmem:[#allocation3 + $0x270] sm:$0xff] %v8131
          %8217 = vst [vmem:[#allocation3 + $0x278] sm:$0xff] %v8132
          %8218 = vst [vmem:[#allocation3 + $0x280] sm:$0xff] %v8133
        $region44: #{tpu_custom_call.1} parent=35 // pred_fallthru
          _
        %p8219 = scmp.lt.s32.totalorder %s16, 2
        // Predicated region
        $region45: #{tpu_custom_call.1} parent=35 // pred_check
          %p8220 = pneg %p8219
        $region46: #{tpu_custom_call.1} parent=35 // pred_check_branch
          %8222 = sbr.rel (%p8220) target = $region48
        $region47: #{tpu_custom_call.1} parent=35 // pred_region
          %v8223 = vld [vmem:[%s0] sm:$0xff]
          %v8224 = vld [vmem:[%s0 + $0x8] sm:$0xff]
          %v8225 = vld [vmem:[%s0 + $0x10] sm:$0xff]
          %v8226 = vld [vmem:[%s0 + $0x18] sm:$0xff]
          %v8227 = vld [vmem:[%s0 + $0x20] sm:$0xff]
          %v8228 = vld [vmem:[%s0 + $0x28] sm:$0xff]
          %v8229 = vld [vmem:[%s0 + $0x30] sm:$0xff]
          %v8230 = vld [vmem:[%s0 + $0x38] sm:$0xff]
          %v8231 = vld [vmem:[%s0 + $0x40] sm:$0xff]
          %v8232 = vld [vmem:[%s0 + $0x48] sm:$0xff]
          %v8233 = vld [vmem:[%s0 + $0x50] sm:$0xff]
          %v8234 = vld [vmem:[%s0 + $0x58] sm:$0xff]
          %v8235 = vld [vmem:[%s0 + $0x60] sm:$0xff]
          %v8236 = vld [vmem:[%s0 + $0x68] sm:$0xff]
          %v8237 = vld [vmem:[%s0 + $0x70] sm:$0xff]
          %v8238 = vld [vmem:[%s0 + $0x78] sm:$0xff]
          %v8239 = vld [vmem:[%s0 + $0x80] sm:$0xff]
          %v8240 = vld [vmem:[%s0 + $0x88] sm:$0xff]
          %v8241 = vld [vmem:[%s0 + $0x90] sm:$0xff]
          %v8242 = vld [vmem:[%s0 + $0x98] sm:$0xff]
          %v8243 = vld [vmem:[%s0 + $0xa0] sm:$0xff]
          %v8244 = vld [vmem:[%s0 + $0xa8] sm:$0xff]
          %v8245 = vld [vmem:[%s0 + $0xb0] sm:$0xff]
          %v8246 = vld [vmem:[%s0 + $0xb8] sm:$0xff]
          %v8247 = vld [vmem:[%s0 + $0xc0] sm:$0xff]
          %v8248 = vld [vmem:[%s0 + $0xc8] sm:$0xff]
          %v8249 = vld [vmem:[%s0 + $0xd0] sm:$0xff]
          %v8250 = vld [vmem:[%s0 + $0xd8] sm:$0xff]
          %v8251 = vld [vmem:[%s0 + $0xe0] sm:$0xff]
          %v8252 = vld [vmem:[%s0 + $0xe8] sm:$0xff]
          %v8253 = vld [vmem:[%s0 + $0xf0] sm:$0xff]
          %v8254 = vld [vmem:[%s0 + $0xf8] sm:$0xff]
          %v8255 = vld [vmem:[%s0 + $0x100] sm:$0xff]
          %v8256 = vld [vmem:[%s0 + $0x108] sm:$0xff]
          %v8257 = vld [vmem:[%s0 + $0x110] sm:$0xff]
          %v8258 = vld [vmem:[%s0 + $0x118] sm:$0xff]
          %v8259 = vld [vmem:[%s0 + $0x120] sm:$0xff]
          %v8260 = vld [vmem:[%s0 + $0x128] sm:$0xff]
          %v8261 = vld [vmem:[%s0 + $0x130] sm:$0xff]
          %v8262 = vld [vmem:[%s0 + $0x138] sm:$0xff]
          %v8263 = vld [vmem:[%s0 + $0x140] sm:$0xff]
          %v8264 = vld [vmem:[%s0 + $0x148] sm:$0xff]
          %v8265 = vld [vmem:[%s0 + $0x150] sm:$0xff]
          %v8266 = vld [vmem:[%s0 + $0x158] sm:$0xff]
          %v8267 = vld [vmem:[%s0 + $0x160] sm:$0xff]
          %v8268 = vld [vmem:[%s0 + $0x168] sm:$0xff]
          %v8269 = vld [vmem:[%s0 + $0x170] sm:$0xff]
          %v8270 = vld [vmem:[%s0 + $0x178] sm:$0xff]
          %v8271 = vld [vmem:[%s0 + $0x180] sm:$0xff]
          %v8272 = vld [vmem:[%s0 + $0x188] sm:$0xff]
          %v8273 = vld [vmem:[%s0 + $0x190] sm:$0xff]
          %v8274 = vld [vmem:[%s0 + $0x198] sm:$0xff]
          %v8275 = vld [vmem:[%s0 + $0x1a0] sm:$0xff]
          %v8276 = vld [vmem:[%s0 + $0x1a8] sm:$0xff]
          %v8277 = vld [vmem:[%s0 + $0x1b0] sm:$0xff]
          %v8278 = vld [vmem:[%s0 + $0x1b8] sm:$0xff]
          %v8279 = vld [vmem:[%s0 + $0x1c0] sm:$0xff]
          %v8280 = vld [vmem:[%s0 + $0x1c8] sm:$0xff]
          %v8281 = vld [vmem:[%s0 + $0x1d0] sm:$0xff]
          %v8282 = vld [vmem:[%s0 + $0x1d8] sm:$0xff]
          %v8283 = vld [vmem:[%s0 + $0x1e0] sm:$0xff]
          %v8284 = vld [vmem:[%s0 + $0x1e8] sm:$0xff]
          %v8285 = vld [vmem:[%s0 + $0x1f0] sm:$0xff]
          %v8286 = vld [vmem:[%s0 + $0x1f8] sm:$0xff]
          %v8287 = vld [vmem:[%s0 + $0x200] sm:$0xff]
          %v8288 = vld [vmem:[%s0 + $0x208] sm:$0xff]
          %v8289 = vld [vmem:[%s0 + $0x210] sm:$0xff]
          %v8290 = vld [vmem:[%s0 + $0x218] sm:$0xff]
          %v8291 = vld [vmem:[%s0 + $0x220] sm:$0xff]
          %v8292 = vld [vmem:[%s0 + $0x228] sm:$0xff]
          %v8293 = vld [vmem:[%s0 + $0x230] sm:$0xff]
          %v8294 = vld [vmem:[%s0 + $0x238] sm:$0xff]
          %v8295 = vld [vmem:[%s0 + $0x240] sm:$0xff]
          %v8296 = vld [vmem:[%s0 + $0x248] sm:$0xff]
          %v8297 = vld [vmem:[%s0 + $0x250] sm:$0xff]
          %v8298 = vld [vmem:[%s0 + $0x258] sm:$0xff]
          %v8299 = vld [vmem:[%s0 + $0x260] sm:$0xff]
          %v8300 = vld [vmem:[%s0 + $0x268] sm:$0xff]
          %v8301 = vld [vmem:[%s0 + $0x270] sm:$0xff]
          %v8302 = vld [vmem:[%s0 + $0x278] sm:$0xff]
          %v8303 = vld [vmem:[%s0 + $0x280] sm:$0xff]
          %v8304 = vadd.f32 %v8223, %v8053
          %v8305 = vadd.f32 %v8224, %v8054
          %v8306 = vadd.f32 %v8225, %v8055
          %v8307 = vadd.f32 %v8226, %v8056
          %v8308 = vadd.f32 %v8227, %v8057
          %v8309 = vadd.f32 %v8228, %v8058
          %v8310 = vadd.f32 %v8229, %v8059
          %v8311 = vadd.f32 %v8230, %v8060
          %v8312 = vadd.f32 %v8231, %v8061
          %v8313 = vadd.f32 %v8232, %v8062
          %v8314 = vadd.f32 %v8233, %v8063
          %v8315 = vadd.f32 %v8234, %v8064
          %v8316 = vadd.f32 %v8235, %v8065
          %v8317 = vadd.f32 %v8236, %v8066
          %v8318 = vadd.f32 %v8237, %v8067
          %v8319 = vadd.f32 %v8238, %v8068
          %v8320 = vadd.f32 %v8239, %v8069
          %v8321 = vadd.f32 %v8240, %v8070
          %v8322 = vadd.f32 %v8241, %v8071
          %v8323 = vadd.f32 %v8242, %v8072
          %v8324 = vadd.f32 %v8243, %v8073
          %v8325 = vadd.f32 %v8244, %v8074
          %v8326 = vadd.f32 %v8245, %v8075
          %v8327 = vadd.f32 %v8246, %v8076
          %v8328 = vadd.f32 %v8247, %v8077
          %v8329 = vadd.f32 %v8248, %v8078
          %v8330 = vadd.f32 %v8249, %v8079
          %v8331 = vadd.f32 %v8250, %v8080
          %v8332 = vadd.f32 %v8251, %v8081
          %v8333 = vadd.f32 %v8252, %v8082
          %v8334 = vadd.f32 %v8253, %v8083
          %v8335 = vadd.f32 %v8254, %v8084
          %v8336 = vadd.f32 %v8255, %v8085
          %v8337 = vadd.f32 %v8256, %v8086
          %v8338 = vadd.f32 %v8257, %v8087
          %v8339 = vadd.f32 %v8258, %v8088
          %v8340 = vadd.f32 %v8259, %v8089
          %v8341 = vadd.f32 %v8260, %v8090
          %v8342 = vadd.f32 %v8261, %v8091
          %v8343 = vadd.f32 %v8262, %v8092
          %v8344 = vadd.f32 %v8263, %v8093
          %v8345 = vadd.f32 %v8264, %v8094
          %v8346 = vadd.f32 %v8265, %v8095
          %v8347 = vadd.f32 %v8266, %v8096
          %v8348 = vadd.f32 %v8267, %v8097
          %v8349 = vadd.f32 %v8268, %v8098
          %v8350 = vadd.f32 %v8269, %v8099
          %v8351 = vadd.f32 %v8270, %v8100
          %v8352 = vadd.f32 %v8271, %v8101
          %v8353 = vadd.f32 %v8272, %v8102
          %v8354 = vadd.f32 %v8273, %v8103
          %v8355 = vadd.f32 %v8274, %v8104
          %v8356 = vadd.f32 %v8275, %v8105
          %v8357 = vadd.f32 %v8276, %v8106
          %v8358 = vadd.f32 %v8277, %v8107
          %v8359 = vadd.f32 %v8278, %v8108
          %v8360 = vadd.f32 %v8279, %v8109
          %v8361 = vadd.f32 %v8280, %v8110
          %v8362 = vadd.f32 %v8281, %v8111
          %v8363 = vadd.f32 %v8282, %v8112
          %v8364 = vadd.f32 %v8283, %v8113
          %v8365 = vadd.f32 %v8284, %v8114
          %v8366 = vadd.f32 %v8285, %v8115
          %v8367 = vadd.f32 %v8286, %v8116
          %v8368 = vadd.f32 %v8287, %v8117
          %v8369 = vadd.f32 %v8288, %v8118
          %v8370 = vadd.f32 %v8289, %v8119
          %v8371 = vadd.f32 %v8290, %v8120
          %v8372 = vadd.f32 %v8291, %v8121
          %v8373 = vadd.f32 %v8292, %v8122
          %v8374 = vadd.f32 %v8293, %v8123
          %v8375 = vadd.f32 %v8294, %v8124
          %v8376 = vadd.f32 %v8295, %v8125
          %v8377 = vadd.f32 %v8296, %v8126
          %v8378 = vadd.f32 %v8297, %v8127
          %v8379 = vadd.f32 %v8298, %v8128
          %v8380 = vadd.f32 %v8299, %v8129
          %v8381 = vadd.f32 %v8300, %v8130
          %v8382 = vadd.f32 %v8301, %v8131
          %v8383 = vadd.f32 %v8302, %v8132
          %v8384 = vadd.f32 %v8303, %v8133
          %v8385 = vmul.f32 %v8304, %v7132
          %v8386 = vmul.f32 %v8305, %v7137
          %v8387 = vmul.f32 %v8306, %v7142
          %v8388 = vmul.f32 %v8307, %v7147
          %v8389 = vmul.f32 %v8308, %v7152
          %v8390 = vmul.f32 %v8309, %v7157
          %v8391 = vmul.f32 %v8310, %v7162
          %v8392 = vmul.f32 %v8311, %v7167
          %v8393 = vmul.f32 %v8312, %v7172
          %v8394 = vmul.f32 %v8313, %v7177
          %v8395 = vmul.f32 %v8314, %v7182
          %v8396 = vmul.f32 %v8315, %v7187
          %v8397 = vmul.f32 %v8316, %v7192
          %v8398 = vmul.f32 %v8317, %v7197
          %v8399 = vmul.f32 %v8318, %v7202
          %v8400 = vmul.f32 %v8319, %v7207
          %v8401 = vmul.f32 %v8320, %v7212
          %v8402 = vmul.f32 %v8321, %v7217
          %v8403 = vmul.f32 %v8322, %v7222
          %v8404 = vmul.f32 %v8323, %v7227
          %v8405 = vmul.f32 %v8324, %v7232
          %v8406 = vmul.f32 %v8325, %v7237
          %v8407 = vmul.f32 %v8326, %v7242
          %v8408 = vmul.f32 %v8327, %v7247
          %v8409 = vmul.f32 %v8328, %v7252
          %v8410 = vmul.f32 %v8329, %v7257
          %v8411 = vmul.f32 %v8330, %v7262
          %v8412 = vmul.f32 %v8331, %v7267
          %v8413 = vmul.f32 %v8332, %v7272
          %v8414 = vmul.f32 %v8333, %v7277
          %v8415 = vmul.f32 %v8334, %v7282
          %v8416 = vmul.f32 %v8335, %v7287
          %v8417 = vmul.f32 %v8336, %v7292
          %v8418 = vmul.f32 %v8337, %v7297
          %v8419 = vmul.f32 %v8338, %v7302
          %v8420 = vmul.f32 %v8339, %v7307
          %v8421 = vmul.f32 %v8340, %v7312
          %v8422 = vmul.f32 %v8341, %v7317
          %v8423 = vmul.f32 %v8342, %v7322
          %v8424 = vmul.f32 %v8343, %v7327
          %v8425 = vmul.f32 %v8344, %v7332
          %v8426 = vmul.f32 %v8345, %v7337
          %v8427 = vmul.f32 %v8346, %v7342
          %v8428 = vmul.f32 %v8347, %v7347
          %v8429 = vmul.f32 %v8348, %v7352
          %v8430 = vmul.f32 %v8349, %v7357
          %v8431 = vmul.f32 %v8350, %v7362
          %v8432 = vmul.f32 %v8351, %v7367
          %v8433 = vmul.f32 %v8352, %v7372
          %v8434 = vmul.f32 %v8353, %v7377
          %v8435 = vmul.f32 %v8354, %v7382
          %v8436 = vmul.f32 %v8355, %v7387
          %v8437 = vmul.f32 %v8356, %v7392
          %v8438 = vmul.f32 %v8357, %v7397
          %v8439 = vmul.f32 %v8358, %v7402
          %v8440 = vmul.f32 %v8359, %v7407
          %v8441 = vmul.f32 %v8360, %v7412
          %v8442 = vmul.f32 %v8361, %v7417
          %v8443 = vmul.f32 %v8362, %v7422
          %v8444 = vmul.f32 %v8363, %v7427
          %v8445 = vmul.f32 %v8364, %v7432
          %v8446 = vmul.f32 %v8365, %v7437
          %v8447 = vmul.f32 %v8366, %v7442
          %v8448 = vmul.f32 %v8367, %v7447
          %v8449 = vmul.f32 %v8368, %v7452
          %v8450 = vmul.f32 %v8369, %v7457
          %v8451 = vmul.f32 %v8370, %v7462
          %v8452 = vmul.f32 %v8371, %v7467
          %v8453 = vmul.f32 %v8372, %v7472
          %v8454 = vmul.f32 %v8373, %v7477
          %v8455 = vmul.f32 %v8374, %v7482
          %v8456 = vmul.f32 %v8375, %v7487
          %v8457 = vmul.f32 %v8376, %v7492
          %v8458 = vmul.f32 %v8377, %v7497
          %v8459 = vmul.f32 %v8378, %v7502
          %v8460 = vmul.f32 %v8379, %v7507
          %v8461 = vmul.f32 %v8380, %v7512
          %v8462 = vmul.f32 %v8381, %v7517
          %v8463 = vmul.f32 %v8382, %v7522
          %v8464 = vmul.f32 %v8383, %v7527
          %v8465 = vmul.f32 %v8384, %v7532
          %v8466 = vpack.c.bf16 %v8385, %v8385
          %v8467 = vpack.c.bf16 %v8386, %v8386
          %v8468 = vpack.c.bf16 %v8387, %v8387
          %v8469 = vpack.c.bf16 %v8388, %v8388
          %v8470 = vpack.c.bf16 %v8389, %v8389
          %v8471 = vpack.c.bf16 %v8390, %v8390
          %v8472 = vpack.c.bf16 %v8391, %v8391
          %v8473 = vpack.c.bf16 %v8392, %v8392
          %v8474 = vpack.c.bf16 %v8393, %v8393
          %v8475 = vpack.c.bf16 %v8394, %v8394
          %v8476 = vpack.c.bf16 %v8395, %v8395
          %v8477 = vpack.c.bf16 %v8396, %v8396
          %v8478 = vpack.c.bf16 %v8397, %v8397
          %v8479 = vpack.c.bf16 %v8398, %v8398
          %v8480 = vpack.c.bf16 %v8399, %v8399
          %v8481 = vpack.c.bf16 %v8400, %v8400
          %v8482 = vpack.c.bf16 %v8401, %v8401
          %v8483 = vpack.c.bf16 %v8402, %v8402
          %v8484 = vpack.c.bf16 %v8403, %v8403
          %v8485 = vpack.c.bf16 %v8404, %v8404
          %v8486 = vpack.c.bf16 %v8405, %v8405
          %v8487 = vpack.c.bf16 %v8406, %v8406
          %v8488 = vpack.c.bf16 %v8407, %v8407
          %v8489 = vpack.c.bf16 %v8408, %v8408
          %v8490 = vpack.c.bf16 %v8409, %v8409
          %v8491 = vpack.c.bf16 %v8410, %v8410
          %v8492 = vpack.c.bf16 %v8411, %v8411
          %v8493 = vpack.c.bf16 %v8412, %v8412
          %v8494 = vpack.c.bf16 %v8413, %v8413
          %v8495 = vpack.c.bf16 %v8414, %v8414
          %v8496 = vpack.c.bf16 %v8415, %v8415
          %v8497 = vpack.c.bf16 %v8416, %v8416
          %v8498 = vpack.c.bf16 %v8417, %v8417
          %v8499 = vpack.c.bf16 %v8418, %v8418
          %v8500 = vpack.c.bf16 %v8419, %v8419
          %v8501 = vpack.c.bf16 %v8420, %v8420
          %v8502 = vpack.c.bf16 %v8421, %v8421
          %v8503 = vpack.c.bf16 %v8422, %v8422
          %v8504 = vpack.c.bf16 %v8423, %v8423
          %v8505 = vpack.c.bf16 %v8424, %v8424
          %v8506 = vpack.c.bf16 %v8425, %v8425
          %v8507 = vpack.c.bf16 %v8426, %v8426
          %v8508 = vpack.c.bf16 %v8427, %v8427
          %v8509 = vpack.c.bf16 %v8428, %v8428
          %v8510 = vpack.c.bf16 %v8429, %v8429
          %v8511 = vpack.c.bf16 %v8430, %v8430
          %v8512 = vpack.c.bf16 %v8431, %v8431
          %v8513 = vpack.c.bf16 %v8432, %v8432
          %v8514 = vpack.c.bf16 %v8433, %v8433
          %v8515 = vpack.c.bf16 %v8434, %v8434
          %v8516 = vpack.c.bf16 %v8435, %v8435
          %v8517 = vpack.c.bf16 %v8436, %v8436
          %v8518 = vpack.c.bf16 %v8437, %v8437
          %v8519 = vpack.c.bf16 %v8438, %v8438
          %v8520 = vpack.c.bf16 %v8439, %v8439
          %v8521 = vpack.c.bf16 %v8440, %v8440
          %v8522 = vpack.c.bf16 %v8441, %v8441
          %v8523 = vpack.c.bf16 %v8442, %v8442
          %v8524 = vpack.c.bf16 %v8443, %v8443
          %v8525 = vpack.c.bf16 %v8444, %v8444
          %v8526 = vpack.c.bf16 %v8445, %v8445
          %v8527 = vpack.c.bf16 %v8446, %v8446
          %v8528 = vpack.c.bf16 %v8447, %v8447
          %v8529 = vpack.c.bf16 %v8448, %v8448
          %v8530 = vpack.c.bf16 %v8449, %v8449
          %v8531 = vpack.c.bf16 %v8450, %v8450
          %v8532 = vpack.c.bf16 %v8451, %v8451
          %v8533 = vpack.c.bf16 %v8452, %v8452
          %v8534 = vpack.c.bf16 %v8453, %v8453
          %v8535 = vpack.c.bf16 %v8454, %v8454
          %v8536 = vpack.c.bf16 %v8455, %v8455
          %v8537 = vpack.c.bf16 %v8456, %v8456
          %v8538 = vpack.c.bf16 %v8457, %v8457
          %v8539 = vpack.c.bf16 %v8458, %v8458
          %v8540 = vpack.c.bf16 %v8459, %v8459
          %v8541 = vpack.c.bf16 %v8460, %v8460
          %v8542 = vpack.c.bf16 %v8461, %v8461
          %v8543 = vpack.c.bf16 %v8462, %v8462
          %v8544 = vpack.c.bf16 %v8463, %v8463
          %v8545 = vpack.c.bf16 %v8464, %v8464
          %v8546 = vpack.c.bf16 %v8465, %v8465
          %vm8547 = vcmask 27648
          %8548 = vst.msk [vmem:[#allocation2 + $0x10] sm:$0xf] %vm8547, %v8466
          %8549 = vst.msk [vmem:[#allocation2 + $0x14] sm:$0xf] %vm8547, %v8467
          %8550 = vst.msk [vmem:[#allocation2 + $0x18] sm:$0xf] %vm8547, %v8468
          %8551 = vst.msk [vmem:[#allocation2 + $0x1c] sm:$0xf] %vm8547, %v8469
          %8552 = vst.msk [vmem:[#allocation2 + $0x20] sm:$0xf] %vm8547, %v8470
          %8553 = vst.msk [vmem:[#allocation2 + $0x24] sm:$0xf] %vm8547, %v8471
          %8554 = vst.msk [vmem:[#allocation2 + $0x28] sm:$0xf] %vm8547, %v8472
          %8555 = vst.msk [vmem:[#allocation2 + $0x2c] sm:$0xf] %vm8547, %v8473
          %8556 = vst.msk [vmem:[#allocation2 + $0x30] sm:$0xf] %vm8547, %v8474
          %8557 = vst.msk [vmem:[#allocation2 + $0x34] sm:$0xf] %vm8547, %v8475
          %8558 = vst.msk [vmem:[#allocation2 + $0x38] sm:$0xf] %vm8547, %v8476
          %8559 = vst.msk [vmem:[#allocation2 + $0x3c] sm:$0xf] %vm8547, %v8477
          %8560 = vst.msk [vmem:[#allocation2 + $0x40] sm:$0xf] %vm8547, %v8478
          %8561 = vst.msk [vmem:[#allocation2 + $0x44] sm:$0xf] %vm8547, %v8479
          %8562 = vst.msk [vmem:[#allocation2 + $0x48] sm:$0xf] %vm8547, %v8480
          %8563 = vst.msk [vmem:[#allocation2 + $0x4c] sm:$0xf] %vm8547, %v8481
          %8564 = vst.msk [vmem:[#allocation2 + $0x50] sm:$0xf] %vm8547, %v8482
          %8565 = vst.msk [vmem:[#allocation2 + $0x54] sm:$0xf] %vm8547, %v8483
          %8566 = vst.msk [vmem:[#allocation2 + $0x58] sm:$0xf] %vm8547, %v8484
          %8567 = vst.msk [vmem:[#allocation2 + $0x5c] sm:$0xf] %vm8547, %v8485
          %8568 = vst.msk [vmem:[#allocation2 + $0x60] sm:$0xf] %vm8547, %v8486
          %8569 = vst.msk [vmem:[#allocation2 + $0x64] sm:$0xf] %vm8547, %v8487
          %8570 = vst.msk [vmem:[#allocation2 + $0x68] sm:$0xf] %vm8547, %v8488
          %8571 = vst.msk [vmem:[#allocation2 + $0x6c] sm:$0xf] %vm8547, %v8489
          %8572 = vst.msk [vmem:[#allocation2 + $0x70] sm:$0xf] %vm8547, %v8490
          %8573 = vst.msk [vmem:[#allocation2 + $0x74] sm:$0xf] %vm8547, %v8491
          %8574 = vst.msk [vmem:[#allocation2 + $0x78] sm:$0xf] %vm8547, %v8492
          %8575 = vst.msk [vmem:[#allocation2 + $0x7c] sm:$0xf] %vm8547, %v8493
          %8576 = vst.msk [vmem:[#allocation2 + $0x80] sm:$0xf] %vm8547, %v8494
          %8577 = vst.msk [vmem:[#allocation2 + $0x84] sm:$0xf] %vm8547, %v8495
          %8578 = vst.msk [vmem:[#allocation2 + $0x88] sm:$0xf] %vm8547, %v8496
          %8579 = vst.msk [vmem:[#allocation2 + $0x8c] sm:$0xf] %vm8547, %v8497
          %8580 = vst.msk [vmem:[#allocation2 + $0x90] sm:$0xf] %vm8547, %v8498
          %8581 = vst.msk [vmem:[#allocation2 + $0x94] sm:$0xf] %vm8547, %v8499
          %8582 = vst.msk [vmem:[#allocation2 + $0x98] sm:$0xf] %vm8547, %v8500
          %8583 = vst.msk [vmem:[#allocation2 + $0x9c] sm:$0xf] %vm8547, %v8501
          %8584 = vst.msk [vmem:[#allocation2 + $0xa0] sm:$0xf] %vm8547, %v8502
          %8585 = vst.msk [vmem:[#allocation2 + $0xa4] sm:$0xf] %vm8547, %v8503
          %8586 = vst.msk [vmem:[#allocation2 + $0xa8] sm:$0xf] %vm8547, %v8504
          %8587 = vst.msk [vmem:[#allocation2 + $0xac] sm:$0xf] %vm8547, %v8505
          %8588 = vst.msk [vmem:[#allocation2 + $0xb0] sm:$0xf] %vm8547, %v8506
          %8589 = vst.msk [vmem:[#allocation2 + $0xb4] sm:$0xf] %vm8547, %v8507
          %8590 = vst.msk [vmem:[#allocation2 + $0xb8] sm:$0xf] %vm8547, %v8508
          %8591 = vst.msk [vmem:[#allocation2 + $0xbc] sm:$0xf] %vm8547, %v8509
          %8592 = vst.msk [vmem:[#allocation2 + $0xc0] sm:$0xf] %vm8547, %v8510
          %8593 = vst.msk [vmem:[#allocation2 + $0xc4] sm:$0xf] %vm8547, %v8511
          %8594 = vst.msk [vmem:[#allocation2 + $0xc8] sm:$0xf] %vm8547, %v8512
          %8595 = vst.msk [vmem:[#allocation2 + $0xcc] sm:$0xf] %vm8547, %v8513
          %8596 = vst.msk [vmem:[#allocation2 + $0xd0] sm:$0xf] %vm8547, %v8514
          %8597 = vst.msk [vmem:[#allocation2 + $0xd4] sm:$0xf] %vm8547, %v8515
          %8598 = vst.msk [vmem:[#allocation2 + $0xd8] sm:$0xf] %vm8547, %v8516
          %8599 = vst.msk [vmem:[#allocation2 + $0xdc] sm:$0xf] %vm8547, %v8517
          %8600 = vst.msk [vmem:[#allocation2 + $0xe0] sm:$0xf] %vm8547, %v8518
          %8601 = vst.msk [vmem:[#allocation2 + $0xe4] sm:$0xf] %vm8547, %v8519
          %8602 = vst.msk [vmem:[#allocation2 + $0xe8] sm:$0xf] %vm8547, %v8520
          %8603 = vst.msk [vmem:[#allocation2 + $0xec] sm:$0xf] %vm8547, %v8521
          %8604 = vst.msk [vmem:[#allocation2 + $0xf0] sm:$0xf] %vm8547, %v8522
          %8605 = vst.msk [vmem:[#allocation2 + $0xf4] sm:$0xf] %vm8547, %v8523
          %8606 = vst.msk [vmem:[#allocation2 + $0xf8] sm:$0xf] %vm8547, %v8524
          %8607 = vst.msk [vmem:[#allocation2 + $0xfc] sm:$0xf] %vm8547, %v8525
          %8608 = vst.msk [vmem:[#allocation2 + $0x100] sm:$0xf] %vm8547, %v8526
          %8609 = vst.msk [vmem:[#allocation2 + $0x104] sm:$0xf] %vm8547, %v8527
          %8610 = vst.msk [vmem:[#allocation2 + $0x108] sm:$0xf] %vm8547, %v8528
          %8611 = vst.msk [vmem:[#allocation2 + $0x10c] sm:$0xf] %vm8547, %v8529
          %8612 = vst.msk [vmem:[#allocation2 + $0x110] sm:$0xf] %vm8547, %v8530
          %8613 = vst.msk [vmem:[#allocation2 + $0x114] sm:$0xf] %vm8547, %v8531
          %8614 = vst.msk [vmem:[#allocation2 + $0x118] sm:$0xf] %vm8547, %v8532
          %8615 = vst.msk [vmem:[#allocation2 + $0x11c] sm:$0xf] %vm8547, %v8533
          %8616 = vst.msk [vmem:[#allocation2 + $0x120] sm:$0xf] %vm8547, %v8534
          %8617 = vst.msk [vmem:[#allocation2 + $0x124] sm:$0xf] %vm8547, %v8535
          %8618 = vst.msk [vmem:[#allocation2 + $0x128] sm:$0xf] %vm8547, %v8536
          %8619 = vst.msk [vmem:[#allocation2 + $0x12c] sm:$0xf] %vm8547, %v8537
          %8620 = vst.msk [vmem:[#allocation2 + $0x130] sm:$0xf] %vm8547, %v8538
          %8621 = vst.msk [vmem:[#allocation2 + $0x134] sm:$0xf] %vm8547, %v8539
          %8622 = vst.msk [vmem:[#allocation2 + $0x138] sm:$0xf] %vm8547, %v8540
          %8623 = vst.msk [vmem:[#allocation2 + $0x13c] sm:$0xf] %vm8547, %v8541
          %8624 = vst.msk [vmem:[#allocation2 + $0x140] sm:$0xf] %vm8547, %v8542
          %8625 = vst.msk [vmem:[#allocation2 + $0x144] sm:$0xf] %vm8547, %v8543
          %8626 = vst.msk [vmem:[#allocation2 + $0x148] sm:$0xf] %vm8547, %v8544
          %8627 = vst.msk [vmem:[#allocation2 + $0x14c] sm:$0xf] %vm8547, %v8545
          %8628 = vst.msk [vmem:[#allocation2 + $0x150] sm:$0xf] %vm8547, %v8546
        $region48: #{tpu_custom_call.1} parent=35 // pred_fallthru
          _
        // Predicated region
        $region49: #{tpu_custom_call.1} parent=35 // pred_check
          %p8629 = pneg %p113
        $region50: #{tpu_custom_call.1} parent=35 // pred_check_branch
          %8631 = sbr.rel (%p8629) target = $region52
        $region51: #{tpu_custom_call.1} parent=35 // pred_region
          %8633 = vsyncadd [#allocation4], 0
          %s8634 = sshll.u32 [#allocation3], 4
          %s8635 = int_to_ptr.vmem [resolvable:$true] %s8634
          %s8636 = sshll.u32 %s4, 4
          %s8637 = int_to_ptr.hbm [resolvable:$true] %s8636
          %8642 = dma.vmem_to_hbm [thread:$0]  %s8635, 10368, %s8637, [#allocation4], 128, 128, 8
        $region52: #{tpu_custom_call.1} parent=35 // pred_fallthru
          _
        // Predicated region
        $region53: #{tpu_custom_call.1} parent=35 // pred_check
          %p8643 = pneg %p113
        $region54: #{tpu_custom_call.1} parent=35 // pred_check_branch
          %8645 = sbr.rel (%p8643) target = $region56
        $region55: #{tpu_custom_call.1} parent=35 // pred_region
          %8647 = dma.done [#allocation4], 10368
        $region56: #{tpu_custom_call.1} parent=35 // pred_fallthru
          _
      $region36: #{tpu_custom_call.1} parent=5 // pred_fallthru
        _
      %p8648 = scmp.le.s32.totalorder 2, %s11
      // Predicated region
      $region57: #{tpu_custom_call.1} parent=5 // pred_check
        %p8649 = pneg %p8648
      $region58: #{tpu_custom_call.1} parent=5 // pred_check_branch
        %8651 = sbr.rel (%p8649) target = $region60
      $region59: #{tpu_custom_call.1} parent=5 // pred_region
        %s8652 = ssub.s32 %s11, 2
      $region60: #{tpu_custom_call.1} parent=5 // pred_fallthru
        _
    $region6: #{tpu_custom_call.1} parent=1 // loop_footer
      %s15 = sadd.s32 1, %s11
    $region7: #{tpu_custom_call.1} parent=1 // loop_footer_branch
      %10 = sbr.rel target = $region3
    $region8: #{tpu_custom_call.1} parent=1 // loop_exit
      _
    %8653 = vsyncpa [#allocation4], 1
    %s8654 = scalar_lea.sflag [#allocation4], 1
    %8655 = vsyncpa %s8654, 1

</llo_original>
